<compile_context>
chip_gen: v6e
topology: v6e:2x2x1
jax: 0.10.0
libtpu: 0.0.40
codegen_flags: <defaults>
</compile_context>

<pallas_src>
import jax
import jax.numpy as jnp
from jax.experimental import pallas as pl
from jax.experimental.pallas import tpu as pltpu

# ---------------- model hyper-parameters (from the PyTorch module) -------------
EMBEDDING_DIM = 64
HIDDEN_DIM = 256
NO_LAYERS = 2
OUTPUT_DIM = 1
VOCAB_SIZE = 50          # len(vocab) + 1  (synthetic vocab)

BATCH = 2
SEQ_LEN = 8

PAD_BATCH = 8            # pad batch to f32 sublane tile (8)
FC_PAD = 128             # lane-dense classifier output (unmasked store)


# ------------------------------- fused Pallas kernel ---------------------------
def fused_lstm_kernel(x_ref, wih0_ref, whh0_ref, b0_ref,
                      wih1_ref, whh1_ref, b1_ref, fcw_ref, fcb_ref,
                      h0_ref, c0_ref,
                      sig_ref, hN_ref, cN_ref,
                      xg_ref):
    """Entire forward pass in one kernel invocation (grid=(1,)).

    x_ref   : (T*Bp, E)   bf16, time-major, batch-padded, flattened embeddings
    wih0_ref: (E, 4H)     bf16, layer-0 input weights (transposed)
    whh0_ref: (H, 4H)     bf16, layer-0 recurrent weights (transposed)
    b0_ref  : (1, 4H)     f32,  layer-0 bias (b_ih + b_hh)
    wih1_ref: (H, 4H)     bf16, layer-1 input weights (transposed)
    whh1_ref: (H, 4H)     bf16, layer-1 recurrent weights (transposed)
    b1_ref  : (1, 4H)     f32,  layer-1 bias
    fcw_ref : (1, H)      f32,  classifier weight row
    fcb_ref : (1, 1)      f32,  classifier bias
    h0_ref  : (2, Bp, H)  f32,  initial hidden states (both layers)
    c0_ref  : (2, Bp, H)  f32,  initial cell states
    sig_ref : (Bp, 128)   f32,  sigmoid(fc(h_T of top layer))   [output]
    hN_ref  : (2, Bp, H)  f32,  final hidden states              [output, aliases h0]
    cN_ref  : (2, Bp, H)  f32,  final cell states                [output, aliases c0]
    xg_ref  : (T*Bp, 4H)  f32,  VMEM scratch for the hoisted input projection
    """
    H = HIDDEN_DIM
    Bp = PAD_BATCH
    T = SEQ_LEN

    # ---- prologue: layer-0 input projection for all T timesteps in one matmul,
    #      staged in VMEM scratch (not kept live across the unrolled loop).
    xg_ref[...] = (jnp.dot(x_ref[...], wih0_ref[...],
                           preferred_element_type=jnp.float32)
                   + b0_ref[...])                              # (T*Bp, 4H) f32

    # ---- hoisted bias broadcast (one broadcast, not 8)
    b1_b = jnp.broadcast_to(b1_ref[...], (Bp, 4 * H))          # (Bp, 4H) f32

    h0 = h0_ref[0]                                             # (Bp, H) f32
    c0 = c0_ref[0]
    h1 = h0_ref[1]
    c1 = c0_ref[1]

    def gate_math(gates, c_prev):
        # PyTorch gate order: i, f, g, o  (all math in f32)
        i_g = jax.nn.sigmoid(gates[:, 0 * H:1 * H])
        f_g = jax.nn.sigmoid(gates[:, 1 * H:2 * H])
        g_g = jnp.tanh(gates[:, 2 * H:3 * H])
        o_g = jax.nn.sigmoid(gates[:, 3 * H:4 * H])
        c_new = f_g * c_prev + i_g * g_g
        h_new = o_g * jnp.tanh(c_new)
        return h_new, c_new

    # Statically unrolled time loop; both layers advance in lockstep so no
    # (T, B, H) intermediate ever leaves VMEM.
    for t in range(T):
        # ---- layer 0: recurrent matmul only (input part precomputed above)
        xg_t = xg_ref[pl.ds(t * Bp, Bp), :]                    # (Bp, 4H) f32
        gates0 = xg_t + jnp.dot(h0.astype(jnp.bfloat16), whh0_ref[...],
                                preferred_element_type=jnp.float32)
        h0, c0 = gate_math(gates0, c0)

        # ---- layer 1: two accumulated dots (no per-step lane concat)
        gates1 = (jnp.dot(h0.astype(jnp.bfloat16), wih1_ref[...],
                          preferred_element_type=jnp.float32)
                  + jnp.dot(h1.astype(jnp.bfloat16), whh1_ref[...],
                            preferred_element_type=jnp.float32)
                  + b1_b)
        h1, c1 = gate_math(gates1, c1)

    hN_ref[0] = h0
    hN_ref[1] = h1
    cN_ref[0] = c0
    cN_ref[1] = c1

    # ---- classifier head on the last top-layer hidden state (dropout = identity).
    #      OUTPUT_DIM == 1 -> VPU multiply + XLU lane reduction, no MXU / padded weight.
    fc_val = (jnp.sum(h1 * fcw_ref[...], axis=1, keepdims=True)
              + fcb_ref[...])                                  # (Bp, 1) f32
    sig_ref[...] = jnp.broadcast_to(jax.nn.sigmoid(fc_val), (Bp, FC_PAD))


# ------------------------------- wrapper ----------------------------------------
def model_predict(params, x_tokens, hidden):
    """Matches Model_predict.forward: returns (sig_out[:, -1], (h_n, c_n))."""
    h0_all, c0_all = hidden                                    # (L, B, H)
    B, T = x_tokens.shape
    Bp = PAD_BATCH
    H = HIDDEN_DIM
    E = EMBEDDING_DIM

    # Embedding lookup (glue; gather stays in plain JAX).
    embeds = jnp.take(params["embedding"], x_tokens, axis=0)   # (B, T, E) f32
    x_tbe = jnp.transpose(embeds, (1, 0, 2))                   # (T, B, E) time-major
    x_pad = jnp.pad(x_tbe, ((0, 0), (0, Bp - B), (0, 0)))      # (T, Bp, E)
    x_flat = x_pad.reshape(T * Bp, E).astype(jnp.bfloat16)     # (T*Bp, E) bf16

    h0_pad = jnp.pad(h0_all, ((0, 0), (0, Bp - B), (0, 0)))    # (L, Bp, H) f32
    c0_pad = jnp.pad(c0_all, ((0, 0), (0, Bp - B), (0, 0)))

    grid_spec = pltpu.PrefetchScalarGridSpec(
        num_scalar_prefetch=0,
        grid=(1,),
        in_specs=[
            pl.BlockSpec((T * Bp, E), lambda i: (0, 0)),            # x (bf16)
            pl.BlockSpec((E, 4 * H), lambda i: (0, 0)),             # W_ih0^T (bf16)
            pl.BlockSpec((H, 4 * H), lambda i: (0, 0)),             # W_hh0^T (bf16)
            pl.BlockSpec((1, 4 * H), lambda i: (0, 0)),             # b0 (f32)
            pl.BlockSpec((H, 4 * H), lambda i: (0, 0)),             # W_ih1^T (bf16)
            pl.BlockSpec((H, 4 * H), lambda i: (0, 0)),             # W_hh1^T (bf16)
            pl.BlockSpec((1, 4 * H), lambda i: (0, 0)),             # b1 (f32)
            pl.BlockSpec((1, H), lambda i: (0, 0)),                 # fc W row (f32)
            pl.BlockSpec((1, 1), lambda i: (0, 0)),                 # fc b (f32)
            pl.BlockSpec((NO_LAYERS, Bp, H), lambda i: (0, 0, 0)),  # h0
            pl.BlockSpec((NO_LAYERS, Bp, H), lambda i: (0, 0, 0)),  # c0
        ],
        out_specs=(
            pl.BlockSpec((Bp, FC_PAD), lambda i: (0, 0)),           # sigmoid out
            pl.BlockSpec((NO_LAYERS, Bp, H), lambda i: (0, 0, 0)),  # h_n
            pl.BlockSpec((NO_LAYERS, Bp, H), lambda i: (0, 0, 0)),  # c_n
        ),
        scratch_shapes=[
            pltpu.VMEM((T * Bp, 4 * H), jnp.float32),               # staged x @ W_ih0^T
        ],
    )
    out_shapes = (
        jax.ShapeDtypeStruct((Bp, FC_PAD), jnp.float32),
        jax.ShapeDtypeStruct((NO_LAYERS, Bp, H), jnp.float32),
        jax.ShapeDtypeStruct((NO_LAYERS, Bp, H), jnp.float32),
    )

    sig_pad, hN_pad, cN_pad = pl.pallas_call(
        fused_lstm_kernel,
        out_shape=out_shapes,
        grid_spec=grid_spec,
        # h0_pad (arg 9) -> h_n (out 1), c0_pad (arg 10) -> c_n (out 2)
        input_output_aliases={9: 1, 10: 2},
        compiler_params=pltpu.CompilerParams(
            dimension_semantics=("arbitrary",)),
    )(x_flat, params["wih0_t"], params["whh0_t"], params["b0"],
      params["wih1_t"], params["whh1_t"], params["b1"],
      params["fc_w"], params["fc_b"],
      h0_pad, c0_pad)

    sig_out = sig_pad[:B, 0]                                   # (B,)  == sig_out[:, -1]
    hidden_out = (hN_pad[:, :B, :], cN_pad[:, :B, :])
    return sig_out, hidden_out


# ------------------------------- parameter init ---------------------------------
def init_params(key):
    """Deterministic parameter init mimicking PyTorch shapes / layouts."""
    ks = jax.random.split(key, 16)
    scale = 1.0 / jnp.sqrt(HIDDEN_DIM)
    H = HIDDEN_DIM
    params = {}
    params["embedding"] = jax.random.normal(
        ks[0], (VOCAB_SIZE, EMBEDDING_DIM), jnp.float32)

    ki = 1
    # ---- layer 0 (weights stored bf16; biases f32)
    wih0 = jax.random.uniform(ks[ki], (4 * H, EMBEDDING_DIM),
                              jnp.float32, -scale, scale); ki += 1
    whh0 = jax.random.uniform(ks[ki], (4 * H, H),
                              jnp.float32, -scale, scale); ki += 1
    bih0 = jax.random.uniform(ks[ki], (4 * H,), jnp.float32, -scale, scale); ki += 1
    bhh0 = jax.random.uniform(ks[ki], (4 * H,), jnp.float32, -scale, scale); ki += 1
    params["wih0_t"] = wih0.T.astype(jnp.bfloat16)             # (E, 4H) bf16
    params["whh0_t"] = whh0.T.astype(jnp.bfloat16)             # (H, 4H) bf16
    params["b0"] = (bih0 + bhh0).reshape(1, 4 * H)             # (1, 4H) f32

    # ---- layer 1
    wih1 = jax.random.uniform(ks[ki], (4 * H, H),
                              jnp.float32, -scale, scale); ki += 1
    whh1 = jax.random.uniform(ks[ki], (4 * H, H),
                              jnp.float32, -scale, scale); ki += 1
    bih1 = jax.random.uniform(ks[ki], (4 * H,), jnp.float32, -scale, scale); ki += 1
    bhh1 = jax.random.uniform(ks[ki], (4 * H,), jnp.float32, -scale, scale); ki += 1
    params["wih1_t"] = wih1.T.astype(jnp.bfloat16)             # (H, 4H) bf16
    params["whh1_t"] = whh1.T.astype(jnp.bfloat16)             # (H, 4H) bf16
    params["b1"] = (bih1 + bhh1).reshape(1, 4 * H)             # (1, 4H) f32

    # ---- classifier head (OUTPUT_DIM = 1 -> one weight row, scalar bias; f32)
    w_fc = jax.random.uniform(ks[ki], (OUTPUT_DIM, H),
                              jnp.float32, -scale, scale); ki += 1
    b_fc = jax.random.uniform(ks[ki], (OUTPUT_DIM,),
                              jnp.float32, -scale, scale)
    params["fc_w"] = w_fc.reshape(1, H)                        # (1, H) f32
    params["fc_b"] = b_fc.reshape(1, 1)                        # (1, 1) f32
    return params


if __name__ == "__main__":
    key = jax.random.PRNGKey(0)
    k_param, k_tok = jax.random.split(key)

    params = init_params(k_param)
    x_tokens = jax.random.randint(k_tok, (BATCH, SEQ_LEN), 0, VOCAB_SIZE,
                                  dtype=jnp.int32)
    hidden = (jnp.zeros((NO_LAYERS, BATCH, HIDDEN_DIM), jnp.float32),
              jnp.zeros((NO_LAYERS, BATCH, HIDDEN_DIM), jnp.float32))

    sig_out, (h_n, c_n) = model_predict(params, x_tokens, hidden)
    jax.block_until_ready((sig_out, h_n, c_n))

    assert sig_out.shape == (BATCH,)
    assert h_n.shape == (NO_LAYERS, BATCH, HIDDEN_DIM)
    assert c_n.shape == (NO_LAYERS, BATCH, HIDDEN_DIM)
    print("KERNEL_OK")
</pallas_src>

<mosaic_0001>
module attributes {stable_mosaic.version = 11 : i64} {
  func.func @fused_lstm_kernel(%arg0: i32, %arg1: memref<64x64xbf16, #tpu.memory_space<vmem>>, %arg2: memref<64x1024xbf16, #tpu.memory_space<vmem>>, %arg3: memref<256x1024xbf16, #tpu.memory_space<vmem>>, %arg4: memref<1x1024xf32, #tpu.memory_space<vmem>>, %arg5: memref<256x1024xbf16, #tpu.memory_space<vmem>>, %arg6: memref<256x1024xbf16, #tpu.memory_space<vmem>>, %arg7: memref<1x1024xf32, #tpu.memory_space<vmem>>, %arg8: memref<1x256xf32, #tpu.memory_space<vmem>>, %arg9: memref<1x1xf32, #tpu.memory_space<vmem>>, %arg10: memref<2x8x256xf32, #tpu.memory_space<vmem>>, %arg11: memref<2x8x256xf32, #tpu.memory_space<vmem>>, %arg12: memref<8x128xf32, #tpu.memory_space<vmem>>, %arg13: memref<2x8x256xf32, #tpu.memory_space<vmem>>, %arg14: memref<2x8x256xf32, #tpu.memory_space<vmem>>, %arg15: memref<64x1024xf32, #tpu.memory_space<vmem>>) attributes {dimension_semantics = [#tpu.dimension_semantics<arbitrary>], iteration_bounds = array<i64: 1>, scalar_prefetch = 0 : i64, scratch_operands = 1 : i64, tpu.core_type = #tpu.core_type<tc>, window_params = [{pipeline_mode = #tpu.pipeline_mode<synchronous>, transform_indices = @transform_0, window_bounds = array<i64: 64, 64>}, {pipeline_mode = #tpu.pipeline_mode<synchronous>, transform_indices = @transform_1, window_bounds = array<i64: 64, 1024>}, {pipeline_mode = #tpu.pipeline_mode<synchronous>, transform_indices = @transform_2, window_bounds = array<i64: 256, 1024>}, {pipeline_mode = #tpu.pipeline_mode<synchronous>, transform_indices = @transform_3, window_bounds = array<i64: 1, 1024>}, {pipeline_mode = #tpu.pipeline_mode<synchronous>, transform_indices = @transform_4, window_bounds = array<i64: 256, 1024>}, {pipeline_mode = #tpu.pipeline_mode<synchronous>, transform_indices = @transform_5, window_bounds = array<i64: 256, 1024>}, {pipeline_mode = #tpu.pipeline_mode<synchronous>, transform_indices = @transform_6, window_bounds = array<i64: 1, 1024>}, {pipeline_mode = #tpu.pipeline_mode<synchronous>, transform_indices = @transform_7, window_bounds = array<i64: 1, 256>}, {pipeline_mode = #tpu.pipeline_mode<synchronous>, transform_indices = @transform_8, window_bounds = array<i64: 1, 1>}, {pipeline_mode = #tpu.pipeline_mode<synchronous>, transform_indices = @transform_9, window_bounds = array<i64: 2, 8, 256>}, {pipeline_mode = #tpu.pipeline_mode<synchronous>, transform_indices = @transform_10, window_bounds = array<i64: 2, 8, 256>}, {pipeline_mode = #tpu.pipeline_mode<synchronous>, transform_indices = @transform_11, window_bounds = array<i64: 8, 128>}, {pipeline_mode = #tpu.pipeline_mode<synchronous>, transform_indices = @transform_12, window_bounds = array<i64: 2, 8, 256>}, {pipeline_mode = #tpu.pipeline_mode<synchronous>, transform_indices = @transform_13, window_bounds = array<i64: 2, 8, 256>}]} {
    %c0 = arith.constant 0 : index
    %c0_0 = arith.constant 0 : index
    %0 = vector.load %arg1[%c0, %c0_0] : memref<64x64xbf16, #tpu.memory_space<vmem>>, vector<64x64xbf16>
    %c0_1 = arith.constant 0 : index
    %c0_2 = arith.constant 0 : index
    %1 = vector.load %arg2[%c0_1, %c0_2] : memref<64x1024xbf16, #tpu.memory_space<vmem>>, vector<64x1024xbf16>
    %cst = arith.constant dense<0.000000e+00> : vector<64x1024xf32>
    %2 = tpu.matmul %0, %1, %cst {dimension_numbers = #tpu.dot_dimension_numbers<[1], [0], [0], [1], [0, 0, 1, 1], [], []>} : vector<64x64xbf16>, vector<64x1024xbf16>, vector<64x1024xf32> -> vector<64x1024xf32>
    %c0_3 = arith.constant 0 : index
    %c0_4 = arith.constant 0 : index
    %3 = vector.load %arg4[%c0_3, %c0_4] : memref<1x1024xf32, #tpu.memory_space<vmem>>, vector<1x1024xf32>
    %4 = vector.broadcast %3 : vector<1x1024xf32> to vector<64x1024xf32>
    %5 = arith.addf %2, %4 : vector<64x1024xf32>
    %c0_5 = arith.constant 0 : index
    %c0_6 = arith.constant 0 : index
    %6 = vector.load %arg15[%c0_5, %c0_6] : memref<64x1024xf32, #tpu.memory_space<vmem>>, vector<64x1024xf32>
    tpu.vector_store %arg15[%c0_5, %c0_6], %5 {strides = array<i32>} : memref<64x1024xf32, #tpu.memory_space<vmem>>, vector<64x1024xf32>,
    %c0_7 = arith.constant 0 : index
    %c0_8 = arith.constant 0 : index
    %7 = vector.load %arg7[%c0_7, %c0_8] : memref<1x1024xf32, #tpu.memory_space<vmem>>, vector<1x1024xf32>
    %8 = vector.shape_cast %7 : vector<1x1024xf32> to vector<1x1024xf32>
    %9 = vector.broadcast %8 : vector<1x1024xf32> to vector<8x1024xf32>
    %c0_9 = arith.constant 0 : index
    %c0_10 = arith.constant 0 : index
    %c0_11 = arith.constant 0 : index
    %10 = vector.load %arg10[%c0_9, %c0_10, %c0_11] : memref<2x8x256xf32, #tpu.memory_space<vmem>>, vector<1x8x256xf32>
    %11 = vector.shape_cast %10 : vector<1x8x256xf32> to vector<8x256xf32>
    %c0_12 = arith.constant 0 : index
    %c0_13 = arith.constant 0 : index
    %c0_14 = arith.constant 0 : index
    %12 = vector.load %arg11[%c0_12, %c0_13, %c0_14] : memref<2x8x256xf32, #tpu.memory_space<vmem>>, vector<1x8x256xf32>
    %13 = vector.shape_cast %12 : vector<1x8x256xf32> to vector<8x256xf32>
    %c1 = arith.constant 1 : index
    %c0_15 = arith.constant 0 : index
    %c0_16 = arith.constant 0 : index
    %14 = vector.load %arg10[%c1, %c0_15, %c0_16] : memref<2x8x256xf32, #tpu.memory_space<vmem>>, vector<1x8x256xf32>
    %15 = vector.shape_cast %14 : vector<1x8x256xf32> to vector<8x256xf32>
    %c1_17 = arith.constant 1 : index
    %c0_18 = arith.constant 0 : index
    %c0_19 = arith.constant 0 : index
    %16 = vector.load %arg11[%c1_17, %c0_18, %c0_19] : memref<2x8x256xf32, #tpu.memory_space<vmem>>, vector<1x8x256xf32>
    %17 = vector.shape_cast %16 : vector<1x8x256xf32> to vector<8x256xf32>
    %c0_20 = arith.constant 0 : index
    %c0_21 = arith.constant 0 : index
    %18 = vector.load %arg15[%c0_20, %c0_21] : memref<64x1024xf32, #tpu.memory_space<vmem>>, vector<8x1024xf32>
    %19 = arith.truncf %11 : vector<8x256xf32> to vector<8x256xbf16>
    %c0_22 = arith.constant 0 : index
    %c0_23 = arith.constant 0 : index
    %20 = vector.load %arg3[%c0_22, %c0_23] : memref<256x1024xbf16, #tpu.memory_space<vmem>>, vector<256x1024xbf16>
    %cst_24 = arith.constant dense<0.000000e+00> : vector<8x1024xf32>
    %21 = tpu.matmul %19, %20, %cst_24 {dimension_numbers = #tpu.dot_dimension_numbers<[1], [0], [0], [1], [0, 0, 1, 1], [], []>} : vector<8x256xbf16>, vector<256x1024xbf16>, vector<8x1024xf32> -> vector<8x1024xf32>
    %22 = arith.addf %18, %21 : vector<8x1024xf32>
    %23 = vector.extract_strided_slice %22 {offsets = [0, 0], sizes = [8, 256], strides = [1, 1]} : vector<8x1024xf32> to vector<8x256xf32>
    %24 = arith.negf %23 : vector<8x256xf32>
    %25 = math.exp %24 : vector<8x256xf32>
    %cst_25 = arith.constant 1.000000e+00 : f32
    %26 = vector.broadcast %cst_25 : f32 to vector<8x256xf32>
    %27 = arith.addf %26, %25 : vector<8x256xf32>
    %28 = arith.divf %26, %27 : vector<8x256xf32>
    %29 = vector.extract_strided_slice %22 {offsets = [0, 256], sizes = [8, 256], strides = [1, 1]} : vector<8x1024xf32> to vector<8x256xf32>
    %30 = arith.negf %29 : vector<8x256xf32>
    %31 = math.exp %30 : vector<8x256xf32>
    %cst_26 = arith.constant 1.000000e+00 : f32
    %32 = vector.broadcast %cst_26 : f32 to vector<8x256xf32>
    %33 = arith.addf %32, %31 : vector<8x256xf32>
    %34 = arith.divf %32, %33 : vector<8x256xf32>
    %35 = vector.extract_strided_slice %22 {offsets = [0, 512], sizes = [8, 256], strides = [1, 1]} : vector<8x1024xf32> to vector<8x256xf32>
    %36 = math.tanh %35 : vector<8x256xf32>
    %37 = vector.extract_strided_slice %22 {offsets = [0, 768], sizes = [8, 256], strides = [1, 1]} : vector<8x1024xf32> to vector<8x256xf32>
    %38 = arith.negf %37 : vector<8x256xf32>
    %39 = math.exp %38 : vector<8x256xf32>
    %cst_27 = arith.constant 1.000000e+00 : f32
    %40 = vector.broadcast %cst_27 : f32 to vector<8x256xf32>
    %41 = arith.addf %40, %39 : vector<8x256xf32>
    %42 = arith.divf %40, %41 : vector<8x256xf32>
    %43 = arith.mulf %34, %13 : vector<8x256xf32>
    %44 = arith.mulf %28, %36 : vector<8x256xf32>
    %45 = arith.addf %43, %44 : vector<8x256xf32>
    %46 = math.tanh %45 : vector<8x256xf32>
    %47 = arith.mulf %42, %46 : vector<8x256xf32>
    %48 = arith.truncf %47 : vector<8x256xf32> to vector<8x256xbf16>
    %c0_28 = arith.constant 0 : index
    %c0_29 = arith.constant 0 : index
    %49 = vector.load %arg5[%c0_28, %c0_29] : memref<256x1024xbf16, #tpu.memory_space<vmem>>, vector<256x1024xbf16>
    %cst_30 = arith.constant dense<0.000000e+00> : vector<8x1024xf32>
    %50 = tpu.matmul %48, %49, %cst_30 {dimension_numbers = #tpu.dot_dimension_numbers<[1], [0], [0], [1], [0, 0, 1, 1], [], []>} : vector<8x256xbf16>, vector<256x1024xbf16>, vector<8x1024xf32> -> vector<8x1024xf32>
    %51 = arith.truncf %15 : vector<8x256xf32> to vector<8x256xbf16>
    %c0_31 = arith.constant 0 : index
    %c0_32 = arith.constant 0 : index
    %52 = vector.load %arg6[%c0_31, %c0_32] : memref<256x1024xbf16, #tpu.memory_space<vmem>>, vector<256x1024xbf16>
    %cst_33 = arith.constant dense<0.000000e+00> : vector<8x1024xf32>
    %53 = tpu.matmul %51, %52, %cst_33 {dimension_numbers = #tpu.dot_dimension_numbers<[1], [0], [0], [1], [0, 0, 1, 1], [], []>} : vector<8x256xbf16>, vector<256x1024xbf16>, vector<8x1024xf32> -> vector<8x1024xf32>
    %54 = arith.addf %50, %53 : vector<8x1024xf32>
    %55 = arith.addf %54, %9 : vector<8x1024xf32>
    %56 = vector.extract_strided_slice %55 {offsets = [0, 0], sizes = [8, 256], strides = [1, 1]} : vector<8x1024xf32> to vector<8x256xf32>
    %57 = arith.negf %56 : vector<8x256xf32>
    %58 = math.exp %57 : vector<8x256xf32>
    %cst_34 = arith.constant 1.000000e+00 : f32
    %59 = vector.broadcast %cst_34 : f32 to vector<8x256xf32>
    %60 = arith.addf %59, %58 : vector<8x256xf32>
    %61 = arith.divf %59, %60 : vector<8x256xf32>
    %62 = vector.extract_strided_slice %55 {offsets = [0, 256], sizes = [8, 256], strides = [1, 1]} : vector<8x1024xf32> to vector<8x256xf32>
    %63 = arith.negf %62 : vector<8x256xf32>
    %64 = math.exp %63 : vector<8x256xf32>
    %cst_35 = arith.constant 1.000000e+00 : f32
    %65 = vector.broadcast %cst_35 : f32 to vector<8x256xf32>
    %66 = arith.addf %65, %64 : vector<8x256xf32>
    %67 = arith.divf %65, %66 : vector<8x256xf32>
    %68 = vector.extract_strided_slice %55 {offsets = [0, 512], sizes = [8, 256], strides = [1, 1]} : vector<8x1024xf32> to vector<8x256xf32>
    %69 = math.tanh %68 : vector<8x256xf32>
    %70 = vector.extract_strided_slice %55 {offsets = [0, 768], sizes = [8, 256], strides = [1, 1]} : vector<8x1024xf32> to vector<8x256xf32>
    %71 = arith.negf %70 : vector<8x256xf32>
    %72 = math.exp %71 : vector<8x256xf32>
    %cst_36 = arith.constant 1.000000e+00 : f32
    %73 = vector.broadcast %cst_36 : f32 to vector<8x256xf32>
    %74 = arith.addf %73, %72 : vector<8x256xf32>
    %75 = arith.divf %73, %74 : vector<8x256xf32>
    %76 = arith.mulf %67, %17 : vector<8x256xf32>
    %77 = arith.mulf %61, %69 : vector<8x256xf32>
    %78 = arith.addf %76, %77 : vector<8x256xf32>
    %79 = math.tanh %78 : vector<8x256xf32>
    %80 = arith.mulf %75, %79 : vector<8x256xf32>
    %c8 = arith.constant 8 : index
    %c0_37 = arith.constant 0 : index
    %81 = vector.load %arg15[%c8, %c0_37] : memref<64x1024xf32, #tpu.memory_space<vmem>>, vector<8x1024xf32>
    %82 = arith.truncf %47 : vector<8x256xf32> to vector<8x256xbf16>
    %c0_38 = arith.constant 0 : index
    %c0_39 = arith.constant 0 : index
    %83 = vector.load %arg3[%c0_38, %c0_39] : memref<256x1024xbf16, #tpu.memory_space<vmem>>, vector<256x1024xbf16>
    %cst_40 = arith.constant dense<0.000000e+00> : vector<8x1024xf32>
    %84 = tpu.matmul %82, %83, %cst_40 {dimension_numbers = #tpu.dot_dimension_numbers<[1], [0], [0], [1], [0, 0, 1, 1], [], []>} : vector<8x256xbf16>, vector<256x1024xbf16>, vector<8x1024xf32> -> vector<8x1024xf32>
    %85 = arith.addf %81, %84 : vector<8x1024xf32>
    %86 = vector.extract_strided_slice %85 {offsets = [0, 0], sizes = [8, 256], strides = [1, 1]} : vector<8x1024xf32> to vector<8x256xf32>
    %87 = arith.negf %86 : vector<8x256xf32>
    %88 = math.exp %87 : vector<8x256xf32>
    %cst_41 = arith.constant 1.000000e+00 : f32
    %89 = vector.broadcast %cst_41 : f32 to vector<8x256xf32>
    %90 = arith.addf %89, %88 : vector<8x256xf32>
    %91 = arith.divf %89, %90 : vector<8x256xf32>
    %92 = vector.extract_strided_slice %85 {offsets = [0, 256], sizes = [8, 256], strides = [1, 1]} : vector<8x1024xf32> to vector<8x256xf32>
    %93 = arith.negf %92 : vector<8x256xf32>
    %94 = math.exp %93 : vector<8x256xf32>
    %cst_42 = arith.constant 1.000000e+00 : f32
    %95 = vector.broadcast %cst_42 : f32 to vector<8x256xf32>
    %96 = arith.addf %95, %94 : vector<8x256xf32>
    %97 = arith.divf %95, %96 : vector<8x256xf32>
    %98 = vector.extract_strided_slice %85 {offsets = [0, 512], sizes = [8, 256], strides = [1, 1]} : vector<8x1024xf32> to vector<8x256xf32>
    %99 = math.tanh %98 : vector<8x256xf32>
    %100 = vector.extract_strided_slice %85 {offsets = [0, 768], sizes = [8, 256], strides = [1, 1]} : vector<8x1024xf32> to vector<8x256xf32>
    %101 = arith.negf %100 : vector<8x256xf32>
    %102 = math.exp %101 : vector<8x256xf32>
    %cst_43 = arith.constant 1.000000e+00 : f32
    %103 = vector.broadcast %cst_43 : f32 to vector<8x256xf32>
    %104 = arith.addf %103, %102 : vector<8x256xf32>
    %105 = arith.divf %103, %104 : vector<8x256xf32>
    %106 = arith.mulf %97, %45 : vector<8x256xf32>
    %107 = arith.mulf %91, %99 : vector<8x256xf32>
    %108 = arith.addf %106, %107 : vector<8x256xf32>
    %109 = math.tanh %108 : vector<8x256xf32>
    %110 = arith.mulf %105, %109 : vector<8x256xf32>
    %111 = arith.truncf %110 : vector<8x256xf32> to vector<8x256xbf16>
    %c0_44 = arith.constant 0 : index
    %c0_45 = arith.constant 0 : index
    %112 = vector.load %arg5[%c0_44, %c0_45] : memref<256x1024xbf16, #tpu.memory_space<vmem>>, vector<256x1024xbf16>
    %cst_46 = arith.constant dense<0.000000e+00> : vector<8x1024xf32>
    %113 = tpu.matmul %111, %112, %cst_46 {dimension_numbers = #tpu.dot_dimension_numbers<[1], [0], [0], [1], [0, 0, 1, 1], [], []>} : vector<8x256xbf16>, vector<256x1024xbf16>, vector<8x1024xf32> -> vector<8x1024xf32>
    %114 = arith.truncf %80 : vector<8x256xf32> to vector<8x256xbf16>
    %c0_47 = arith.constant 0 : index
    %c0_48 = arith.constant 0 : index
    %115 = vector.load %arg6[%c0_47, %c0_48] : memref<256x1024xbf16, #tpu.memory_space<vmem>>, vector<256x1024xbf16>
    %cst_49 = arith.constant dense<0.000000e+00> : vector<8x1024xf32>
    %116 = tpu.matmul %114, %115, %cst_49 {dimension_numbers = #tpu.dot_dimension_numbers<[1], [0], [0], [1], [0, 0, 1, 1], [], []>} : vector<8x256xbf16>, vector<256x1024xbf16>, vector<8x1024xf32> -> vector<8x1024xf32>
    %117 = arith.addf %113, %116 : vector<8x1024xf32>
    %118 = arith.addf %117, %9 : vector<8x1024xf32>
    %119 = vector.extract_strided_slice %118 {offsets = [0, 0], sizes = [8, 256], strides = [1, 1]} : vector<8x1024xf32> to vector<8x256xf32>
    %120 = arith.negf %119 : vector<8x256xf32>
    %121 = math.exp %120 : vector<8x256xf32>
    %cst_50 = arith.constant 1.000000e+00 : f32
    %122 = vector.broadcast %cst_50 : f32 to vector<8x256xf32>
    %123 = arith.addf %122, %121 : vector<8x256xf32>
    %124 = arith.divf %122, %123 : vector<8x256xf32>
    %125 = vector.extract_strided_slice %118 {offsets = [0, 256], sizes = [8, 256], strides = [1, 1]} : vector<8x1024xf32> to vector<8x256xf32>
    %126 = arith.negf %125 : vector<8x256xf32>
    %127 = math.exp %126 : vector<8x256xf32>
    %cst_51 = arith.constant 1.000000e+00 : f32
    %128 = vector.broadcast %cst_51 : f32 to vector<8x256xf32>
    %129 = arith.addf %128, %127 : vector<8x256xf32>
    %130 = arith.divf %128, %129 : vector<8x256xf32>
    %131 = vector.extract_strided_slice %118 {offsets = [0, 512], sizes = [8, 256], strides = [1, 1]} : vector<8x1024xf32> to vector<8x256xf32>
    %132 = math.tanh %131 : vector<8x256xf32>
    %133 = vector.extract_strided_slice %118 {offsets = [0, 768], sizes = [8, 256], strides = [1, 1]} : vector<8x1024xf32> to vector<8x256xf32>
    %134 = arith.negf %133 : vector<8x256xf32>
    %135 = math.exp %134 : vector<8x256xf32>
    %cst_52 = arith.constant 1.000000e+00 : f32
    %136 = vector.broadcast %cst_52 : f32 to vector<8x256xf32>
    %137 = arith.addf %136, %135 : vector<8x256xf32>
    %138 = arith.divf %136, %137 : vector<8x256xf32>
    %139 = arith.mulf %130, %78 : vector<8x256xf32>
    %140 = arith.mulf %124, %132 : vector<8x256xf32>
    %141 = arith.addf %139, %140 : vector<8x256xf32>
    %142 = math.tanh %141 : vector<8x256xf32>
    %143 = arith.mulf %138, %142 : vector<8x256xf32>
    %c16 = arith.constant 16 : index
    %c0_53 = arith.constant 0 : index
    %144 = vector.load %arg15[%c16, %c0_53] : memref<64x1024xf32, #tpu.memory_space<vmem>>, vector<8x1024xf32>
    %145 = arith.truncf %110 : vector<8x256xf32> to vector<8x256xbf16>
    %c0_54 = arith.constant 0 : index
    %c0_55 = arith.constant 0 : index
    %146 = vector.load %arg3[%c0_54, %c0_55] : memref<256x1024xbf16, #tpu.memory_space<vmem>>, vector<256x1024xbf16>
    %cst_56 = arith.constant dense<0.000000e+00> : vector<8x1024xf32>
    %147 = tpu.matmul %145, %146, %cst_56 {dimension_numbers = #tpu.dot_dimension_numbers<[1], [0], [0], [1], [0, 0, 1, 1], [], []>} : vector<8x256xbf16>, vector<256x1024xbf16>, vector<8x1024xf32> -> vector<8x1024xf32>
    %148 = arith.addf %144, %147 : vector<8x1024xf32>
    %149 = vector.extract_strided_slice %148 {offsets = [0, 0], sizes = [8, 256], strides = [1, 1]} : vector<8x1024xf32> to vector<8x256xf32>
    %150 = arith.negf %149 : vector<8x256xf32>
    %151 = math.exp %150 : vector<8x256xf32>
    %cst_57 = arith.constant 1.000000e+00 : f32
    %152 = vector.broadcast %cst_57 : f32 to vector<8x256xf32>
    %153 = arith.addf %152, %151 : vector<8x256xf32>
    %154 = arith.divf %152, %153 : vector<8x256xf32>
    %155 = vector.extract_strided_slice %148 {offsets = [0, 256], sizes = [8, 256], strides = [1, 1]} : vector<8x1024xf32> to vector<8x256xf32>
    %156 = arith.negf %155 : vector<8x256xf32>
    %157 = math.exp %156 : vector<8x256xf32>
    %cst_58 = arith.constant 1.000000e+00 : f32
    %158 = vector.broadcast %cst_58 : f32 to vector<8x256xf32>
    %159 = arith.addf %158, %157 : vector<8x256xf32>
    %160 = arith.divf %158, %159 : vector<8x256xf32>
    %161 = vector.extract_strided_slice %148 {offsets = [0, 512], sizes = [8, 256], strides = [1, 1]} : vector<8x1024xf32> to vector<8x256xf32>
    %162 = math.tanh %161 : vector<8x256xf32>
    %163 = vector.extract_strided_slice %148 {offsets = [0, 768], sizes = [8, 256], strides = [1, 1]} : vector<8x1024xf32> to vector<8x256xf32>
    %164 = arith.negf %163 : vector<8x256xf32>
    %165 = math.exp %164 : vector<8x256xf32>
    %cst_59 = arith.constant 1.000000e+00 : f32
    %166 = vector.broadcast %cst_59 : f32 to vector<8x256xf32>
    %167 = arith.addf %166, %165 : vector<8x256xf32>
    %168 = arith.divf %166, %167 : vector<8x256xf32>
    %169 = arith.mulf %160, %108 : vector<8x256xf32>
    %170 = arith.mulf %154, %162 : vector<8x256xf32>
    %171 = arith.addf %169, %170 : vector<8x256xf32>
    %172 = math.tanh %171 : vector<8x256xf32>
    %173 = arith.mulf %168, %172 : vector<8x256xf32>
    %174 = arith.truncf %173 : vector<8x256xf32> to vector<8x256xbf16>
    %c0_60 = arith.constant 0 : index
    %c0_61 = arith.constant 0 : index
    %175 = vector.load %arg5[%c0_60, %c0_61] : memref<256x1024xbf16, #tpu.memory_space<vmem>>, vector<256x1024xbf16>
    %cst_62 = arith.constant dense<0.000000e+00> : vector<8x1024xf32>
    %176 = tpu.matmul %174, %175, %cst_62 {dimension_numbers = #tpu.dot_dimension_numbers<[1], [0], [0], [1], [0, 0, 1, 1], [], []>} : vector<8x256xbf16>, vector<256x1024xbf16>, vector<8x1024xf32> -> vector<8x1024xf32>
    %177 = arith.truncf %143 : vector<8x256xf32> to vector<8x256xbf16>
    %c0_63 = arith.constant 0 : index
    %c0_64 = arith.constant 0 : index
    %178 = vector.load %arg6[%c0_63, %c0_64] : memref<256x1024xbf16, #tpu.memory_space<vmem>>, vector<256x1024xbf16>
    %cst_65 = arith.constant dense<0.000000e+00> : vector<8x1024xf32>
    %179 = tpu.matmul %177, %178, %cst_65 {dimension_numbers = #tpu.dot_dimension_numbers<[1], [0], [0], [1], [0, 0, 1, 1], [], []>} : vector<8x256xbf16>, vector<256x1024xbf16>, vector<8x1024xf32> -> vector<8x1024xf32>
    %180 = arith.addf %176, %179 : vector<8x1024xf32>
    %181 = arith.addf %180, %9 : vector<8x1024xf32>
    %182 = vector.extract_strided_slice %181 {offsets = [0, 0], sizes = [8, 256], strides = [1, 1]} : vector<8x1024xf32> to vector<8x256xf32>
    %183 = arith.negf %182 : vector<8x256xf32>
    %184 = math.exp %183 : vector<8x256xf32>
    %cst_66 = arith.constant 1.000000e+00 : f32
    %185 = vector.broadcast %cst_66 : f32 to vector<8x256xf32>
    %186 = arith.addf %185, %184 : vector<8x256xf32>
    %187 = arith.divf %185, %186 : vector<8x256xf32>
    %188 = vector.extract_strided_slice %181 {offsets = [0, 256], sizes = [8, 256], strides = [1, 1]} : vector<8x1024xf32> to vector<8x256xf32>
    %189 = arith.negf %188 : vector<8x256xf32>
    %190 = math.exp %189 : vector<8x256xf32>
    %cst_67 = arith.constant 1.000000e+00 : f32
    %191 = vector.broadcast %cst_67 : f32 to vector<8x256xf32>
    %192 = arith.addf %191, %190 : vector<8x256xf32>
    %193 = arith.divf %191, %192 : vector<8x256xf32>
    %194 = vector.extract_strided_slice %181 {offsets = [0, 512], sizes = [8, 256], strides = [1, 1]} : vector<8x1024xf32> to vector<8x256xf32>
    %195 = math.tanh %194 : vector<8x256xf32>
    %196 = vector.extract_strided_slice %181 {offsets = [0, 768], sizes = [8, 256], strides = [1, 1]} : vector<8x1024xf32> to vector<8x256xf32>
    %197 = arith.negf %196 : vector<8x256xf32>
    %198 = math.exp %197 : vector<8x256xf32>
    %cst_68 = arith.constant 1.000000e+00 : f32
    %199 = vector.broadcast %cst_68 : f32 to vector<8x256xf32>
    %200 = arith.addf %199, %198 : vector<8x256xf32>
    %201 = arith.divf %199, %200 : vector<8x256xf32>
    %202 = arith.mulf %193, %141 : vector<8x256xf32>
    %203 = arith.mulf %187, %195 : vector<8x256xf32>
    %204 = arith.addf %202, %203 : vector<8x256xf32>
    %205 = math.tanh %204 : vector<8x256xf32>
    %206 = arith.mulf %201, %205 : vector<8x256xf32>
    %c24 = arith.constant 24 : index
    %c0_69 = arith.constant 0 : index
    %207 = vector.load %arg15[%c24, %c0_69] : memref<64x1024xf32, #tpu.memory_space<vmem>>, vector<8x1024xf32>
    %208 = arith.truncf %173 : vector<8x256xf32> to vector<8x256xbf16>
    %c0_70 = arith.constant 0 : index
    %c0_71 = arith.constant 0 : index
    %209 = vector.load %arg3[%c0_70, %c0_71] : memref<256x1024xbf16, #tpu.memory_space<vmem>>, vector<256x1024xbf16>
    %cst_72 = arith.constant dense<0.000000e+00> : vector<8x1024xf32>
    %210 = tpu.matmul %208, %209, %cst_72 {dimension_numbers = #tpu.dot_dimension_numbers<[1], [0], [0], [1], [0, 0, 1, 1], [], []>} : vector<8x256xbf16>, vector<256x1024xbf16>, vector<8x1024xf32> -> vector<8x1024xf32>
    %211 = arith.addf %207, %210 : vector<8x1024xf32>
    %212 = vector.extract_strided_slice %211 {offsets = [0, 0], sizes = [8, 256], strides = [1, 1]} : vector<8x1024xf32> to vector<8x256xf32>
    %213 = arith.negf %212 : vector<8x256xf32>
    %214 = math.exp %213 : vector<8x256xf32>
    %cst_73 = arith.constant 1.000000e+00 : f32
    %215 = vector.broadcast %cst_73 : f32 to vector<8x256xf32>
    %216 = arith.addf %215, %214 : vector<8x256xf32>
    %217 = arith.divf %215, %216 : vector<8x256xf32>
    %218 = vector.extract_strided_slice %211 {offsets = [0, 256], sizes = [8, 256], strides = [1, 1]} : vector<8x1024xf32> to vector<8x256xf32>
    %219 = arith.negf %218 : vector<8x256xf32>
    %220 = math.exp %219 : vector<8x256xf32>
    %cst_74 = arith.constant 1.000000e+00 : f32
    %221 = vector.broadcast %cst_74 : f32 to vector<8x256xf32>
    %222 = arith.addf %221, %220 : vector<8x256xf32>
    %223 = arith.divf %221, %222 : vector<8x256xf32>
    %224 = vector.extract_strided_slice %211 {offsets = [0, 512], sizes = [8, 256], strides = [1, 1]} : vector<8x1024xf32> to vector<8x256xf32>
    %225 = math.tanh %224 : vector<8x256xf32>
    %226 = vector.extract_strided_slice %211 {offsets = [0, 768], sizes = [8, 256], strides = [1, 1]} : vector<8x1024xf32> to vector<8x256xf32>
    %227 = arith.negf %226 : vector<8x256xf32>
    %228 = math.exp %227 : vector<8x256xf32>
    %cst_75 = arith.constant 1.000000e+00 : f32
    %229 = vector.broadcast %cst_75 : f32 to vector<8x256xf32>
    %230 = arith.addf %229, %228 : vector<8x256xf32>
    %231 = arith.divf %229, %230 : vector<8x256xf32>
    %232 = arith.mulf %223, %171 : vector<8x256xf32>
    %233 = arith.mulf %217, %225 : vector<8x256xf32>
    %234 = arith.addf %232, %233 : vector<8x256xf32>
    %235 = math.tanh %234 : vector<8x256xf32>
    %236 = arith.mulf %231, %235 : vector<8x256xf32>
    %237 = arith.truncf %236 : vector<8x256xf32> to vector<8x256xbf16>
    %c0_76 = arith.constant 0 : index
    %c0_77 = arith.constant 0 : index
    %238 = vector.load %arg5[%c0_76, %c0_77] : memref<256x1024xbf16, #tpu.memory_space<vmem>>, vector<256x1024xbf16>
    %cst_78 = arith.constant dense<0.000000e+00> : vector<8x1024xf32>
    %239 = tpu.matmul %237, %238, %cst_78 {dimension_numbers = #tpu.dot_dimension_numbers<[1], [0], [0], [1], [0, 0, 1, 1], [], []>} : vector<8x256xbf16>, vector<256x1024xbf16>, vector<8x1024xf32> -> vector<8x1024xf32>
    %240 = arith.truncf %206 : vector<8x256xf32> to vector<8x256xbf16>
    %c0_79 = arith.constant 0 : index
    %c0_80 = arith.constant 0 : index
    %241 = vector.load %arg6[%c0_79, %c0_80] : memref<256x1024xbf16, #tpu.memory_space<vmem>>, vector<256x1024xbf16>
    %cst_81 = arith.constant dense<0.000000e+00> : vector<8x1024xf32>
    %242 = tpu.matmul %240, %241, %cst_81 {dimension_numbers = #tpu.dot_dimension_numbers<[1], [0], [0], [1], [0, 0, 1, 1], [], []>} : vector<8x256xbf16>, vector<256x1024xbf16>, vector<8x1024xf32> -> vector<8x1024xf32>
    %243 = arith.addf %239, %242 : vector<8x1024xf32>
    %244 = arith.addf %243, %9 : vector<8x1024xf32>
    %245 = vector.extract_strided_slice %244 {offsets = [0, 0], sizes = [8, 256], strides = [1, 1]} : vector<8x1024xf32> to vector<8x256xf32>
    %246 = arith.negf %245 : vector<8x256xf32>
    %247 = math.exp %246 : vector<8x256xf32>
    %cst_82 = arith.constant 1.000000e+00 : f32
    %248 = vector.broadcast %cst_82 : f32 to vector<8x256xf32>
    %249 = arith.addf %248, %247 : vector<8x256xf32>
    %250 = arith.divf %248, %249 : vector<8x256xf32>
    %251 = vector.extract_strided_slice %244 {offsets = [0, 256], sizes = [8, 256], strides = [1, 1]} : vector<8x1024xf32> to vector<8x256xf32>
    %252 = arith.negf %251 : vector<8x256xf32>
    %253 = math.exp %252 : vector<8x256xf32>
    %cst_83 = arith.constant 1.000000e+00 : f32
    %254 = vector.broadcast %cst_83 : f32 to vector<8x256xf32>
    %255 = arith.addf %254, %253 : vector<8x256xf32>
    %256 = arith.divf %254, %255 : vector<8x256xf32>
    %257 = vector.extract_strided_slice %244 {offsets = [0, 512], sizes = [8, 256], strides = [1, 1]} : vector<8x1024xf32> to vector<8x256xf32>
    %258 = math.tanh %257 : vector<8x256xf32>
    %259 = vector.extract_strided_slice %244 {offsets = [0, 768], sizes = [8, 256], strides = [1, 1]} : vector<8x1024xf32> to vector<8x256xf32>
    %260 = arith.negf %259 : vector<8x256xf32>
    %261 = math.exp %260 : vector<8x256xf32>
    %cst_84 = arith.constant 1.000000e+00 : f32
    %262 = vector.broadcast %cst_84 : f32 to vector<8x256xf32>
    %263 = arith.addf %262, %261 : vector<8x256xf32>
    %264 = arith.divf %262, %263 : vector<8x256xf32>
    %265 = arith.mulf %256, %204 : vector<8x256xf32>
    %266 = arith.mulf %250, %258 : vector<8x256xf32>
    %267 = arith.addf %265, %266 : vector<8x256xf32>
    %268 = math.tanh %267 : vector<8x256xf32>
    %269 = arith.mulf %264, %268 : vector<8x256xf32>
    %c32 = arith.constant 32 : index
    %c0_85 = arith.constant 0 : index
    %270 = vector.load %arg15[%c32, %c0_85] : memref<64x1024xf32, #tpu.memory_space<vmem>>, vector<8x1024xf32>
    %271 = arith.truncf %236 : vector<8x256xf32> to vector<8x256xbf16>
    %c0_86 = arith.constant 0 : index
    %c0_87 = arith.constant 0 : index
    %272 = vector.load %arg3[%c0_86, %c0_87] : memref<256x1024xbf16, #tpu.memory_space<vmem>>, vector<256x1024xbf16>
    %cst_88 = arith.constant dense<0.000000e+00> : vector<8x1024xf32>
    %273 = tpu.matmul %271, %272, %cst_88 {dimension_numbers = #tpu.dot_dimension_numbers<[1], [0], [0], [1], [0, 0, 1, 1], [], []>} : vector<8x256xbf16>, vector<256x1024xbf16>, vector<8x1024xf32> -> vector<8x1024xf32>
    %274 = arith.addf %270, %273 : vector<8x1024xf32>
    %275 = vector.extract_strided_slice %274 {offsets = [0, 0], sizes = [8, 256], strides = [1, 1]} : vector<8x1024xf32> to vector<8x256xf32>
    %276 = arith.negf %275 : vector<8x256xf32>
    %277 = math.exp %276 : vector<8x256xf32>
    %cst_89 = arith.constant 1.000000e+00 : f32
    %278 = vector.broadcast %cst_89 : f32 to vector<8x256xf32>
    %279 = arith.addf %278, %277 : vector<8x256xf32>
    %280 = arith.divf %278, %279 : vector<8x256xf32>
    %281 = vector.extract_strided_slice %274 {offsets = [0, 256], sizes = [8, 256], strides = [1, 1]} : vector<8x1024xf32> to vector<8x256xf32>
    %282 = arith.negf %281 : vector<8x256xf32>
    %283 = math.exp %282 : vector<8x256xf32>
    %cst_90 = arith.constant 1.000000e+00 : f32
    %284 = vector.broadcast %cst_90 : f32 to vector<8x256xf32>
    %285 = arith.addf %284, %283 : vector<8x256xf32>
    %286 = arith.divf %284, %285 : vector<8x256xf32>
    %287 = vector.extract_strided_slice %274 {offsets = [0, 512], sizes = [8, 256], strides = [1, 1]} : vector<8x1024xf32> to vector<8x256xf32>
    %288 = math.tanh %287 : vector<8x256xf32>
    %289 = vector.extract_strided_slice %274 {offsets = [0, 768], sizes = [8, 256], strides = [1, 1]} : vector<8x1024xf32> to vector<8x256xf32>
    %290 = arith.negf %289 : vector<8x256xf32>
    %291 = math.exp %290 : vector<8x256xf32>
    %cst_91 = arith.constant 1.000000e+00 : f32
    %292 = vector.broadcast %cst_91 : f32 to vector<8x256xf32>
    %293 = arith.addf %292, %291 : vector<8x256xf32>
    %294 = arith.divf %292, %293 : vector<8x256xf32>
    %295 = arith.mulf %286, %234 : vector<8x256xf32>
    %296 = arith.mulf %280, %288 : vector<8x256xf32>
    %297 = arith.addf %295, %296 : vector<8x256xf32>
    %298 = math.tanh %297 : vector<8x256xf32>
    %299 = arith.mulf %294, %298 : vector<8x256xf32>
    %300 = arith.truncf %299 : vector<8x256xf32> to vector<8x256xbf16>
    %c0_92 = arith.constant 0 : index
    %c0_93 = arith.constant 0 : index
    %301 = vector.load %arg5[%c0_92, %c0_93] : memref<256x1024xbf16, #tpu.memory_space<vmem>>, vector<256x1024xbf16>
    %cst_94 = arith.constant dense<0.000000e+00> : vector<8x1024xf32>
    %302 = tpu.matmul %300, %301, %cst_94 {dimension_numbers = #tpu.dot_dimension_numbers<[1], [0], [0], [1], [0, 0, 1, 1], [], []>} : vector<8x256xbf16>, vector<256x1024xbf16>, vector<8x1024xf32> -> vector<8x1024xf32>
    %303 = arith.truncf %269 : vector<8x256xf32> to vector<8x256xbf16>
    %c0_95 = arith.constant 0 : index
    %c0_96 = arith.constant 0 : index
    %304 = vector.load %arg6[%c0_95, %c0_96] : memref<256x1024xbf16, #tpu.memory_space<vmem>>, vector<256x1024xbf16>
    %cst_97 = arith.constant dense<0.000000e+00> : vector<8x1024xf32>
    %305 = tpu.matmul %303, %304, %cst_97 {dimension_numbers = #tpu.dot_dimension_numbers<[1], [0], [0], [1], [0, 0, 1, 1], [], []>} : vector<8x256xbf16>, vector<256x1024xbf16>, vector<8x1024xf32> -> vector<8x1024xf32>
    %306 = arith.addf %302, %305 : vector<8x1024xf32>
    %307 = arith.addf %306, %9 : vector<8x1024xf32>
    %308 = vector.extract_strided_slice %307 {offsets = [0, 0], sizes = [8, 256], strides = [1, 1]} : vector<8x1024xf32> to vector<8x256xf32>
    %309 = arith.negf %308 : vector<8x256xf32>
    %310 = math.exp %309 : vector<8x256xf32>
    %cst_98 = arith.constant 1.000000e+00 : f32
    %311 = vector.broadcast %cst_98 : f32 to vector<8x256xf32>
    %312 = arith.addf %311, %310 : vector<8x256xf32>
    %313 = arith.divf %311, %312 : vector<8x256xf32>
    %314 = vector.extract_strided_slice %307 {offsets = [0, 256], sizes = [8, 256], strides = [1, 1]} : vector<8x1024xf32> to vector<8x256xf32>
    %315 = arith.negf %314 : vector<8x256xf32>
    %316 = math.exp %315 : vector<8x256xf32>
    %cst_99 = arith.constant 1.000000e+00 : f32
    %317 = vector.broadcast %cst_99 : f32 to vector<8x256xf32>
    %318 = arith.addf %317, %316 : vector<8x256xf32>
    %319 = arith.divf %317, %318 : vector<8x256xf32>
    %320 = vector.extract_strided_slice %307 {offsets = [0, 512], sizes = [8, 256], strides = [1, 1]} : vector<8x1024xf32> to vector<8x256xf32>
    %321 = math.tanh %320 : vector<8x256xf32>
    %322 = vector.extract_strided_slice %307 {offsets = [0, 768], sizes = [8, 256], strides = [1, 1]} : vector<8x1024xf32> to vector<8x256xf32>
    %323 = arith.negf %322 : vector<8x256xf32>
    %324 = math.exp %323 : vector<8x256xf32>
    %cst_100 = arith.constant 1.000000e+00 : f32
    %325 = vector.broadcast %cst_100 : f32 to vector<8x256xf32>
    %326 = arith.addf %325, %324 : vector<8x256xf32>
    %327 = arith.divf %325, %326 : vector<8x256xf32>
    %328 = arith.mulf %319, %267 : vector<8x256xf32>
    %329 = arith.mulf %313, %321 : vector<8x256xf32>
    %330 = arith.addf %328, %329 : vector<8x256xf32>
    %331 = math.tanh %330 : vector<8x256xf32>
    %332 = arith.mulf %327, %331 : vector<8x256xf32>
    %c40 = arith.constant 40 : index
    %c0_101 = arith.constant 0 : index
    %333 = vector.load %arg15[%c40, %c0_101] : memref<64x1024xf32, #tpu.memory_space<vmem>>, vector<8x1024xf32>
    %334 = arith.truncf %299 : vector<8x256xf32> to vector<8x256xbf16>
    %c0_102 = arith.constant 0 : index
    %c0_103 = arith.constant 0 : index
    %335 = vector.load %arg3[%c0_102, %c0_103] : memref<256x1024xbf16, #tpu.memory_space<vmem>>, vector<256x1024xbf16>
    %cst_104 = arith.constant dense<0.000000e+00> : vector<8x1024xf32>
    %336 = tpu.matmul %334, %335, %cst_104 {dimension_numbers = #tpu.dot_dimension_numbers<[1], [0], [0], [1], [0, 0, 1, 1], [], []>} : vector<8x256xbf16>, vector<256x1024xbf16>, vector<8x1024xf32> -> vector<8x1024xf32>
    %337 = arith.addf %333, %336 : vector<8x1024xf32>
    %338 = vector.extract_strided_slice %337 {offsets = [0, 0], sizes = [8, 256], strides = [1, 1]} : vector<8x1024xf32> to vector<8x256xf32>
    %339 = arith.negf %338 : vector<8x256xf32>
    %340 = math.exp %339 : vector<8x256xf32>
    %cst_105 = arith.constant 1.000000e+00 : f32
    %341 = vector.broadcast %cst_105 : f32 to vector<8x256xf32>
    %342 = arith.addf %341, %340 : vector<8x256xf32>
    %343 = arith.divf %341, %342 : vector<8x256xf32>
    %344 = vector.extract_strided_slice %337 {offsets = [0, 256], sizes = [8, 256], strides = [1, 1]} : vector<8x1024xf32> to vector<8x256xf32>
    %345 = arith.negf %344 : vector<8x256xf32>
    %346 = math.exp %345 : vector<8x256xf32>
    %cst_106 = arith.constant 1.000000e+00 : f32
    %347 = vector.broadcast %cst_106 : f32 to vector<8x256xf32>
    %348 = arith.addf %347, %346 : vector<8x256xf32>
    %349 = arith.divf %347, %348 : vector<8x256xf32>
    %350 = vector.extract_strided_slice %337 {offsets = [0, 512], sizes = [8, 256], strides = [1, 1]} : vector<8x1024xf32> to vector<8x256xf32>
    %351 = math.tanh %350 : vector<8x256xf32>
    %352 = vector.extract_strided_slice %337 {offsets = [0, 768], sizes = [8, 256], strides = [1, 1]} : vector<8x1024xf32> to vector<8x256xf32>
    %353 = arith.negf %352 : vector<8x256xf32>
    %354 = math.exp %353 : vector<8x256xf32>
    %cst_107 = arith.constant 1.000000e+00 : f32
    %355 = vector.broadcast %cst_107 : f32 to vector<8x256xf32>
    %356 = arith.addf %355, %354 : vector<8x256xf32>
    %357 = arith.divf %355, %356 : vector<8x256xf32>
    %358 = arith.mulf %349, %297 : vector<8x256xf32>
    %359 = arith.mulf %343, %351 : vector<8x256xf32>
    %360 = arith.addf %358, %359 : vector<8x256xf32>
    %361 = math.tanh %360 : vector<8x256xf32>
    %362 = arith.mulf %357, %361 : vector<8x256xf32>
    %363 = arith.truncf %362 : vector<8x256xf32> to vector<8x256xbf16>
    %c0_108 = arith.constant 0 : index
    %c0_109 = arith.constant 0 : index
    %364 = vector.load %arg5[%c0_108, %c0_109] : memref<256x1024xbf16, #tpu.memory_space<vmem>>, vector<256x1024xbf16>
    %cst_110 = arith.constant dense<0.000000e+00> : vector<8x1024xf32>
    %365 = tpu.matmul %363, %364, %cst_110 {dimension_numbers = #tpu.dot_dimension_numbers<[1], [0], [0], [1], [0, 0, 1, 1], [], []>} : vector<8x256xbf16>, vector<256x1024xbf16>, vector<8x1024xf32> -> vector<8x1024xf32>
    %366 = arith.truncf %332 : vector<8x256xf32> to vector<8x256xbf16>
    %c0_111 = arith.constant 0 : index
    %c0_112 = arith.constant 0 : index
    %367 = vector.load %arg6[%c0_111, %c0_112] : memref<256x1024xbf16, #tpu.memory_space<vmem>>, vector<256x1024xbf16>
    %cst_113 = arith.constant dense<0.000000e+00> : vector<8x1024xf32>
    %368 = tpu.matmul %366, %367, %cst_113 {dimension_numbers = #tpu.dot_dimension_numbers<[1], [0], [0], [1], [0, 0, 1, 1], [], []>} : vector<8x256xbf16>, vector<256x1024xbf16>, vector<8x1024xf32> -> vector<8x1024xf32>
    %369 = arith.addf %365, %368 : vector<8x1024xf32>
    %370 = arith.addf %369, %9 : vector<8x1024xf32>
    %371 = vector.extract_strided_slice %370 {offsets = [0, 0], sizes = [8, 256], strides = [1, 1]} : vector<8x1024xf32> to vector<8x256xf32>
    %372 = arith.negf %371 : vector<8x256xf32>
    %373 = math.exp %372 : vector<8x256xf32>
    %cst_114 = arith.constant 1.000000e+00 : f32
    %374 = vector.broadcast %cst_114 : f32 to vector<8x256xf32>
    %375 = arith.addf %374, %373 : vector<8x256xf32>
    %376 = arith.divf %374, %375 : vector<8x256xf32>
    %377 = vector.extract_strided_slice %370 {offsets = [0, 256], sizes = [8, 256], strides = [1, 1]} : vector<8x1024xf32> to vector<8x256xf32>
    %378 = arith.negf %377 : vector<8x256xf32>
    %379 = math.exp %378 : vector<8x256xf32>
    %cst_115 = arith.constant 1.000000e+00 : f32
    %380 = vector.broadcast %cst_115 : f32 to vector<8x256xf32>
    %381 = arith.addf %380, %379 : vector<8x256xf32>
    %382 = arith.divf %380, %381 : vector<8x256xf32>
    %383 = vector.extract_strided_slice %370 {offsets = [0, 512], sizes = [8, 256], strides = [1, 1]} : vector<8x1024xf32> to vector<8x256xf32>
    %384 = math.tanh %383 : vector<8x256xf32>
    %385 = vector.extract_strided_slice %370 {offsets = [0, 768], sizes = [8, 256], strides = [1, 1]} : vector<8x1024xf32> to vector<8x256xf32>
    %386 = arith.negf %385 : vector<8x256xf32>
    %387 = math.exp %386 : vector<8x256xf32>
    %cst_116 = arith.constant 1.000000e+00 : f32
    %388 = vector.broadcast %cst_116 : f32 to vector<8x256xf32>
    %389 = arith.addf %388, %387 : vector<8x256xf32>
    %390 = arith.divf %388, %389 : vector<8x256xf32>
    %391 = arith.mulf %382, %330 : vector<8x256xf32>
    %392 = arith.mulf %376, %384 : vector<8x256xf32>
    %393 = arith.addf %391, %392 : vector<8x256xf32>
    %394 = math.tanh %393 : vector<8x256xf32>
    %395 = arith.mulf %390, %394 : vector<8x256xf32>
    %c48 = arith.constant 48 : index
    %c0_117 = arith.constant 0 : index
    %396 = vector.load %arg15[%c48, %c0_117] : memref<64x1024xf32, #tpu.memory_space<vmem>>, vector<8x1024xf32>
    %397 = arith.truncf %362 : vector<8x256xf32> to vector<8x256xbf16>
    %c0_118 = arith.constant 0 : index
    %c0_119 = arith.constant 0 : index
    %398 = vector.load %arg3[%c0_118, %c0_119] : memref<256x1024xbf16, #tpu.memory_space<vmem>>, vector<256x1024xbf16>
    %cst_120 = arith.constant dense<0.000000e+00> : vector<8x1024xf32>
    %399 = tpu.matmul %397, %398, %cst_120 {dimension_numbers = #tpu.dot_dimension_numbers<[1], [0], [0], [1], [0, 0, 1, 1], [], []>} : vector<8x256xbf16>, vector<256x1024xbf16>, vector<8x1024xf32> -> vector<8x1024xf32>
    %400 = arith.addf %396, %399 : vector<8x1024xf32>
    %401 = vector.extract_strided_slice %400 {offsets = [0, 0], sizes = [8, 256], strides = [1, 1]} : vector<8x1024xf32> to vector<8x256xf32>
    %402 = arith.negf %401 : vector<8x256xf32>
    %403 = math.exp %402 : vector<8x256xf32>
    %cst_121 = arith.constant 1.000000e+00 : f32
    %404 = vector.broadcast %cst_121 : f32 to vector<8x256xf32>
    %405 = arith.addf %404, %403 : vector<8x256xf32>
    %406 = arith.divf %404, %405 : vector<8x256xf32>
    %407 = vector.extract_strided_slice %400 {offsets = [0, 256], sizes = [8, 256], strides = [1, 1]} : vector<8x1024xf32> to vector<8x256xf32>
    %408 = arith.negf %407 : vector<8x256xf32>
    %409 = math.exp %408 : vector<8x256xf32>
    %cst_122 = arith.constant 1.000000e+00 : f32
    %410 = vector.broadcast %cst_122 : f32 to vector<8x256xf32>
    %411 = arith.addf %410, %409 : vector<8x256xf32>
    %412 = arith.divf %410, %411 : vector<8x256xf32>
    %413 = vector.extract_strided_slice %400 {offsets = [0, 512], sizes = [8, 256], strides = [1, 1]} : vector<8x1024xf32> to vector<8x256xf32>
    %414 = math.tanh %413 : vector<8x256xf32>
    %415 = vector.extract_strided_slice %400 {offsets = [0, 768], sizes = [8, 256], strides = [1, 1]} : vector<8x1024xf32> to vector<8x256xf32>
    %416 = arith.negf %415 : vector<8x256xf32>
    %417 = math.exp %416 : vector<8x256xf32>
    %cst_123 = arith.constant 1.000000e+00 : f32
    %418 = vector.broadcast %cst_123 : f32 to vector<8x256xf32>
    %419 = arith.addf %418, %417 : vector<8x256xf32>
    %420 = arith.divf %418, %419 : vector<8x256xf32>
    %421 = arith.mulf %412, %360 : vector<8x256xf32>
    %422 = arith.mulf %406, %414 : vector<8x256xf32>
    %423 = arith.addf %421, %422 : vector<8x256xf32>
    %424 = math.tanh %423 : vector<8x256xf32>
    %425 = arith.mulf %420, %424 : vector<8x256xf32>
    %426 = arith.truncf %425 : vector<8x256xf32> to vector<8x256xbf16>
    %c0_124 = arith.constant 0 : index
    %c0_125 = arith.constant 0 : index
    %427 = vector.load %arg5[%c0_124, %c0_125] : memref<256x1024xbf16, #tpu.memory_space<vmem>>, vector<256x1024xbf16>
    %cst_126 = arith.constant dense<0.000000e+00> : vector<8x1024xf32>
    %428 = tpu.matmul %426, %427, %cst_126 {dimension_numbers = #tpu.dot_dimension_numbers<[1], [0], [0], [1], [0, 0, 1, 1], [], []>} : vector<8x256xbf16>, vector<256x1024xbf16>, vector<8x1024xf32> -> vector<8x1024xf32>
    %429 = arith.truncf %395 : vector<8x256xf32> to vector<8x256xbf16>
    %c0_127 = arith.constant 0 : index
    %c0_128 = arith.constant 0 : index
    %430 = vector.load %arg6[%c0_127, %c0_128] : memref<256x1024xbf16, #tpu.memory_space<vmem>>, vector<256x1024xbf16>
    %cst_129 = arith.constant dense<0.000000e+00> : vector<8x1024xf32>
    %431 = tpu.matmul %429, %430, %cst_129 {dimension_numbers = #tpu.dot_dimension_numbers<[1], [0], [0], [1], [0, 0, 1, 1], [], []>} : vector<8x256xbf16>, vector<256x1024xbf16>, vector<8x1024xf32> -> vector<8x1024xf32>
    %432 = arith.addf %428, %431 : vector<8x1024xf32>
    %433 = arith.addf %432, %9 : vector<8x1024xf32>
    %434 = vector.extract_strided_slice %433 {offsets = [0, 0], sizes = [8, 256], strides = [1, 1]} : vector<8x1024xf32> to vector<8x256xf32>
    %435 = arith.negf %434 : vector<8x256xf32>
    %436 = math.exp %435 : vector<8x256xf32>
    %cst_130 = arith.constant 1.000000e+00 : f32
    %437 = vector.broadcast %cst_130 : f32 to vector<8x256xf32>
    %438 = arith.addf %437, %436 : vector<8x256xf32>
    %439 = arith.divf %437, %438 : vector<8x256xf32>
    %440 = vector.extract_strided_slice %433 {offsets = [0, 256], sizes = [8, 256], strides = [1, 1]} : vector<8x1024xf32> to vector<8x256xf32>
    %441 = arith.negf %440 : vector<8x256xf32>
    %442 = math.exp %441 : vector<8x256xf32>
    %cst_131 = arith.constant 1.000000e+00 : f32
    %443 = vector.broadcast %cst_131 : f32 to vector<8x256xf32>
    %444 = arith.addf %443, %442 : vector<8x256xf32>
    %445 = arith.divf %443, %444 : vector<8x256xf32>
    %446 = vector.extract_strided_slice %433 {offsets = [0, 512], sizes = [8, 256], strides = [1, 1]} : vector<8x1024xf32> to vector<8x256xf32>
    %447 = math.tanh %446 : vector<8x256xf32>
    %448 = vector.extract_strided_slice %433 {offsets = [0, 768], sizes = [8, 256], strides = [1, 1]} : vector<8x1024xf32> to vector<8x256xf32>
    %449 = arith.negf %448 : vector<8x256xf32>
    %450 = math.exp %449 : vector<8x256xf32>
    %cst_132 = arith.constant 1.000000e+00 : f32
    %451 = vector.broadcast %cst_132 : f32 to vector<8x256xf32>
    %452 = arith.addf %451, %450 : vector<8x256xf32>
    %453 = arith.divf %451, %452 : vector<8x256xf32>
    %454 = arith.mulf %445, %393 : vector<8x256xf32>
    %455 = arith.mulf %439, %447 : vector<8x256xf32>
    %456 = arith.addf %454, %455 : vector<8x256xf32>
    %457 = math.tanh %456 : vector<8x256xf32>
    %458 = arith.mulf %453, %457 : vector<8x256xf32>
    %c56 = arith.constant 56 : index
    %c0_133 = arith.constant 0 : index
    %459 = vector.load %arg15[%c56, %c0_133] : memref<64x1024xf32, #tpu.memory_space<vmem>>, vector<8x1024xf32>
    %460 = arith.truncf %425 : vector<8x256xf32> to vector<8x256xbf16>
    %c0_134 = arith.constant 0 : index
    %c0_135 = arith.constant 0 : index
    %461 = vector.load %arg3[%c0_134, %c0_135] : memref<256x1024xbf16, #tpu.memory_space<vmem>>, vector<256x1024xbf16>
    %cst_136 = arith.constant dense<0.000000e+00> : vector<8x1024xf32>
    %462 = tpu.matmul %460, %461, %cst_136 {dimension_numbers = #tpu.dot_dimension_numbers<[1], [0], [0], [1], [0, 0, 1, 1], [], []>} : vector<8x256xbf16>, vector<256x1024xbf16>, vector<8x1024xf32> -> vector<8x1024xf32>
    %463 = arith.addf %459, %462 : vector<8x1024xf32>
    %464 = vector.extract_strided_slice %463 {offsets = [0, 0], sizes = [8, 256], strides = [1, 1]} : vector<8x1024xf32> to vector<8x256xf32>
    %465 = arith.negf %464 : vector<8x256xf32>
    %466 = math.exp %465 : vector<8x256xf32>
    %cst_137 = arith.constant 1.000000e+00 : f32
    %467 = vector.broadcast %cst_137 : f32 to vector<8x256xf32>
    %468 = arith.addf %467, %466 : vector<8x256xf32>
    %469 = arith.divf %467, %468 : vector<8x256xf32>
    %470 = vector.extract_strided_slice %463 {offsets = [0, 256], sizes = [8, 256], strides = [1, 1]} : vector<8x1024xf32> to vector<8x256xf32>
    %471 = arith.negf %470 : vector<8x256xf32>
    %472 = math.exp %471 : vector<8x256xf32>
    %cst_138 = arith.constant 1.000000e+00 : f32
    %473 = vector.broadcast %cst_138 : f32 to vector<8x256xf32>
    %474 = arith.addf %473, %472 : vector<8x256xf32>
    %475 = arith.divf %473, %474 : vector<8x256xf32>
    %476 = vector.extract_strided_slice %463 {offsets = [0, 512], sizes = [8, 256], strides = [1, 1]} : vector<8x1024xf32> to vector<8x256xf32>
    %477 = math.tanh %476 : vector<8x256xf32>
    %478 = vector.extract_strided_slice %463 {offsets = [0, 768], sizes = [8, 256], strides = [1, 1]} : vector<8x1024xf32> to vector<8x256xf32>
    %479 = arith.negf %478 : vector<8x256xf32>
    %480 = math.exp %479 : vector<8x256xf32>
    %cst_139 = arith.constant 1.000000e+00 : f32
    %481 = vector.broadcast %cst_139 : f32 to vector<8x256xf32>
    %482 = arith.addf %481, %480 : vector<8x256xf32>
    %483 = arith.divf %481, %482 : vector<8x256xf32>
    %484 = arith.mulf %475, %423 : vector<8x256xf32>
    %485 = arith.mulf %469, %477 : vector<8x256xf32>
    %486 = arith.addf %484, %485 : vector<8x256xf32>
    %487 = math.tanh %486 : vector<8x256xf32>
    %488 = arith.mulf %483, %487 : vector<8x256xf32>
    %489 = arith.truncf %488 : vector<8x256xf32> to vector<8x256xbf16>
    %c0_140 = arith.constant 0 : index
    %c0_141 = arith.constant 0 : index
    %490 = vector.load %arg5[%c0_140, %c0_141] : memref<256x1024xbf16, #tpu.memory_space<vmem>>, vector<256x1024xbf16>
    %cst_142 = arith.constant dense<0.000000e+00> : vector<8x1024xf32>
    %491 = tpu.matmul %489, %490, %cst_142 {dimension_numbers = #tpu.dot_dimension_numbers<[1], [0], [0], [1], [0, 0, 1, 1], [], []>} : vector<8x256xbf16>, vector<256x1024xbf16>, vector<8x1024xf32> -> vector<8x1024xf32>
    %492 = arith.truncf %458 : vector<8x256xf32> to vector<8x256xbf16>
    %c0_143 = arith.constant 0 : index
    %c0_144 = arith.constant 0 : index
    %493 = vector.load %arg6[%c0_143, %c0_144] : memref<256x1024xbf16, #tpu.memory_space<vmem>>, vector<256x1024xbf16>
    %cst_145 = arith.constant dense<0.000000e+00> : vector<8x1024xf32>
    %494 = tpu.matmul %492, %493, %cst_145 {dimension_numbers = #tpu.dot_dimension_numbers<[1], [0], [0], [1], [0, 0, 1, 1], [], []>} : vector<8x256xbf16>, vector<256x1024xbf16>, vector<8x1024xf32> -> vector<8x1024xf32>
    %495 = arith.addf %491, %494 : vector<8x1024xf32>
    %496 = arith.addf %495, %9 : vector<8x1024xf32>
    %497 = vector.extract_strided_slice %496 {offsets = [0, 0], sizes = [8, 256], strides = [1, 1]} : vector<8x1024xf32> to vector<8x256xf32>
    %498 = arith.negf %497 : vector<8x256xf32>
    %499 = math.exp %498 : vector<8x256xf32>
    %cst_146 = arith.constant 1.000000e+00 : f32
    %500 = vector.broadcast %cst_146 : f32 to vector<8x256xf32>
    %501 = arith.addf %500, %499 : vector<8x256xf32>
    %502 = arith.divf %500, %501 : vector<8x256xf32>
    %503 = vector.extract_strided_slice %496 {offsets = [0, 256], sizes = [8, 256], strides = [1, 1]} : vector<8x1024xf32> to vector<8x256xf32>
    %504 = arith.negf %503 : vector<8x256xf32>
    %505 = math.exp %504 : vector<8x256xf32>
    %cst_147 = arith.constant 1.000000e+00 : f32
    %506 = vector.broadcast %cst_147 : f32 to vector<8x256xf32>
    %507 = arith.addf %506, %505 : vector<8x256xf32>
    %508 = arith.divf %506, %507 : vector<8x256xf32>
    %509 = vector.extract_strided_slice %496 {offsets = [0, 512], sizes = [8, 256], strides = [1, 1]} : vector<8x1024xf32> to vector<8x256xf32>
    %510 = math.tanh %509 : vector<8x256xf32>
    %511 = vector.extract_strided_slice %496 {offsets = [0, 768], sizes = [8, 256], strides = [1, 1]} : vector<8x1024xf32> to vector<8x256xf32>
    %512 = arith.negf %511 : vector<8x256xf32>
    %513 = math.exp %512 : vector<8x256xf32>
    %cst_148 = arith.constant 1.000000e+00 : f32
    %514 = vector.broadcast %cst_148 : f32 to vector<8x256xf32>
    %515 = arith.addf %514, %513 : vector<8x256xf32>
    %516 = arith.divf %514, %515 : vector<8x256xf32>
    %517 = arith.mulf %508, %456 : vector<8x256xf32>
    %518 = arith.mulf %502, %510 : vector<8x256xf32>
    %519 = arith.addf %517, %518 : vector<8x256xf32>
    %520 = math.tanh %519 : vector<8x256xf32>
    %521 = arith.mulf %516, %520 : vector<8x256xf32>
    %c0_149 = arith.constant 0 : index
    %c0_150 = arith.constant 0 : index
    %c0_151 = arith.constant 0 : index
    %522 = vector.load %arg13[%c0_149, %c0_150, %c0_151] : memref<2x8x256xf32, #tpu.memory_space<vmem>>, vector<1x8x256xf32>
    %523 = vector.shape_cast %522 : vector<1x8x256xf32> to vector<8x256xf32>
    %524 = vector.shape_cast %488 : vector<8x256xf32> to vector<1x8x256xf32>
    tpu.vector_store %arg13[%c0_149, %c0_150, %c0_151], %524 {strides = array<i32>} : memref<2x8x256xf32, #tpu.memory_space<vmem>>, vector<1x8x256xf32>,
    %c1_152 = arith.constant 1 : index
    %c0_153 = arith.constant 0 : index
    %c0_154 = arith.constant 0 : index
    %525 = vector.load %arg13[%c1_152, %c0_153, %c0_154] : memref<2x8x256xf32, #tpu.memory_space<vmem>>, vector<1x8x256xf32>
    %526 = vector.shape_cast %525 : vector<1x8x256xf32> to vector<8x256xf32>
    %527 = vector.shape_cast %521 : vector<8x256xf32> to vector<1x8x256xf32>
    tpu.vector_store %arg13[%c1_152, %c0_153, %c0_154], %527 {strides = array<i32>} : memref<2x8x256xf32, #tpu.memory_space<vmem>>, vector<1x8x256xf32>,
    %c0_155 = arith.constant 0 : index
    %c0_156 = arith.constant 0 : index
    %c0_157 = arith.constant 0 : index
    %528 = vector.load %arg14[%c0_155, %c0_156, %c0_157] : memref<2x8x256xf32, #tpu.memory_space<vmem>>, vector<1x8x256xf32>
    %529 = vector.shape_cast %528 : vector<1x8x256xf32> to vector<8x256xf32>
    %530 = vector.shape_cast %486 : vector<8x256xf32> to vector<1x8x256xf32>
    tpu.vector_store %arg14[%c0_155, %c0_156, %c0_157], %530 {strides = array<i32>} : memref<2x8x256xf32, #tpu.memory_space<vmem>>, vector<1x8x256xf32>,
    %c1_158 = arith.constant 1 : index
    %c0_159 = arith.constant 0 : index
    %c0_160 = arith.constant 0 : index
    %531 = vector.load %arg14[%c1_158, %c0_159, %c0_160] : memref<2x8x256xf32, #tpu.memory_space<vmem>>, vector<1x8x256xf32>
    %532 = vector.shape_cast %531 : vector<1x8x256xf32> to vector<8x256xf32>
    %533 = vector.shape_cast %519 : vector<8x256xf32> to vector<1x8x256xf32>
    tpu.vector_store %arg14[%c1_158, %c0_159, %c0_160], %533 {strides = array<i32>} : memref<2x8x256xf32, #tpu.memory_space<vmem>>, vector<1x8x256xf32>,
    %c0_161 = arith.constant 0 : index
    %c0_162 = arith.constant 0 : index
    %534 = vector.load %arg8[%c0_161, %c0_162] : memref<1x256xf32, #tpu.memory_space<vmem>>, vector<1x256xf32>
    %535 = vector.broadcast %534 : vector<1x256xf32> to vector<8x256xf32>
    %536 = arith.mulf %521, %535 : vector<8x256xf32>
    %cst_163 = arith.constant dense<0.000000e+00> : vector<8xf32>
    %537 = vector.multi_reduction <add>, %536, %cst_163 [1] : vector<8x256xf32> to vector<8xf32>
    %538 = vector.shape_cast %537 : vector<8xf32> to vector<8x1xf32>
    %c0_164 = arith.constant 0 : index
    %c0_165 = arith.constant 0 : index
    %539 = vector.load %arg9[%c0_164, %c0_165] : memref<1x1xf32, #tpu.memory_space<vmem>>, vector<1x1xf32>
    %540 = vector.broadcast %539 : vector<1x1xf32> to vector<8x1xf32>
    %541 = arith.addf %538, %540 : vector<8x1xf32>
    %542 = arith.negf %541 : vector<8x1xf32>
    %543 = math.exp %542 : vector<8x1xf32>
    %cst_166 = arith.constant 1.000000e+00 : f32
    %544 = vector.broadcast %cst_166 : f32 to vector<8x1xf32>
    %545 = arith.addf %544, %543 : vector<8x1xf32>
    %546 = arith.divf %544, %545 : vector<8x1xf32>
    %547 = vector.shape_cast %546 : vector<8x1xf32> to vector<8x1xf32>
    %548 = vector.broadcast %547 : vector<8x1xf32> to vector<8x128xf32>
    %c0_167 = arith.constant 0 : index
    %c0_168 = arith.constant 0 : index
    %549 = vector.load %arg12[%c0_167, %c0_168] : memref<8x128xf32, #tpu.memory_space<vmem>>, vector<8x128xf32>
    tpu.vector_store %arg12[%c0_167, %c0_168], %548 {strides = array<i32>} : memref<8x128xf32, #tpu.memory_space<vmem>>, vector<8x128xf32>,
    return
  }
  func.func @transform_0(%arg0: i32) -> (i32, i32) {
    %c0_i32 = arith.constant 0 : i32
    %c0_i32_0 = arith.constant 0 : i32
    %c0_i32_1 = arith.constant 0 : i32
    return %c0_i32, %c0_i32_0 : i32, i32
  }
  func.func @transform_1(%arg0: i32) -> (i32, i32) {
    %c0_i32 = arith.constant 0 : i32
    %c0_i32_0 = arith.constant 0 : i32
    %c0_i32_1 = arith.constant 0 : i32
    return %c0_i32, %c0_i32_0 : i32, i32
  }
  func.func @transform_2(%arg0: i32) -> (i32, i32) {
    %c0_i32 = arith.constant 0 : i32
    %c0_i32_0 = arith.constant 0 : i32
    %c0_i32_1 = arith.constant 0 : i32
    return %c0_i32, %c0_i32_0 : i32, i32
  }
  func.func @transform_3(%arg0: i32) -> (i32, i32) {
    %c0_i32 = arith.constant 0 : i32
    %c0_i32_0 = arith.constant 0 : i32
    %c0_i32_1 = arith.constant 0 : i32
    return %c0_i32, %c0_i32_0 : i32, i32
  }
  func.func @transform_4(%arg0: i32) -> (i32, i32) {
    %c0_i32 = arith.constant 0 : i32
    %c0_i32_0 = arith.constant 0 : i32
    %c0_i32_1 = arith.constant 0 : i32
    return %c0_i32, %c0_i32_0 : i32, i32
  }
  func.func @transform_5(%arg0: i32) -> (i32, i32) {
    %c0_i32 = arith.constant 0 : i32
    %c0_i32_0 = arith.constant 0 : i32
    %c0_i32_1 = arith.constant 0 : i32
    return %c0_i32, %c0_i32_0 : i32, i32
  }
  func.func @transform_6(%arg0: i32) -> (i32, i32) {
    %c0_i32 = arith.constant 0 : i32
    %c0_i32_0 = arith.constant 0 : i32
    %c0_i32_1 = arith.constant 0 : i32
    return %c0_i32, %c0_i32_0 : i32, i32
  }
  func.func @transform_7(%arg0: i32) -> (i32, i32) {
    %c0_i32 = arith.constant 0 : i32
    %c0_i32_0 = arith.constant 0 : i32
    %c0_i32_1 = arith.constant 0 : i32
    return %c0_i32, %c0_i32_0 : i32, i32
  }
  func.func @transform_8(%arg0: i32) -> (i32, i32) {
    %c0_i32 = arith.constant 0 : i32
    %c0_i32_0 = arith.constant 0 : i32
    %c0_i32_1 = arith.constant 0 : i32
    return %c0_i32, %c0_i32_0 : i32, i32
  }
  func.func @transform_9(%arg0: i32) -> (i32, i32, i32) {
    %c0_i32 = arith.constant 0 : i32
    %c0_i32_0 = arith.constant 0 : i32
    %c0_i32_1 = arith.constant 0 : i32
    %c0_i32_2 = arith.constant 0 : i32
    return %c0_i32, %c0_i32_0, %c0_i32_1 : i32, i32, i32
  }
  func.func @transform_10(%arg0: i32) -> (i32, i32, i32) {
    %c0_i32 = arith.constant 0 : i32
    %c0_i32_0 = arith.constant 0 : i32
    %c0_i32_1 = arith.constant 0 : i32
    %c0_i32_2 = arith.constant 0 : i32
    return %c0_i32, %c0_i32_0, %c0_i32_1 : i32, i32, i32
  }
  func.func @transform_11(%arg0: i32) -> (i32, i32) {
    %c0_i32 = arith.constant 0 : i32
    %c0_i32_0 = arith.constant 0 : i32
    %c0_i32_1 = arith.constant 0 : i32
    return %c0_i32, %c0_i32_0 : i32, i32
  }
  func.func @transform_12(%arg0: i32) -> (i32, i32, i32) {
    %c0_i32 = arith.constant 0 : i32
    %c0_i32_0 = arith.constant 0 : i32
    %c0_i32_1 = arith.constant 0 : i32
    %c0_i32_2 = arith.constant 0 : i32
    return %c0_i32, %c0_i32_0, %c0_i32_1 : i32, i32, i32
  }
  func.func @transform_13(%arg0: i32) -> (i32, i32, i32) {
    %c0_i32 = arith.constant 0 : i32
    %c0_i32_0 = arith.constant 0 : i32
    %c0_i32_1 = arith.constant 0 : i32
    %c0_i32_2 = arith.constant 0 : i32
    return %c0_i32, %c0_i32_0, %c0_i32_1 : i32, i32, i32
  }
}

</mosaic_0001>

<llo_original>
// kernel: tpu_custom_call.1
$region0: #{tpu_custom_call.1}
  #allocation0 [shape = 'u32[]', space=smem, size = 0x4, offset = 0x4, fixed_abs, tag = 'smem constant byte address 0x4 - core index']
  #allocation1 [shape = 'u32[144,128]{1,0:T(1,128)}', space=vmem, size = 0x12000, scoped, tag = 'internal scratch']
  #allocation2 [shape = 'f32[64,1024]{1,0:T(8,128)}', space=vmem, size = 0x40000, scoped, tag = 'scratch operand']
  #allocation3 [shape = 'f32[1,1]{1,0:T(1,128)S(1)}', space=vmem, size = 0x200, scoped, tag = 'scoped memory for tpu_custom_call.1']
  %s0 = inlined_call_operand.vmem [shape: bf16[64,64], index: 0, kind: input, shape index: {}]
  %s1 = inlined_call_operand.hbm [shape: bf16[64,1024], index: 1, kind: input, shape index: {}]
  %s2 = inlined_call_operand.hbm [shape: bf16[256,1024], index: 2, kind: input, shape index: {}]
  %s3 = inlined_call_operand.vmem [shape: f32[1,1024], index: 3, kind: input, shape index: {}]
  %s4 = inlined_call_operand.hbm [shape: bf16[256,1024], index: 4, kind: input, shape index: {}]
  %s5 = inlined_call_operand.hbm [shape: bf16[256,1024], index: 5, kind: input, shape index: {}]
  %s6 = inlined_call_operand.vmem [shape: f32[1,1024], index: 6, kind: input, shape index: {}]
  %s7 = inlined_call_operand.vmem [shape: f32[1,256], index: 7, kind: input, shape index: {}]
  %s8 = inlined_call_operand.<no memory space> [shape: f32[1,1], index: 8, kind: input, shape index: {}]
  %s9 = inlined_call_operand.hbm [shape: f32[2,8,256], index: 9, kind: input, shape index: {}, may-alias: {9,12}]
  %s10 = inlined_call_operand.hbm [shape: f32[2,8,256], index: 10, kind: input, shape index: {}, may-alias: {10,13}]
  %s11 = inlined_call_operand.hbm [shape: f32[8,128], index: 11, kind: output, shape index: {0}]
  %s12 = inlined_call_operand.hbm [shape: f32[2,8,256], index: 12, kind: output, shape index: {1}, may-alias: {9,12}]
  %s13 = inlined_call_operand.hbm [shape: f32[2,8,256], index: 13, kind: output, shape index: {2}, may-alias: {10,13}]
  %14 = xla_tuple %s11, %s12, %s13
  %s15 = sld [smem:[#allocation0]]
  $region94: #{tpu_custom_call.1} parent=0
    _
  %s17 = ssub.s32 1, %s15
  %s18 = scalar_select 0, %s17, %s15
  %v19 = vstv %s8
  %20 = vst [vmem:[#allocation3] sm:$0x1] %v19
  $region1: #{tpu_custom_call.1} parent=0
    #allocation4 [shape = 'u8[131072]{0}', space=vmem, size = 0x20000, scoped, tag = 'input window, operand 1, single buffered']
    #allocation5 [shape = 's32[1]{0}', space=sflag, size = 0x4, scoped, tag = 'scoped memory for tpu_custom_call.1']
    #allocation6 [shape = 's32[1]{0}', space=sflag, size = 0x4, scoped, tag = 'scoped memory for tpu_custom_call.1']
    #allocation7 [shape = 'u8[524288]{0}', space=vmem, size = 0x80000, scoped, tag = 'input window, operand 2, single buffered']
    #allocation8 [shape = 's32[1]{0}', space=sflag, size = 0x4, scoped, tag = 'scoped memory for tpu_custom_call.1']
    #allocation9 [shape = 'u8[524288]{0}', space=vmem, size = 0x80000, scoped, tag = 'input window, operand 4, single buffered']
    #allocation10 [shape = 'u8[524288]{0}', space=vmem, size = 0x80000, scoped, tag = 'input window, operand 5, single buffered']
    #allocation11 [shape = 's32[1]{0}', space=sflag, size = 0x4, scoped, tag = 'scoped memory for tpu_custom_call.1']
    #allocation12 [shape = 'u8[16384]{0}', space=vmem, size = 0x4000, scoped, tag = 'input window, operand 9, single buffered']
    #allocation13 [shape = 'u8[16384]{0}', space=vmem, size = 0x4000, scoped, tag = 'input window, operand 10, single buffered']
    #allocation14 [shape = 's32[1]{0}', space=sflag, size = 0x4, scoped, tag = 'scoped memory for tpu_custom_call.1']
    #allocation15 [shape = 'u8[4096]{0}', space=vmem, size = 0x1000, scoped, tag = 'output window, operand 0, single buffered']
    #allocation16 [shape = 'u8[16384]{0}', space=vmem, size = 0x4000, scoped, tag = 'output window, operand 1, single buffered']
    #allocation17 [shape = 's32[1]{0}', space=sflag, size = 0x4, scoped, tag = 'scoped memory for tpu_custom_call.1']
    #allocation18 [shape = 'u8[16384]{0}', space=vmem, size = 0x4000, scoped, tag = 'output window, operand 2, single buffered']
    %21 = vsyncpa [#allocation5], 0
    %22 = vsyncpa [#allocation8], 0
    %23 = vsyncpa [#allocation11], 0
    %24 = vsyncpa [#allocation14], 0
    %25 = vsyncpa [#allocation6], 0
    %26 = vsyncpa [#allocation17], 0
    // Predicated region
    $region2: #{tpu_custom_call.1} parent=1 // pred_check
      _
    $region3: #{tpu_custom_call.1} parent=1 // pred_check_branch
      %28 = sbr.rel (0) target = $region5
    $region4: #{tpu_custom_call.1} parent=1 // pred_region
      _
    $region5: #{tpu_custom_call.1} parent=1 // pred_fallthru
      _
    // Predicated region
    $region6: #{tpu_custom_call.1} parent=1 // pred_check
      _
    $region7: #{tpu_custom_call.1} parent=1 // pred_check_branch
      %30 = sbr.rel (0) target = $region9
    $region8: #{tpu_custom_call.1} parent=1 // pred_region
      %s32 = ssub.s32 4096, 4096
      %33 = vsyncadd [#allocation5], %s32
      %s34 = sshll.u32 [#allocation4], 4
      %s35 = int_to_ptr.vmem [resolvable:$true] %s34
      %40 = dma.hbm_to_vmem [thread:$0]  %s1, 4096, %s35, [#allocation5], 512, 512, 32
    $region9: #{tpu_custom_call.1} parent=1 // pred_fallthru
      _
    // Predicated region
    $region10: #{tpu_custom_call.1} parent=1 // pred_check
      _
    $region11: #{tpu_custom_call.1} parent=1 // pred_check_branch
      %42 = sbr.rel (0) target = $region13
    $region12: #{tpu_custom_call.1} parent=1 // pred_region
      %s44 = ssub.s32 16384, 16384
      %45 = vsyncadd [#allocation8], %s44
      %s46 = sshll.u32 [#allocation7], 4
      %s47 = int_to_ptr.vmem [resolvable:$true] %s46
      %52 = dma.hbm_to_vmem [thread:$0]  %s2, 16384, %s47, [#allocation8], 512, 512, 32
    $region13: #{tpu_custom_call.1} parent=1 // pred_fallthru
      _
    // Predicated region
    $region14: #{tpu_custom_call.1} parent=1 // pred_check
      _
    $region15: #{tpu_custom_call.1} parent=1 // pred_check_branch
      %54 = sbr.rel (0) target = $region17
    $region16: #{tpu_custom_call.1} parent=1 // pred_region
      _
    $region17: #{tpu_custom_call.1} parent=1 // pred_fallthru
      _
    // Predicated region
    $region18: #{tpu_custom_call.1} parent=1 // pred_check
      _
    $region19: #{tpu_custom_call.1} parent=1 // pred_check_branch
      %56 = sbr.rel (0) target = $region21
    $region20: #{tpu_custom_call.1} parent=1 // pred_region
      %s58 = ssub.s32 16384, 16384
      %59 = vsyncadd [#allocation8], %s58
      %s60 = sshll.u32 [#allocation9], 4
      %s61 = int_to_ptr.vmem [resolvable:$true] %s60
      %66 = dma.hbm_to_vmem [thread:$0]  %s4, 16384, %s61, [#allocation8], 512, 512, 32
    $region21: #{tpu_custom_call.1} parent=1 // pred_fallthru
      _
    // Predicated region
    $region22: #{tpu_custom_call.1} parent=1 // pred_check
      _
    $region23: #{tpu_custom_call.1} parent=1 // pred_check_branch
      %68 = sbr.rel (0) target = $region25
    $region24: #{tpu_custom_call.1} parent=1 // pred_region
      %s70 = ssub.s32 16384, 16384
      %71 = vsyncadd [#allocation11], %s70
      %s72 = sshll.u32 [#allocation10], 4
      %s73 = int_to_ptr.vmem [resolvable:$true] %s72
      %78 = dma.hbm_to_vmem [thread:$0]  %s5, 16384, %s73, [#allocation11], 512, 512, 32
    $region25: #{tpu_custom_call.1} parent=1 // pred_fallthru
      _
    // Predicated region
    $region26: #{tpu_custom_call.1} parent=1 // pred_check
      _
    $region27: #{tpu_custom_call.1} parent=1 // pred_check_branch
      %80 = sbr.rel (0) target = $region29
    $region28: #{tpu_custom_call.1} parent=1 // pred_region
      _
    $region29: #{tpu_custom_call.1} parent=1 // pred_fallthru
      _
    // Predicated region
    $region30: #{tpu_custom_call.1} parent=1 // pred_check
      _
    $region31: #{tpu_custom_call.1} parent=1 // pred_check_branch
      %82 = sbr.rel (0) target = $region33
    $region32: #{tpu_custom_call.1} parent=1 // pred_region
      _
    $region33: #{tpu_custom_call.1} parent=1 // pred_fallthru
      _
    // Predicated region
    $region34: #{tpu_custom_call.1} parent=1 // pred_check
      _
    $region35: #{tpu_custom_call.1} parent=1 // pred_check_branch
      %84 = sbr.rel (0) target = $region37
    $region36: #{tpu_custom_call.1} parent=1 // pred_region
      _
    $region37: #{tpu_custom_call.1} parent=1 // pred_fallthru
      _
    // Predicated region
    $region38: #{tpu_custom_call.1} parent=1 // pred_check
      _
    $region39: #{tpu_custom_call.1} parent=1 // pred_check_branch
      %86 = sbr.rel (0) target = $region41
    $region40: #{tpu_custom_call.1} parent=1 // pred_region
      %s88 = ssub.s32 512, 512
      %89 = vsyncadd [#allocation11], %s88
      %s90 = sshll.u32 [#allocation12], 4
      %s91 = int_to_ptr.vmem [resolvable:$true] %s90
      %96 = dma.hbm_to_vmem [thread:$0]  %s9, 512, %s91, [#allocation11], 256, 256, 16
    $region41: #{tpu_custom_call.1} parent=1 // pred_fallthru
      _
    // Predicated region
    $region42: #{tpu_custom_call.1} parent=1 // pred_check
      _
    $region43: #{tpu_custom_call.1} parent=1 // pred_check_branch
      %98 = sbr.rel (0) target = $region45
    $region44: #{tpu_custom_call.1} parent=1 // pred_region
      %s100 = ssub.s32 512, 512
      %101 = vsyncadd [#allocation14], %s100
      %s102 = sshll.u32 [#allocation13], 4
      %s103 = int_to_ptr.vmem [resolvable:$true] %s102
      %108 = dma.hbm_to_vmem [thread:$0]  %s10, 512, %s103, [#allocation14], 256, 256, 16
    $region45: #{tpu_custom_call.1} parent=1 // pred_fallthru
      _
    // Predicated region
    $region46: #{tpu_custom_call.1} parent=1 // pred_check
      _
    $region47: #{tpu_custom_call.1} parent=1 // pred_check_branch
      %110 = sbr.rel (0) target = $region49
    $region48: #{tpu_custom_call.1} parent=1 // pred_region
      %111 = dma.done [#allocation5], 4096
    $region49: #{tpu_custom_call.1} parent=1 // pred_fallthru
      _
    // Predicated region
    $region50: #{tpu_custom_call.1} parent=1 // pred_check
      _
    $region51: #{tpu_custom_call.1} parent=1 // pred_check_branch
      %113 = sbr.rel (0) target = $region53
    $region52: #{tpu_custom_call.1} parent=1 // pred_region
      %114 = dma.done [#allocation8], 16384
    $region53: #{tpu_custom_call.1} parent=1 // pred_fallthru
      _
    // Predicated region
    $region54: #{tpu_custom_call.1} parent=1 // pred_check
      _
    $region55: #{tpu_custom_call.1} parent=1 // pred_check_branch
      %116 = sbr.rel (0) target = $region57
    $region56: #{tpu_custom_call.1} parent=1 // pred_region
      %117 = dma.done [#allocation8], 16384
    $region57: #{tpu_custom_call.1} parent=1 // pred_fallthru
      _
    // Predicated region
    $region58: #{tpu_custom_call.1} parent=1 // pred_check
      _
    $region59: #{tpu_custom_call.1} parent=1 // pred_check_branch
      %119 = sbr.rel (0) target = $region61
    $region60: #{tpu_custom_call.1} parent=1 // pred_region
      %120 = dma.done [#allocation11], 16384
    $region61: #{tpu_custom_call.1} parent=1 // pred_fallthru
      _
    // Predicated region
    $region62: #{tpu_custom_call.1} parent=1 // pred_check
      _
    $region63: #{tpu_custom_call.1} parent=1 // pred_check_branch
      %122 = sbr.rel (0) target = $region65
    $region64: #{tpu_custom_call.1} parent=1 // pred_region
      %123 = dma.done [#allocation11], 512
    $region65: #{tpu_custom_call.1} parent=1 // pred_fallthru
      _
    // Predicated region
    $region66: #{tpu_custom_call.1} parent=1 // pred_check
      _
    $region67: #{tpu_custom_call.1} parent=1 // pred_check_branch
      %125 = sbr.rel (0) target = $region69
    $region68: #{tpu_custom_call.1} parent=1 // pred_region
      %126 = dma.done [#allocation14], 512
    $region69: #{tpu_custom_call.1} parent=1 // pred_fallthru
      _
    %v128 = vld [vmem:[%s0] sm:$0xf]
    %v129 = vld [vmem:[%s0 + $0x4] sm:$0xf]
    %v130 = vld [vmem:[%s0 + $0x8] sm:$0xf]
    %v131 = vld [vmem:[%s0 + $0xc] sm:$0xf]
    %v132 = vld [vmem:[%s0 + $0x10] sm:$0xf]
    %v133 = vld [vmem:[%s0 + $0x14] sm:$0xf]
    %v134 = vld [vmem:[%s0 + $0x18] sm:$0xf]
    %v135 = vld [vmem:[%s0 + $0x1c] sm:$0xf]
    %v136 = vld [vmem:[#allocation4] sm:$0xff]
    %v137 = vld [vmem:[#allocation4 + $0x8] sm:$0xff]
    %v138 = vld [vmem:[#allocation4 + $0x10] sm:$0xff]
    %v139 = vld [vmem:[#allocation4 + $0x18] sm:$0xff]
    %v140 = vld [vmem:[#allocation4 + $0x20] sm:$0xff]
    %v141 = vld [vmem:[#allocation4 + $0x28] sm:$0xff]
    %v142 = vld [vmem:[#allocation4 + $0x30] sm:$0xff]
    %v143 = vld [vmem:[#allocation4 + $0x38] sm:$0xff]
    %v144 = vld [vmem:[#allocation4 + $0x40] sm:$0xff]
    %v145 = vld [vmem:[#allocation4 + $0x48] sm:$0xff]
    %v146 = vld [vmem:[#allocation4 + $0x50] sm:$0xff]
    %v147 = vld [vmem:[#allocation4 + $0x58] sm:$0xff]
    %v148 = vld [vmem:[#allocation4 + $0x60] sm:$0xff]
    %v149 = vld [vmem:[#allocation4 + $0x68] sm:$0xff]
    %v150 = vld [vmem:[#allocation4 + $0x70] sm:$0xff]
    %v151 = vld [vmem:[#allocation4 + $0x78] sm:$0xff]
    %v152 = vld [vmem:[#allocation4 + $0x80] sm:$0xff]
    %v153 = vld [vmem:[#allocation4 + $0x88] sm:$0xff]
    %v154 = vld [vmem:[#allocation4 + $0x90] sm:$0xff]
    %v155 = vld [vmem:[#allocation4 + $0x98] sm:$0xff]
    %v156 = vld [vmem:[#allocation4 + $0xa0] sm:$0xff]
    %v157 = vld [vmem:[#allocation4 + $0xa8] sm:$0xff]
    %v158 = vld [vmem:[#allocation4 + $0xb0] sm:$0xff]
    %v159 = vld [vmem:[#allocation4 + $0xb8] sm:$0xff]
    %v160 = vld [vmem:[#allocation4 + $0xc0] sm:$0xff]
    %v161 = vld [vmem:[#allocation4 + $0xc8] sm:$0xff]
    %v162 = vld [vmem:[#allocation4 + $0xd0] sm:$0xff]
    %v163 = vld [vmem:[#allocation4 + $0xd8] sm:$0xff]
    %v164 = vld [vmem:[#allocation4 + $0xe0] sm:$0xff]
    %v165 = vld [vmem:[#allocation4 + $0xe8] sm:$0xff]
    %v166 = vld [vmem:[#allocation4 + $0xf0] sm:$0xff]
    %v167 = vld [vmem:[#allocation4 + $0xf8] sm:$0xff]
    %v168 = vld [vmem:[%s3] sm:$0xff]
    %v170 = vlaneseq
    %v171 = vshrl.u32 %v170, 7
    %v172 = vsub.s32 0, %v171
    %v173 = vrot.slane %v168, %v172
    %v174 = vlaneseq
    %v175 = vshrl.u32 %v174, 7
    %v176 = vsub.s32 1, %v175
    %v177 = vrot.slane %v168, %v176
    %v178 = vlaneseq
    %v179 = vshrl.u32 %v178, 7
    %v180 = vsub.s32 2, %v179
    %v181 = vrot.slane %v168, %v180
    %v182 = vlaneseq
    %v183 = vshrl.u32 %v182, 7
    %v184 = vsub.s32 3, %v183
    %v185 = vrot.slane %v168, %v184
    %v186 = vlaneseq
    %v187 = vshrl.u32 %v186, 7
    %v188 = vsub.s32 4, %v187
    %v189 = vrot.slane %v168, %v188
    %v190 = vlaneseq
    %v191 = vshrl.u32 %v190, 7
    %v192 = vsub.s32 5, %v191
    %v193 = vrot.slane %v168, %v192
    %v194 = vlaneseq
    %v195 = vshrl.u32 %v194, 7
    %v196 = vsub.s32 6, %v195
    %v197 = vrot.slane %v168, %v196
    %v198 = vlaneseq
    %v199 = vshrl.u32 %v198, 7
    %v200 = vsub.s32 7, %v199
    %v201 = vrot.slane %v168, %v200
    %v218 = vunpack.c.l.b16 %v128
    %v219 = vunpack.c.l.b16 %v129
    %v220 = vunpack.c.l.b16 %v130
    %v221 = vunpack.c.l.b16 %v131
    %v222 = vunpack.c.l.b16 %v132
    %v223 = vunpack.c.l.b16 %v133
    %v224 = vunpack.c.l.b16 %v134
    %v225 = vunpack.c.l.b16 %v135
    %v226 = vpack.c.b16 %v219, %v218
    %v227 = vpack.c.b16 %v221, %v220
    %v228 = vpack.c.b16 %v223, %v222
    %v229 = vpack.c.b16 %v225, %v224
    %v262 = vunpack.c.l.b16 %v136
    %v263 = vunpack.c.h.b16 %v136
    %v264 = vunpack.c.l.b16 %v137
    %v265 = vunpack.c.h.b16 %v137
    %v266 = vunpack.c.l.b16 %v138
    %v267 = vunpack.c.h.b16 %v138
    %v268 = vunpack.c.l.b16 %v139
    %v269 = vunpack.c.h.b16 %v139
    %v270 = vunpack.c.l.b16 %v140
    %v271 = vunpack.c.h.b16 %v140
    %v272 = vunpack.c.l.b16 %v141
    %v273 = vunpack.c.h.b16 %v141
    %v274 = vunpack.c.l.b16 %v142
    %v275 = vunpack.c.h.b16 %v142
    %v276 = vunpack.c.l.b16 %v143
    %v277 = vunpack.c.h.b16 %v143
    %v278 = vunpack.c.l.b16 %v144
    %v279 = vunpack.c.h.b16 %v144
    %v280 = vunpack.c.l.b16 %v145
    %v281 = vunpack.c.h.b16 %v145
    %v282 = vunpack.c.l.b16 %v146
    %v283 = vunpack.c.h.b16 %v146
    %v284 = vunpack.c.l.b16 %v147
    %v285 = vunpack.c.h.b16 %v147
    %v286 = vunpack.c.l.b16 %v148
    %v287 = vunpack.c.h.b16 %v148
    %v288 = vunpack.c.l.b16 %v149
    %v289 = vunpack.c.h.b16 %v149
    %v290 = vunpack.c.l.b16 %v150
    %v291 = vunpack.c.h.b16 %v150
    %v292 = vunpack.c.l.b16 %v151
    %v293 = vunpack.c.h.b16 %v151
    %v294 = vunpack.c.l.b16 %v152
    %v295 = vunpack.c.h.b16 %v152
    %v296 = vunpack.c.l.b16 %v153
    %v297 = vunpack.c.h.b16 %v153
    %v298 = vunpack.c.l.b16 %v154
    %v299 = vunpack.c.h.b16 %v154
    %v300 = vunpack.c.l.b16 %v155
    %v301 = vunpack.c.h.b16 %v155
    %v302 = vunpack.c.l.b16 %v156
    %v303 = vunpack.c.h.b16 %v156
    %v304 = vunpack.c.l.b16 %v157
    %v305 = vunpack.c.h.b16 %v157
    %v306 = vunpack.c.l.b16 %v158
    %v307 = vunpack.c.h.b16 %v158
    %v308 = vunpack.c.l.b16 %v159
    %v309 = vunpack.c.h.b16 %v159
    %v310 = vunpack.c.l.b16 %v160
    %v311 = vunpack.c.h.b16 %v160
    %v312 = vunpack.c.l.b16 %v161
    %v313 = vunpack.c.h.b16 %v161
    %v314 = vunpack.c.l.b16 %v162
    %v315 = vunpack.c.h.b16 %v162
    %v316 = vunpack.c.l.b16 %v163
    %v317 = vunpack.c.h.b16 %v163
    %v318 = vunpack.c.l.b16 %v164
    %v319 = vunpack.c.h.b16 %v164
    %v320 = vunpack.c.l.b16 %v165
    %v321 = vunpack.c.h.b16 %v165
    %v322 = vunpack.c.l.b16 %v166
    %v323 = vunpack.c.h.b16 %v166
    %v324 = vunpack.c.l.b16 %v167
    %v325 = vunpack.c.h.b16 %v167
    %v326 = vpack.c.b16 %v270, %v262
    %v327 = vpack.c.b16 %v271, %v263
    %v328 = vpack.c.b16 %v272, %v264
    %v329 = vpack.c.b16 %v273, %v265
    %v330 = vpack.c.b16 %v274, %v266
    %v331 = vpack.c.b16 %v275, %v267
    %v332 = vpack.c.b16 %v276, %v268
    %v333 = vpack.c.b16 %v277, %v269
    %v334 = vpack.c.b16 %v286, %v278
    %v335 = vpack.c.b16 %v287, %v279
    %v336 = vpack.c.b16 %v288, %v280
    %v337 = vpack.c.b16 %v289, %v281
    %v338 = vpack.c.b16 %v290, %v282
    %v339 = vpack.c.b16 %v291, %v283
    %v340 = vpack.c.b16 %v292, %v284
    %v341 = vpack.c.b16 %v293, %v285
    %v342 = vpack.c.b16 %v302, %v294
    %v343 = vpack.c.b16 %v303, %v295
    %v344 = vpack.c.b16 %v304, %v296
    %v345 = vpack.c.b16 %v305, %v297
    %v346 = vpack.c.b16 %v306, %v298
    %v347 = vpack.c.b16 %v307, %v299
    %v348 = vpack.c.b16 %v308, %v300
    %v349 = vpack.c.b16 %v309, %v301
    %v350 = vpack.c.b16 %v318, %v310
    %v351 = vpack.c.b16 %v319, %v311
    %v352 = vpack.c.b16 %v320, %v312
    %v353 = vpack.c.b16 %v321, %v313
    %v354 = vpack.c.b16 %v322, %v314
    %v355 = vpack.c.b16 %v323, %v315
    %v356 = vpack.c.b16 %v324, %v316
    %v357 = vpack.c.b16 %v325, %v317
    %vm390 = vcmask 523264
    %v392 = vsel %vm390, %v226, 0
    %v395 = vsel %vm390, %v227, 0
    %v398 = vsel %vm390, %v228, 0
    %v401 = vsel %vm390, %v229, 0
    %403 = vmatprep.subr.bf16.mxu0 0
    %404 = vmatpush1.bf16.msra.mxu0 0
    %405 = vmatprep.subr.bf16.mxu0 0
    %406 = vmatpush1.bf16.msra.mxu0 0
    %407 = vmatprep.subr.bf16.mxu0 0
    %408 = vmatpush1.bf16.msra.mxu0 0
    %409 = vmatprep.subr.bf16.mxu0 0
    %410 = vmatpush1.bf16.msra.mxu0 0
    %411 = vmatprep.subr.bf16.mxu0 %v351
    %412 = vmatpush1.bf16.msra.mxu0 %v350
    %413 = vmatprep.subr.bf16.mxu0 %v343
    %414 = vmatpush1.bf16.msra.mxu0 %v342
    %415 = vmatprep.subr.bf16.mxu0 %v335
    %416 = vmatpush1.bf16.msra.mxu0 %v334
    %417 = vmatprep.subr.bf16.mxu0 %v327
    %418 = vmatpush1.bf16.msra.mxu0 %v326
    %419 = vmatprep.subr.bf16.mxu0 0
    %420 = vmatpush2.bf16.msra.mxu0 0
    %421 = vmatprep.subr.bf16.mxu0 0
    %422 = vmatpush2.bf16.msra.mxu0 0
    %423 = vmatprep.subr.bf16.mxu0 0
    %424 = vmatpush2.bf16.msra.mxu0 0
    %425 = vmatprep.subr.bf16.mxu0 0
    %426 = vmatpush2.bf16.msra.mxu0 0
    %427 = vmatprep.subr.bf16.mxu0 0
    %428 = vmatpush2.bf16.msra.mxu0 0
    %429 = vmatprep.subr.bf16.mxu0 0
    %430 = vmatpush2.bf16.msra.mxu0 0
    %431 = vmatprep.subr.bf16.mxu0 0
    %432 = vmatpush2.bf16.msra.mxu0 0
    %433 = vmatprep.subr.bf16.mxu0 0
    %434 = vmatpush2.bf16.msra.mxu0 0
    %435 = vmatprep.mubr.bf16.mxu0 0
    %436 = vmatmul.mubr.bf16.gmra.mxu0 %v392
    %v437 = vpop.f32.mrf.mxu0
    %v438 = vadd.f32 %v173, %v437
    %v439 = vpop.f32.mrf.mxu0
    %v440 = vadd.f32 %v177, %v439
    %v441 = vpop.f32.mrf.mxu0
    %v442 = vadd.f32 %v173, %v441
    %v443 = vpop.f32.mrf.mxu0
    %v444 = vadd.f32 %v177, %v443
    %445 = vmatprep.mubr.bf16.mxu0 0
    %446 = vmatmul.mubr.bf16.gmra.mxu0 %v395
    %v447 = vpop.f32.mrf.mxu0
    %v448 = vadd.f32 %v173, %v447
    %v449 = vpop.f32.mrf.mxu0
    %v450 = vadd.f32 %v177, %v449
    %v451 = vpop.f32.mrf.mxu0
    %v452 = vadd.f32 %v173, %v451
    %v453 = vpop.f32.mrf.mxu0
    %v454 = vadd.f32 %v177, %v453
    %455 = vmatprep.mubr.bf16.mxu0 0
    %456 = vmatmul.mubr.bf16.gmra.mxu0 %v398
    %v457 = vpop.f32.mrf.mxu0
    %v458 = vadd.f32 %v173, %v457
    %v459 = vpop.f32.mrf.mxu0
    %v460 = vadd.f32 %v177, %v459
    %v461 = vpop.f32.mrf.mxu0
    %v462 = vadd.f32 %v173, %v461
    %v463 = vpop.f32.mrf.mxu0
    %v464 = vadd.f32 %v177, %v463
    %465 = vmatprep.mubr.bf16.mxu0 0
    %466 = vmatmul.mubr.bf16.gmra.mxu0 %v401
    %v467 = vpop.f32.mrf.mxu0
    %v468 = vadd.f32 %v173, %v467
    %v469 = vpop.f32.mrf.mxu0
    %v470 = vadd.f32 %v177, %v469
    %v471 = vpop.f32.mrf.mxu0
    %v472 = vadd.f32 %v173, %v471
    %v473 = vpop.f32.mrf.mxu0
    %v474 = vadd.f32 %v177, %v473
    %475 = vdwg.mxu0
    %476 = vmatprep.subr.bf16.mxu0 0
    %477 = vmatpush1.bf16.msra.mxu0 0
    %478 = vmatprep.subr.bf16.mxu0 0
    %479 = vmatpush1.bf16.msra.mxu0 0
    %480 = vmatprep.subr.bf16.mxu0 0
    %481 = vmatpush1.bf16.msra.mxu0 0
    %482 = vmatprep.subr.bf16.mxu0 0
    %483 = vmatpush1.bf16.msra.mxu0 0
    %484 = vmatprep.subr.bf16.mxu0 %v353
    %485 = vmatpush1.bf16.msra.mxu0 %v352
    %486 = vmatprep.subr.bf16.mxu0 %v345
    %487 = vmatpush1.bf16.msra.mxu0 %v344
    %488 = vmatprep.subr.bf16.mxu0 %v337
    %489 = vmatpush1.bf16.msra.mxu0 %v336
    %490 = vmatprep.subr.bf16.mxu0 %v329
    %491 = vmatpush1.bf16.msra.mxu0 %v328
    %492 = vmatprep.subr.bf16.mxu0 0
    %493 = vmatpush2.bf16.msra.mxu0 0
    %494 = vmatprep.subr.bf16.mxu0 0
    %495 = vmatpush2.bf16.msra.mxu0 0
    %496 = vmatprep.subr.bf16.mxu0 0
    %497 = vmatpush2.bf16.msra.mxu0 0
    %498 = vmatprep.subr.bf16.mxu0 0
    %499 = vmatpush2.bf16.msra.mxu0 0
    %500 = vmatprep.subr.bf16.mxu0 0
    %501 = vmatpush2.bf16.msra.mxu0 0
    %502 = vmatprep.subr.bf16.mxu0 0
    %503 = vmatpush2.bf16.msra.mxu0 0
    %504 = vmatprep.subr.bf16.mxu0 0
    %505 = vmatpush2.bf16.msra.mxu0 0
    %506 = vmatprep.subr.bf16.mxu0 0
    %507 = vmatpush2.bf16.msra.mxu0 0
    %508 = vmatprep.mubr.bf16.mxu0 0
    %509 = vmatmul.mubr.bf16.gmra.mxu0 %v392
    %v510 = vpop.f32.mrf.mxu0
    %v511 = vadd.f32 %v181, %v510
    %v512 = vpop.f32.mrf.mxu0
    %v513 = vadd.f32 %v185, %v512
    %v514 = vpop.f32.mrf.mxu0
    %v515 = vadd.f32 %v181, %v514
    %v516 = vpop.f32.mrf.mxu0
    %v517 = vadd.f32 %v185, %v516
    %518 = vmatprep.mubr.bf16.mxu0 0
    %519 = vmatmul.mubr.bf16.gmra.mxu0 %v395
    %v520 = vpop.f32.mrf.mxu0
    %v521 = vadd.f32 %v181, %v520
    %v522 = vpop.f32.mrf.mxu0
    %v523 = vadd.f32 %v185, %v522
    %v524 = vpop.f32.mrf.mxu0
    %v525 = vadd.f32 %v181, %v524
    %v526 = vpop.f32.mrf.mxu0
    %v527 = vadd.f32 %v185, %v526
    %528 = vmatprep.mubr.bf16.mxu0 0
    %529 = vmatmul.mubr.bf16.gmra.mxu0 %v398
    %v530 = vpop.f32.mrf.mxu0
    %v531 = vadd.f32 %v181, %v530
    %v532 = vpop.f32.mrf.mxu0
    %v533 = vadd.f32 %v185, %v532
    %v534 = vpop.f32.mrf.mxu0
    %v535 = vadd.f32 %v181, %v534
    %v536 = vpop.f32.mrf.mxu0
    %v537 = vadd.f32 %v185, %v536
    %538 = vmatprep.mubr.bf16.mxu0 0
    %539 = vmatmul.mubr.bf16.gmra.mxu0 %v401
    %v540 = vpop.f32.mrf.mxu0
    %v541 = vadd.f32 %v181, %v540
    %v542 = vpop.f32.mrf.mxu0
    %v543 = vadd.f32 %v185, %v542
    %v544 = vpop.f32.mrf.mxu0
    %v545 = vadd.f32 %v181, %v544
    %v546 = vpop.f32.mrf.mxu0
    %v547 = vadd.f32 %v185, %v546
    %548 = vdwg.mxu0
    %549 = vmatprep.subr.bf16.mxu0 0
    %550 = vmatpush1.bf16.msra.mxu0 0
    %551 = vmatprep.subr.bf16.mxu0 0
    %552 = vmatpush1.bf16.msra.mxu0 0
    %553 = vmatprep.subr.bf16.mxu0 0
    %554 = vmatpush1.bf16.msra.mxu0 0
    %555 = vmatprep.subr.bf16.mxu0 0
    %556 = vmatpush1.bf16.msra.mxu0 0
    %557 = vmatprep.subr.bf16.mxu0 %v355
    %558 = vmatpush1.bf16.msra.mxu0 %v354
    %559 = vmatprep.subr.bf16.mxu0 %v347
    %560 = vmatpush1.bf16.msra.mxu0 %v346
    %561 = vmatprep.subr.bf16.mxu0 %v339
    %562 = vmatpush1.bf16.msra.mxu0 %v338
    %563 = vmatprep.subr.bf16.mxu0 %v331
    %564 = vmatpush1.bf16.msra.mxu0 %v330
    %565 = vmatprep.subr.bf16.mxu0 0
    %566 = vmatpush2.bf16.msra.mxu0 0
    %567 = vmatprep.subr.bf16.mxu0 0
    %568 = vmatpush2.bf16.msra.mxu0 0
    %569 = vmatprep.subr.bf16.mxu0 0
    %570 = vmatpush2.bf16.msra.mxu0 0
    %571 = vmatprep.subr.bf16.mxu0 0
    %572 = vmatpush2.bf16.msra.mxu0 0
    %573 = vmatprep.subr.bf16.mxu0 0
    %574 = vmatpush2.bf16.msra.mxu0 0
    %575 = vmatprep.subr.bf16.mxu0 0
    %576 = vmatpush2.bf16.msra.mxu0 0
    %577 = vmatprep.subr.bf16.mxu0 0
    %578 = vmatpush2.bf16.msra.mxu0 0
    %579 = vmatprep.subr.bf16.mxu0 0
    %580 = vmatpush2.bf16.msra.mxu0 0
    %581 = vmatprep.mubr.bf16.mxu0 0
    %582 = vmatmul.mubr.bf16.gmra.mxu0 %v392
    %v583 = vpop.f32.mrf.mxu0
    %v584 = vadd.f32 %v189, %v583
    %v585 = vpop.f32.mrf.mxu0
    %v586 = vadd.f32 %v193, %v585
    %v587 = vpop.f32.mrf.mxu0
    %v588 = vadd.f32 %v189, %v587
    %v589 = vpop.f32.mrf.mxu0
    %v590 = vadd.f32 %v193, %v589
    %591 = vmatprep.mubr.bf16.mxu0 0
    %592 = vmatmul.mubr.bf16.gmra.mxu0 %v395
    %v593 = vpop.f32.mrf.mxu0
    %v594 = vadd.f32 %v189, %v593
    %v595 = vpop.f32.mrf.mxu0
    %v596 = vadd.f32 %v193, %v595
    %v597 = vpop.f32.mrf.mxu0
    %v598 = vadd.f32 %v189, %v597
    %v599 = vpop.f32.mrf.mxu0
    %v600 = vadd.f32 %v193, %v599
    %601 = vmatprep.mubr.bf16.mxu0 0
    %602 = vmatmul.mubr.bf16.gmra.mxu0 %v398
    %v603 = vpop.f32.mrf.mxu0
    %v604 = vadd.f32 %v189, %v603
    %v605 = vpop.f32.mrf.mxu0
    %v606 = vadd.f32 %v193, %v605
    %v607 = vpop.f32.mrf.mxu0
    %v608 = vadd.f32 %v189, %v607
    %v609 = vpop.f32.mrf.mxu0
    %v610 = vadd.f32 %v193, %v609
    %611 = vmatprep.mubr.bf16.mxu0 0
    %612 = vmatmul.mubr.bf16.gmra.mxu0 %v401
    %v613 = vpop.f32.mrf.mxu0
    %v614 = vadd.f32 %v189, %v613
    %v615 = vpop.f32.mrf.mxu0
    %v616 = vadd.f32 %v193, %v615
    %v617 = vpop.f32.mrf.mxu0
    %v618 = vadd.f32 %v189, %v617
    %v619 = vpop.f32.mrf.mxu0
    %v620 = vadd.f32 %v193, %v619
    %621 = vdwg.mxu0
    %622 = vmatprep.subr.bf16.mxu0 0
    %623 = vmatpush1.bf16.msra.mxu0 0
    %624 = vmatprep.subr.bf16.mxu0 0
    %625 = vmatpush1.bf16.msra.mxu0 0
    %626 = vmatprep.subr.bf16.mxu0 0
    %627 = vmatpush1.bf16.msra.mxu0 0
    %628 = vmatprep.subr.bf16.mxu0 0
    %629 = vmatpush1.bf16.msra.mxu0 0
    %630 = vmatprep.subr.bf16.mxu0 %v357
    %631 = vmatpush1.bf16.msra.mxu0 %v356
    %632 = vmatprep.subr.bf16.mxu0 %v349
    %633 = vmatpush1.bf16.msra.mxu0 %v348
    %634 = vmatprep.subr.bf16.mxu0 %v341
    %635 = vmatpush1.bf16.msra.mxu0 %v340
    %636 = vmatprep.subr.bf16.mxu0 %v333
    %637 = vmatpush1.bf16.msra.mxu0 %v332
    %638 = vmatprep.subr.bf16.mxu0 0
    %639 = vmatpush2.bf16.msra.mxu0 0
    %640 = vmatprep.subr.bf16.mxu0 0
    %641 = vmatpush2.bf16.msra.mxu0 0
    %642 = vmatprep.subr.bf16.mxu0 0
    %643 = vmatpush2.bf16.msra.mxu0 0
    %644 = vmatprep.subr.bf16.mxu0 0
    %645 = vmatpush2.bf16.msra.mxu0 0
    %646 = vmatprep.subr.bf16.mxu0 0
    %647 = vmatpush2.bf16.msra.mxu0 0
    %648 = vmatprep.subr.bf16.mxu0 0
    %649 = vmatpush2.bf16.msra.mxu0 0
    %650 = vmatprep.subr.bf16.mxu0 0
    %651 = vmatpush2.bf16.msra.mxu0 0
    %652 = vmatprep.subr.bf16.mxu0 0
    %653 = vmatpush2.bf16.msra.mxu0 0
    %654 = vmatprep.mubr.bf16.mxu0 0
    %655 = vmatmul.mubr.bf16.gmra.mxu0 %v392
    %v656 = vpop.f32.mrf.mxu0
    %v657 = vadd.f32 %v197, %v656
    %v658 = vpop.f32.mrf.mxu0
    %v659 = vadd.f32 %v201, %v658
    %v660 = vpop.f32.mrf.mxu0
    %v661 = vadd.f32 %v197, %v660
    %v662 = vpop.f32.mrf.mxu0
    %v663 = vadd.f32 %v201, %v662
    %664 = vmatprep.mubr.bf16.mxu0 0
    %665 = vmatmul.mubr.bf16.gmra.mxu0 %v395
    %v666 = vpop.f32.mrf.mxu0
    %v667 = vadd.f32 %v197, %v666
    %v668 = vpop.f32.mrf.mxu0
    %v669 = vadd.f32 %v201, %v668
    %v670 = vpop.f32.mrf.mxu0
    %v671 = vadd.f32 %v197, %v670
    %v672 = vpop.f32.mrf.mxu0
    %v673 = vadd.f32 %v201, %v672
    %674 = vmatprep.mubr.bf16.mxu0 0
    %675 = vmatmul.mubr.bf16.gmra.mxu0 %v398
    %v676 = vpop.f32.mrf.mxu0
    %v677 = vadd.f32 %v197, %v676
    %v678 = vpop.f32.mrf.mxu0
    %v679 = vadd.f32 %v201, %v678
    %v680 = vpop.f32.mrf.mxu0
    %v681 = vadd.f32 %v197, %v680
    %v682 = vpop.f32.mrf.mxu0
    %v683 = vadd.f32 %v201, %v682
    %684 = vmatprep.mubr.bf16.mxu0 0
    %685 = vmatmul.mubr.bf16.gmra.mxu0 %v401
    %v686 = vpop.f32.mrf.mxu0
    %v687 = vadd.f32 %v197, %v686
    %v688 = vpop.f32.mrf.mxu0
    %v689 = vadd.f32 %v201, %v688
    %v690 = vpop.f32.mrf.mxu0
    %v691 = vadd.f32 %v197, %v690
    %v692 = vpop.f32.mrf.mxu0
    %v693 = vadd.f32 %v201, %v692
    %694 = vdwg.mxu0
    %695 = vst [vmem:[#allocation2] sm:$0xff] %v438
    %696 = vst [vmem:[#allocation2 + $0x8] sm:$0xff] %v440
    %697 = vst [vmem:[#allocation2 + $0x10] sm:$0xff] %v511
    %698 = vst [vmem:[#allocation2 + $0x18] sm:$0xff] %v513
    %699 = vst [vmem:[#allocation2 + $0x20] sm:$0xff] %v584
    %700 = vst [vmem:[#allocation2 + $0x28] sm:$0xff] %v586
    %701 = vst [vmem:[#allocation2 + $0x30] sm:$0xff] %v657
    %702 = vst [vmem:[#allocation2 + $0x38] sm:$0xff] %v659
    %703 = vst [vmem:[#allocation2 + $0x40] sm:$0xff] %v442
    %704 = vst [vmem:[#allocation2 + $0x48] sm:$0xff] %v444
    %705 = vst [vmem:[#allocation2 + $0x50] sm:$0xff] %v515
    %706 = vst [vmem:[#allocation2 + $0x58] sm:$0xff] %v517
    %707 = vst [vmem:[#allocation2 + $0x60] sm:$0xff] %v588
    %708 = vst [vmem:[#allocation2 + $0x68] sm:$0xff] %v590
    %709 = vst [vmem:[#allocation2 + $0x70] sm:$0xff] %v661
    %710 = vst [vmem:[#allocation2 + $0x78] sm:$0xff] %v663
    %711 = vst [vmem:[#allocation2 + $0x80] sm:$0xff] %v448
    %712 = vst [vmem:[#allocation2 + $0x88] sm:$0xff] %v450
    %713 = vst [vmem:[#allocation2 + $0x90] sm:$0xff] %v521
    %714 = vst [vmem:[#allocation2 + $0x98] sm:$0xff] %v523
    %715 = vst [vmem:[#allocation2 + $0xa0] sm:$0xff] %v594
    %716 = vst [vmem:[#allocation2 + $0xa8] sm:$0xff] %v596
    %717 = vst [vmem:[#allocation2 + $0xb0] sm:$0xff] %v667
    %718 = vst [vmem:[#allocation2 + $0xb8] sm:$0xff] %v669
    %719 = vst [vmem:[#allocation2 + $0xc0] sm:$0xff] %v452
    %720 = vst [vmem:[#allocation2 + $0xc8] sm:$0xff] %v454
    %721 = vst [vmem:[#allocation2 + $0xd0] sm:$0xff] %v525
    %722 = vst [vmem:[#allocation2 + $0xd8] sm:$0xff] %v527
    %723 = vst [vmem:[#allocation2 + $0xe0] sm:$0xff] %v598
    %724 = vst [vmem:[#allocation2 + $0xe8] sm:$0xff] %v600
    %725 = vst [vmem:[#allocation2 + $0xf0] sm:$0xff] %v671
    %726 = vst [vmem:[#allocation2 + $0xf8] sm:$0xff] %v673
    %727 = vst [vmem:[#allocation2 + $0x100] sm:$0xff] %v458
    %728 = vst [vmem:[#allocation2 + $0x108] sm:$0xff] %v460
    %729 = vst [vmem:[#allocation2 + $0x110] sm:$0xff] %v531
    %730 = vst [vmem:[#allocation2 + $0x118] sm:$0xff] %v533
    %731 = vst [vmem:[#allocation2 + $0x120] sm:$0xff] %v604
    %732 = vst [vmem:[#allocation2 + $0x128] sm:$0xff] %v606
    %733 = vst [vmem:[#allocation2 + $0x130] sm:$0xff] %v677
    %734 = vst [vmem:[#allocation2 + $0x138] sm:$0xff] %v679
    %735 = vst [vmem:[#allocation2 + $0x140] sm:$0xff] %v462
    %736 = vst [vmem:[#allocation2 + $0x148] sm:$0xff] %v464
    %737 = vst [vmem:[#allocation2 + $0x150] sm:$0xff] %v535
    %738 = vst [vmem:[#allocation2 + $0x158] sm:$0xff] %v537
    %739 = vst [vmem:[#allocation2 + $0x160] sm:$0xff] %v608
    %740 = vst [vmem:[#allocation2 + $0x168] sm:$0xff] %v610
    %741 = vst [vmem:[#allocation2 + $0x170] sm:$0xff] %v681
    %742 = vst [vmem:[#allocation2 + $0x178] sm:$0xff] %v683
    %743 = vst [vmem:[#allocation2 + $0x180] sm:$0xff] %v468
    %744 = vst [vmem:[#allocation2 + $0x188] sm:$0xff] %v470
    %745 = vst [vmem:[#allocation2 + $0x190] sm:$0xff] %v541
    %746 = vst [vmem:[#allocation2 + $0x198] sm:$0xff] %v543
    %747 = vst [vmem:[#allocation2 + $0x1a0] sm:$0xff] %v614
    %748 = vst [vmem:[#allocation2 + $0x1a8] sm:$0xff] %v616
    %749 = vst [vmem:[#allocation2 + $0x1b0] sm:$0xff] %v687
    %750 = vst [vmem:[#allocation2 + $0x1b8] sm:$0xff] %v689
    %751 = vst [vmem:[#allocation2 + $0x1c0] sm:$0xff] %v472
    %752 = vst [vmem:[#allocation2 + $0x1c8] sm:$0xff] %v474
    %753 = vst [vmem:[#allocation2 + $0x1d0] sm:$0xff] %v545
    %754 = vst [vmem:[#allocation2 + $0x1d8] sm:$0xff] %v547
    %755 = vst [vmem:[#allocation2 + $0x1e0] sm:$0xff] %v618
    %756 = vst [vmem:[#allocation2 + $0x1e8] sm:$0xff] %v620
    %757 = vst [vmem:[#allocation2 + $0x1f0] sm:$0xff] %v691
    %758 = vst [vmem:[#allocation2 + $0x1f8] sm:$0xff] %v693
    %v759 = vld [vmem:[%s6] sm:$0xff]
    %v761 = vlaneseq
    %v762 = vshrl.u32 %v761, 7
    %v763 = vsub.s32 0, %v762
    %v764 = vrot.slane %v759, %v763
    %v765 = vlaneseq
    %v766 = vshrl.u32 %v765, 7
    %v767 = vsub.s32 1, %v766
    %v768 = vrot.slane %v759, %v767
    %v769 = vlaneseq
    %v770 = vshrl.u32 %v769, 7
    %v771 = vsub.s32 2, %v770
    %v772 = vrot.slane %v759, %v771
    %v773 = vlaneseq
    %v774 = vshrl.u32 %v773, 7
    %v775 = vsub.s32 3, %v774
    %v776 = vrot.slane %v759, %v775
    %v777 = vlaneseq
    %v778 = vshrl.u32 %v777, 7
    %v779 = vsub.s32 4, %v778
    %v780 = vrot.slane %v759, %v779
    %v781 = vlaneseq
    %v782 = vshrl.u32 %v781, 7
    %v783 = vsub.s32 5, %v782
    %v784 = vrot.slane %v759, %v783
    %v785 = vlaneseq
    %v786 = vshrl.u32 %v785, 7
    %v787 = vsub.s32 6, %v786
    %v788 = vrot.slane %v759, %v787
    %v789 = vlaneseq
    %v790 = vshrl.u32 %v789, 7
    %v791 = vsub.s32 7, %v790
    %v792 = vrot.slane %v759, %v791
    %v801 = vld [vmem:[#allocation12] sm:$0xff]
    %v802 = vld [vmem:[#allocation12 + $0x8] sm:$0xff]
    %v803 = vld [vmem:[#allocation13] sm:$0xff]
    %v804 = vld [vmem:[#allocation13 + $0x8] sm:$0xff]
    %s805 = scalar_lea.vmem [#allocation12], 16
    %v806 = vld [vmem:[%s805] sm:$0xff]
    %v807 = vld [vmem:[%s805 + $0x8] sm:$0xff]
    %s808 = scalar_lea.vmem [#allocation13], 16
    %v809 = vld [vmem:[%s808] sm:$0xff]
    %v810 = vld [vmem:[%s808 + $0x8] sm:$0xff]
    %v811 = vld [vmem:[#allocation2] sm:$0xff]
    %v812 = vld [vmem:[#allocation2 + $0x8] sm:$0xff]
    %v813 = vld [vmem:[#allocation2 + $0x10] sm:$0xff]
    %v814 = vld [vmem:[#allocation2 + $0x18] sm:$0xff]
    %v815 = vld [vmem:[#allocation2 + $0x20] sm:$0xff]
    %v816 = vld [vmem:[#allocation2 + $0x28] sm:$0xff]
    %v817 = vld [vmem:[#allocation2 + $0x30] sm:$0xff]
    %v818 = vld [vmem:[#allocation2 + $0x38] sm:$0xff]
    %v819 = vpack.c.bf16 %v801, %v801
    %v820 = vpack.c.bf16 %v802, %v802
    %v821 = vld [vmem:[#allocation7] sm:$0xff]
    %v822 = vld [vmem:[#allocation7 + $0x8] sm:$0xff]
    %v823 = vld [vmem:[#allocation7 + $0x10] sm:$0xff]
    %v824 = vld [vmem:[#allocation7 + $0x18] sm:$0xff]
    %v825 = vld [vmem:[#allocation7 + $0x20] sm:$0xff]
    %v826 = vld [vmem:[#allocation7 + $0x28] sm:$0xff]
    %v827 = vld [vmem:[#allocation7 + $0x30] sm:$0xff]
    %v828 = vld [vmem:[#allocation7 + $0x38] sm:$0xff]
    %v829 = vld [vmem:[#allocation7 + $0x40] sm:$0xff]
    %v830 = vld [vmem:[#allocation7 + $0x48] sm:$0xff]
    %v831 = vld [vmem:[#allocation7 + $0x50] sm:$0xff]
    %v832 = vld [vmem:[#allocation7 + $0x58] sm:$0xff]
    %v833 = vld [vmem:[#allocation7 + $0x60] sm:$0xff]
    %v834 = vld [vmem:[#allocation7 + $0x68] sm:$0xff]
    %v835 = vld [vmem:[#allocation7 + $0x70] sm:$0xff]
    %v836 = vld [vmem:[#allocation7 + $0x78] sm:$0xff]
    %v837 = vld [vmem:[#allocation7 + $0x80] sm:$0xff]
    %v838 = vld [vmem:[#allocation7 + $0x88] sm:$0xff]
    %v839 = vld [vmem:[#allocation7 + $0x90] sm:$0xff]
    %v840 = vld [vmem:[#allocation7 + $0x98] sm:$0xff]
    %v841 = vld [vmem:[#allocation7 + $0xa0] sm:$0xff]
    %v842 = vld [vmem:[#allocation7 + $0xa8] sm:$0xff]
    %v843 = vld [vmem:[#allocation7 + $0xb0] sm:$0xff]
    %v844 = vld [vmem:[#allocation7 + $0xb8] sm:$0xff]
    %v845 = vld [vmem:[#allocation7 + $0xc0] sm:$0xff]
    %v846 = vld [vmem:[#allocation7 + $0xc8] sm:$0xff]
    %v847 = vld [vmem:[#allocation7 + $0xd0] sm:$0xff]
    %v848 = vld [vmem:[#allocation7 + $0xd8] sm:$0xff]
    %v849 = vld [vmem:[#allocation7 + $0xe0] sm:$0xff]
    %v850 = vld [vmem:[#allocation7 + $0xe8] sm:$0xff]
    %v851 = vld [vmem:[#allocation7 + $0xf0] sm:$0xff]
    %v852 = vld [vmem:[#allocation7 + $0xf8] sm:$0xff]
    %v853 = vld [vmem:[#allocation7 + $0x100] sm:$0xff]
    %v854 = vld [vmem:[#allocation7 + $0x108] sm:$0xff]
    %v855 = vld [vmem:[#allocation7 + $0x110] sm:$0xff]
    %v856 = vld [vmem:[#allocation7 + $0x118] sm:$0xff]
    %v857 = vld [vmem:[#allocation7 + $0x120] sm:$0xff]
    %v858 = vld [vmem:[#allocation7 + $0x128] sm:$0xff]
    %v859 = vld [vmem:[#allocation7 + $0x130] sm:$0xff]
    %v860 = vld [vmem:[#allocation7 + $0x138] sm:$0xff]
    %v861 = vld [vmem:[#allocation7 + $0x140] sm:$0xff]
    %v862 = vld [vmem:[#allocation7 + $0x148] sm:$0xff]
    %v863 = vld [vmem:[#allocation7 + $0x150] sm:$0xff]
    %v864 = vld [vmem:[#allocation7 + $0x158] sm:$0xff]
    %v865 = vld [vmem:[#allocation7 + $0x160] sm:$0xff]
    %v866 = vld [vmem:[#allocation7 + $0x168] sm:$0xff]
    %v867 = vld [vmem:[#allocation7 + $0x170] sm:$0xff]
    %v868 = vld [vmem:[#allocation7 + $0x178] sm:$0xff]
    %v869 = vld [vmem:[#allocation7 + $0x180] sm:$0xff]
    %v870 = vld [vmem:[#allocation7 + $0x188] sm:$0xff]
    %v871 = vld [vmem:[#allocation7 + $0x190] sm:$0xff]
    %v872 = vld [vmem:[#allocation7 + $0x198] sm:$0xff]
    %v873 = vld [vmem:[#allocation7 + $0x1a0] sm:$0xff]
    %v874 = vld [vmem:[#allocation7 + $0x1a8] sm:$0xff]
    %v875 = vld [vmem:[#allocation7 + $0x1b0] sm:$0xff]
    %v876 = vld [vmem:[#allocation7 + $0x1b8] sm:$0xff]
    %v877 = vld [vmem:[#allocation7 + $0x1c0] sm:$0xff]
    %v878 = vld [vmem:[#allocation7 + $0x1c8] sm:$0xff]
    %v879 = vld [vmem:[#allocation7 + $0x1d0] sm:$0xff]
    %v880 = vld [vmem:[#allocation7 + $0x1d8] sm:$0xff]
    %v881 = vld [vmem:[#allocation7 + $0x1e0] sm:$0xff]
    %v882 = vld [vmem:[#allocation7 + $0x1e8] sm:$0xff]
    %v883 = vld [vmem:[#allocation7 + $0x1f0] sm:$0xff]
    %v884 = vld [vmem:[#allocation7 + $0x1f8] sm:$0xff]
    %v885 = vld [vmem:[#allocation7 + $0x200] sm:$0xff]
    %v886 = vld [vmem:[#allocation7 + $0x208] sm:$0xff]
    %v887 = vld [vmem:[#allocation7 + $0x210] sm:$0xff]
    %v888 = vld [vmem:[#allocation7 + $0x218] sm:$0xff]
    %v889 = vld [vmem:[#allocation7 + $0x220] sm:$0xff]
    %v890 = vld [vmem:[#allocation7 + $0x228] sm:$0xff]
    %v891 = vld [vmem:[#allocation7 + $0x230] sm:$0xff]
    %v892 = vld [vmem:[#allocation7 + $0x238] sm:$0xff]
    %v893 = vld [vmem:[#allocation7 + $0x240] sm:$0xff]
    %v894 = vld [vmem:[#allocation7 + $0x248] sm:$0xff]
    %v895 = vld [vmem:[#allocation7 + $0x250] sm:$0xff]
    %v896 = vld [vmem:[#allocation7 + $0x258] sm:$0xff]
    %v897 = vld [vmem:[#allocation7 + $0x260] sm:$0xff]
    %v898 = vld [vmem:[#allocation7 + $0x268] sm:$0xff]
    %v899 = vld [vmem:[#allocation7 + $0x270] sm:$0xff]
    %v900 = vld [vmem:[#allocation7 + $0x278] sm:$0xff]
    %v901 = vld [vmem:[#allocation7 + $0x280] sm:$0xff]
    %v902 = vld [vmem:[#allocation7 + $0x288] sm:$0xff]
    %v903 = vld [vmem:[#allocation7 + $0x290] sm:$0xff]
    %v904 = vld [vmem:[#allocation7 + $0x298] sm:$0xff]
    %v905 = vld [vmem:[#allocation7 + $0x2a0] sm:$0xff]
    %v906 = vld [vmem:[#allocation7 + $0x2a8] sm:$0xff]
    %v907 = vld [vmem:[#allocation7 + $0x2b0] sm:$0xff]
    %v908 = vld [vmem:[#allocation7 + $0x2b8] sm:$0xff]
    %v909 = vld [vmem:[#allocation7 + $0x2c0] sm:$0xff]
    %v910 = vld [vmem:[#allocation7 + $0x2c8] sm:$0xff]
    %v911 = vld [vmem:[#allocation7 + $0x2d0] sm:$0xff]
    %v912 = vld [vmem:[#allocation7 + $0x2d8] sm:$0xff]
    %v913 = vld [vmem:[#allocation7 + $0x2e0] sm:$0xff]
    %v914 = vld [vmem:[#allocation7 + $0x2e8] sm:$0xff]
    %v915 = vld [vmem:[#allocation7 + $0x2f0] sm:$0xff]
    %v916 = vld [vmem:[#allocation7 + $0x2f8] sm:$0xff]
    %v917 = vld [vmem:[#allocation7 + $0x300] sm:$0xff]
    %v918 = vld [vmem:[#allocation7 + $0x308] sm:$0xff]
    %v919 = vld [vmem:[#allocation7 + $0x310] sm:$0xff]
    %v920 = vld [vmem:[#allocation7 + $0x318] sm:$0xff]
    %v921 = vld [vmem:[#allocation7 + $0x320] sm:$0xff]
    %v922 = vld [vmem:[#allocation7 + $0x328] sm:$0xff]
    %v923 = vld [vmem:[#allocation7 + $0x330] sm:$0xff]
    %v924 = vld [vmem:[#allocation7 + $0x338] sm:$0xff]
    %v925 = vld [vmem:[#allocation7 + $0x340] sm:$0xff]
    %v926 = vld [vmem:[#allocation7 + $0x348] sm:$0xff]
    %v927 = vld [vmem:[#allocation7 + $0x350] sm:$0xff]
    %v928 = vld [vmem:[#allocation7 + $0x358] sm:$0xff]
    %v929 = vld [vmem:[#allocation7 + $0x360] sm:$0xff]
    %v930 = vld [vmem:[#allocation7 + $0x368] sm:$0xff]
    %v931 = vld [vmem:[#allocation7 + $0x370] sm:$0xff]
    %v932 = vld [vmem:[#allocation7 + $0x378] sm:$0xff]
    %v933 = vld [vmem:[#allocation7 + $0x380] sm:$0xff]
    %v934 = vld [vmem:[#allocation7 + $0x388] sm:$0xff]
    %v935 = vld [vmem:[#allocation7 + $0x390] sm:$0xff]
    %v936 = vld [vmem:[#allocation7 + $0x398] sm:$0xff]
    %v937 = vld [vmem:[#allocation7 + $0x3a0] sm:$0xff]
    %v938 = vld [vmem:[#allocation7 + $0x3a8] sm:$0xff]
    %v939 = vld [vmem:[#allocation7 + $0x3b0] sm:$0xff]
    %v940 = vld [vmem:[#allocation7 + $0x3b8] sm:$0xff]
    %v941 = vld [vmem:[#allocation7 + $0x3c0] sm:$0xff]
    %v942 = vld [vmem:[#allocation7 + $0x3c8] sm:$0xff]
    %v943 = vld [vmem:[#allocation7 + $0x3d0] sm:$0xff]
    %v944 = vld [vmem:[#allocation7 + $0x3d8] sm:$0xff]
    %v945 = vld [vmem:[#allocation7 + $0x3e0] sm:$0xff]
    %v946 = vld [vmem:[#allocation7 + $0x3e8] sm:$0xff]
    %v947 = vld [vmem:[#allocation7 + $0x3f0] sm:$0xff]
    %v948 = vld [vmem:[#allocation7 + $0x3f8] sm:$0xff]
    %v1077 = vunpack.c.l.b16 %v821
    %v1078 = vunpack.c.h.b16 %v821
    %v1079 = vunpack.c.l.b16 %v822
    %v1080 = vunpack.c.h.b16 %v822
    %v1081 = vunpack.c.l.b16 %v823
    %v1082 = vunpack.c.h.b16 %v823
    %v1083 = vunpack.c.l.b16 %v824
    %v1084 = vunpack.c.h.b16 %v824
    %v1085 = vunpack.c.l.b16 %v825
    %v1086 = vunpack.c.h.b16 %v825
    %v1087 = vunpack.c.l.b16 %v826
    %v1088 = vunpack.c.h.b16 %v826
    %v1089 = vunpack.c.l.b16 %v827
    %v1090 = vunpack.c.h.b16 %v827
    %v1091 = vunpack.c.l.b16 %v828
    %v1092 = vunpack.c.h.b16 %v828
    %v1093 = vunpack.c.l.b16 %v829
    %v1094 = vunpack.c.h.b16 %v829
    %v1095 = vunpack.c.l.b16 %v830
    %v1096 = vunpack.c.h.b16 %v830
    %v1097 = vunpack.c.l.b16 %v831
    %v1098 = vunpack.c.h.b16 %v831
    %v1099 = vunpack.c.l.b16 %v832
    %v1100 = vunpack.c.h.b16 %v832
    %v1101 = vunpack.c.l.b16 %v833
    %v1102 = vunpack.c.h.b16 %v833
    %v1103 = vunpack.c.l.b16 %v834
    %v1104 = vunpack.c.h.b16 %v834
    %v1105 = vunpack.c.l.b16 %v835
    %v1106 = vunpack.c.h.b16 %v835
    %v1107 = vunpack.c.l.b16 %v836
    %v1108 = vunpack.c.h.b16 %v836
    %v1109 = vunpack.c.l.b16 %v837
    %v1110 = vunpack.c.h.b16 %v837
    %v1111 = vunpack.c.l.b16 %v838
    %v1112 = vunpack.c.h.b16 %v838
    %v1113 = vunpack.c.l.b16 %v839
    %v1114 = vunpack.c.h.b16 %v839
    %v1115 = vunpack.c.l.b16 %v840
    %v1116 = vunpack.c.h.b16 %v840
    %v1117 = vunpack.c.l.b16 %v841
    %v1118 = vunpack.c.h.b16 %v841
    %v1119 = vunpack.c.l.b16 %v842
    %v1120 = vunpack.c.h.b16 %v842
    %v1121 = vunpack.c.l.b16 %v843
    %v1122 = vunpack.c.h.b16 %v843
    %v1123 = vunpack.c.l.b16 %v844
    %v1124 = vunpack.c.h.b16 %v844
    %v1125 = vunpack.c.l.b16 %v845
    %v1126 = vunpack.c.h.b16 %v845
    %v1127 = vunpack.c.l.b16 %v846
    %v1128 = vunpack.c.h.b16 %v846
    %v1129 = vunpack.c.l.b16 %v847
    %v1130 = vunpack.c.h.b16 %v847
    %v1131 = vunpack.c.l.b16 %v848
    %v1132 = vunpack.c.h.b16 %v848
    %v1133 = vunpack.c.l.b16 %v849
    %v1134 = vunpack.c.h.b16 %v849
    %v1135 = vunpack.c.l.b16 %v850
    %v1136 = vunpack.c.h.b16 %v850
    %v1137 = vunpack.c.l.b16 %v851
    %v1138 = vunpack.c.h.b16 %v851
    %v1139 = vunpack.c.l.b16 %v852
    %v1140 = vunpack.c.h.b16 %v852
    %v1141 = vunpack.c.l.b16 %v853
    %v1142 = vunpack.c.h.b16 %v853
    %v1143 = vunpack.c.l.b16 %v854
    %v1144 = vunpack.c.h.b16 %v854
    %v1145 = vunpack.c.l.b16 %v855
    %v1146 = vunpack.c.h.b16 %v855
    %v1147 = vunpack.c.l.b16 %v856
    %v1148 = vunpack.c.h.b16 %v856
    %v1149 = vunpack.c.l.b16 %v857
    %v1150 = vunpack.c.h.b16 %v857
    %v1151 = vunpack.c.l.b16 %v858
    %v1152 = vunpack.c.h.b16 %v858
    %v1153 = vunpack.c.l.b16 %v859
    %v1154 = vunpack.c.h.b16 %v859
    %v1155 = vunpack.c.l.b16 %v860
    %v1156 = vunpack.c.h.b16 %v860
    %v1157 = vunpack.c.l.b16 %v861
    %v1158 = vunpack.c.h.b16 %v861
    %v1159 = vunpack.c.l.b16 %v862
    %v1160 = vunpack.c.h.b16 %v862
    %v1161 = vunpack.c.l.b16 %v863
    %v1162 = vunpack.c.h.b16 %v863
    %v1163 = vunpack.c.l.b16 %v864
    %v1164 = vunpack.c.h.b16 %v864
    %v1165 = vunpack.c.l.b16 %v865
    %v1166 = vunpack.c.h.b16 %v865
    %v1167 = vunpack.c.l.b16 %v866
    %v1168 = vunpack.c.h.b16 %v866
    %v1169 = vunpack.c.l.b16 %v867
    %v1170 = vunpack.c.h.b16 %v867
    %v1171 = vunpack.c.l.b16 %v868
    %v1172 = vunpack.c.h.b16 %v868
    %v1173 = vunpack.c.l.b16 %v869
    %v1174 = vunpack.c.h.b16 %v869
    %v1175 = vunpack.c.l.b16 %v870
    %v1176 = vunpack.c.h.b16 %v870
    %v1177 = vunpack.c.l.b16 %v871
    %v1178 = vunpack.c.h.b16 %v871
    %v1179 = vunpack.c.l.b16 %v872
    %v1180 = vunpack.c.h.b16 %v872
    %v1181 = vunpack.c.l.b16 %v873
    %v1182 = vunpack.c.h.b16 %v873
    %v1183 = vunpack.c.l.b16 %v874
    %v1184 = vunpack.c.h.b16 %v874
    %v1185 = vunpack.c.l.b16 %v875
    %v1186 = vunpack.c.h.b16 %v875
    %v1187 = vunpack.c.l.b16 %v876
    %v1188 = vunpack.c.h.b16 %v876
    %v1189 = vunpack.c.l.b16 %v877
    %v1190 = vunpack.c.h.b16 %v877
    %v1191 = vunpack.c.l.b16 %v878
    %v1192 = vunpack.c.h.b16 %v878
    %v1193 = vunpack.c.l.b16 %v879
    %v1194 = vunpack.c.h.b16 %v879
    %v1195 = vunpack.c.l.b16 %v880
    %v1196 = vunpack.c.h.b16 %v880
    %v1197 = vunpack.c.l.b16 %v881
    %v1198 = vunpack.c.h.b16 %v881
    %v1199 = vunpack.c.l.b16 %v882
    %v1200 = vunpack.c.h.b16 %v882
    %v1201 = vunpack.c.l.b16 %v883
    %v1202 = vunpack.c.h.b16 %v883
    %v1203 = vunpack.c.l.b16 %v884
    %v1204 = vunpack.c.h.b16 %v884
    %v1205 = vunpack.c.l.b16 %v885
    %v1206 = vunpack.c.h.b16 %v885
    %v1207 = vunpack.c.l.b16 %v886
    %v1208 = vunpack.c.h.b16 %v886
    %v1209 = vunpack.c.l.b16 %v887
    %v1210 = vunpack.c.h.b16 %v887
    %v1211 = vunpack.c.l.b16 %v888
    %v1212 = vunpack.c.h.b16 %v888
    %v1213 = vunpack.c.l.b16 %v889
    %v1214 = vunpack.c.h.b16 %v889
    %v1215 = vunpack.c.l.b16 %v890
    %v1216 = vunpack.c.h.b16 %v890
    %v1217 = vunpack.c.l.b16 %v891
    %v1218 = vunpack.c.h.b16 %v891
    %v1219 = vunpack.c.l.b16 %v892
    %v1220 = vunpack.c.h.b16 %v892
    %v1221 = vunpack.c.l.b16 %v893
    %v1222 = vunpack.c.h.b16 %v893
    %v1223 = vunpack.c.l.b16 %v894
    %v1224 = vunpack.c.h.b16 %v894
    %v1225 = vunpack.c.l.b16 %v895
    %v1226 = vunpack.c.h.b16 %v895
    %v1227 = vunpack.c.l.b16 %v896
    %v1228 = vunpack.c.h.b16 %v896
    %v1229 = vunpack.c.l.b16 %v897
    %v1230 = vunpack.c.h.b16 %v897
    %v1231 = vunpack.c.l.b16 %v898
    %v1232 = vunpack.c.h.b16 %v898
    %v1233 = vunpack.c.l.b16 %v899
    %v1234 = vunpack.c.h.b16 %v899
    %v1235 = vunpack.c.l.b16 %v900
    %v1236 = vunpack.c.h.b16 %v900
    %v1237 = vunpack.c.l.b16 %v901
    %v1238 = vunpack.c.h.b16 %v901
    %v1239 = vunpack.c.l.b16 %v902
    %v1240 = vunpack.c.h.b16 %v902
    %v1241 = vunpack.c.l.b16 %v903
    %v1242 = vunpack.c.h.b16 %v903
    %v1243 = vunpack.c.l.b16 %v904
    %v1244 = vunpack.c.h.b16 %v904
    %v1245 = vunpack.c.l.b16 %v905
    %v1246 = vunpack.c.h.b16 %v905
    %v1247 = vunpack.c.l.b16 %v906
    %v1248 = vunpack.c.h.b16 %v906
    %v1249 = vunpack.c.l.b16 %v907
    %v1250 = vunpack.c.h.b16 %v907
    %v1251 = vunpack.c.l.b16 %v908
    %v1252 = vunpack.c.h.b16 %v908
    %v1253 = vunpack.c.l.b16 %v909
    %v1254 = vunpack.c.h.b16 %v909
    %v1255 = vunpack.c.l.b16 %v910
    %v1256 = vunpack.c.h.b16 %v910
    %v1257 = vunpack.c.l.b16 %v911
    %v1258 = vunpack.c.h.b16 %v911
    %v1259 = vunpack.c.l.b16 %v912
    %v1260 = vunpack.c.h.b16 %v912
    %v1261 = vunpack.c.l.b16 %v913
    %v1262 = vunpack.c.h.b16 %v913
    %v1263 = vunpack.c.l.b16 %v914
    %v1264 = vunpack.c.h.b16 %v914
    %v1265 = vunpack.c.l.b16 %v915
    %v1266 = vunpack.c.h.b16 %v915
    %v1267 = vunpack.c.l.b16 %v916
    %v1268 = vunpack.c.h.b16 %v916
    %v1269 = vunpack.c.l.b16 %v917
    %v1270 = vunpack.c.h.b16 %v917
    %v1271 = vunpack.c.l.b16 %v918
    %v1272 = vunpack.c.h.b16 %v918
    %v1273 = vunpack.c.l.b16 %v919
    %v1274 = vunpack.c.h.b16 %v919
    %v1275 = vunpack.c.l.b16 %v920
    %v1276 = vunpack.c.h.b16 %v920
    %v1277 = vunpack.c.l.b16 %v921
    %v1278 = vunpack.c.h.b16 %v921
    %v1279 = vunpack.c.l.b16 %v922
    %v1280 = vunpack.c.h.b16 %v922
    %v1281 = vunpack.c.l.b16 %v923
    %v1282 = vunpack.c.h.b16 %v923
    %v1283 = vunpack.c.l.b16 %v924
    %v1284 = vunpack.c.h.b16 %v924
    %v1285 = vunpack.c.l.b16 %v925
    %v1286 = vunpack.c.h.b16 %v925
    %v1287 = vunpack.c.l.b16 %v926
    %v1288 = vunpack.c.h.b16 %v926
    %v1289 = vunpack.c.l.b16 %v927
    %v1290 = vunpack.c.h.b16 %v927
    %v1291 = vunpack.c.l.b16 %v928
    %v1292 = vunpack.c.h.b16 %v928
    %v1293 = vunpack.c.l.b16 %v929
    %v1294 = vunpack.c.h.b16 %v929
    %v1295 = vunpack.c.l.b16 %v930
    %v1296 = vunpack.c.h.b16 %v930
    %v1297 = vunpack.c.l.b16 %v931
    %v1298 = vunpack.c.h.b16 %v931
    %v1299 = vunpack.c.l.b16 %v932
    %v1300 = vunpack.c.h.b16 %v932
    %v1301 = vunpack.c.l.b16 %v933
    %v1302 = vunpack.c.h.b16 %v933
    %v1303 = vunpack.c.l.b16 %v934
    %v1304 = vunpack.c.h.b16 %v934
    %v1305 = vunpack.c.l.b16 %v935
    %v1306 = vunpack.c.h.b16 %v935
    %v1307 = vunpack.c.l.b16 %v936
    %v1308 = vunpack.c.h.b16 %v936
    %v1309 = vunpack.c.l.b16 %v937
    %v1310 = vunpack.c.h.b16 %v937
    %v1311 = vunpack.c.l.b16 %v938
    %v1312 = vunpack.c.h.b16 %v938
    %v1313 = vunpack.c.l.b16 %v939
    %v1314 = vunpack.c.h.b16 %v939
    %v1315 = vunpack.c.l.b16 %v940
    %v1316 = vunpack.c.h.b16 %v940
    %v1317 = vunpack.c.l.b16 %v941
    %v1318 = vunpack.c.h.b16 %v941
    %v1319 = vunpack.c.l.b16 %v942
    %v1320 = vunpack.c.h.b16 %v942
    %v1321 = vunpack.c.l.b16 %v943
    %v1322 = vunpack.c.h.b16 %v943
    %v1323 = vunpack.c.l.b16 %v944
    %v1324 = vunpack.c.h.b16 %v944
    %v1325 = vunpack.c.l.b16 %v945
    %v1326 = vunpack.c.h.b16 %v945
    %v1327 = vunpack.c.l.b16 %v946
    %v1328 = vunpack.c.h.b16 %v946
    %v1329 = vunpack.c.l.b16 %v947
    %v1330 = vunpack.c.h.b16 %v947
    %v1331 = vunpack.c.l.b16 %v948
    %v1332 = vunpack.c.h.b16 %v948
    %v1333 = vpack.c.b16 %v1085, %v1077
    %v1334 = vpack.c.b16 %v1086, %v1078
    %v1335 = vpack.c.b16 %v1087, %v1079
    %v1336 = vpack.c.b16 %v1088, %v1080
    %v1337 = vpack.c.b16 %v1089, %v1081
    %v1338 = vpack.c.b16 %v1090, %v1082
    %v1339 = vpack.c.b16 %v1091, %v1083
    %v1340 = vpack.c.b16 %v1092, %v1084
    %v1341 = vpack.c.b16 %v1101, %v1093
    %v1342 = vpack.c.b16 %v1102, %v1094
    %v1343 = vpack.c.b16 %v1103, %v1095
    %v1344 = vpack.c.b16 %v1104, %v1096
    %v1345 = vpack.c.b16 %v1105, %v1097
    %v1346 = vpack.c.b16 %v1106, %v1098
    %v1347 = vpack.c.b16 %v1107, %v1099
    %v1348 = vpack.c.b16 %v1108, %v1100
    %v1349 = vpack.c.b16 %v1117, %v1109
    %v1350 = vpack.c.b16 %v1118, %v1110
    %v1351 = vpack.c.b16 %v1119, %v1111
    %v1352 = vpack.c.b16 %v1120, %v1112
    %v1353 = vpack.c.b16 %v1121, %v1113
    %v1354 = vpack.c.b16 %v1122, %v1114
    %v1355 = vpack.c.b16 %v1123, %v1115
    %v1356 = vpack.c.b16 %v1124, %v1116
    %v1357 = vpack.c.b16 %v1133, %v1125
    %v1358 = vpack.c.b16 %v1134, %v1126
    %v1359 = vpack.c.b16 %v1135, %v1127
    %v1360 = vpack.c.b16 %v1136, %v1128
    %v1361 = vpack.c.b16 %v1137, %v1129
    %v1362 = vpack.c.b16 %v1138, %v1130
    %v1363 = vpack.c.b16 %v1139, %v1131
    %v1364 = vpack.c.b16 %v1140, %v1132
    %v1365 = vpack.c.b16 %v1149, %v1141
    %v1366 = vpack.c.b16 %v1150, %v1142
    %v1367 = vpack.c.b16 %v1151, %v1143
    %v1368 = vpack.c.b16 %v1152, %v1144
    %v1369 = vpack.c.b16 %v1153, %v1145
    %v1370 = vpack.c.b16 %v1154, %v1146
    %v1371 = vpack.c.b16 %v1155, %v1147
    %v1372 = vpack.c.b16 %v1156, %v1148
    %v1373 = vpack.c.b16 %v1165, %v1157
    %v1374 = vpack.c.b16 %v1166, %v1158
    %v1375 = vpack.c.b16 %v1167, %v1159
    %v1376 = vpack.c.b16 %v1168, %v1160
    %v1377 = vpack.c.b16 %v1169, %v1161
    %v1378 = vpack.c.b16 %v1170, %v1162
    %v1379 = vpack.c.b16 %v1171, %v1163
    %v1380 = vpack.c.b16 %v1172, %v1164
    %v1381 = vpack.c.b16 %v1181, %v1173
    %v1382 = vpack.c.b16 %v1182, %v1174
    %v1383 = vpack.c.b16 %v1183, %v1175
    %v1384 = vpack.c.b16 %v1184, %v1176
    %v1385 = vpack.c.b16 %v1185, %v1177
    %v1386 = vpack.c.b16 %v1186, %v1178
    %v1387 = vpack.c.b16 %v1187, %v1179
    %v1388 = vpack.c.b16 %v1188, %v1180
    %v1389 = vpack.c.b16 %v1197, %v1189
    %v1390 = vpack.c.b16 %v1198, %v1190
    %v1391 = vpack.c.b16 %v1199, %v1191
    %v1392 = vpack.c.b16 %v1200, %v1192
    %v1393 = vpack.c.b16 %v1201, %v1193
    %v1394 = vpack.c.b16 %v1202, %v1194
    %v1395 = vpack.c.b16 %v1203, %v1195
    %v1396 = vpack.c.b16 %v1204, %v1196
    %v1397 = vpack.c.b16 %v1213, %v1205
    %v1398 = vpack.c.b16 %v1214, %v1206
    %v1399 = vpack.c.b16 %v1215, %v1207
    %v1400 = vpack.c.b16 %v1216, %v1208
    %v1401 = vpack.c.b16 %v1217, %v1209
    %v1402 = vpack.c.b16 %v1218, %v1210
    %v1403 = vpack.c.b16 %v1219, %v1211
    %v1404 = vpack.c.b16 %v1220, %v1212
    %v1405 = vpack.c.b16 %v1229, %v1221
    %v1406 = vpack.c.b16 %v1230, %v1222
    %v1407 = vpack.c.b16 %v1231, %v1223
    %v1408 = vpack.c.b16 %v1232, %v1224
    %v1409 = vpack.c.b16 %v1233, %v1225
    %v1410 = vpack.c.b16 %v1234, %v1226
    %v1411 = vpack.c.b16 %v1235, %v1227
    %v1412 = vpack.c.b16 %v1236, %v1228
    %v1413 = vpack.c.b16 %v1245, %v1237
    %v1414 = vpack.c.b16 %v1246, %v1238
    %v1415 = vpack.c.b16 %v1247, %v1239
    %v1416 = vpack.c.b16 %v1248, %v1240
    %v1417 = vpack.c.b16 %v1249, %v1241
    %v1418 = vpack.c.b16 %v1250, %v1242
    %v1419 = vpack.c.b16 %v1251, %v1243
    %v1420 = vpack.c.b16 %v1252, %v1244
    %v1421 = vpack.c.b16 %v1261, %v1253
    %v1422 = vpack.c.b16 %v1262, %v1254
    %v1423 = vpack.c.b16 %v1263, %v1255
    %v1424 = vpack.c.b16 %v1264, %v1256
    %v1425 = vpack.c.b16 %v1265, %v1257
    %v1426 = vpack.c.b16 %v1266, %v1258
    %v1427 = vpack.c.b16 %v1267, %v1259
    %v1428 = vpack.c.b16 %v1268, %v1260
    %v1429 = vpack.c.b16 %v1277, %v1269
    %v1430 = vpack.c.b16 %v1278, %v1270
    %v1431 = vpack.c.b16 %v1279, %v1271
    %v1432 = vpack.c.b16 %v1280, %v1272
    %v1433 = vpack.c.b16 %v1281, %v1273
    %v1434 = vpack.c.b16 %v1282, %v1274
    %v1435 = vpack.c.b16 %v1283, %v1275
    %v1436 = vpack.c.b16 %v1284, %v1276
    %v1437 = vpack.c.b16 %v1293, %v1285
    %v1438 = vpack.c.b16 %v1294, %v1286
    %v1439 = vpack.c.b16 %v1295, %v1287
    %v1440 = vpack.c.b16 %v1296, %v1288
    %v1441 = vpack.c.b16 %v1297, %v1289
    %v1442 = vpack.c.b16 %v1298, %v1290
    %v1443 = vpack.c.b16 %v1299, %v1291
    %v1444 = vpack.c.b16 %v1300, %v1292
    %v1445 = vpack.c.b16 %v1309, %v1301
    %v1446 = vpack.c.b16 %v1310, %v1302
    %v1447 = vpack.c.b16 %v1311, %v1303
    %v1448 = vpack.c.b16 %v1312, %v1304
    %v1449 = vpack.c.b16 %v1313, %v1305
    %v1450 = vpack.c.b16 %v1314, %v1306
    %v1451 = vpack.c.b16 %v1315, %v1307
    %v1452 = vpack.c.b16 %v1316, %v1308
    %v1453 = vpack.c.b16 %v1325, %v1317
    %v1454 = vpack.c.b16 %v1326, %v1318
    %v1455 = vpack.c.b16 %v1327, %v1319
    %v1456 = vpack.c.b16 %v1328, %v1320
    %v1457 = vpack.c.b16 %v1329, %v1321
    %v1458 = vpack.c.b16 %v1330, %v1322
    %v1459 = vpack.c.b16 %v1331, %v1323
    %v1460 = vpack.c.b16 %v1332, %v1324
    %1589 = vmatprep.subr.bf16.mxu0 %v1390
    %1590 = vmatpush1.bf16.msra.mxu0 %v1389
    %1591 = vmatprep.subr.bf16.mxu0 %v1382
    %1592 = vmatpush1.bf16.msra.mxu0 %v1381
    %1593 = vmatprep.subr.bf16.mxu0 %v1374
    %1594 = vmatpush1.bf16.msra.mxu0 %v1373
    %1595 = vmatprep.subr.bf16.mxu0 %v1366
    %1596 = vmatpush1.bf16.msra.mxu0 %v1365
    %1597 = vmatprep.subr.bf16.mxu0 %v1358
    %1598 = vmatpush1.bf16.msra.mxu0 %v1357
    %1599 = vmatprep.subr.bf16.mxu0 %v1350
    %1600 = vmatpush1.bf16.msra.mxu0 %v1349
    %1601 = vmatprep.subr.bf16.mxu0 %v1342
    %1602 = vmatpush1.bf16.msra.mxu0 %v1341
    %1603 = vmatprep.subr.bf16.mxu0 %v1334
    %1604 = vmatpush1.bf16.msra.mxu0 %v1333
    %1605 = vmatprep.subr.bf16.mxu0 %v1454
    %1606 = vmatpush2.bf16.msra.mxu0 %v1453
    %1607 = vmatprep.subr.bf16.mxu0 %v1446
    %1608 = vmatpush2.bf16.msra.mxu0 %v1445
    %1609 = vmatprep.subr.bf16.mxu0 %v1438
    %1610 = vmatpush2.bf16.msra.mxu0 %v1437
    %1611 = vmatprep.subr.bf16.mxu0 %v1430
    %1612 = vmatpush2.bf16.msra.mxu0 %v1429
    %1613 = vmatprep.subr.bf16.mxu0 %v1422
    %1614 = vmatpush2.bf16.msra.mxu0 %v1421
    %1615 = vmatprep.subr.bf16.mxu0 %v1414
    %1616 = vmatpush2.bf16.msra.mxu0 %v1413
    %1617 = vmatprep.subr.bf16.mxu0 %v1406
    %1618 = vmatpush2.bf16.msra.mxu0 %v1405
    %1619 = vmatprep.subr.bf16.mxu0 %v1398
    %1620 = vmatpush2.bf16.msra.mxu0 %v1397
    %1621 = vmatprep.mubr.bf16.mxu0 %v820
    %1622 = vmatmul.mubr.bf16.gmra.mxu0 %v819
    %v1623 = vpop.f32.mrf.mxu0
    %v1624 = vadd.f32 0.0, %v1623
    %v1625 = vpop.f32.mrf.mxu0
    %v1626 = vadd.f32 0.0, %v1625
    %v1627 = vpop.f32.mrf.mxu0
    %v1628 = vpop.f32.mrf.mxu0
    %1629 = vdwg.mxu0
    %1630 = vmatprep.subr.bf16.mxu0 %v1392
    %1631 = vmatpush1.bf16.msra.mxu0 %v1391
    %1632 = vmatprep.subr.bf16.mxu0 %v1384
    %1633 = vmatpush1.bf16.msra.mxu0 %v1383
    %1634 = vmatprep.subr.bf16.mxu0 %v1376
    %1635 = vmatpush1.bf16.msra.mxu0 %v1375
    %1636 = vmatprep.subr.bf16.mxu0 %v1368
    %1637 = vmatpush1.bf16.msra.mxu0 %v1367
    %1638 = vmatprep.subr.bf16.mxu0 %v1360
    %1639 = vmatpush1.bf16.msra.mxu0 %v1359
    %1640 = vmatprep.subr.bf16.mxu0 %v1352
    %1641 = vmatpush1.bf16.msra.mxu0 %v1351
    %1642 = vmatprep.subr.bf16.mxu0 %v1344
    %1643 = vmatpush1.bf16.msra.mxu0 %v1343
    %1644 = vmatprep.subr.bf16.mxu0 %v1336
    %1645 = vmatpush1.bf16.msra.mxu0 %v1335
    %1646 = vmatprep.subr.bf16.mxu0 %v1456
    %1647 = vmatpush2.bf16.msra.mxu0 %v1455
    %1648 = vmatprep.subr.bf16.mxu0 %v1448
    %1649 = vmatpush2.bf16.msra.mxu0 %v1447
    %1650 = vmatprep.subr.bf16.mxu0 %v1440
    %1651 = vmatpush2.bf16.msra.mxu0 %v1439
    %1652 = vmatprep.subr.bf16.mxu0 %v1432
    %1653 = vmatpush2.bf16.msra.mxu0 %v1431
    %1654 = vmatprep.subr.bf16.mxu0 %v1424
    %1655 = vmatpush2.bf16.msra.mxu0 %v1423
    %1656 = vmatprep.subr.bf16.mxu0 %v1416
    %1657 = vmatpush2.bf16.msra.mxu0 %v1415
    %1658 = vmatprep.subr.bf16.mxu0 %v1408
    %1659 = vmatpush2.bf16.msra.mxu0 %v1407
    %1660 = vmatprep.subr.bf16.mxu0 %v1400
    %1661 = vmatpush2.bf16.msra.mxu0 %v1399
    %1662 = vmatprep.mubr.bf16.mxu0 %v820
    %1663 = vmatmul.mubr.bf16.gmra.mxu0 %v819
    %v1664 = vpop.f32.mrf.mxu0
    %v1665 = vadd.f32 0.0, %v1664
    %v1666 = vpop.f32.mrf.mxu0
    %v1667 = vadd.f32 0.0, %v1666
    %v1668 = vpop.f32.mrf.mxu0
    %v1669 = vpop.f32.mrf.mxu0
    %1670 = vdwg.mxu0
    %1671 = vmatprep.subr.bf16.mxu0 %v1394
    %1672 = vmatpush1.bf16.msra.mxu0 %v1393
    %1673 = vmatprep.subr.bf16.mxu0 %v1386
    %1674 = vmatpush1.bf16.msra.mxu0 %v1385
    %1675 = vmatprep.subr.bf16.mxu0 %v1378
    %1676 = vmatpush1.bf16.msra.mxu0 %v1377
    %1677 = vmatprep.subr.bf16.mxu0 %v1370
    %1678 = vmatpush1.bf16.msra.mxu0 %v1369
    %1679 = vmatprep.subr.bf16.mxu0 %v1362
    %1680 = vmatpush1.bf16.msra.mxu0 %v1361
    %1681 = vmatprep.subr.bf16.mxu0 %v1354
    %1682 = vmatpush1.bf16.msra.mxu0 %v1353
    %1683 = vmatprep.subr.bf16.mxu0 %v1346
    %1684 = vmatpush1.bf16.msra.mxu0 %v1345
    %1685 = vmatprep.subr.bf16.mxu0 %v1338
    %1686 = vmatpush1.bf16.msra.mxu0 %v1337
    %1687 = vmatprep.subr.bf16.mxu0 %v1458
    %1688 = vmatpush2.bf16.msra.mxu0 %v1457
    %1689 = vmatprep.subr.bf16.mxu0 %v1450
    %1690 = vmatpush2.bf16.msra.mxu0 %v1449
    %1691 = vmatprep.subr.bf16.mxu0 %v1442
    %1692 = vmatpush2.bf16.msra.mxu0 %v1441
    %1693 = vmatprep.subr.bf16.mxu0 %v1434
    %1694 = vmatpush2.bf16.msra.mxu0 %v1433
    %1695 = vmatprep.subr.bf16.mxu0 %v1426
    %1696 = vmatpush2.bf16.msra.mxu0 %v1425
    %1697 = vmatprep.subr.bf16.mxu0 %v1418
    %1698 = vmatpush2.bf16.msra.mxu0 %v1417
    %1699 = vmatprep.subr.bf16.mxu0 %v1410
    %1700 = vmatpush2.bf16.msra.mxu0 %v1409
    %1701 = vmatprep.subr.bf16.mxu0 %v1402
    %1702 = vmatpush2.bf16.msra.mxu0 %v1401
    %1703 = vmatprep.mubr.bf16.mxu0 %v820
    %1704 = vmatmul.mubr.bf16.gmra.mxu0 %v819
    %v1705 = vpop.f32.mrf.mxu0
    %v1706 = vadd.f32 0.0, %v1705
    %v1707 = vpop.f32.mrf.mxu0
    %v1708 = vadd.f32 0.0, %v1707
    %v1709 = vpop.f32.mrf.mxu0
    %v1710 = vpop.f32.mrf.mxu0
    %1711 = vdwg.mxu0
    %1712 = vmatprep.subr.bf16.mxu0 %v1396
    %1713 = vmatpush1.bf16.msra.mxu0 %v1395
    %1714 = vmatprep.subr.bf16.mxu0 %v1388
    %1715 = vmatpush1.bf16.msra.mxu0 %v1387
    %1716 = vmatprep.subr.bf16.mxu0 %v1380
    %1717 = vmatpush1.bf16.msra.mxu0 %v1379
    %1718 = vmatprep.subr.bf16.mxu0 %v1372
    %1719 = vmatpush1.bf16.msra.mxu0 %v1371
    %1720 = vmatprep.subr.bf16.mxu0 %v1364
    %1721 = vmatpush1.bf16.msra.mxu0 %v1363
    %1722 = vmatprep.subr.bf16.mxu0 %v1356
    %1723 = vmatpush1.bf16.msra.mxu0 %v1355
    %1724 = vmatprep.subr.bf16.mxu0 %v1348
    %1725 = vmatpush1.bf16.msra.mxu0 %v1347
    %1726 = vmatprep.subr.bf16.mxu0 %v1340
    %1727 = vmatpush1.bf16.msra.mxu0 %v1339
    %1728 = vmatprep.subr.bf16.mxu0 %v1460
    %1729 = vmatpush2.bf16.msra.mxu0 %v1459
    %1730 = vmatprep.subr.bf16.mxu0 %v1452
    %1731 = vmatpush2.bf16.msra.mxu0 %v1451
    %1732 = vmatprep.subr.bf16.mxu0 %v1444
    %1733 = vmatpush2.bf16.msra.mxu0 %v1443
    %1734 = vmatprep.subr.bf16.mxu0 %v1436
    %1735 = vmatpush2.bf16.msra.mxu0 %v1435
    %1736 = vmatprep.subr.bf16.mxu0 %v1428
    %1737 = vmatpush2.bf16.msra.mxu0 %v1427
    %1738 = vmatprep.subr.bf16.mxu0 %v1420
    %1739 = vmatpush2.bf16.msra.mxu0 %v1419
    %1740 = vmatprep.subr.bf16.mxu0 %v1412
    %1741 = vmatpush2.bf16.msra.mxu0 %v1411
    %1742 = vmatprep.subr.bf16.mxu0 %v1404
    %1743 = vmatpush2.bf16.msra.mxu0 %v1403
    %1744 = vmatprep.mubr.bf16.mxu0 %v820
    %1745 = vmatmul.mubr.bf16.gmra.mxu0 %v819
    %v1746 = vpop.f32.mrf.mxu0
    %v1747 = vadd.f32 0.0, %v1746
    %v1748 = vpop.f32.mrf.mxu0
    %v1749 = vadd.f32 0.0, %v1748
    %v1750 = vpop.f32.mrf.mxu0
    %v1751 = vpop.f32.mrf.mxu0
    %1752 = vdwg.mxu0
    %v1753 = vadd.f32 %v811, %v1624
    %v1754 = vadd.f32 %v812, %v1626
    %v1755 = vadd.f32 %v813, %v1665
    %v1756 = vadd.f32 %v814, %v1667
    %v1757 = vadd.f32 %v815, %v1706
    %v1758 = vadd.f32 %v816, %v1708
    %v1759 = vadd.f32 %v817, %v1747
    %v1760 = vadd.f32 %v818, %v1749
    %v1761 = vxor.u32 %v1753, 2147483648
    %v1762 = vxor.u32 %v1754, 2147483648
    %v1763 = vmul.f32 %v1761, 1.442695
    %v1764 = vpow.pop %v1763
    %v1765 = vmul.f32 %v1762, 1.442695
    %v1766 = vpow.pop %v1765
    %v1767 = vadd.f32 %v1764, 1.0
    %v1768 = vadd.f32 %v1766, 1.0
    %v1769 = vrcp.pop %v1767
    %v1770 = vmul.f32 1.0, %v1769
    %v1771 = vrcp.pop %v1768
    %v1772 = vmul.f32 1.0, %v1771
    %v1773 = vxor.u32 %v1755, 2147483648
    %v1774 = vxor.u32 %v1756, 2147483648
    %v1775 = vmul.f32 %v1773, 1.442695
    %v1776 = vpow.pop %v1775
    %v1777 = vmul.f32 %v1774, 1.442695
    %v1778 = vpow.pop %v1777
    %v1779 = vadd.f32 %v1776, 1.0
    %v1780 = vadd.f32 %v1778, 1.0
    %v1781 = vrcp.pop %v1779
    %v1782 = vmul.f32 1.0, %v1781
    %v1783 = vrcp.pop %v1780
    %v1784 = vmul.f32 1.0, %v1783
    %v1785 = vtanh.pop %v1757
    %v1786 = vtanh.pop %v1758
    %v1787 = vxor.u32 %v1759, 2147483648
    %v1788 = vxor.u32 %v1760, 2147483648
    %v1789 = vmul.f32 %v1787, 1.442695
    %v1790 = vpow.pop %v1789
    %v1791 = vmul.f32 %v1788, 1.442695
    %v1792 = vpow.pop %v1791
    %v1793 = vadd.f32 %v1790, 1.0
    %v1794 = vadd.f32 %v1792, 1.0
    %v1795 = vrcp.pop %v1793
    %v1796 = vmul.f32 1.0, %v1795
    %v1797 = vrcp.pop %v1794
    %v1798 = vmul.f32 1.0, %v1797
    %v1799 = vmul.f32 %v1782, %v803
    %v1800 = vmul.f32 %v1784, %v804
    %v1801 = vmul.f32 %v1770, %v1785
    %v1802 = vmul.f32 %v1772, %v1786
    %v1803 = vadd.f32 %v1799, %v1801
    %v1804 = vadd.f32 %v1800, %v1802
    %v1805 = vtanh.pop %v1803
    %v1806 = vtanh.pop %v1804
    %v1807 = vmul.f32 %v1796, %v1805
    %v1808 = vmul.f32 %v1798, %v1806
    %v1809 = vpack.c.bf16 %v1807, %v1807
    %v1810 = vpack.c.bf16 %v1808, %v1808
    %v1811 = vld [vmem:[#allocation9] sm:$0xff]
    %v1812 = vld [vmem:[#allocation9 + $0x8] sm:$0xff]
    %v1813 = vld [vmem:[#allocation9 + $0x10] sm:$0xff]
    %v1814 = vld [vmem:[#allocation9 + $0x18] sm:$0xff]
    %v1815 = vld [vmem:[#allocation9 + $0x20] sm:$0xff]
    %v1816 = vld [vmem:[#allocation9 + $0x28] sm:$0xff]
    %v1817 = vld [vmem:[#allocation9 + $0x30] sm:$0xff]
    %v1818 = vld [vmem:[#allocation9 + $0x38] sm:$0xff]
    %v1819 = vld [vmem:[#allocation9 + $0x40] sm:$0xff]
    %v1820 = vld [vmem:[#allocation9 + $0x48] sm:$0xff]
    %v1821 = vld [vmem:[#allocation9 + $0x50] sm:$0xff]
    %v1822 = vld [vmem:[#allocation9 + $0x58] sm:$0xff]
    %v1823 = vld [vmem:[#allocation9 + $0x60] sm:$0xff]
    %v1824 = vld [vmem:[#allocation9 + $0x68] sm:$0xff]
    %v1825 = vld [vmem:[#allocation9 + $0x70] sm:$0xff]
    %v1826 = vld [vmem:[#allocation9 + $0x78] sm:$0xff]
    %v1827 = vld [vmem:[#allocation9 + $0x80] sm:$0xff]
    %v1828 = vld [vmem:[#allocation9 + $0x88] sm:$0xff]
    %v1829 = vld [vmem:[#allocation9 + $0x90] sm:$0xff]
    %v1830 = vld [vmem:[#allocation9 + $0x98] sm:$0xff]
    %v1831 = vld [vmem:[#allocation9 + $0xa0] sm:$0xff]
    %v1832 = vld [vmem:[#allocation9 + $0xa8] sm:$0xff]
    %v1833 = vld [vmem:[#allocation9 + $0xb0] sm:$0xff]
    %v1834 = vld [vmem:[#allocation9 + $0xb8] sm:$0xff]
    %v1835 = vld [vmem:[#allocation9 + $0xc0] sm:$0xff]
    %v1836 = vld [vmem:[#allocation9 + $0xc8] sm:$0xff]
    %v1837 = vld [vmem:[#allocation9 + $0xd0] sm:$0xff]
    %v1838 = vld [vmem:[#allocation9 + $0xd8] sm:$0xff]
    %v1839 = vld [vmem:[#allocation9 + $0xe0] sm:$0xff]
    %v1840 = vld [vmem:[#allocation9 + $0xe8] sm:$0xff]
    %v1841 = vld [vmem:[#allocation9 + $0xf0] sm:$0xff]
    %v1842 = vld [vmem:[#allocation9 + $0xf8] sm:$0xff]
    %v1843 = vld [vmem:[#allocation9 + $0x100] sm:$0xff]
    %v1844 = vld [vmem:[#allocation9 + $0x108] sm:$0xff]
    %v1845 = vld [vmem:[#allocation9 + $0x110] sm:$0xff]
    %v1846 = vld [vmem:[#allocation9 + $0x118] sm:$0xff]
    %v1847 = vld [vmem:[#allocation9 + $0x120] sm:$0xff]
    %v1848 = vld [vmem:[#allocation9 + $0x128] sm:$0xff]
    %v1849 = vld [vmem:[#allocation9 + $0x130] sm:$0xff]
    %v1850 = vld [vmem:[#allocation9 + $0x138] sm:$0xff]
    %v1851 = vld [vmem:[#allocation9 + $0x140] sm:$0xff]
    %v1852 = vld [vmem:[#allocation9 + $0x148] sm:$0xff]
    %v1853 = vld [vmem:[#allocation9 + $0x150] sm:$0xff]
    %v1854 = vld [vmem:[#allocation9 + $0x158] sm:$0xff]
    %v1855 = vld [vmem:[#allocation9 + $0x160] sm:$0xff]
    %v1856 = vld [vmem:[#allocation9 + $0x168] sm:$0xff]
    %v1857 = vld [vmem:[#allocation9 + $0x170] sm:$0xff]
    %v1858 = vld [vmem:[#allocation9 + $0x178] sm:$0xff]
    %v1859 = vld [vmem:[#allocation9 + $0x180] sm:$0xff]
    %v1860 = vld [vmem:[#allocation9 + $0x188] sm:$0xff]
    %v1861 = vld [vmem:[#allocation9 + $0x190] sm:$0xff]
    %v1862 = vld [vmem:[#allocation9 + $0x198] sm:$0xff]
    %v1863 = vld [vmem:[#allocation9 + $0x1a0] sm:$0xff]
    %v1864 = vld [vmem:[#allocation9 + $0x1a8] sm:$0xff]
    %v1865 = vld [vmem:[#allocation9 + $0x1b0] sm:$0xff]
    %v1866 = vld [vmem:[#allocation9 + $0x1b8] sm:$0xff]
    %v1867 = vld [vmem:[#allocation9 + $0x1c0] sm:$0xff]
    %v1868 = vld [vmem:[#allocation9 + $0x1c8] sm:$0xff]
    %v1869 = vld [vmem:[#allocation9 + $0x1d0] sm:$0xff]
    %v1870 = vld [vmem:[#allocation9 + $0x1d8] sm:$0xff]
    %v1871 = vld [vmem:[#allocation9 + $0x1e0] sm:$0xff]
    %v1872 = vld [vmem:[#allocation9 + $0x1e8] sm:$0xff]
    %v1873 = vld [vmem:[#allocation9 + $0x1f0] sm:$0xff]
    %v1874 = vld [vmem:[#allocation9 + $0x1f8] sm:$0xff]
    %v1875 = vld [vmem:[#allocation9 + $0x200] sm:$0xff]
    %v1876 = vld [vmem:[#allocation9 + $0x208] sm:$0xff]
    %v1877 = vld [vmem:[#allocation9 + $0x210] sm:$0xff]
    %v1878 = vld [vmem:[#allocation9 + $0x218] sm:$0xff]
    %v1879 = vld [vmem:[#allocation9 + $0x220] sm:$0xff]
    %v1880 = vld [vmem:[#allocation9 + $0x228] sm:$0xff]
    %v1881 = vld [vmem:[#allocation9 + $0x230] sm:$0xff]
    %v1882 = vld [vmem:[#allocation9 + $0x238] sm:$0xff]
    %v1883 = vld [vmem:[#allocation9 + $0x240] sm:$0xff]
    %v1884 = vld [vmem:[#allocation9 + $0x248] sm:$0xff]
    %v1885 = vld [vmem:[#allocation9 + $0x250] sm:$0xff]
    %v1886 = vld [vmem:[#allocation9 + $0x258] sm:$0xff]
    %v1887 = vld [vmem:[#allocation9 + $0x260] sm:$0xff]
    %v1888 = vld [vmem:[#allocation9 + $0x268] sm:$0xff]
    %v1889 = vld [vmem:[#allocation9 + $0x270] sm:$0xff]
    %v1890 = vld [vmem:[#allocation9 + $0x278] sm:$0xff]
    %v1891 = vld [vmem:[#allocation9 + $0x280] sm:$0xff]
    %v1892 = vld [vmem:[#allocation9 + $0x288] sm:$0xff]
    %v1893 = vld [vmem:[#allocation9 + $0x290] sm:$0xff]
    %v1894 = vld [vmem:[#allocation9 + $0x298] sm:$0xff]
    %v1895 = vld [vmem:[#allocation9 + $0x2a0] sm:$0xff]
    %v1896 = vld [vmem:[#allocation9 + $0x2a8] sm:$0xff]
    %v1897 = vld [vmem:[#allocation9 + $0x2b0] sm:$0xff]
    %v1898 = vld [vmem:[#allocation9 + $0x2b8] sm:$0xff]
    %v1899 = vld [vmem:[#allocation9 + $0x2c0] sm:$0xff]
    %v1900 = vld [vmem:[#allocation9 + $0x2c8] sm:$0xff]
    %v1901 = vld [vmem:[#allocation9 + $0x2d0] sm:$0xff]
    %v1902 = vld [vmem:[#allocation9 + $0x2d8] sm:$0xff]
    %v1903 = vld [vmem:[#allocation9 + $0x2e0] sm:$0xff]
    %v1904 = vld [vmem:[#allocation9 + $0x2e8] sm:$0xff]
    %v1905 = vld [vmem:[#allocation9 + $0x2f0] sm:$0xff]
    %v1906 = vld [vmem:[#allocation9 + $0x2f8] sm:$0xff]
    %v1907 = vld [vmem:[#allocation9 + $0x300] sm:$0xff]
    %v1908 = vld [vmem:[#allocation9 + $0x308] sm:$0xff]
    %v1909 = vld [vmem:[#allocation9 + $0x310] sm:$0xff]
    %v1910 = vld [vmem:[#allocation9 + $0x318] sm:$0xff]
    %v1911 = vld [vmem:[#allocation9 + $0x320] sm:$0xff]
    %v1912 = vld [vmem:[#allocation9 + $0x328] sm:$0xff]
    %v1913 = vld [vmem:[#allocation9 + $0x330] sm:$0xff]
    %v1914 = vld [vmem:[#allocation9 + $0x338] sm:$0xff]
    %v1915 = vld [vmem:[#allocation9 + $0x340] sm:$0xff]
    %v1916 = vld [vmem:[#allocation9 + $0x348] sm:$0xff]
    %v1917 = vld [vmem:[#allocation9 + $0x350] sm:$0xff]
    %v1918 = vld [vmem:[#allocation9 + $0x358] sm:$0xff]
    %v1919 = vld [vmem:[#allocation9 + $0x360] sm:$0xff]
    %v1920 = vld [vmem:[#allocation9 + $0x368] sm:$0xff]
    %v1921 = vld [vmem:[#allocation9 + $0x370] sm:$0xff]
    %v1922 = vld [vmem:[#allocation9 + $0x378] sm:$0xff]
    %v1923 = vld [vmem:[#allocation9 + $0x380] sm:$0xff]
    %v1924 = vld [vmem:[#allocation9 + $0x388] sm:$0xff]
    %v1925 = vld [vmem:[#allocation9 + $0x390] sm:$0xff]
    %v1926 = vld [vmem:[#allocation9 + $0x398] sm:$0xff]
    %v1927 = vld [vmem:[#allocation9 + $0x3a0] sm:$0xff]
    %v1928 = vld [vmem:[#allocation9 + $0x3a8] sm:$0xff]
    %v1929 = vld [vmem:[#allocation9 + $0x3b0] sm:$0xff]
    %v1930 = vld [vmem:[#allocation9 + $0x3b8] sm:$0xff]
    %v1931 = vld [vmem:[#allocation9 + $0x3c0] sm:$0xff]
    %v1932 = vld [vmem:[#allocation9 + $0x3c8] sm:$0xff]
    %v1933 = vld [vmem:[#allocation9 + $0x3d0] sm:$0xff]
    %v1934 = vld [vmem:[#allocation9 + $0x3d8] sm:$0xff]
    %v1935 = vld [vmem:[#allocation9 + $0x3e0] sm:$0xff]
    %v1936 = vld [vmem:[#allocation9 + $0x3e8] sm:$0xff]
    %v1937 = vld [vmem:[#allocation9 + $0x3f0] sm:$0xff]
    %v1938 = vld [vmem:[#allocation9 + $0x3f8] sm:$0xff]
    %v1939 = vpack.c.bf16 %v806, %v806
    %v1940 = vpack.c.bf16 %v807, %v807
    %v1941 = vld [vmem:[#allocation10] sm:$0xff]
    %v1942 = vld [vmem:[#allocation10 + $0x8] sm:$0xff]
    %v1943 = vld [vmem:[#allocation10 + $0x10] sm:$0xff]
    %v1944 = vld [vmem:[#allocation10 + $0x18] sm:$0xff]
    %v1945 = vld [vmem:[#allocation10 + $0x20] sm:$0xff]
    %v1946 = vld [vmem:[#allocation10 + $0x28] sm:$0xff]
    %v1947 = vld [vmem:[#allocation10 + $0x30] sm:$0xff]
    %v1948 = vld [vmem:[#allocation10 + $0x38] sm:$0xff]
    %v1949 = vld [vmem:[#allocation10 + $0x40] sm:$0xff]
    %v1950 = vld [vmem:[#allocation10 + $0x48] sm:$0xff]
    %v1951 = vld [vmem:[#allocation10 + $0x50] sm:$0xff]
    %v1952 = vld [vmem:[#allocation10 + $0x58] sm:$0xff]
    %v1953 = vld [vmem:[#allocation10 + $0x60] sm:$0xff]
    %v1954 = vld [vmem:[#allocation10 + $0x68] sm:$0xff]
    %v1955 = vld [vmem:[#allocation10 + $0x70] sm:$0xff]
    %v1956 = vld [vmem:[#allocation10 + $0x78] sm:$0xff]
    %v1957 = vld [vmem:[#allocation10 + $0x80] sm:$0xff]
    %v1958 = vld [vmem:[#allocation10 + $0x88] sm:$0xff]
    %v1959 = vld [vmem:[#allocation10 + $0x90] sm:$0xff]
    %v1960 = vld [vmem:[#allocation10 + $0x98] sm:$0xff]
    %v1961 = vld [vmem:[#allocation10 + $0xa0] sm:$0xff]
    %v1962 = vld [vmem:[#allocation10 + $0xa8] sm:$0xff]
    %v1963 = vld [vmem:[#allocation10 + $0xb0] sm:$0xff]
    %v1964 = vld [vmem:[#allocation10 + $0xb8] sm:$0xff]
    %v1965 = vld [vmem:[#allocation10 + $0xc0] sm:$0xff]
    %v1966 = vld [vmem:[#allocation10 + $0xc8] sm:$0xff]
    %v1967 = vld [vmem:[#allocation10 + $0xd0] sm:$0xff]
    %v1968 = vld [vmem:[#allocation10 + $0xd8] sm:$0xff]
    %v1969 = vld [vmem:[#allocation10 + $0xe0] sm:$0xff]
    %v1970 = vld [vmem:[#allocation10 + $0xe8] sm:$0xff]
    %v1971 = vld [vmem:[#allocation10 + $0xf0] sm:$0xff]
    %v1972 = vld [vmem:[#allocation10 + $0xf8] sm:$0xff]
    %v1973 = vld [vmem:[#allocation10 + $0x100] sm:$0xff]
    %v1974 = vld [vmem:[#allocation10 + $0x108] sm:$0xff]
    %v1975 = vld [vmem:[#allocation10 + $0x110] sm:$0xff]
    %v1976 = vld [vmem:[#allocation10 + $0x118] sm:$0xff]
    %v1977 = vld [vmem:[#allocation10 + $0x120] sm:$0xff]
    %v1978 = vld [vmem:[#allocation10 + $0x128] sm:$0xff]
    %v1979 = vld [vmem:[#allocation10 + $0x130] sm:$0xff]
    %v1980 = vld [vmem:[#allocation10 + $0x138] sm:$0xff]
    %v1981 = vld [vmem:[#allocation10 + $0x140] sm:$0xff]
    %v1982 = vld [vmem:[#allocation10 + $0x148] sm:$0xff]
    %v1983 = vld [vmem:[#allocation10 + $0x150] sm:$0xff]
    %v1984 = vld [vmem:[#allocation10 + $0x158] sm:$0xff]
    %v1985 = vld [vmem:[#allocation10 + $0x160] sm:$0xff]
    %v1986 = vld [vmem:[#allocation10 + $0x168] sm:$0xff]
    %v1987 = vld [vmem:[#allocation10 + $0x170] sm:$0xff]
    %v1988 = vld [vmem:[#allocation10 + $0x178] sm:$0xff]
    %v1989 = vld [vmem:[#allocation10 + $0x180] sm:$0xff]
    %v1990 = vld [vmem:[#allocation10 + $0x188] sm:$0xff]
    %v1991 = vld [vmem:[#allocation10 + $0x190] sm:$0xff]
    %v1992 = vld [vmem:[#allocation10 + $0x198] sm:$0xff]
    %v1993 = vld [vmem:[#allocation10 + $0x1a0] sm:$0xff]
    %v1994 = vld [vmem:[#allocation10 + $0x1a8] sm:$0xff]
    %v1995 = vld [vmem:[#allocation10 + $0x1b0] sm:$0xff]
    %v1996 = vld [vmem:[#allocation10 + $0x1b8] sm:$0xff]
    %v1997 = vld [vmem:[#allocation10 + $0x1c0] sm:$0xff]
    %v1998 = vld [vmem:[#allocation10 + $0x1c8] sm:$0xff]
    %v1999 = vld [vmem:[#allocation10 + $0x1d0] sm:$0xff]
    %v2000 = vld [vmem:[#allocation10 + $0x1d8] sm:$0xff]
    %v2001 = vld [vmem:[#allocation10 + $0x1e0] sm:$0xff]
    %v2002 = vld [vmem:[#allocation10 + $0x1e8] sm:$0xff]
    %v2003 = vld [vmem:[#allocation10 + $0x1f0] sm:$0xff]
    %v2004 = vld [vmem:[#allocation10 + $0x1f8] sm:$0xff]
    %v2005 = vld [vmem:[#allocation10 + $0x200] sm:$0xff]
    %v2006 = vld [vmem:[#allocation10 + $0x208] sm:$0xff]
    %v2007 = vld [vmem:[#allocation10 + $0x210] sm:$0xff]
    %v2008 = vld [vmem:[#allocation10 + $0x218] sm:$0xff]
    %v2009 = vld [vmem:[#allocation10 + $0x220] sm:$0xff]
    %v2010 = vld [vmem:[#allocation10 + $0x228] sm:$0xff]
    %v2011 = vld [vmem:[#allocation10 + $0x230] sm:$0xff]
    %v2012 = vld [vmem:[#allocation10 + $0x238] sm:$0xff]
    %v2013 = vld [vmem:[#allocation10 + $0x240] sm:$0xff]
    %v2014 = vld [vmem:[#allocation10 + $0x248] sm:$0xff]
    %v2015 = vld [vmem:[#allocation10 + $0x250] sm:$0xff]
    %v2016 = vld [vmem:[#allocation10 + $0x258] sm:$0xff]
    %v2017 = vld [vmem:[#allocation10 + $0x260] sm:$0xff]
    %v2018 = vld [vmem:[#allocation10 + $0x268] sm:$0xff]
    %v2019 = vld [vmem:[#allocation10 + $0x270] sm:$0xff]
    %v2020 = vld [vmem:[#allocation10 + $0x278] sm:$0xff]
    %v2021 = vld [vmem:[#allocation10 + $0x280] sm:$0xff]
    %v2022 = vld [vmem:[#allocation10 + $0x288] sm:$0xff]
    %v2023 = vld [vmem:[#allocation10 + $0x290] sm:$0xff]
    %v2024 = vld [vmem:[#allocation10 + $0x298] sm:$0xff]
    %v2025 = vld [vmem:[#allocation10 + $0x2a0] sm:$0xff]
    %v2026 = vld [vmem:[#allocation10 + $0x2a8] sm:$0xff]
    %v2027 = vld [vmem:[#allocation10 + $0x2b0] sm:$0xff]
    %v2028 = vld [vmem:[#allocation10 + $0x2b8] sm:$0xff]
    %v2029 = vld [vmem:[#allocation10 + $0x2c0] sm:$0xff]
    %v2030 = vld [vmem:[#allocation10 + $0x2c8] sm:$0xff]
    %v2031 = vld [vmem:[#allocation10 + $0x2d0] sm:$0xff]
    %v2032 = vld [vmem:[#allocation10 + $0x2d8] sm:$0xff]
    %v2033 = vld [vmem:[#allocation10 + $0x2e0] sm:$0xff]
    %v2034 = vld [vmem:[#allocation10 + $0x2e8] sm:$0xff]
    %v2035 = vld [vmem:[#allocation10 + $0x2f0] sm:$0xff]
    %v2036 = vld [vmem:[#allocation10 + $0x2f8] sm:$0xff]
    %v2037 = vld [vmem:[#allocation10 + $0x300] sm:$0xff]
    %v2038 = vld [vmem:[#allocation10 + $0x308] sm:$0xff]
    %v2039 = vld [vmem:[#allocation10 + $0x310] sm:$0xff]
    %v2040 = vld [vmem:[#allocation10 + $0x318] sm:$0xff]
    %v2041 = vld [vmem:[#allocation10 + $0x320] sm:$0xff]
    %v2042 = vld [vmem:[#allocation10 + $0x328] sm:$0xff]
    %v2043 = vld [vmem:[#allocation10 + $0x330] sm:$0xff]
    %v2044 = vld [vmem:[#allocation10 + $0x338] sm:$0xff]
    %v2045 = vld [vmem:[#allocation10 + $0x340] sm:$0xff]
    %v2046 = vld [vmem:[#allocation10 + $0x348] sm:$0xff]
    %v2047 = vld [vmem:[#allocation10 + $0x350] sm:$0xff]
    %v2048 = vld [vmem:[#allocation10 + $0x358] sm:$0xff]
    %v2049 = vld [vmem:[#allocation10 + $0x360] sm:$0xff]
    %v2050 = vld [vmem:[#allocation10 + $0x368] sm:$0xff]
    %v2051 = vld [vmem:[#allocation10 + $0x370] sm:$0xff]
    %v2052 = vld [vmem:[#allocation10 + $0x378] sm:$0xff]
    %v2053 = vld [vmem:[#allocation10 + $0x380] sm:$0xff]
    %v2054 = vld [vmem:[#allocation10 + $0x388] sm:$0xff]
    %v2055 = vld [vmem:[#allocation10 + $0x390] sm:$0xff]
    %v2056 = vld [vmem:[#allocation10 + $0x398] sm:$0xff]
    %v2057 = vld [vmem:[#allocation10 + $0x3a0] sm:$0xff]
    %v2058 = vld [vmem:[#allocation10 + $0x3a8] sm:$0xff]
    %v2059 = vld [vmem:[#allocation10 + $0x3b0] sm:$0xff]
    %v2060 = vld [vmem:[#allocation10 + $0x3b8] sm:$0xff]
    %v2061 = vld [vmem:[#allocation10 + $0x3c0] sm:$0xff]
    %v2062 = vld [vmem:[#allocation10 + $0x3c8] sm:$0xff]
    %v2063 = vld [vmem:[#allocation10 + $0x3d0] sm:$0xff]
    %v2064 = vld [vmem:[#allocation10 + $0x3d8] sm:$0xff]
    %v2065 = vld [vmem:[#allocation10 + $0x3e0] sm:$0xff]
    %v2066 = vld [vmem:[#allocation10 + $0x3e8] sm:$0xff]
    %v2067 = vld [vmem:[#allocation10 + $0x3f0] sm:$0xff]
    %v2068 = vld [vmem:[#allocation10 + $0x3f8] sm:$0xff]
    %v2197 = vunpack.c.l.b16 %v1941
    %v2198 = vunpack.c.h.b16 %v1941
    %v2199 = vunpack.c.l.b16 %v1942
    %v2200 = vunpack.c.h.b16 %v1942
    %v2201 = vunpack.c.l.b16 %v1943
    %v2202 = vunpack.c.h.b16 %v1943
    %v2203 = vunpack.c.l.b16 %v1944
    %v2204 = vunpack.c.h.b16 %v1944
    %v2205 = vunpack.c.l.b16 %v1945
    %v2206 = vunpack.c.h.b16 %v1945
    %v2207 = vunpack.c.l.b16 %v1946
    %v2208 = vunpack.c.h.b16 %v1946
    %v2209 = vunpack.c.l.b16 %v1947
    %v2210 = vunpack.c.h.b16 %v1947
    %v2211 = vunpack.c.l.b16 %v1948
    %v2212 = vunpack.c.h.b16 %v1948
    %v2213 = vunpack.c.l.b16 %v1949
    %v2214 = vunpack.c.h.b16 %v1949
    %v2215 = vunpack.c.l.b16 %v1950
    %v2216 = vunpack.c.h.b16 %v1950
    %v2217 = vunpack.c.l.b16 %v1951
    %v2218 = vunpack.c.h.b16 %v1951
    %v2219 = vunpack.c.l.b16 %v1952
    %v2220 = vunpack.c.h.b16 %v1952
    %v2221 = vunpack.c.l.b16 %v1953
    %v2222 = vunpack.c.h.b16 %v1953
    %v2223 = vunpack.c.l.b16 %v1954
    %v2224 = vunpack.c.h.b16 %v1954
    %v2225 = vunpack.c.l.b16 %v1955
    %v2226 = vunpack.c.h.b16 %v1955
    %v2227 = vunpack.c.l.b16 %v1956
    %v2228 = vunpack.c.h.b16 %v1956
    %v2229 = vunpack.c.l.b16 %v1957
    %v2230 = vunpack.c.h.b16 %v1957
    %v2231 = vunpack.c.l.b16 %v1958
    %v2232 = vunpack.c.h.b16 %v1958
    %v2233 = vunpack.c.l.b16 %v1959
    %v2234 = vunpack.c.h.b16 %v1959
    %v2235 = vunpack.c.l.b16 %v1960
    %v2236 = vunpack.c.h.b16 %v1960
    %v2237 = vunpack.c.l.b16 %v1961
    %v2238 = vunpack.c.h.b16 %v1961
    %v2239 = vunpack.c.l.b16 %v1962
    %v2240 = vunpack.c.h.b16 %v1962
    %v2241 = vunpack.c.l.b16 %v1963
    %v2242 = vunpack.c.h.b16 %v1963
    %v2243 = vunpack.c.l.b16 %v1964
    %v2244 = vunpack.c.h.b16 %v1964
    %v2245 = vunpack.c.l.b16 %v1965
    %v2246 = vunpack.c.h.b16 %v1965
    %v2247 = vunpack.c.l.b16 %v1966
    %v2248 = vunpack.c.h.b16 %v1966
    %v2249 = vunpack.c.l.b16 %v1967
    %v2250 = vunpack.c.h.b16 %v1967
    %v2251 = vunpack.c.l.b16 %v1968
    %v2252 = vunpack.c.h.b16 %v1968
    %v2253 = vunpack.c.l.b16 %v1969
    %v2254 = vunpack.c.h.b16 %v1969
    %v2255 = vunpack.c.l.b16 %v1970
    %v2256 = vunpack.c.h.b16 %v1970
    %v2257 = vunpack.c.l.b16 %v1971
    %v2258 = vunpack.c.h.b16 %v1971
    %v2259 = vunpack.c.l.b16 %v1972
    %v2260 = vunpack.c.h.b16 %v1972
    %v2261 = vunpack.c.l.b16 %v1973
    %v2262 = vunpack.c.h.b16 %v1973
    %v2263 = vunpack.c.l.b16 %v1974
    %v2264 = vunpack.c.h.b16 %v1974
    %v2265 = vunpack.c.l.b16 %v1975
    %v2266 = vunpack.c.h.b16 %v1975
    %v2267 = vunpack.c.l.b16 %v1976
    %v2268 = vunpack.c.h.b16 %v1976
    %v2269 = vunpack.c.l.b16 %v1977
    %v2270 = vunpack.c.h.b16 %v1977
    %v2271 = vunpack.c.l.b16 %v1978
    %v2272 = vunpack.c.h.b16 %v1978
    %v2273 = vunpack.c.l.b16 %v1979
    %v2274 = vunpack.c.h.b16 %v1979
    %v2275 = vunpack.c.l.b16 %v1980
    %v2276 = vunpack.c.h.b16 %v1980
    %v2277 = vunpack.c.l.b16 %v1981
    %v2278 = vunpack.c.h.b16 %v1981
    %v2279 = vunpack.c.l.b16 %v1982
    %v2280 = vunpack.c.h.b16 %v1982
    %v2281 = vunpack.c.l.b16 %v1983
    %v2282 = vunpack.c.h.b16 %v1983
    %v2283 = vunpack.c.l.b16 %v1984
    %v2284 = vunpack.c.h.b16 %v1984
    %v2285 = vunpack.c.l.b16 %v1985
    %v2286 = vunpack.c.h.b16 %v1985
    %v2287 = vunpack.c.l.b16 %v1986
    %v2288 = vunpack.c.h.b16 %v1986
    %v2289 = vunpack.c.l.b16 %v1987
    %v2290 = vunpack.c.h.b16 %v1987
    %v2291 = vunpack.c.l.b16 %v1988
    %v2292 = vunpack.c.h.b16 %v1988
    %v2293 = vunpack.c.l.b16 %v1989
    %v2294 = vunpack.c.h.b16 %v1989
    %v2295 = vunpack.c.l.b16 %v1990
    %v2296 = vunpack.c.h.b16 %v1990
    %v2297 = vunpack.c.l.b16 %v1991
    %v2298 = vunpack.c.h.b16 %v1991
    %v2299 = vunpack.c.l.b16 %v1992
    %v2300 = vunpack.c.h.b16 %v1992
    %v2301 = vunpack.c.l.b16 %v1993
    %v2302 = vunpack.c.h.b16 %v1993
    %v2303 = vunpack.c.l.b16 %v1994
    %v2304 = vunpack.c.h.b16 %v1994
    %v2305 = vunpack.c.l.b16 %v1995
    %v2306 = vunpack.c.h.b16 %v1995
    %v2307 = vunpack.c.l.b16 %v1996
    %v2308 = vunpack.c.h.b16 %v1996
    %v2309 = vunpack.c.l.b16 %v1997
    %v2310 = vunpack.c.h.b16 %v1997
    %v2311 = vunpack.c.l.b16 %v1998
    %v2312 = vunpack.c.h.b16 %v1998
    %v2313 = vunpack.c.l.b16 %v1999
    %v2314 = vunpack.c.h.b16 %v1999
    %v2315 = vunpack.c.l.b16 %v2000
    %v2316 = vunpack.c.h.b16 %v2000
    %v2317 = vunpack.c.l.b16 %v2001
    %v2318 = vunpack.c.h.b16 %v2001
    %v2319 = vunpack.c.l.b16 %v2002
    %v2320 = vunpack.c.h.b16 %v2002
    %v2321 = vunpack.c.l.b16 %v2003
    %v2322 = vunpack.c.h.b16 %v2003
    %v2323 = vunpack.c.l.b16 %v2004
    %v2324 = vunpack.c.h.b16 %v2004
    %v2325 = vunpack.c.l.b16 %v2005
    %v2326 = vunpack.c.h.b16 %v2005
    %v2327 = vunpack.c.l.b16 %v2006
    %v2328 = vunpack.c.h.b16 %v2006
    %v2329 = vunpack.c.l.b16 %v2007
    %v2330 = vunpack.c.h.b16 %v2007
    %v2331 = vunpack.c.l.b16 %v2008
    %v2332 = vunpack.c.h.b16 %v2008
    %v2333 = vunpack.c.l.b16 %v2009
    %v2334 = vunpack.c.h.b16 %v2009
    %v2335 = vunpack.c.l.b16 %v2010
    %v2336 = vunpack.c.h.b16 %v2010
    %v2337 = vunpack.c.l.b16 %v2011
    %v2338 = vunpack.c.h.b16 %v2011
    %v2339 = vunpack.c.l.b16 %v2012
    %v2340 = vunpack.c.h.b16 %v2012
    %v2341 = vunpack.c.l.b16 %v2013
    %v2342 = vunpack.c.h.b16 %v2013
    %v2343 = vunpack.c.l.b16 %v2014
    %v2344 = vunpack.c.h.b16 %v2014
    %v2345 = vunpack.c.l.b16 %v2015
    %v2346 = vunpack.c.h.b16 %v2015
    %v2347 = vunpack.c.l.b16 %v2016
    %v2348 = vunpack.c.h.b16 %v2016
    %v2349 = vunpack.c.l.b16 %v2017
    %v2350 = vunpack.c.h.b16 %v2017
    %v2351 = vunpack.c.l.b16 %v2018
    %v2352 = vunpack.c.h.b16 %v2018
    %v2353 = vunpack.c.l.b16 %v2019
    %v2354 = vunpack.c.h.b16 %v2019
    %v2355 = vunpack.c.l.b16 %v2020
    %v2356 = vunpack.c.h.b16 %v2020
    %v2357 = vunpack.c.l.b16 %v2021
    %v2358 = vunpack.c.h.b16 %v2021
    %v2359 = vunpack.c.l.b16 %v2022
    %v2360 = vunpack.c.h.b16 %v2022
    %v2361 = vunpack.c.l.b16 %v2023
    %v2362 = vunpack.c.h.b16 %v2023
    %v2363 = vunpack.c.l.b16 %v2024
    %v2364 = vunpack.c.h.b16 %v2024
    %v2365 = vunpack.c.l.b16 %v2025
    %v2366 = vunpack.c.h.b16 %v2025
    %v2367 = vunpack.c.l.b16 %v2026
    %v2368 = vunpack.c.h.b16 %v2026
    %v2369 = vunpack.c.l.b16 %v2027
    %v2370 = vunpack.c.h.b16 %v2027
    %v2371 = vunpack.c.l.b16 %v2028
    %v2372 = vunpack.c.h.b16 %v2028
    %v2373 = vunpack.c.l.b16 %v2029
    %v2374 = vunpack.c.h.b16 %v2029
    %v2375 = vunpack.c.l.b16 %v2030
    %v2376 = vunpack.c.h.b16 %v2030
    %v2377 = vunpack.c.l.b16 %v2031
    %v2378 = vunpack.c.h.b16 %v2031
    %v2379 = vunpack.c.l.b16 %v2032
    %v2380 = vunpack.c.h.b16 %v2032
    %v2381 = vunpack.c.l.b16 %v2033
    %v2382 = vunpack.c.h.b16 %v2033
    %v2383 = vunpack.c.l.b16 %v2034
    %v2384 = vunpack.c.h.b16 %v2034
    %v2385 = vunpack.c.l.b16 %v2035
    %v2386 = vunpack.c.h.b16 %v2035
    %v2387 = vunpack.c.l.b16 %v2036
    %v2388 = vunpack.c.h.b16 %v2036
    %v2389 = vunpack.c.l.b16 %v2037
    %v2390 = vunpack.c.h.b16 %v2037
    %v2391 = vunpack.c.l.b16 %v2038
    %v2392 = vunpack.c.h.b16 %v2038
    %v2393 = vunpack.c.l.b16 %v2039
    %v2394 = vunpack.c.h.b16 %v2039
    %v2395 = vunpack.c.l.b16 %v2040
    %v2396 = vunpack.c.h.b16 %v2040
    %v2397 = vunpack.c.l.b16 %v2041
    %v2398 = vunpack.c.h.b16 %v2041
    %v2399 = vunpack.c.l.b16 %v2042
    %v2400 = vunpack.c.h.b16 %v2042
    %v2401 = vunpack.c.l.b16 %v2043
    %v2402 = vunpack.c.h.b16 %v2043
    %v2403 = vunpack.c.l.b16 %v2044
    %v2404 = vunpack.c.h.b16 %v2044
    %v2405 = vunpack.c.l.b16 %v2045
    %v2406 = vunpack.c.h.b16 %v2045
    %v2407 = vunpack.c.l.b16 %v2046
    %v2408 = vunpack.c.h.b16 %v2046
    %v2409 = vunpack.c.l.b16 %v2047
    %v2410 = vunpack.c.h.b16 %v2047
    %v2411 = vunpack.c.l.b16 %v2048
    %v2412 = vunpack.c.h.b16 %v2048
    %v2413 = vunpack.c.l.b16 %v2049
    %v2414 = vunpack.c.h.b16 %v2049
    %v2415 = vunpack.c.l.b16 %v2050
    %v2416 = vunpack.c.h.b16 %v2050
    %v2417 = vunpack.c.l.b16 %v2051
    %v2418 = vunpack.c.h.b16 %v2051
    %v2419 = vunpack.c.l.b16 %v2052
    %v2420 = vunpack.c.h.b16 %v2052
    %v2421 = vunpack.c.l.b16 %v2053
    %v2422 = vunpack.c.h.b16 %v2053
    %v2423 = vunpack.c.l.b16 %v2054
    %v2424 = vunpack.c.h.b16 %v2054
    %v2425 = vunpack.c.l.b16 %v2055
    %v2426 = vunpack.c.h.b16 %v2055
    %v2427 = vunpack.c.l.b16 %v2056
    %v2428 = vunpack.c.h.b16 %v2056
    %v2429 = vunpack.c.l.b16 %v2057
    %v2430 = vunpack.c.h.b16 %v2057
    %v2431 = vunpack.c.l.b16 %v2058
    %v2432 = vunpack.c.h.b16 %v2058
    %v2433 = vunpack.c.l.b16 %v2059
    %v2434 = vunpack.c.h.b16 %v2059
    %v2435 = vunpack.c.l.b16 %v2060
    %v2436 = vunpack.c.h.b16 %v2060
    %v2437 = vunpack.c.l.b16 %v2061
    %v2438 = vunpack.c.h.b16 %v2061
    %v2439 = vunpack.c.l.b16 %v2062
    %v2440 = vunpack.c.h.b16 %v2062
    %v2441 = vunpack.c.l.b16 %v2063
    %v2442 = vunpack.c.h.b16 %v2063
    %v2443 = vunpack.c.l.b16 %v2064
    %v2444 = vunpack.c.h.b16 %v2064
    %v2445 = vunpack.c.l.b16 %v2065
    %v2446 = vunpack.c.h.b16 %v2065
    %v2447 = vunpack.c.l.b16 %v2066
    %v2448 = vunpack.c.h.b16 %v2066
    %v2449 = vunpack.c.l.b16 %v2067
    %v2450 = vunpack.c.h.b16 %v2067
    %v2451 = vunpack.c.l.b16 %v2068
    %v2452 = vunpack.c.h.b16 %v2068
    %v2453 = vpack.c.b16 %v2205, %v2197
    %v2454 = vpack.c.b16 %v2206, %v2198
    %v2455 = vpack.c.b16 %v2207, %v2199
    %v2456 = vpack.c.b16 %v2208, %v2200
    %v2457 = vpack.c.b16 %v2209, %v2201
    %v2458 = vpack.c.b16 %v2210, %v2202
    %v2459 = vpack.c.b16 %v2211, %v2203
    %v2460 = vpack.c.b16 %v2212, %v2204
    %v2461 = vpack.c.b16 %v2221, %v2213
    %v2462 = vpack.c.b16 %v2222, %v2214
    %v2463 = vpack.c.b16 %v2223, %v2215
    %v2464 = vpack.c.b16 %v2224, %v2216
    %v2465 = vpack.c.b16 %v2225, %v2217
    %v2466 = vpack.c.b16 %v2226, %v2218
    %v2467 = vpack.c.b16 %v2227, %v2219
    %v2468 = vpack.c.b16 %v2228, %v2220
    %v2469 = vpack.c.b16 %v2237, %v2229
    %v2470 = vpack.c.b16 %v2238, %v2230
    %v2471 = vpack.c.b16 %v2239, %v2231
    %v2472 = vpack.c.b16 %v2240, %v2232
    %v2473 = vpack.c.b16 %v2241, %v2233
    %v2474 = vpack.c.b16 %v2242, %v2234
    %v2475 = vpack.c.b16 %v2243, %v2235
    %v2476 = vpack.c.b16 %v2244, %v2236
    %v2477 = vpack.c.b16 %v2253, %v2245
    %v2478 = vpack.c.b16 %v2254, %v2246
    %v2479 = vpack.c.b16 %v2255, %v2247
    %v2480 = vpack.c.b16 %v2256, %v2248
    %v2481 = vpack.c.b16 %v2257, %v2249
    %v2482 = vpack.c.b16 %v2258, %v2250
    %v2483 = vpack.c.b16 %v2259, %v2251
    %v2484 = vpack.c.b16 %v2260, %v2252
    %v2485 = vpack.c.b16 %v2269, %v2261
    %v2486 = vpack.c.b16 %v2270, %v2262
    %v2487 = vpack.c.b16 %v2271, %v2263
    %v2488 = vpack.c.b16 %v2272, %v2264
    %v2489 = vpack.c.b16 %v2273, %v2265
    %v2490 = vpack.c.b16 %v2274, %v2266
    %v2491 = vpack.c.b16 %v2275, %v2267
    %v2492 = vpack.c.b16 %v2276, %v2268
    %v2493 = vpack.c.b16 %v2285, %v2277
    %v2494 = vpack.c.b16 %v2286, %v2278
    %v2495 = vpack.c.b16 %v2287, %v2279
    %v2496 = vpack.c.b16 %v2288, %v2280
    %v2497 = vpack.c.b16 %v2289, %v2281
    %v2498 = vpack.c.b16 %v2290, %v2282
    %v2499 = vpack.c.b16 %v2291, %v2283
    %v2500 = vpack.c.b16 %v2292, %v2284
    %v2501 = vpack.c.b16 %v2301, %v2293
    %v2502 = vpack.c.b16 %v2302, %v2294
    %v2503 = vpack.c.b16 %v2303, %v2295
    %v2504 = vpack.c.b16 %v2304, %v2296
    %v2505 = vpack.c.b16 %v2305, %v2297
    %v2506 = vpack.c.b16 %v2306, %v2298
    %v2507 = vpack.c.b16 %v2307, %v2299
    %v2508 = vpack.c.b16 %v2308, %v2300
    %v2509 = vpack.c.b16 %v2317, %v2309
    %v2510 = vpack.c.b16 %v2318, %v2310
    %v2511 = vpack.c.b16 %v2319, %v2311
    %v2512 = vpack.c.b16 %v2320, %v2312
    %v2513 = vpack.c.b16 %v2321, %v2313
    %v2514 = vpack.c.b16 %v2322, %v2314
    %v2515 = vpack.c.b16 %v2323, %v2315
    %v2516 = vpack.c.b16 %v2324, %v2316
    %v2517 = vpack.c.b16 %v2333, %v2325
    %v2518 = vpack.c.b16 %v2334, %v2326
    %v2519 = vpack.c.b16 %v2335, %v2327
    %v2520 = vpack.c.b16 %v2336, %v2328
    %v2521 = vpack.c.b16 %v2337, %v2329
    %v2522 = vpack.c.b16 %v2338, %v2330
    %v2523 = vpack.c.b16 %v2339, %v2331
    %v2524 = vpack.c.b16 %v2340, %v2332
    %v2525 = vpack.c.b16 %v2349, %v2341
    %v2526 = vpack.c.b16 %v2350, %v2342
    %v2527 = vpack.c.b16 %v2351, %v2343
    %v2528 = vpack.c.b16 %v2352, %v2344
    %v2529 = vpack.c.b16 %v2353, %v2345
    %v2530 = vpack.c.b16 %v2354, %v2346
    %v2531 = vpack.c.b16 %v2355, %v2347
    %v2532 = vpack.c.b16 %v2356, %v2348
    %v2533 = vpack.c.b16 %v2365, %v2357
    %v2534 = vpack.c.b16 %v2366, %v2358
    %v2535 = vpack.c.b16 %v2367, %v2359
    %v2536 = vpack.c.b16 %v2368, %v2360
    %v2537 = vpack.c.b16 %v2369, %v2361
    %v2538 = vpack.c.b16 %v2370, %v2362
    %v2539 = vpack.c.b16 %v2371, %v2363
    %v2540 = vpack.c.b16 %v2372, %v2364
    %v2541 = vpack.c.b16 %v2381, %v2373
    %v2542 = vpack.c.b16 %v2382, %v2374
    %v2543 = vpack.c.b16 %v2383, %v2375
    %v2544 = vpack.c.b16 %v2384, %v2376
    %v2545 = vpack.c.b16 %v2385, %v2377
    %v2546 = vpack.c.b16 %v2386, %v2378
    %v2547 = vpack.c.b16 %v2387, %v2379
    %v2548 = vpack.c.b16 %v2388, %v2380
    %v2549 = vpack.c.b16 %v2397, %v2389
    %v2550 = vpack.c.b16 %v2398, %v2390
    %v2551 = vpack.c.b16 %v2399, %v2391
    %v2552 = vpack.c.b16 %v2400, %v2392
    %v2553 = vpack.c.b16 %v2401, %v2393
    %v2554 = vpack.c.b16 %v2402, %v2394
    %v2555 = vpack.c.b16 %v2403, %v2395
    %v2556 = vpack.c.b16 %v2404, %v2396
    %v2557 = vpack.c.b16 %v2413, %v2405
    %v2558 = vpack.c.b16 %v2414, %v2406
    %v2559 = vpack.c.b16 %v2415, %v2407
    %v2560 = vpack.c.b16 %v2416, %v2408
    %v2561 = vpack.c.b16 %v2417, %v2409
    %v2562 = vpack.c.b16 %v2418, %v2410
    %v2563 = vpack.c.b16 %v2419, %v2411
    %v2564 = vpack.c.b16 %v2420, %v2412
    %v2565 = vpack.c.b16 %v2429, %v2421
    %v2566 = vpack.c.b16 %v2430, %v2422
    %v2567 = vpack.c.b16 %v2431, %v2423
    %v2568 = vpack.c.b16 %v2432, %v2424
    %v2569 = vpack.c.b16 %v2433, %v2425
    %v2570 = vpack.c.b16 %v2434, %v2426
    %v2571 = vpack.c.b16 %v2435, %v2427
    %v2572 = vpack.c.b16 %v2436, %v2428
    %v2573 = vpack.c.b16 %v2445, %v2437
    %v2574 = vpack.c.b16 %v2446, %v2438
    %v2575 = vpack.c.b16 %v2447, %v2439
    %v2576 = vpack.c.b16 %v2448, %v2440
    %v2577 = vpack.c.b16 %v2449, %v2441
    %v2578 = vpack.c.b16 %v2450, %v2442
    %v2579 = vpack.c.b16 %v2451, %v2443
    %v2580 = vpack.c.b16 %v2452, %v2444
    %2709 = vmatprep.subr.bf16.mxu0 %v2510
    %2710 = vmatpush1.bf16.msra.mxu0 %v2509
    %2711 = vmatprep.subr.bf16.mxu0 %v2502
    %2712 = vmatpush1.bf16.msra.mxu0 %v2501
    %2713 = vmatprep.subr.bf16.mxu0 %v2494
    %2714 = vmatpush1.bf16.msra.mxu0 %v2493
    %2715 = vmatprep.subr.bf16.mxu0 %v2486
    %2716 = vmatpush1.bf16.msra.mxu0 %v2485
    %2717 = vmatprep.subr.bf16.mxu0 %v2478
    %2718 = vmatpush1.bf16.msra.mxu0 %v2477
    %2719 = vmatprep.subr.bf16.mxu0 %v2470
    %2720 = vmatpush1.bf16.msra.mxu0 %v2469
    %2721 = vmatprep.subr.bf16.mxu0 %v2462
    %2722 = vmatpush1.bf16.msra.mxu0 %v2461
    %2723 = vmatprep.subr.bf16.mxu0 %v2454
    %2724 = vmatpush1.bf16.msra.mxu0 %v2453
    %2725 = vmatprep.subr.bf16.mxu0 %v2574
    %2726 = vmatpush2.bf16.msra.mxu0 %v2573
    %2727 = vmatprep.subr.bf16.mxu0 %v2566
    %2728 = vmatpush2.bf16.msra.mxu0 %v2565
    %2729 = vmatprep.subr.bf16.mxu0 %v2558
    %2730 = vmatpush2.bf16.msra.mxu0 %v2557
    %2731 = vmatprep.subr.bf16.mxu0 %v2550
    %2732 = vmatpush2.bf16.msra.mxu0 %v2549
    %2733 = vmatprep.subr.bf16.mxu0 %v2542
    %2734 = vmatpush2.bf16.msra.mxu0 %v2541
    %2735 = vmatprep.subr.bf16.mxu0 %v2534
    %2736 = vmatpush2.bf16.msra.mxu0 %v2533
    %2737 = vmatprep.subr.bf16.mxu0 %v2526
    %2738 = vmatpush2.bf16.msra.mxu0 %v2525
    %2739 = vmatprep.subr.bf16.mxu0 %v2518
    %2740 = vmatpush2.bf16.msra.mxu0 %v2517
    %2741 = vmatprep.mubr.bf16.mxu0 %v1940
    %2742 = vmatmul.mubr.bf16.gmra.mxu0 %v1939
    %v2743 = vpop.f32.mrf.mxu0
    %v2744 = vadd.f32 0.0, %v2743
    %v2745 = vpop.f32.mrf.mxu0
    %v2746 = vadd.f32 0.0, %v2745
    %v2747 = vpop.f32.mrf.mxu0
    %v2748 = vpop.f32.mrf.mxu0
    %2749 = vdwg.mxu0
    %2750 = vmatprep.subr.bf16.mxu0 %v2512
    %2751 = vmatpush1.bf16.msra.mxu0 %v2511
    %2752 = vmatprep.subr.bf16.mxu0 %v2504
    %2753 = vmatpush1.bf16.msra.mxu0 %v2503
    %2754 = vmatprep.subr.bf16.mxu0 %v2496
    %2755 = vmatpush1.bf16.msra.mxu0 %v2495
    %2756 = vmatprep.subr.bf16.mxu0 %v2488
    %2757 = vmatpush1.bf16.msra.mxu0 %v2487
    %2758 = vmatprep.subr.bf16.mxu0 %v2480
    %2759 = vmatpush1.bf16.msra.mxu0 %v2479
    %2760 = vmatprep.subr.bf16.mxu0 %v2472
    %2761 = vmatpush1.bf16.msra.mxu0 %v2471
    %2762 = vmatprep.subr.bf16.mxu0 %v2464
    %2763 = vmatpush1.bf16.msra.mxu0 %v2463
    %2764 = vmatprep.subr.bf16.mxu0 %v2456
    %2765 = vmatpush1.bf16.msra.mxu0 %v2455
    %2766 = vmatprep.subr.bf16.mxu0 %v2576
    %2767 = vmatpush2.bf16.msra.mxu0 %v2575
    %2768 = vmatprep.subr.bf16.mxu0 %v2568
    %2769 = vmatpush2.bf16.msra.mxu0 %v2567
    %2770 = vmatprep.subr.bf16.mxu0 %v2560
    %2771 = vmatpush2.bf16.msra.mxu0 %v2559
    %2772 = vmatprep.subr.bf16.mxu0 %v2552
    %2773 = vmatpush2.bf16.msra.mxu0 %v2551
    %2774 = vmatprep.subr.bf16.mxu0 %v2544
    %2775 = vmatpush2.bf16.msra.mxu0 %v2543
    %2776 = vmatprep.subr.bf16.mxu0 %v2536
    %2777 = vmatpush2.bf16.msra.mxu0 %v2535
    %2778 = vmatprep.subr.bf16.mxu0 %v2528
    %2779 = vmatpush2.bf16.msra.mxu0 %v2527
    %2780 = vmatprep.subr.bf16.mxu0 %v2520
    %2781 = vmatpush2.bf16.msra.mxu0 %v2519
    %2782 = vmatprep.mubr.bf16.mxu0 %v1940
    %2783 = vmatmul.mubr.bf16.gmra.mxu0 %v1939
    %v2784 = vpop.f32.mrf.mxu0
    %v2785 = vadd.f32 0.0, %v2784
    %v2786 = vpop.f32.mrf.mxu0
    %v2787 = vadd.f32 0.0, %v2786
    %v2788 = vpop.f32.mrf.mxu0
    %v2789 = vpop.f32.mrf.mxu0
    %2790 = vdwg.mxu0
    %2791 = vmatprep.subr.bf16.mxu0 %v2514
    %2792 = vmatpush1.bf16.msra.mxu0 %v2513
    %2793 = vmatprep.subr.bf16.mxu0 %v2506
    %2794 = vmatpush1.bf16.msra.mxu0 %v2505
    %2795 = vmatprep.subr.bf16.mxu0 %v2498
    %2796 = vmatpush1.bf16.msra.mxu0 %v2497
    %2797 = vmatprep.subr.bf16.mxu0 %v2490
    %2798 = vmatpush1.bf16.msra.mxu0 %v2489
    %2799 = vmatprep.subr.bf16.mxu0 %v2482
    %2800 = vmatpush1.bf16.msra.mxu0 %v2481
    %2801 = vmatprep.subr.bf16.mxu0 %v2474
    %2802 = vmatpush1.bf16.msra.mxu0 %v2473
    %2803 = vmatprep.subr.bf16.mxu0 %v2466
    %2804 = vmatpush1.bf16.msra.mxu0 %v2465
    %2805 = vmatprep.subr.bf16.mxu0 %v2458
    %2806 = vmatpush1.bf16.msra.mxu0 %v2457
    %2807 = vmatprep.subr.bf16.mxu0 %v2578
    %2808 = vmatpush2.bf16.msra.mxu0 %v2577
    %2809 = vmatprep.subr.bf16.mxu0 %v2570
    %2810 = vmatpush2.bf16.msra.mxu0 %v2569
    %2811 = vmatprep.subr.bf16.mxu0 %v2562
    %2812 = vmatpush2.bf16.msra.mxu0 %v2561
    %2813 = vmatprep.subr.bf16.mxu0 %v2554
    %2814 = vmatpush2.bf16.msra.mxu0 %v2553
    %2815 = vmatprep.subr.bf16.mxu0 %v2546
    %2816 = vmatpush2.bf16.msra.mxu0 %v2545
    %2817 = vmatprep.subr.bf16.mxu0 %v2538
    %2818 = vmatpush2.bf16.msra.mxu0 %v2537
    %2819 = vmatprep.subr.bf16.mxu0 %v2530
    %2820 = vmatpush2.bf16.msra.mxu0 %v2529
    %2821 = vmatprep.subr.bf16.mxu0 %v2522
    %2822 = vmatpush2.bf16.msra.mxu0 %v2521
    %2823 = vmatprep.mubr.bf16.mxu0 %v1940
    %2824 = vmatmul.mubr.bf16.gmra.mxu0 %v1939
    %v2825 = vpop.f32.mrf.mxu0
    %v2826 = vadd.f32 0.0, %v2825
    %v2827 = vpop.f32.mrf.mxu0
    %v2828 = vadd.f32 0.0, %v2827
    %v2829 = vpop.f32.mrf.mxu0
    %v2830 = vpop.f32.mrf.mxu0
    %2831 = vdwg.mxu0
    %2832 = vmatprep.subr.bf16.mxu0 %v2516
    %2833 = vmatpush1.bf16.msra.mxu0 %v2515
    %2834 = vmatprep.subr.bf16.mxu0 %v2508
    %2835 = vmatpush1.bf16.msra.mxu0 %v2507
    %2836 = vmatprep.subr.bf16.mxu0 %v2500
    %2837 = vmatpush1.bf16.msra.mxu0 %v2499
    %2838 = vmatprep.subr.bf16.mxu0 %v2492
    %2839 = vmatpush1.bf16.msra.mxu0 %v2491
    %2840 = vmatprep.subr.bf16.mxu0 %v2484
    %2841 = vmatpush1.bf16.msra.mxu0 %v2483
    %2842 = vmatprep.subr.bf16.mxu0 %v2476
    %2843 = vmatpush1.bf16.msra.mxu0 %v2475
    %2844 = vmatprep.subr.bf16.mxu0 %v2468
    %2845 = vmatpush1.bf16.msra.mxu0 %v2467
    %2846 = vmatprep.subr.bf16.mxu0 %v2460
    %2847 = vmatpush1.bf16.msra.mxu0 %v2459
    %2848 = vmatprep.subr.bf16.mxu0 %v2580
    %2849 = vmatpush2.bf16.msra.mxu0 %v2579
    %2850 = vmatprep.subr.bf16.mxu0 %v2572
    %2851 = vmatpush2.bf16.msra.mxu0 %v2571
    %2852 = vmatprep.subr.bf16.mxu0 %v2564
    %2853 = vmatpush2.bf16.msra.mxu0 %v2563
    %2854 = vmatprep.subr.bf16.mxu0 %v2556
    %2855 = vmatpush2.bf16.msra.mxu0 %v2555
    %2856 = vmatprep.subr.bf16.mxu0 %v2548
    %2857 = vmatpush2.bf16.msra.mxu0 %v2547
    %2858 = vmatprep.subr.bf16.mxu0 %v2540
    %2859 = vmatpush2.bf16.msra.mxu0 %v2539
    %2860 = vmatprep.subr.bf16.mxu0 %v2532
    %2861 = vmatpush2.bf16.msra.mxu0 %v2531
    %2862 = vmatprep.subr.bf16.mxu0 %v2524
    %2863 = vmatpush2.bf16.msra.mxu0 %v2523
    %2864 = vmatprep.mubr.bf16.mxu0 %v1940
    %2865 = vmatmul.mubr.bf16.gmra.mxu0 %v1939
    %v2866 = vpop.f32.mrf.mxu0
    %v2867 = vadd.f32 0.0, %v2866
    %v2868 = vpop.f32.mrf.mxu0
    %v2869 = vadd.f32 0.0, %v2868
    %v2870 = vpop.f32.mrf.mxu0
    %v2871 = vpop.f32.mrf.mxu0
    %2872 = vdwg.mxu0
    %v3001 = vunpack.c.l.b16 %v1811
    %v3002 = vunpack.c.h.b16 %v1811
    %v3003 = vunpack.c.l.b16 %v1812
    %v3004 = vunpack.c.h.b16 %v1812
    %v3005 = vunpack.c.l.b16 %v1813
    %v3006 = vunpack.c.h.b16 %v1813
    %v3007 = vunpack.c.l.b16 %v1814
    %v3008 = vunpack.c.h.b16 %v1814
    %v3009 = vunpack.c.l.b16 %v1815
    %v3010 = vunpack.c.h.b16 %v1815
    %v3011 = vunpack.c.l.b16 %v1816
    %v3012 = vunpack.c.h.b16 %v1816
    %v3013 = vunpack.c.l.b16 %v1817
    %v3014 = vunpack.c.h.b16 %v1817
    %v3015 = vunpack.c.l.b16 %v1818
    %v3016 = vunpack.c.h.b16 %v1818
    %v3017 = vunpack.c.l.b16 %v1819
    %v3018 = vunpack.c.h.b16 %v1819
    %v3019 = vunpack.c.l.b16 %v1820
    %v3020 = vunpack.c.h.b16 %v1820
    %v3021 = vunpack.c.l.b16 %v1821
    %v3022 = vunpack.c.h.b16 %v1821
    %v3023 = vunpack.c.l.b16 %v1822
    %v3024 = vunpack.c.h.b16 %v1822
    %v3025 = vunpack.c.l.b16 %v1823
    %v3026 = vunpack.c.h.b16 %v1823
    %v3027 = vunpack.c.l.b16 %v1824
    %v3028 = vunpack.c.h.b16 %v1824
    %v3029 = vunpack.c.l.b16 %v1825
    %v3030 = vunpack.c.h.b16 %v1825
    %v3031 = vunpack.c.l.b16 %v1826
    %v3032 = vunpack.c.h.b16 %v1826
    %v3033 = vunpack.c.l.b16 %v1827
    %v3034 = vunpack.c.h.b16 %v1827
    %v3035 = vunpack.c.l.b16 %v1828
    %v3036 = vunpack.c.h.b16 %v1828
    %v3037 = vunpack.c.l.b16 %v1829
    %v3038 = vunpack.c.h.b16 %v1829
    %v3039 = vunpack.c.l.b16 %v1830
    %v3040 = vunpack.c.h.b16 %v1830
    %v3041 = vunpack.c.l.b16 %v1831
    %v3042 = vunpack.c.h.b16 %v1831
    %v3043 = vunpack.c.l.b16 %v1832
    %v3044 = vunpack.c.h.b16 %v1832
    %v3045 = vunpack.c.l.b16 %v1833
    %v3046 = vunpack.c.h.b16 %v1833
    %v3047 = vunpack.c.l.b16 %v1834
    %v3048 = vunpack.c.h.b16 %v1834
    %v3049 = vunpack.c.l.b16 %v1835
    %v3050 = vunpack.c.h.b16 %v1835
    %v3051 = vunpack.c.l.b16 %v1836
    %v3052 = vunpack.c.h.b16 %v1836
    %v3053 = vunpack.c.l.b16 %v1837
    %v3054 = vunpack.c.h.b16 %v1837
    %v3055 = vunpack.c.l.b16 %v1838
    %v3056 = vunpack.c.h.b16 %v1838
    %v3057 = vunpack.c.l.b16 %v1839
    %v3058 = vunpack.c.h.b16 %v1839
    %v3059 = vunpack.c.l.b16 %v1840
    %v3060 = vunpack.c.h.b16 %v1840
    %v3061 = vunpack.c.l.b16 %v1841
    %v3062 = vunpack.c.h.b16 %v1841
    %v3063 = vunpack.c.l.b16 %v1842
    %v3064 = vunpack.c.h.b16 %v1842
    %v3065 = vunpack.c.l.b16 %v1843
    %v3066 = vunpack.c.h.b16 %v1843
    %v3067 = vunpack.c.l.b16 %v1844
    %v3068 = vunpack.c.h.b16 %v1844
    %v3069 = vunpack.c.l.b16 %v1845
    %v3070 = vunpack.c.h.b16 %v1845
    %v3071 = vunpack.c.l.b16 %v1846
    %v3072 = vunpack.c.h.b16 %v1846
    %v3073 = vunpack.c.l.b16 %v1847
    %v3074 = vunpack.c.h.b16 %v1847
    %v3075 = vunpack.c.l.b16 %v1848
    %v3076 = vunpack.c.h.b16 %v1848
    %v3077 = vunpack.c.l.b16 %v1849
    %v3078 = vunpack.c.h.b16 %v1849
    %v3079 = vunpack.c.l.b16 %v1850
    %v3080 = vunpack.c.h.b16 %v1850
    %v3081 = vunpack.c.l.b16 %v1851
    %v3082 = vunpack.c.h.b16 %v1851
    %v3083 = vunpack.c.l.b16 %v1852
    %v3084 = vunpack.c.h.b16 %v1852
    %v3085 = vunpack.c.l.b16 %v1853
    %v3086 = vunpack.c.h.b16 %v1853
    %v3087 = vunpack.c.l.b16 %v1854
    %v3088 = vunpack.c.h.b16 %v1854
    %v3089 = vunpack.c.l.b16 %v1855
    %v3090 = vunpack.c.h.b16 %v1855
    %v3091 = vunpack.c.l.b16 %v1856
    %v3092 = vunpack.c.h.b16 %v1856
    %v3093 = vunpack.c.l.b16 %v1857
    %v3094 = vunpack.c.h.b16 %v1857
    %v3095 = vunpack.c.l.b16 %v1858
    %v3096 = vunpack.c.h.b16 %v1858
    %v3097 = vunpack.c.l.b16 %v1859
    %v3098 = vunpack.c.h.b16 %v1859
    %v3099 = vunpack.c.l.b16 %v1860
    %v3100 = vunpack.c.h.b16 %v1860
    %v3101 = vunpack.c.l.b16 %v1861
    %v3102 = vunpack.c.h.b16 %v1861
    %v3103 = vunpack.c.l.b16 %v1862
    %v3104 = vunpack.c.h.b16 %v1862
    %v3105 = vunpack.c.l.b16 %v1863
    %v3106 = vunpack.c.h.b16 %v1863
    %v3107 = vunpack.c.l.b16 %v1864
    %v3108 = vunpack.c.h.b16 %v1864
    %v3109 = vunpack.c.l.b16 %v1865
    %v3110 = vunpack.c.h.b16 %v1865
    %v3111 = vunpack.c.l.b16 %v1866
    %v3112 = vunpack.c.h.b16 %v1866
    %v3113 = vunpack.c.l.b16 %v1867
    %v3114 = vunpack.c.h.b16 %v1867
    %v3115 = vunpack.c.l.b16 %v1868
    %v3116 = vunpack.c.h.b16 %v1868
    %v3117 = vunpack.c.l.b16 %v1869
    %v3118 = vunpack.c.h.b16 %v1869
    %v3119 = vunpack.c.l.b16 %v1870
    %v3120 = vunpack.c.h.b16 %v1870
    %v3121 = vunpack.c.l.b16 %v1871
    %v3122 = vunpack.c.h.b16 %v1871
    %v3123 = vunpack.c.l.b16 %v1872
    %v3124 = vunpack.c.h.b16 %v1872
    %v3125 = vunpack.c.l.b16 %v1873
    %v3126 = vunpack.c.h.b16 %v1873
    %v3127 = vunpack.c.l.b16 %v1874
    %v3128 = vunpack.c.h.b16 %v1874
    %v3129 = vunpack.c.l.b16 %v1875
    %v3130 = vunpack.c.h.b16 %v1875
    %v3131 = vunpack.c.l.b16 %v1876
    %v3132 = vunpack.c.h.b16 %v1876
    %v3133 = vunpack.c.l.b16 %v1877
    %v3134 = vunpack.c.h.b16 %v1877
    %v3135 = vunpack.c.l.b16 %v1878
    %v3136 = vunpack.c.h.b16 %v1878
    %v3137 = vunpack.c.l.b16 %v1879
    %v3138 = vunpack.c.h.b16 %v1879
    %v3139 = vunpack.c.l.b16 %v1880
    %v3140 = vunpack.c.h.b16 %v1880
    %v3141 = vunpack.c.l.b16 %v1881
    %v3142 = vunpack.c.h.b16 %v1881
    %v3143 = vunpack.c.l.b16 %v1882
    %v3144 = vunpack.c.h.b16 %v1882
    %v3145 = vunpack.c.l.b16 %v1883
    %v3146 = vunpack.c.h.b16 %v1883
    %v3147 = vunpack.c.l.b16 %v1884
    %v3148 = vunpack.c.h.b16 %v1884
    %v3149 = vunpack.c.l.b16 %v1885
    %v3150 = vunpack.c.h.b16 %v1885
    %v3151 = vunpack.c.l.b16 %v1886
    %v3152 = vunpack.c.h.b16 %v1886
    %v3153 = vunpack.c.l.b16 %v1887
    %v3154 = vunpack.c.h.b16 %v1887
    %v3155 = vunpack.c.l.b16 %v1888
    %v3156 = vunpack.c.h.b16 %v1888
    %v3157 = vunpack.c.l.b16 %v1889
    %v3158 = vunpack.c.h.b16 %v1889
    %v3159 = vunpack.c.l.b16 %v1890
    %v3160 = vunpack.c.h.b16 %v1890
    %v3161 = vunpack.c.l.b16 %v1891
    %v3162 = vunpack.c.h.b16 %v1891
    %v3163 = vunpack.c.l.b16 %v1892
    %v3164 = vunpack.c.h.b16 %v1892
    %v3165 = vunpack.c.l.b16 %v1893
    %v3166 = vunpack.c.h.b16 %v1893
    %v3167 = vunpack.c.l.b16 %v1894
    %v3168 = vunpack.c.h.b16 %v1894
    %v3169 = vunpack.c.l.b16 %v1895
    %v3170 = vunpack.c.h.b16 %v1895
    %v3171 = vunpack.c.l.b16 %v1896
    %v3172 = vunpack.c.h.b16 %v1896
    %v3173 = vunpack.c.l.b16 %v1897
    %v3174 = vunpack.c.h.b16 %v1897
    %v3175 = vunpack.c.l.b16 %v1898
    %v3176 = vunpack.c.h.b16 %v1898
    %v3177 = vunpack.c.l.b16 %v1899
    %v3178 = vunpack.c.h.b16 %v1899
    %v3179 = vunpack.c.l.b16 %v1900
    %v3180 = vunpack.c.h.b16 %v1900
    %v3181 = vunpack.c.l.b16 %v1901
    %v3182 = vunpack.c.h.b16 %v1901
    %v3183 = vunpack.c.l.b16 %v1902
    %v3184 = vunpack.c.h.b16 %v1902
    %v3185 = vunpack.c.l.b16 %v1903
    %v3186 = vunpack.c.h.b16 %v1903
    %v3187 = vunpack.c.l.b16 %v1904
    %v3188 = vunpack.c.h.b16 %v1904
    %v3189 = vunpack.c.l.b16 %v1905
    %v3190 = vunpack.c.h.b16 %v1905
    %v3191 = vunpack.c.l.b16 %v1906
    %v3192 = vunpack.c.h.b16 %v1906
    %v3193 = vunpack.c.l.b16 %v1907
    %v3194 = vunpack.c.h.b16 %v1907
    %v3195 = vunpack.c.l.b16 %v1908
    %v3196 = vunpack.c.h.b16 %v1908
    %v3197 = vunpack.c.l.b16 %v1909
    %v3198 = vunpack.c.h.b16 %v1909
    %v3199 = vunpack.c.l.b16 %v1910
    %v3200 = vunpack.c.h.b16 %v1910
    %v3201 = vunpack.c.l.b16 %v1911
    %v3202 = vunpack.c.h.b16 %v1911
    %v3203 = vunpack.c.l.b16 %v1912
    %v3204 = vunpack.c.h.b16 %v1912
    %v3205 = vunpack.c.l.b16 %v1913
    %v3206 = vunpack.c.h.b16 %v1913
    %v3207 = vunpack.c.l.b16 %v1914
    %v3208 = vunpack.c.h.b16 %v1914
    %v3209 = vunpack.c.l.b16 %v1915
    %v3210 = vunpack.c.h.b16 %v1915
    %v3211 = vunpack.c.l.b16 %v1916
    %v3212 = vunpack.c.h.b16 %v1916
    %v3213 = vunpack.c.l.b16 %v1917
    %v3214 = vunpack.c.h.b16 %v1917
    %v3215 = vunpack.c.l.b16 %v1918
    %v3216 = vunpack.c.h.b16 %v1918
    %v3217 = vunpack.c.l.b16 %v1919
    %v3218 = vunpack.c.h.b16 %v1919
    %v3219 = vunpack.c.l.b16 %v1920
    %v3220 = vunpack.c.h.b16 %v1920
    %v3221 = vunpack.c.l.b16 %v1921
    %v3222 = vunpack.c.h.b16 %v1921
    %v3223 = vunpack.c.l.b16 %v1922
    %v3224 = vunpack.c.h.b16 %v1922
    %v3225 = vunpack.c.l.b16 %v1923
    %v3226 = vunpack.c.h.b16 %v1923
    %v3227 = vunpack.c.l.b16 %v1924
    %v3228 = vunpack.c.h.b16 %v1924
    %v3229 = vunpack.c.l.b16 %v1925
    %v3230 = vunpack.c.h.b16 %v1925
    %v3231 = vunpack.c.l.b16 %v1926
    %v3232 = vunpack.c.h.b16 %v1926
    %v3233 = vunpack.c.l.b16 %v1927
    %v3234 = vunpack.c.h.b16 %v1927
    %v3235 = vunpack.c.l.b16 %v1928
    %v3236 = vunpack.c.h.b16 %v1928
    %v3237 = vunpack.c.l.b16 %v1929
    %v3238 = vunpack.c.h.b16 %v1929
    %v3239 = vunpack.c.l.b16 %v1930
    %v3240 = vunpack.c.h.b16 %v1930
    %v3241 = vunpack.c.l.b16 %v1931
    %v3242 = vunpack.c.h.b16 %v1931
    %v3243 = vunpack.c.l.b16 %v1932
    %v3244 = vunpack.c.h.b16 %v1932
    %v3245 = vunpack.c.l.b16 %v1933
    %v3246 = vunpack.c.h.b16 %v1933
    %v3247 = vunpack.c.l.b16 %v1934
    %v3248 = vunpack.c.h.b16 %v1934
    %v3249 = vunpack.c.l.b16 %v1935
    %v3250 = vunpack.c.h.b16 %v1935
    %v3251 = vunpack.c.l.b16 %v1936
    %v3252 = vunpack.c.h.b16 %v1936
    %v3253 = vunpack.c.l.b16 %v1937
    %v3254 = vunpack.c.h.b16 %v1937
    %v3255 = vunpack.c.l.b16 %v1938
    %v3256 = vunpack.c.h.b16 %v1938
    %v3257 = vpack.c.b16 %v3009, %v3001
    %v3258 = vpack.c.b16 %v3010, %v3002
    %v3259 = vpack.c.b16 %v3011, %v3003
    %v3260 = vpack.c.b16 %v3012, %v3004
    %v3261 = vpack.c.b16 %v3013, %v3005
    %v3262 = vpack.c.b16 %v3014, %v3006
    %v3263 = vpack.c.b16 %v3015, %v3007
    %v3264 = vpack.c.b16 %v3016, %v3008
    %v3265 = vpack.c.b16 %v3025, %v3017
    %v3266 = vpack.c.b16 %v3026, %v3018
    %v3267 = vpack.c.b16 %v3027, %v3019
    %v3268 = vpack.c.b16 %v3028, %v3020
    %v3269 = vpack.c.b16 %v3029, %v3021
    %v3270 = vpack.c.b16 %v3030, %v3022
    %v3271 = vpack.c.b16 %v3031, %v3023
    %v3272 = vpack.c.b16 %v3032, %v3024
    %v3273 = vpack.c.b16 %v3041, %v3033
    %v3274 = vpack.c.b16 %v3042, %v3034
    %v3275 = vpack.c.b16 %v3043, %v3035
    %v3276 = vpack.c.b16 %v3044, %v3036
    %v3277 = vpack.c.b16 %v3045, %v3037
    %v3278 = vpack.c.b16 %v3046, %v3038
    %v3279 = vpack.c.b16 %v3047, %v3039
    %v3280 = vpack.c.b16 %v3048, %v3040
    %v3281 = vpack.c.b16 %v3057, %v3049
    %v3282 = vpack.c.b16 %v3058, %v3050
    %v3283 = vpack.c.b16 %v3059, %v3051
    %v3284 = vpack.c.b16 %v3060, %v3052
    %v3285 = vpack.c.b16 %v3061, %v3053
    %v3286 = vpack.c.b16 %v3062, %v3054
    %v3287 = vpack.c.b16 %v3063, %v3055
    %v3288 = vpack.c.b16 %v3064, %v3056
    %v3289 = vpack.c.b16 %v3073, %v3065
    %v3290 = vpack.c.b16 %v3074, %v3066
    %v3291 = vpack.c.b16 %v3075, %v3067
    %v3292 = vpack.c.b16 %v3076, %v3068
    %v3293 = vpack.c.b16 %v3077, %v3069
    %v3294 = vpack.c.b16 %v3078, %v3070
    %v3295 = vpack.c.b16 %v3079, %v3071
    %v3296 = vpack.c.b16 %v3080, %v3072
    %v3297 = vpack.c.b16 %v3089, %v3081
    %v3298 = vpack.c.b16 %v3090, %v3082
    %v3299 = vpack.c.b16 %v3091, %v3083
    %v3300 = vpack.c.b16 %v3092, %v3084
    %v3301 = vpack.c.b16 %v3093, %v3085
    %v3302 = vpack.c.b16 %v3094, %v3086
    %v3303 = vpack.c.b16 %v3095, %v3087
    %v3304 = vpack.c.b16 %v3096, %v3088
    %v3305 = vpack.c.b16 %v3105, %v3097
    %v3306 = vpack.c.b16 %v3106, %v3098
    %v3307 = vpack.c.b16 %v3107, %v3099
    %v3308 = vpack.c.b16 %v3108, %v3100
    %v3309 = vpack.c.b16 %v3109, %v3101
    %v3310 = vpack.c.b16 %v3110, %v3102
    %v3311 = vpack.c.b16 %v3111, %v3103
    %v3312 = vpack.c.b16 %v3112, %v3104
    %v3313 = vpack.c.b16 %v3121, %v3113
    %v3314 = vpack.c.b16 %v3122, %v3114
    %v3315 = vpack.c.b16 %v3123, %v3115
    %v3316 = vpack.c.b16 %v3124, %v3116
    %v3317 = vpack.c.b16 %v3125, %v3117
    %v3318 = vpack.c.b16 %v3126, %v3118
    %v3319 = vpack.c.b16 %v3127, %v3119
    %v3320 = vpack.c.b16 %v3128, %v3120
    %v3321 = vpack.c.b16 %v3137, %v3129
    %v3322 = vpack.c.b16 %v3138, %v3130
    %v3323 = vpack.c.b16 %v3139, %v3131
    %v3324 = vpack.c.b16 %v3140, %v3132
    %v3325 = vpack.c.b16 %v3141, %v3133
    %v3326 = vpack.c.b16 %v3142, %v3134
    %v3327 = vpack.c.b16 %v3143, %v3135
    %v3328 = vpack.c.b16 %v3144, %v3136
    %v3329 = vpack.c.b16 %v3153, %v3145
    %v3330 = vpack.c.b16 %v3154, %v3146
    %v3331 = vpack.c.b16 %v3155, %v3147
    %v3332 = vpack.c.b16 %v3156, %v3148
    %v3333 = vpack.c.b16 %v3157, %v3149
    %v3334 = vpack.c.b16 %v3158, %v3150
    %v3335 = vpack.c.b16 %v3159, %v3151
    %v3336 = vpack.c.b16 %v3160, %v3152
    %v3337 = vpack.c.b16 %v3169, %v3161
    %v3338 = vpack.c.b16 %v3170, %v3162
    %v3339 = vpack.c.b16 %v3171, %v3163
    %v3340 = vpack.c.b16 %v3172, %v3164
    %v3341 = vpack.c.b16 %v3173, %v3165
    %v3342 = vpack.c.b16 %v3174, %v3166
    %v3343 = vpack.c.b16 %v3175, %v3167
    %v3344 = vpack.c.b16 %v3176, %v3168
    %v3345 = vpack.c.b16 %v3185, %v3177
    %v3346 = vpack.c.b16 %v3186, %v3178
    %v3347 = vpack.c.b16 %v3187, %v3179
    %v3348 = vpack.c.b16 %v3188, %v3180
    %v3349 = vpack.c.b16 %v3189, %v3181
    %v3350 = vpack.c.b16 %v3190, %v3182
    %v3351 = vpack.c.b16 %v3191, %v3183
    %v3352 = vpack.c.b16 %v3192, %v3184
    %v3353 = vpack.c.b16 %v3201, %v3193
    %v3354 = vpack.c.b16 %v3202, %v3194
    %v3355 = vpack.c.b16 %v3203, %v3195
    %v3356 = vpack.c.b16 %v3204, %v3196
    %v3357 = vpack.c.b16 %v3205, %v3197
    %v3358 = vpack.c.b16 %v3206, %v3198
    %v3359 = vpack.c.b16 %v3207, %v3199
    %v3360 = vpack.c.b16 %v3208, %v3200
    %v3361 = vpack.c.b16 %v3217, %v3209
    %v3362 = vpack.c.b16 %v3218, %v3210
    %v3363 = vpack.c.b16 %v3219, %v3211
    %v3364 = vpack.c.b16 %v3220, %v3212
    %v3365 = vpack.c.b16 %v3221, %v3213
    %v3366 = vpack.c.b16 %v3222, %v3214
    %v3367 = vpack.c.b16 %v3223, %v3215
    %v3368 = vpack.c.b16 %v3224, %v3216
    %v3369 = vpack.c.b16 %v3233, %v3225
    %v3370 = vpack.c.b16 %v3234, %v3226
    %v3371 = vpack.c.b16 %v3235, %v3227
    %v3372 = vpack.c.b16 %v3236, %v3228
    %v3373 = vpack.c.b16 %v3237, %v3229
    %v3374 = vpack.c.b16 %v3238, %v3230
    %v3375 = vpack.c.b16 %v3239, %v3231
    %v3376 = vpack.c.b16 %v3240, %v3232
    %v3377 = vpack.c.b16 %v3249, %v3241
    %v3378 = vpack.c.b16 %v3250, %v3242
    %v3379 = vpack.c.b16 %v3251, %v3243
    %v3380 = vpack.c.b16 %v3252, %v3244
    %v3381 = vpack.c.b16 %v3253, %v3245
    %v3382 = vpack.c.b16 %v3254, %v3246
    %v3383 = vpack.c.b16 %v3255, %v3247
    %v3384 = vpack.c.b16 %v3256, %v3248
    %3513 = vmatprep.subr.bf16.mxu0 %v3314
    %3514 = vmatpush1.bf16.msra.mxu0 %v3313
    %3515 = vmatprep.subr.bf16.mxu0 %v3306
    %3516 = vmatpush1.bf16.msra.mxu0 %v3305
    %3517 = vmatprep.subr.bf16.mxu0 %v3298
    %3518 = vmatpush1.bf16.msra.mxu0 %v3297
    %3519 = vmatprep.subr.bf16.mxu0 %v3290
    %3520 = vmatpush1.bf16.msra.mxu0 %v3289
    %3521 = vmatprep.subr.bf16.mxu0 %v3282
    %3522 = vmatpush1.bf16.msra.mxu0 %v3281
    %3523 = vmatprep.subr.bf16.mxu0 %v3274
    %3524 = vmatpush1.bf16.msra.mxu0 %v3273
    %3525 = vmatprep.subr.bf16.mxu0 %v3266
    %3526 = vmatpush1.bf16.msra.mxu0 %v3265
    %3527 = vmatprep.subr.bf16.mxu0 %v3258
    %3528 = vmatpush1.bf16.msra.mxu0 %v3257
    %3529 = vmatprep.subr.bf16.mxu0 %v3378
    %3530 = vmatpush2.bf16.msra.mxu0 %v3377
    %3531 = vmatprep.subr.bf16.mxu0 %v3370
    %3532 = vmatpush2.bf16.msra.mxu0 %v3369
    %3533 = vmatprep.subr.bf16.mxu0 %v3362
    %3534 = vmatpush2.bf16.msra.mxu0 %v3361
    %3535 = vmatprep.subr.bf16.mxu0 %v3354
    %3536 = vmatpush2.bf16.msra.mxu0 %v3353
    %3537 = vmatprep.subr.bf16.mxu0 %v3346
    %3538 = vmatpush2.bf16.msra.mxu0 %v3345
    %3539 = vmatprep.subr.bf16.mxu0 %v3338
    %3540 = vmatpush2.bf16.msra.mxu0 %v3337
    %3541 = vmatprep.subr.bf16.mxu0 %v3330
    %3542 = vmatpush2.bf16.msra.mxu0 %v3329
    %3543 = vmatprep.subr.bf16.mxu0 %v3322
    %3544 = vmatpush2.bf16.msra.mxu0 %v3321
    %3545 = vmatprep.mubr.bf16.mxu0 %v1810
    %3546 = vmatmul.mubr.bf16.gmra.mxu0 %v1809
    %v3547 = vpop.f32.mrf.mxu0
    %v3548 = vadd.f32 %v2744, %v3547
    %v3549 = vpop.f32.mrf.mxu0
    %v3550 = vadd.f32 %v2746, %v3549
    %v3551 = vpop.f32.mrf.mxu0
    %v3552 = vpop.f32.mrf.mxu0
    %3553 = vdwg.mxu0
    %3554 = vmatprep.subr.bf16.mxu0 %v3316
    %3555 = vmatpush1.bf16.msra.mxu0 %v3315
    %3556 = vmatprep.subr.bf16.mxu0 %v3308
    %3557 = vmatpush1.bf16.msra.mxu0 %v3307
    %3558 = vmatprep.subr.bf16.mxu0 %v3300
    %3559 = vmatpush1.bf16.msra.mxu0 %v3299
    %3560 = vmatprep.subr.bf16.mxu0 %v3292
    %3561 = vmatpush1.bf16.msra.mxu0 %v3291
    %3562 = vmatprep.subr.bf16.mxu0 %v3284
    %3563 = vmatpush1.bf16.msra.mxu0 %v3283
    %3564 = vmatprep.subr.bf16.mxu0 %v3276
    %3565 = vmatpush1.bf16.msra.mxu0 %v3275
    %3566 = vmatprep.subr.bf16.mxu0 %v3268
    %3567 = vmatpush1.bf16.msra.mxu0 %v3267
    %3568 = vmatprep.subr.bf16.mxu0 %v3260
    %3569 = vmatpush1.bf16.msra.mxu0 %v3259
    %3570 = vmatprep.subr.bf16.mxu0 %v3380
    %3571 = vmatpush2.bf16.msra.mxu0 %v3379
    %3572 = vmatprep.subr.bf16.mxu0 %v3372
    %3573 = vmatpush2.bf16.msra.mxu0 %v3371
    %3574 = vmatprep.subr.bf16.mxu0 %v3364
    %3575 = vmatpush2.bf16.msra.mxu0 %v3363
    %3576 = vmatprep.subr.bf16.mxu0 %v3356
    %3577 = vmatpush2.bf16.msra.mxu0 %v3355
    %3578 = vmatprep.subr.bf16.mxu0 %v3348
    %3579 = vmatpush2.bf16.msra.mxu0 %v3347
    %3580 = vmatprep.subr.bf16.mxu0 %v3340
    %3581 = vmatpush2.bf16.msra.mxu0 %v3339
    %3582 = vmatprep.subr.bf16.mxu0 %v3332
    %3583 = vmatpush2.bf16.msra.mxu0 %v3331
    %3584 = vmatprep.subr.bf16.mxu0 %v3324
    %3585 = vmatpush2.bf16.msra.mxu0 %v3323
    %3586 = vmatprep.mubr.bf16.mxu0 %v1810
    %3587 = vmatmul.mubr.bf16.gmra.mxu0 %v1809
    %v3588 = vpop.f32.mrf.mxu0
    %v3589 = vadd.f32 %v2785, %v3588
    %v3590 = vpop.f32.mrf.mxu0
    %v3591 = vadd.f32 %v2787, %v3590
    %v3592 = vpop.f32.mrf.mxu0
    %v3593 = vpop.f32.mrf.mxu0
    %3594 = vdwg.mxu0
    %3595 = vmatprep.subr.bf16.mxu0 %v3318
    %3596 = vmatpush1.bf16.msra.mxu0 %v3317
    %3597 = vmatprep.subr.bf16.mxu0 %v3310
    %3598 = vmatpush1.bf16.msra.mxu0 %v3309
    %3599 = vmatprep.subr.bf16.mxu0 %v3302
    %3600 = vmatpush1.bf16.msra.mxu0 %v3301
    %3601 = vmatprep.subr.bf16.mxu0 %v3294
    %3602 = vmatpush1.bf16.msra.mxu0 %v3293
    %3603 = vmatprep.subr.bf16.mxu0 %v3286
    %3604 = vmatpush1.bf16.msra.mxu0 %v3285
    %3605 = vmatprep.subr.bf16.mxu0 %v3278
    %3606 = vmatpush1.bf16.msra.mxu0 %v3277
    %3607 = vmatprep.subr.bf16.mxu0 %v3270
    %3608 = vmatpush1.bf16.msra.mxu0 %v3269
    %3609 = vmatprep.subr.bf16.mxu0 %v3262
    %3610 = vmatpush1.bf16.msra.mxu0 %v3261
    %3611 = vmatprep.subr.bf16.mxu0 %v3382
    %3612 = vmatpush2.bf16.msra.mxu0 %v3381
    %3613 = vmatprep.subr.bf16.mxu0 %v3374
    %3614 = vmatpush2.bf16.msra.mxu0 %v3373
    %3615 = vmatprep.subr.bf16.mxu0 %v3366
    %3616 = vmatpush2.bf16.msra.mxu0 %v3365
    %3617 = vmatprep.subr.bf16.mxu0 %v3358
    %3618 = vmatpush2.bf16.msra.mxu0 %v3357
    %3619 = vmatprep.subr.bf16.mxu0 %v3350
    %3620 = vmatpush2.bf16.msra.mxu0 %v3349
    %3621 = vmatprep.subr.bf16.mxu0 %v3342
    %3622 = vmatpush2.bf16.msra.mxu0 %v3341
    %3623 = vmatprep.subr.bf16.mxu0 %v3334
    %3624 = vmatpush2.bf16.msra.mxu0 %v3333
    %3625 = vmatprep.subr.bf16.mxu0 %v3326
    %3626 = vmatpush2.bf16.msra.mxu0 %v3325
    %3627 = vmatprep.mubr.bf16.mxu0 %v1810
    %3628 = vmatmul.mubr.bf16.gmra.mxu0 %v1809
    %v3629 = vpop.f32.mrf.mxu0
    %v3630 = vadd.f32 %v2826, %v3629
    %v3631 = vpop.f32.mrf.mxu0
    %v3632 = vadd.f32 %v2828, %v3631
    %v3633 = vpop.f32.mrf.mxu0
    %v3634 = vpop.f32.mrf.mxu0
    %3635 = vdwg.mxu0
    %3636 = vmatprep.subr.bf16.mxu0 %v3320
    %3637 = vmatpush1.bf16.msra.mxu0 %v3319
    %3638 = vmatprep.subr.bf16.mxu0 %v3312
    %3639 = vmatpush1.bf16.msra.mxu0 %v3311
    %3640 = vmatprep.subr.bf16.mxu0 %v3304
    %3641 = vmatpush1.bf16.msra.mxu0 %v3303
    %3642 = vmatprep.subr.bf16.mxu0 %v3296
    %3643 = vmatpush1.bf16.msra.mxu0 %v3295
    %3644 = vmatprep.subr.bf16.mxu0 %v3288
    %3645 = vmatpush1.bf16.msra.mxu0 %v3287
    %3646 = vmatprep.subr.bf16.mxu0 %v3280
    %3647 = vmatpush1.bf16.msra.mxu0 %v3279
    %3648 = vmatprep.subr.bf16.mxu0 %v3272
    %3649 = vmatpush1.bf16.msra.mxu0 %v3271
    %3650 = vmatprep.subr.bf16.mxu0 %v3264
    %3651 = vmatpush1.bf16.msra.mxu0 %v3263
    %3652 = vmatprep.subr.bf16.mxu0 %v3384
    %3653 = vmatpush2.bf16.msra.mxu0 %v3383
    %3654 = vmatprep.subr.bf16.mxu0 %v3376
    %3655 = vmatpush2.bf16.msra.mxu0 %v3375
    %3656 = vmatprep.subr.bf16.mxu0 %v3368
    %3657 = vmatpush2.bf16.msra.mxu0 %v3367
    %3658 = vmatprep.subr.bf16.mxu0 %v3360
    %3659 = vmatpush2.bf16.msra.mxu0 %v3359
    %3660 = vmatprep.subr.bf16.mxu0 %v3352
    %3661 = vmatpush2.bf16.msra.mxu0 %v3351
    %3662 = vmatprep.subr.bf16.mxu0 %v3344
    %3663 = vmatpush2.bf16.msra.mxu0 %v3343
    %3664 = vmatprep.subr.bf16.mxu0 %v3336
    %3665 = vmatpush2.bf16.msra.mxu0 %v3335
    %3666 = vmatprep.subr.bf16.mxu0 %v3328
    %3667 = vmatpush2.bf16.msra.mxu0 %v3327
    %3668 = vmatprep.mubr.bf16.mxu0 %v1810
    %3669 = vmatmul.mubr.bf16.gmra.mxu0 %v1809
    %v3670 = vpop.f32.mrf.mxu0
    %v3671 = vadd.f32 %v2867, %v3670
    %v3672 = vpop.f32.mrf.mxu0
    %v3673 = vadd.f32 %v2869, %v3672
    %v3674 = vpop.f32.mrf.mxu0
    %v3675 = vpop.f32.mrf.mxu0
    %3676 = vdwg.mxu0
    %v3677 = vadd.f32 %v3548, %v764
    %v3678 = vadd.f32 %v3550, %v768
    %v3679 = vadd.f32 %v3589, %v772
    %v3680 = vadd.f32 %v3591, %v776
    %v3681 = vadd.f32 %v3630, %v780
    %v3682 = vadd.f32 %v3632, %v784
    %v3683 = vadd.f32 %v3671, %v788
    %v3684 = vadd.f32 %v3673, %v792
    %v3685 = vxor.u32 %v3677, 2147483648
    %v3686 = vxor.u32 %v3678, 2147483648
    %v3687 = vmul.f32 %v3685, 1.442695
    %v3688 = vpow.pop %v3687
    %v3689 = vmul.f32 %v3686, 1.442695
    %v3690 = vpow.pop %v3689
    %v3691 = vadd.f32 %v3688, 1.0
    %v3692 = vadd.f32 %v3690, 1.0
    %v3693 = vrcp.pop %v3691
    %v3694 = vmul.f32 1.0, %v3693
    %v3695 = vrcp.pop %v3692
    %v3696 = vmul.f32 1.0, %v3695
    %v3697 = vxor.u32 %v3679, 2147483648
    %v3698 = vxor.u32 %v3680, 2147483648
    %v3699 = vmul.f32 %v3697, 1.442695
    %v3700 = vpow.pop %v3699
    %v3701 = vmul.f32 %v3698, 1.442695
    %v3702 = vpow.pop %v3701
    %v3703 = vadd.f32 %v3700, 1.0
    %v3704 = vadd.f32 %v3702, 1.0
    %v3705 = vrcp.pop %v3703
    %v3706 = vmul.f32 1.0, %v3705
    %v3707 = vrcp.pop %v3704
    %v3708 = vmul.f32 1.0, %v3707
    %v3709 = vtanh.pop %v3681
    %v3710 = vtanh.pop %v3682
    %v3711 = vxor.u32 %v3683, 2147483648
    %v3712 = vxor.u32 %v3684, 2147483648
    %v3713 = vmul.f32 %v3711, 1.442695
    %v3714 = vpow.pop %v3713
    %v3715 = vmul.f32 %v3712, 1.442695
    %v3716 = vpow.pop %v3715
    %v3717 = vadd.f32 %v3714, 1.0
    %v3718 = vadd.f32 %v3716, 1.0
    %v3719 = vrcp.pop %v3717
    %v3720 = vmul.f32 1.0, %v3719
    %v3721 = vrcp.pop %v3718
    %v3722 = vmul.f32 1.0, %v3721
    %v3723 = vmul.f32 %v3706, %v809
    %v3724 = vmul.f32 %v3708, %v810
    %v3725 = vmul.f32 %v3694, %v3709
    %v3726 = vmul.f32 %v3696, %v3710
    %v3727 = vadd.f32 %v3723, %v3725
    %v3728 = vadd.f32 %v3724, %v3726
    %v3729 = vtanh.pop %v3727
    %v3730 = vtanh.pop %v3728
    %v3731 = vmul.f32 %v3720, %v3729
    %v3732 = vmul.f32 %v3722, %v3730
    %v3733 = vld [vmem:[#allocation2 + $0x40] sm:$0xff]
    %v3734 = vld [vmem:[#allocation2 + $0x48] sm:$0xff]
    %v3735 = vld [vmem:[#allocation2 + $0x50] sm:$0xff]
    %v3736 = vld [vmem:[#allocation2 + $0x58] sm:$0xff]
    %v3737 = vld [vmem:[#allocation2 + $0x60] sm:$0xff]
    %v3738 = vld [vmem:[#allocation2 + $0x68] sm:$0xff]
    %v3739 = vld [vmem:[#allocation2 + $0x70] sm:$0xff]
    %v3740 = vld [vmem:[#allocation2 + $0x78] sm:$0xff]
    %3741 = vmatprep.subr.bf16.mxu0 %v1390
    %3742 = vmatpush1.bf16.msra.mxu0 %v1389
    %3743 = vmatprep.subr.bf16.mxu0 %v1382
    %3744 = vmatpush1.bf16.msra.mxu0 %v1381
    %3745 = vmatprep.subr.bf16.mxu0 %v1374
    %3746 = vmatpush1.bf16.msra.mxu0 %v1373
    %3747 = vmatprep.subr.bf16.mxu0 %v1366
    %3748 = vmatpush1.bf16.msra.mxu0 %v1365
    %3749 = vmatprep.subr.bf16.mxu0 %v1358
    %3750 = vmatpush1.bf16.msra.mxu0 %v1357
    %3751 = vmatprep.subr.bf16.mxu0 %v1350
    %3752 = vmatpush1.bf16.msra.mxu0 %v1349
    %3753 = vmatprep.subr.bf16.mxu0 %v1342
    %3754 = vmatpush1.bf16.msra.mxu0 %v1341
    %3755 = vmatprep.subr.bf16.mxu0 %v1334
    %3756 = vmatpush1.bf16.msra.mxu0 %v1333
    %3757 = vmatprep.subr.bf16.mxu0 %v1454
    %3758 = vmatpush2.bf16.msra.mxu0 %v1453
    %3759 = vmatprep.subr.bf16.mxu0 %v1446
    %3760 = vmatpush2.bf16.msra.mxu0 %v1445
    %3761 = vmatprep.subr.bf16.mxu0 %v1438
    %3762 = vmatpush2.bf16.msra.mxu0 %v1437
    %3763 = vmatprep.subr.bf16.mxu0 %v1430
    %3764 = vmatpush2.bf16.msra.mxu0 %v1429
    %3765 = vmatprep.subr.bf16.mxu0 %v1422
    %3766 = vmatpush2.bf16.msra.mxu0 %v1421
    %3767 = vmatprep.subr.bf16.mxu0 %v1414
    %3768 = vmatpush2.bf16.msra.mxu0 %v1413
    %3769 = vmatprep.subr.bf16.mxu0 %v1406
    %3770 = vmatpush2.bf16.msra.mxu0 %v1405
    %3771 = vmatprep.subr.bf16.mxu0 %v1398
    %3772 = vmatpush2.bf16.msra.mxu0 %v1397
    %3773 = vmatprep.mubr.bf16.mxu0 %v1810
    %3774 = vmatmul.mubr.bf16.gmra.mxu0 %v1809
    %v3775 = vpop.f32.mrf.mxu0
    %v3776 = vadd.f32 0.0, %v3775
    %v3777 = vpop.f32.mrf.mxu0
    %v3778 = vadd.f32 0.0, %v3777
    %v3779 = vpop.f32.mrf.mxu0
    %v3780 = vpop.f32.mrf.mxu0
    %3781 = vdwg.mxu0
    %3782 = vmatprep.subr.bf16.mxu0 %v1392
    %3783 = vmatpush1.bf16.msra.mxu0 %v1391
    %3784 = vmatprep.subr.bf16.mxu0 %v1384
    %3785 = vmatpush1.bf16.msra.mxu0 %v1383
    %3786 = vmatprep.subr.bf16.mxu0 %v1376
    %3787 = vmatpush1.bf16.msra.mxu0 %v1375
    %3788 = vmatprep.subr.bf16.mxu0 %v1368
    %3789 = vmatpush1.bf16.msra.mxu0 %v1367
    %3790 = vmatprep.subr.bf16.mxu0 %v1360
    %3791 = vmatpush1.bf16.msra.mxu0 %v1359
    %3792 = vmatprep.subr.bf16.mxu0 %v1352
    %3793 = vmatpush1.bf16.msra.mxu0 %v1351
    %3794 = vmatprep.subr.bf16.mxu0 %v1344
    %3795 = vmatpush1.bf16.msra.mxu0 %v1343
    %3796 = vmatprep.subr.bf16.mxu0 %v1336
    %3797 = vmatpush1.bf16.msra.mxu0 %v1335
    %3798 = vmatprep.subr.bf16.mxu0 %v1456
    %3799 = vmatpush2.bf16.msra.mxu0 %v1455
    %3800 = vmatprep.subr.bf16.mxu0 %v1448
    %3801 = vmatpush2.bf16.msra.mxu0 %v1447
    %3802 = vmatprep.subr.bf16.mxu0 %v1440
    %3803 = vmatpush2.bf16.msra.mxu0 %v1439
    %3804 = vmatprep.subr.bf16.mxu0 %v1432
    %3805 = vmatpush2.bf16.msra.mxu0 %v1431
    %3806 = vmatprep.subr.bf16.mxu0 %v1424
    %3807 = vmatpush2.bf16.msra.mxu0 %v1423
    %3808 = vmatprep.subr.bf16.mxu0 %v1416
    %3809 = vmatpush2.bf16.msra.mxu0 %v1415
    %3810 = vmatprep.subr.bf16.mxu0 %v1408
    %3811 = vmatpush2.bf16.msra.mxu0 %v1407
    %3812 = vmatprep.subr.bf16.mxu0 %v1400
    %3813 = vmatpush2.bf16.msra.mxu0 %v1399
    %3814 = vmatprep.mubr.bf16.mxu0 %v1810
    %3815 = vmatmul.mubr.bf16.gmra.mxu0 %v1809
    %v3816 = vpop.f32.mrf.mxu0
    %v3817 = vadd.f32 0.0, %v3816
    %v3818 = vpop.f32.mrf.mxu0
    %v3819 = vadd.f32 0.0, %v3818
    %v3820 = vpop.f32.mrf.mxu0
    %v3821 = vpop.f32.mrf.mxu0
    %3822 = vdwg.mxu0
    %3823 = vmatprep.subr.bf16.mxu0 %v1394
    %3824 = vmatpush1.bf16.msra.mxu0 %v1393
    %3825 = vmatprep.subr.bf16.mxu0 %v1386
    %3826 = vmatpush1.bf16.msra.mxu0 %v1385
    %3827 = vmatprep.subr.bf16.mxu0 %v1378
    %3828 = vmatpush1.bf16.msra.mxu0 %v1377
    %3829 = vmatprep.subr.bf16.mxu0 %v1370
    %3830 = vmatpush1.bf16.msra.mxu0 %v1369
    %3831 = vmatprep.subr.bf16.mxu0 %v1362
    %3832 = vmatpush1.bf16.msra.mxu0 %v1361
    %3833 = vmatprep.subr.bf16.mxu0 %v1354
    %3834 = vmatpush1.bf16.msra.mxu0 %v1353
    %3835 = vmatprep.subr.bf16.mxu0 %v1346
    %3836 = vmatpush1.bf16.msra.mxu0 %v1345
    %3837 = vmatprep.subr.bf16.mxu0 %v1338
    %3838 = vmatpush1.bf16.msra.mxu0 %v1337
    %3839 = vmatprep.subr.bf16.mxu0 %v1458
    %3840 = vmatpush2.bf16.msra.mxu0 %v1457
    %3841 = vmatprep.subr.bf16.mxu0 %v1450
    %3842 = vmatpush2.bf16.msra.mxu0 %v1449
    %3843 = vmatprep.subr.bf16.mxu0 %v1442
    %3844 = vmatpush2.bf16.msra.mxu0 %v1441
    %3845 = vmatprep.subr.bf16.mxu0 %v1434
    %3846 = vmatpush2.bf16.msra.mxu0 %v1433
    %3847 = vmatprep.subr.bf16.mxu0 %v1426
    %3848 = vmatpush2.bf16.msra.mxu0 %v1425
    %3849 = vmatprep.subr.bf16.mxu0 %v1418
    %3850 = vmatpush2.bf16.msra.mxu0 %v1417
    %3851 = vmatprep.subr.bf16.mxu0 %v1410
    %3852 = vmatpush2.bf16.msra.mxu0 %v1409
    %3853 = vmatprep.subr.bf16.mxu0 %v1402
    %3854 = vmatpush2.bf16.msra.mxu0 %v1401
    %3855 = vmatprep.mubr.bf16.mxu0 %v1810
    %3856 = vmatmul.mubr.bf16.gmra.mxu0 %v1809
    %v3857 = vpop.f32.mrf.mxu0
    %v3858 = vadd.f32 0.0, %v3857
    %v3859 = vpop.f32.mrf.mxu0
    %v3860 = vadd.f32 0.0, %v3859
    %v3861 = vpop.f32.mrf.mxu0
    %v3862 = vpop.f32.mrf.mxu0
    %3863 = vdwg.mxu0
    %3864 = vmatprep.subr.bf16.mxu0 %v1396
    %3865 = vmatpush1.bf16.msra.mxu0 %v1395
    %3866 = vmatprep.subr.bf16.mxu0 %v1388
    %3867 = vmatpush1.bf16.msra.mxu0 %v1387
    %3868 = vmatprep.subr.bf16.mxu0 %v1380
    %3869 = vmatpush1.bf16.msra.mxu0 %v1379
    %3870 = vmatprep.subr.bf16.mxu0 %v1372
    %3871 = vmatpush1.bf16.msra.mxu0 %v1371
    %3872 = vmatprep.subr.bf16.mxu0 %v1364
    %3873 = vmatpush1.bf16.msra.mxu0 %v1363
    %3874 = vmatprep.subr.bf16.mxu0 %v1356
    %3875 = vmatpush1.bf16.msra.mxu0 %v1355
    %3876 = vmatprep.subr.bf16.mxu0 %v1348
    %3877 = vmatpush1.bf16.msra.mxu0 %v1347
    %3878 = vmatprep.subr.bf16.mxu0 %v1340
    %3879 = vmatpush1.bf16.msra.mxu0 %v1339
    %3880 = vmatprep.subr.bf16.mxu0 %v1460
    %3881 = vmatpush2.bf16.msra.mxu0 %v1459
    %3882 = vmatprep.subr.bf16.mxu0 %v1452
    %3883 = vmatpush2.bf16.msra.mxu0 %v1451
    %3884 = vmatprep.subr.bf16.mxu0 %v1444
    %3885 = vmatpush2.bf16.msra.mxu0 %v1443
    %3886 = vmatprep.subr.bf16.mxu0 %v1436
    %3887 = vmatpush2.bf16.msra.mxu0 %v1435
    %3888 = vmatprep.subr.bf16.mxu0 %v1428
    %3889 = vmatpush2.bf16.msra.mxu0 %v1427
    %3890 = vmatprep.subr.bf16.mxu0 %v1420
    %3891 = vmatpush2.bf16.msra.mxu0 %v1419
    %3892 = vmatprep.subr.bf16.mxu0 %v1412
    %3893 = vmatpush2.bf16.msra.mxu0 %v1411
    %3894 = vmatprep.subr.bf16.mxu0 %v1404
    %3895 = vmatpush2.bf16.msra.mxu0 %v1403
    %3896 = vmatprep.mubr.bf16.mxu0 %v1810
    %3897 = vmatmul.mubr.bf16.gmra.mxu0 %v1809
    %v3898 = vpop.f32.mrf.mxu0
    %v3899 = vadd.f32 0.0, %v3898
    %v3900 = vpop.f32.mrf.mxu0
    %v3901 = vadd.f32 0.0, %v3900
    %v3902 = vpop.f32.mrf.mxu0
    %v3903 = vpop.f32.mrf.mxu0
    %3904 = vdwg.mxu0
    %v3905 = vadd.f32 %v3733, %v3776
    %v3906 = vadd.f32 %v3734, %v3778
    %v3907 = vadd.f32 %v3735, %v3817
    %v3908 = vadd.f32 %v3736, %v3819
    %v3909 = vadd.f32 %v3737, %v3858
    %v3910 = vadd.f32 %v3738, %v3860
    %v3911 = vadd.f32 %v3739, %v3899
    %v3912 = vadd.f32 %v3740, %v3901
    %v3913 = vxor.u32 %v3905, 2147483648
    %v3914 = vxor.u32 %v3906, 2147483648
    %v3915 = vmul.f32 %v3913, 1.442695
    %v3916 = vpow.pop %v3915
    %v3917 = vmul.f32 %v3914, 1.442695
    %v3918 = vpow.pop %v3917
    %v3919 = vadd.f32 %v3916, 1.0
    %v3920 = vadd.f32 %v3918, 1.0
    %v3921 = vrcp.pop %v3919
    %v3922 = vmul.f32 1.0, %v3921
    %v3923 = vrcp.pop %v3920
    %v3924 = vmul.f32 1.0, %v3923
    %v3925 = vxor.u32 %v3907, 2147483648
    %v3926 = vxor.u32 %v3908, 2147483648
    %v3927 = vmul.f32 %v3925, 1.442695
    %v3928 = vpow.pop %v3927
    %v3929 = vmul.f32 %v3926, 1.442695
    %v3930 = vpow.pop %v3929
    %v3931 = vadd.f32 %v3928, 1.0
    %v3932 = vadd.f32 %v3930, 1.0
    %v3933 = vrcp.pop %v3931
    %v3934 = vmul.f32 1.0, %v3933
    %v3935 = vrcp.pop %v3932
    %v3936 = vmul.f32 1.0, %v3935
    %v3937 = vtanh.pop %v3909
    %v3938 = vtanh.pop %v3910
    %v3939 = vxor.u32 %v3911, 2147483648
    %v3940 = vxor.u32 %v3912, 2147483648
    %v3941 = vmul.f32 %v3939, 1.442695
    %v3942 = vpow.pop %v3941
    %v3943 = vmul.f32 %v3940, 1.442695
    %v3944 = vpow.pop %v3943
    %v3945 = vadd.f32 %v3942, 1.0
    %v3946 = vadd.f32 %v3944, 1.0
    %v3947 = vrcp.pop %v3945
    %v3948 = vmul.f32 1.0, %v3947
    %v3949 = vrcp.pop %v3946
    %v3950 = vmul.f32 1.0, %v3949
    %v3951 = vmul.f32 %v3934, %v1803
    %v3952 = vmul.f32 %v3936, %v1804
    %v3953 = vmul.f32 %v3922, %v3937
    %v3954 = vmul.f32 %v3924, %v3938
    %v3955 = vadd.f32 %v3951, %v3953
    %v3956 = vadd.f32 %v3952, %v3954
    %v3957 = vtanh.pop %v3955
    %v3958 = vtanh.pop %v3956
    %v3959 = vmul.f32 %v3948, %v3957
    %v3960 = vmul.f32 %v3950, %v3958
    %v3961 = vpack.c.bf16 %v3959, %v3959
    %v3962 = vpack.c.bf16 %v3960, %v3960
    %v3963 = vpack.c.bf16 %v3731, %v3731
    %v3964 = vpack.c.bf16 %v3732, %v3732
    %3965 = vmatprep.subr.bf16.mxu0 %v2510
    %3966 = vmatpush1.bf16.msra.mxu0 %v2509
    %3967 = vmatprep.subr.bf16.mxu0 %v2502
    %3968 = vmatpush1.bf16.msra.mxu0 %v2501
    %3969 = vmatprep.subr.bf16.mxu0 %v2494
    %3970 = vmatpush1.bf16.msra.mxu0 %v2493
    %3971 = vmatprep.subr.bf16.mxu0 %v2486
    %3972 = vmatpush1.bf16.msra.mxu0 %v2485
    %3973 = vmatprep.subr.bf16.mxu0 %v2478
    %3974 = vmatpush1.bf16.msra.mxu0 %v2477
    %3975 = vmatprep.subr.bf16.mxu0 %v2470
    %3976 = vmatpush1.bf16.msra.mxu0 %v2469
    %3977 = vmatprep.subr.bf16.mxu0 %v2462
    %3978 = vmatpush1.bf16.msra.mxu0 %v2461
    %3979 = vmatprep.subr.bf16.mxu0 %v2454
    %3980 = vmatpush1.bf16.msra.mxu0 %v2453
    %3981 = vmatprep.subr.bf16.mxu0 %v2574
    %3982 = vmatpush2.bf16.msra.mxu0 %v2573
    %3983 = vmatprep.subr.bf16.mxu0 %v2566
    %3984 = vmatpush2.bf16.msra.mxu0 %v2565
    %3985 = vmatprep.subr.bf16.mxu0 %v2558
    %3986 = vmatpush2.bf16.msra.mxu0 %v2557
    %3987 = vmatprep.subr.bf16.mxu0 %v2550
    %3988 = vmatpush2.bf16.msra.mxu0 %v2549
    %3989 = vmatprep.subr.bf16.mxu0 %v2542
    %3990 = vmatpush2.bf16.msra.mxu0 %v2541
    %3991 = vmatprep.subr.bf16.mxu0 %v2534
    %3992 = vmatpush2.bf16.msra.mxu0 %v2533
    %3993 = vmatprep.subr.bf16.mxu0 %v2526
    %3994 = vmatpush2.bf16.msra.mxu0 %v2525
    %3995 = vmatprep.subr.bf16.mxu0 %v2518
    %3996 = vmatpush2.bf16.msra.mxu0 %v2517
    %3997 = vmatprep.mubr.bf16.mxu0 %v3964
    %3998 = vmatmul.mubr.bf16.gmra.mxu0 %v3963
    %v3999 = vpop.f32.mrf.mxu0
    %v4000 = vadd.f32 0.0, %v3999
    %v4001 = vpop.f32.mrf.mxu0
    %v4002 = vadd.f32 0.0, %v4001
    %v4003 = vpop.f32.mrf.mxu0
    %v4004 = vpop.f32.mrf.mxu0
    %4005 = vdwg.mxu0
    %4006 = vmatprep.subr.bf16.mxu0 %v2512
    %4007 = vmatpush1.bf16.msra.mxu0 %v2511
    %4008 = vmatprep.subr.bf16.mxu0 %v2504
    %4009 = vmatpush1.bf16.msra.mxu0 %v2503
    %4010 = vmatprep.subr.bf16.mxu0 %v2496
    %4011 = vmatpush1.bf16.msra.mxu0 %v2495
    %4012 = vmatprep.subr.bf16.mxu0 %v2488
    %4013 = vmatpush1.bf16.msra.mxu0 %v2487
    %4014 = vmatprep.subr.bf16.mxu0 %v2480
    %4015 = vmatpush1.bf16.msra.mxu0 %v2479
    %4016 = vmatprep.subr.bf16.mxu0 %v2472
    %4017 = vmatpush1.bf16.msra.mxu0 %v2471
    %4018 = vmatprep.subr.bf16.mxu0 %v2464
    %4019 = vmatpush1.bf16.msra.mxu0 %v2463
    %4020 = vmatprep.subr.bf16.mxu0 %v2456
    %4021 = vmatpush1.bf16.msra.mxu0 %v2455
    %4022 = vmatprep.subr.bf16.mxu0 %v2576
    %4023 = vmatpush2.bf16.msra.mxu0 %v2575
    %4024 = vmatprep.subr.bf16.mxu0 %v2568
    %4025 = vmatpush2.bf16.msra.mxu0 %v2567
    %4026 = vmatprep.subr.bf16.mxu0 %v2560
    %4027 = vmatpush2.bf16.msra.mxu0 %v2559
    %4028 = vmatprep.subr.bf16.mxu0 %v2552
    %4029 = vmatpush2.bf16.msra.mxu0 %v2551
    %4030 = vmatprep.subr.bf16.mxu0 %v2544
    %4031 = vmatpush2.bf16.msra.mxu0 %v2543
    %4032 = vmatprep.subr.bf16.mxu0 %v2536
    %4033 = vmatpush2.bf16.msra.mxu0 %v2535
    %4034 = vmatprep.subr.bf16.mxu0 %v2528
    %4035 = vmatpush2.bf16.msra.mxu0 %v2527
    %4036 = vmatprep.subr.bf16.mxu0 %v2520
    %4037 = vmatpush2.bf16.msra.mxu0 %v2519
    %4038 = vmatprep.mubr.bf16.mxu0 %v3964
    %4039 = vmatmul.mubr.bf16.gmra.mxu0 %v3963
    %v4040 = vpop.f32.mrf.mxu0
    %v4041 = vadd.f32 0.0, %v4040
    %v4042 = vpop.f32.mrf.mxu0
    %v4043 = vadd.f32 0.0, %v4042
    %v4044 = vpop.f32.mrf.mxu0
    %v4045 = vpop.f32.mrf.mxu0
    %4046 = vdwg.mxu0
    %4047 = vmatprep.subr.bf16.mxu0 %v2514
    %4048 = vmatpush1.bf16.msra.mxu0 %v2513
    %4049 = vmatprep.subr.bf16.mxu0 %v2506
    %4050 = vmatpush1.bf16.msra.mxu0 %v2505
    %4051 = vmatprep.subr.bf16.mxu0 %v2498
    %4052 = vmatpush1.bf16.msra.mxu0 %v2497
    %4053 = vmatprep.subr.bf16.mxu0 %v2490
    %4054 = vmatpush1.bf16.msra.mxu0 %v2489
    %4055 = vmatprep.subr.bf16.mxu0 %v2482
    %4056 = vmatpush1.bf16.msra.mxu0 %v2481
    %4057 = vmatprep.subr.bf16.mxu0 %v2474
    %4058 = vmatpush1.bf16.msra.mxu0 %v2473
    %4059 = vmatprep.subr.bf16.mxu0 %v2466
    %4060 = vmatpush1.bf16.msra.mxu0 %v2465
    %4061 = vmatprep.subr.bf16.mxu0 %v2458
    %4062 = vmatpush1.bf16.msra.mxu0 %v2457
    %4063 = vmatprep.subr.bf16.mxu0 %v2578
    %4064 = vmatpush2.bf16.msra.mxu0 %v2577
    %4065 = vmatprep.subr.bf16.mxu0 %v2570
    %4066 = vmatpush2.bf16.msra.mxu0 %v2569
    %4067 = vmatprep.subr.bf16.mxu0 %v2562
    %4068 = vmatpush2.bf16.msra.mxu0 %v2561
    %4069 = vmatprep.subr.bf16.mxu0 %v2554
    %4070 = vmatpush2.bf16.msra.mxu0 %v2553
    %4071 = vmatprep.subr.bf16.mxu0 %v2546
    %4072 = vmatpush2.bf16.msra.mxu0 %v2545
    %4073 = vmatprep.subr.bf16.mxu0 %v2538
    %4074 = vmatpush2.bf16.msra.mxu0 %v2537
    %4075 = vmatprep.subr.bf16.mxu0 %v2530
    %4076 = vmatpush2.bf16.msra.mxu0 %v2529
    %4077 = vmatprep.subr.bf16.mxu0 %v2522
    %4078 = vmatpush2.bf16.msra.mxu0 %v2521
    %4079 = vmatprep.mubr.bf16.mxu0 %v3964
    %4080 = vmatmul.mubr.bf16.gmra.mxu0 %v3963
    %v4081 = vpop.f32.mrf.mxu0
    %v4082 = vadd.f32 0.0, %v4081
    %v4083 = vpop.f32.mrf.mxu0
    %v4084 = vadd.f32 0.0, %v4083
    %v4085 = vpop.f32.mrf.mxu0
    %v4086 = vpop.f32.mrf.mxu0
    %4087 = vdwg.mxu0
    %4088 = vmatprep.subr.bf16.mxu0 %v2516
    %4089 = vmatpush1.bf16.msra.mxu0 %v2515
    %4090 = vmatprep.subr.bf16.mxu0 %v2508
    %4091 = vmatpush1.bf16.msra.mxu0 %v2507
    %4092 = vmatprep.subr.bf16.mxu0 %v2500
    %4093 = vmatpush1.bf16.msra.mxu0 %v2499
    %4094 = vmatprep.subr.bf16.mxu0 %v2492
    %4095 = vmatpush1.bf16.msra.mxu0 %v2491
    %4096 = vmatprep.subr.bf16.mxu0 %v2484
    %4097 = vmatpush1.bf16.msra.mxu0 %v2483
    %4098 = vmatprep.subr.bf16.mxu0 %v2476
    %4099 = vmatpush1.bf16.msra.mxu0 %v2475
    %4100 = vmatprep.subr.bf16.mxu0 %v2468
    %4101 = vmatpush1.bf16.msra.mxu0 %v2467
    %4102 = vmatprep.subr.bf16.mxu0 %v2460
    %4103 = vmatpush1.bf16.msra.mxu0 %v2459
    %4104 = vmatprep.subr.bf16.mxu0 %v2580
    %4105 = vmatpush2.bf16.msra.mxu0 %v2579
    %4106 = vmatprep.subr.bf16.mxu0 %v2572
    %4107 = vmatpush2.bf16.msra.mxu0 %v2571
    %4108 = vmatprep.subr.bf16.mxu0 %v2564
    %4109 = vmatpush2.bf16.msra.mxu0 %v2563
    %4110 = vmatprep.subr.bf16.mxu0 %v2556
    %4111 = vmatpush2.bf16.msra.mxu0 %v2555
    %4112 = vmatprep.subr.bf16.mxu0 %v2548
    %4113 = vmatpush2.bf16.msra.mxu0 %v2547
    %4114 = vmatprep.subr.bf16.mxu0 %v2540
    %4115 = vmatpush2.bf16.msra.mxu0 %v2539
    %4116 = vmatprep.subr.bf16.mxu0 %v2532
    %4117 = vmatpush2.bf16.msra.mxu0 %v2531
    %4118 = vmatprep.subr.bf16.mxu0 %v2524
    %4119 = vmatpush2.bf16.msra.mxu0 %v2523
    %4120 = vmatprep.mubr.bf16.mxu0 %v3964
    %4121 = vmatmul.mubr.bf16.gmra.mxu0 %v3963
    %v4122 = vpop.f32.mrf.mxu0
    %v4123 = vadd.f32 0.0, %v4122
    %v4124 = vpop.f32.mrf.mxu0
    %v4125 = vadd.f32 0.0, %v4124
    %v4126 = vpop.f32.mrf.mxu0
    %v4127 = vpop.f32.mrf.mxu0
    %4128 = vdwg.mxu0
    %4129 = vmatprep.subr.bf16.mxu0 %v3314
    %4130 = vmatpush1.bf16.msra.mxu0 %v3313
    %4131 = vmatprep.subr.bf16.mxu0 %v3306
    %4132 = vmatpush1.bf16.msra.mxu0 %v3305
    %4133 = vmatprep.subr.bf16.mxu0 %v3298
    %4134 = vmatpush1.bf16.msra.mxu0 %v3297
    %4135 = vmatprep.subr.bf16.mxu0 %v3290
    %4136 = vmatpush1.bf16.msra.mxu0 %v3289
    %4137 = vmatprep.subr.bf16.mxu0 %v3282
    %4138 = vmatpush1.bf16.msra.mxu0 %v3281
    %4139 = vmatprep.subr.bf16.mxu0 %v3274
    %4140 = vmatpush1.bf16.msra.mxu0 %v3273
    %4141 = vmatprep.subr.bf16.mxu0 %v3266
    %4142 = vmatpush1.bf16.msra.mxu0 %v3265
    %4143 = vmatprep.subr.bf16.mxu0 %v3258
    %4144 = vmatpush1.bf16.msra.mxu0 %v3257
    %4145 = vmatprep.subr.bf16.mxu0 %v3378
    %4146 = vmatpush2.bf16.msra.mxu0 %v3377
    %4147 = vmatprep.subr.bf16.mxu0 %v3370
    %4148 = vmatpush2.bf16.msra.mxu0 %v3369
    %4149 = vmatprep.subr.bf16.mxu0 %v3362
    %4150 = vmatpush2.bf16.msra.mxu0 %v3361
    %4151 = vmatprep.subr.bf16.mxu0 %v3354
    %4152 = vmatpush2.bf16.msra.mxu0 %v3353
    %4153 = vmatprep.subr.bf16.mxu0 %v3346
    %4154 = vmatpush2.bf16.msra.mxu0 %v3345
    %4155 = vmatprep.subr.bf16.mxu0 %v3338
    %4156 = vmatpush2.bf16.msra.mxu0 %v3337
    %4157 = vmatprep.subr.bf16.mxu0 %v3330
    %4158 = vmatpush2.bf16.msra.mxu0 %v3329
    %4159 = vmatprep.subr.bf16.mxu0 %v3322
    %4160 = vmatpush2.bf16.msra.mxu0 %v3321
    %4161 = vmatprep.mubr.bf16.mxu0 %v3962
    %4162 = vmatmul.mubr.bf16.gmra.mxu0 %v3961
    %v4163 = vpop.f32.mrf.mxu0
    %v4164 = vadd.f32 %v4000, %v4163
    %v4165 = vpop.f32.mrf.mxu0
    %v4166 = vadd.f32 %v4002, %v4165
    %v4167 = vpop.f32.mrf.mxu0
    %v4168 = vpop.f32.mrf.mxu0
    %4169 = vdwg.mxu0
    %4170 = vmatprep.subr.bf16.mxu0 %v3316
    %4171 = vmatpush1.bf16.msra.mxu0 %v3315
    %4172 = vmatprep.subr.bf16.mxu0 %v3308
    %4173 = vmatpush1.bf16.msra.mxu0 %v3307
    %4174 = vmatprep.subr.bf16.mxu0 %v3300
    %4175 = vmatpush1.bf16.msra.mxu0 %v3299
    %4176 = vmatprep.subr.bf16.mxu0 %v3292
    %4177 = vmatpush1.bf16.msra.mxu0 %v3291
    %4178 = vmatprep.subr.bf16.mxu0 %v3284
    %4179 = vmatpush1.bf16.msra.mxu0 %v3283
    %4180 = vmatprep.subr.bf16.mxu0 %v3276
    %4181 = vmatpush1.bf16.msra.mxu0 %v3275
    %4182 = vmatprep.subr.bf16.mxu0 %v3268
    %4183 = vmatpush1.bf16.msra.mxu0 %v3267
    %4184 = vmatprep.subr.bf16.mxu0 %v3260
    %4185 = vmatpush1.bf16.msra.mxu0 %v3259
    %4186 = vmatprep.subr.bf16.mxu0 %v3380
    %4187 = vmatpush2.bf16.msra.mxu0 %v3379
    %4188 = vmatprep.subr.bf16.mxu0 %v3372
    %4189 = vmatpush2.bf16.msra.mxu0 %v3371
    %4190 = vmatprep.subr.bf16.mxu0 %v3364
    %4191 = vmatpush2.bf16.msra.mxu0 %v3363
    %4192 = vmatprep.subr.bf16.mxu0 %v3356
    %4193 = vmatpush2.bf16.msra.mxu0 %v3355
    %4194 = vmatprep.subr.bf16.mxu0 %v3348
    %4195 = vmatpush2.bf16.msra.mxu0 %v3347
    %4196 = vmatprep.subr.bf16.mxu0 %v3340
    %4197 = vmatpush2.bf16.msra.mxu0 %v3339
    %4198 = vmatprep.subr.bf16.mxu0 %v3332
    %4199 = vmatpush2.bf16.msra.mxu0 %v3331
    %4200 = vmatprep.subr.bf16.mxu0 %v3324
    %4201 = vmatpush2.bf16.msra.mxu0 %v3323
    %4202 = vmatprep.mubr.bf16.mxu0 %v3962
    %4203 = vmatmul.mubr.bf16.gmra.mxu0 %v3961
    %v4204 = vpop.f32.mrf.mxu0
    %v4205 = vadd.f32 %v4041, %v4204
    %v4206 = vpop.f32.mrf.mxu0
    %v4207 = vadd.f32 %v4043, %v4206
    %v4208 = vpop.f32.mrf.mxu0
    %v4209 = vpop.f32.mrf.mxu0
    %4210 = vdwg.mxu0
    %4211 = vmatprep.subr.bf16.mxu0 %v3318
    %4212 = vmatpush1.bf16.msra.mxu0 %v3317
    %4213 = vmatprep.subr.bf16.mxu0 %v3310
    %4214 = vmatpush1.bf16.msra.mxu0 %v3309
    %4215 = vmatprep.subr.bf16.mxu0 %v3302
    %4216 = vmatpush1.bf16.msra.mxu0 %v3301
    %4217 = vmatprep.subr.bf16.mxu0 %v3294
    %4218 = vmatpush1.bf16.msra.mxu0 %v3293
    %4219 = vmatprep.subr.bf16.mxu0 %v3286
    %4220 = vmatpush1.bf16.msra.mxu0 %v3285
    %4221 = vmatprep.subr.bf16.mxu0 %v3278
    %4222 = vmatpush1.bf16.msra.mxu0 %v3277
    %4223 = vmatprep.subr.bf16.mxu0 %v3270
    %4224 = vmatpush1.bf16.msra.mxu0 %v3269
    %4225 = vmatprep.subr.bf16.mxu0 %v3262
    %4226 = vmatpush1.bf16.msra.mxu0 %v3261
    %4227 = vmatprep.subr.bf16.mxu0 %v3382
    %4228 = vmatpush2.bf16.msra.mxu0 %v3381
    %4229 = vmatprep.subr.bf16.mxu0 %v3374
    %4230 = vmatpush2.bf16.msra.mxu0 %v3373
    %4231 = vmatprep.subr.bf16.mxu0 %v3366
    %4232 = vmatpush2.bf16.msra.mxu0 %v3365
    %4233 = vmatprep.subr.bf16.mxu0 %v3358
    %4234 = vmatpush2.bf16.msra.mxu0 %v3357
    %4235 = vmatprep.subr.bf16.mxu0 %v3350
    %4236 = vmatpush2.bf16.msra.mxu0 %v3349
    %4237 = vmatprep.subr.bf16.mxu0 %v3342
    %4238 = vmatpush2.bf16.msra.mxu0 %v3341
    %4239 = vmatprep.subr.bf16.mxu0 %v3334
    %4240 = vmatpush2.bf16.msra.mxu0 %v3333
    %4241 = vmatprep.subr.bf16.mxu0 %v3326
    %4242 = vmatpush2.bf16.msra.mxu0 %v3325
    %4243 = vmatprep.mubr.bf16.mxu0 %v3962
    %4244 = vmatmul.mubr.bf16.gmra.mxu0 %v3961
    %v4245 = vpop.f32.mrf.mxu0
    %v4246 = vadd.f32 %v4082, %v4245
    %v4247 = vpop.f32.mrf.mxu0
    %v4248 = vadd.f32 %v4084, %v4247
    %v4249 = vpop.f32.mrf.mxu0
    %v4250 = vpop.f32.mrf.mxu0
    %4251 = vdwg.mxu0
    %4252 = vmatprep.subr.bf16.mxu0 %v3320
    %4253 = vmatpush1.bf16.msra.mxu0 %v3319
    %4254 = vmatprep.subr.bf16.mxu0 %v3312
    %4255 = vmatpush1.bf16.msra.mxu0 %v3311
    %4256 = vmatprep.subr.bf16.mxu0 %v3304
    %4257 = vmatpush1.bf16.msra.mxu0 %v3303
    %4258 = vmatprep.subr.bf16.mxu0 %v3296
    %4259 = vmatpush1.bf16.msra.mxu0 %v3295
    %4260 = vmatprep.subr.bf16.mxu0 %v3288
    %4261 = vmatpush1.bf16.msra.mxu0 %v3287
    %4262 = vmatprep.subr.bf16.mxu0 %v3280
    %4263 = vmatpush1.bf16.msra.mxu0 %v3279
    %4264 = vmatprep.subr.bf16.mxu0 %v3272
    %4265 = vmatpush1.bf16.msra.mxu0 %v3271
    %4266 = vmatprep.subr.bf16.mxu0 %v3264
    %4267 = vmatpush1.bf16.msra.mxu0 %v3263
    %4268 = vmatprep.subr.bf16.mxu0 %v3384
    %4269 = vmatpush2.bf16.msra.mxu0 %v3383
    %4270 = vmatprep.subr.bf16.mxu0 %v3376
    %4271 = vmatpush2.bf16.msra.mxu0 %v3375
    %4272 = vmatprep.subr.bf16.mxu0 %v3368
    %4273 = vmatpush2.bf16.msra.mxu0 %v3367
    %4274 = vmatprep.subr.bf16.mxu0 %v3360
    %4275 = vmatpush2.bf16.msra.mxu0 %v3359
    %4276 = vmatprep.subr.bf16.mxu0 %v3352
    %4277 = vmatpush2.bf16.msra.mxu0 %v3351
    %4278 = vmatprep.subr.bf16.mxu0 %v3344
    %4279 = vmatpush2.bf16.msra.mxu0 %v3343
    %4280 = vmatprep.subr.bf16.mxu0 %v3336
    %4281 = vmatpush2.bf16.msra.mxu0 %v3335
    %4282 = vmatprep.subr.bf16.mxu0 %v3328
    %4283 = vmatpush2.bf16.msra.mxu0 %v3327
    %4284 = vmatprep.mubr.bf16.mxu0 %v3962
    %4285 = vmatmul.mubr.bf16.gmra.mxu0 %v3961
    %v4286 = vpop.f32.mrf.mxu0
    %v4287 = vadd.f32 %v4123, %v4286
    %v4288 = vpop.f32.mrf.mxu0
    %v4289 = vadd.f32 %v4125, %v4288
    %v4290 = vpop.f32.mrf.mxu0
    %v4291 = vpop.f32.mrf.mxu0
    %4292 = vdwg.mxu0
    %v4293 = vadd.f32 %v4164, %v764
    %v4294 = vadd.f32 %v4166, %v768
    %v4295 = vadd.f32 %v4205, %v772
    %v4296 = vadd.f32 %v4207, %v776
    %v4297 = vadd.f32 %v4246, %v780
    %v4298 = vadd.f32 %v4248, %v784
    %v4299 = vadd.f32 %v4287, %v788
    %v4300 = vadd.f32 %v4289, %v792
    %v4301 = vxor.u32 %v4293, 2147483648
    %v4302 = vxor.u32 %v4294, 2147483648
    %v4303 = vmul.f32 %v4301, 1.442695
    %v4304 = vpow.pop %v4303
    %v4305 = vmul.f32 %v4302, 1.442695
    %v4306 = vpow.pop %v4305
    %v4307 = vadd.f32 %v4304, 1.0
    %v4308 = vadd.f32 %v4306, 1.0
    %v4309 = vrcp.pop %v4307
    %v4310 = vmul.f32 1.0, %v4309
    %v4311 = vrcp.pop %v4308
    %v4312 = vmul.f32 1.0, %v4311
    %v4313 = vxor.u32 %v4295, 2147483648
    %v4314 = vxor.u32 %v4296, 2147483648
    %v4315 = vmul.f32 %v4313, 1.442695
    %v4316 = vpow.pop %v4315
    %v4317 = vmul.f32 %v4314, 1.442695
    %v4318 = vpow.pop %v4317
    %v4319 = vadd.f32 %v4316, 1.0
    %v4320 = vadd.f32 %v4318, 1.0
    %v4321 = vrcp.pop %v4319
    %v4322 = vmul.f32 1.0, %v4321
    %v4323 = vrcp.pop %v4320
    %v4324 = vmul.f32 1.0, %v4323
    %v4325 = vtanh.pop %v4297
    %v4326 = vtanh.pop %v4298
    %v4327 = vxor.u32 %v4299, 2147483648
    %v4328 = vxor.u32 %v4300, 2147483648
    %v4329 = vmul.f32 %v4327, 1.442695
    %v4330 = vpow.pop %v4329
    %v4331 = vmul.f32 %v4328, 1.442695
    %v4332 = vpow.pop %v4331
    %v4333 = vadd.f32 %v4330, 1.0
    %v4334 = vadd.f32 %v4332, 1.0
    %v4335 = vrcp.pop %v4333
    %v4336 = vmul.f32 1.0, %v4335
    %v4337 = vrcp.pop %v4334
    %v4338 = vmul.f32 1.0, %v4337
    %v4339 = vmul.f32 %v4322, %v3727
    %v4340 = vmul.f32 %v4324, %v3728
    %v4341 = vmul.f32 %v4310, %v4325
    %v4342 = vmul.f32 %v4312, %v4326
    %v4343 = vadd.f32 %v4339, %v4341
    %v4344 = vadd.f32 %v4340, %v4342
    %v4345 = vtanh.pop %v4343
    %v4346 = vtanh.pop %v4344
    %v4347 = vmul.f32 %v4336, %v4345
    %v4348 = vmul.f32 %v4338, %v4346
    %v4349 = vld [vmem:[#allocation2 + $0x80] sm:$0xff]
    %v4350 = vld [vmem:[#allocation2 + $0x88] sm:$0xff]
    %v4351 = vld [vmem:[#allocation2 + $0x90] sm:$0xff]
    %v4352 = vld [vmem:[#allocation2 + $0x98] sm:$0xff]
    %v4353 = vld [vmem:[#allocation2 + $0xa0] sm:$0xff]
    %v4354 = vld [vmem:[#allocation2 + $0xa8] sm:$0xff]
    %v4355 = vld [vmem:[#allocation2 + $0xb0] sm:$0xff]
    %v4356 = vld [vmem:[#allocation2 + $0xb8] sm:$0xff]
    %4357 = vmatprep.subr.bf16.mxu0 %v1390
    %4358 = vmatpush1.bf16.msra.mxu0 %v1389
    %4359 = vmatprep.subr.bf16.mxu0 %v1382
    %4360 = vmatpush1.bf16.msra.mxu0 %v1381
    %4361 = vmatprep.subr.bf16.mxu0 %v1374
    %4362 = vmatpush1.bf16.msra.mxu0 %v1373
    %4363 = vmatprep.subr.bf16.mxu0 %v1366
    %4364 = vmatpush1.bf16.msra.mxu0 %v1365
    %4365 = vmatprep.subr.bf16.mxu0 %v1358
    %4366 = vmatpush1.bf16.msra.mxu0 %v1357
    %4367 = vmatprep.subr.bf16.mxu0 %v1350
    %4368 = vmatpush1.bf16.msra.mxu0 %v1349
    %4369 = vmatprep.subr.bf16.mxu0 %v1342
    %4370 = vmatpush1.bf16.msra.mxu0 %v1341
    %4371 = vmatprep.subr.bf16.mxu0 %v1334
    %4372 = vmatpush1.bf16.msra.mxu0 %v1333
    %4373 = vmatprep.subr.bf16.mxu0 %v1454
    %4374 = vmatpush2.bf16.msra.mxu0 %v1453
    %4375 = vmatprep.subr.bf16.mxu0 %v1446
    %4376 = vmatpush2.bf16.msra.mxu0 %v1445
    %4377 = vmatprep.subr.bf16.mxu0 %v1438
    %4378 = vmatpush2.bf16.msra.mxu0 %v1437
    %4379 = vmatprep.subr.bf16.mxu0 %v1430
    %4380 = vmatpush2.bf16.msra.mxu0 %v1429
    %4381 = vmatprep.subr.bf16.mxu0 %v1422
    %4382 = vmatpush2.bf16.msra.mxu0 %v1421
    %4383 = vmatprep.subr.bf16.mxu0 %v1414
    %4384 = vmatpush2.bf16.msra.mxu0 %v1413
    %4385 = vmatprep.subr.bf16.mxu0 %v1406
    %4386 = vmatpush2.bf16.msra.mxu0 %v1405
    %4387 = vmatprep.subr.bf16.mxu0 %v1398
    %4388 = vmatpush2.bf16.msra.mxu0 %v1397
    %4389 = vmatprep.mubr.bf16.mxu0 %v3962
    %4390 = vmatmul.mubr.bf16.gmra.mxu0 %v3961
    %v4391 = vpop.f32.mrf.mxu0
    %v4392 = vadd.f32 0.0, %v4391
    %v4393 = vpop.f32.mrf.mxu0
    %v4394 = vadd.f32 0.0, %v4393
    %v4395 = vpop.f32.mrf.mxu0
    %v4396 = vpop.f32.mrf.mxu0
    %4397 = vdwg.mxu0
    %4398 = vmatprep.subr.bf16.mxu0 %v1392
    %4399 = vmatpush1.bf16.msra.mxu0 %v1391
    %4400 = vmatprep.subr.bf16.mxu0 %v1384
    %4401 = vmatpush1.bf16.msra.mxu0 %v1383
    %4402 = vmatprep.subr.bf16.mxu0 %v1376
    %4403 = vmatpush1.bf16.msra.mxu0 %v1375
    %4404 = vmatprep.subr.bf16.mxu0 %v1368
    %4405 = vmatpush1.bf16.msra.mxu0 %v1367
    %4406 = vmatprep.subr.bf16.mxu0 %v1360
    %4407 = vmatpush1.bf16.msra.mxu0 %v1359
    %4408 = vmatprep.subr.bf16.mxu0 %v1352
    %4409 = vmatpush1.bf16.msra.mxu0 %v1351
    %4410 = vmatprep.subr.bf16.mxu0 %v1344
    %4411 = vmatpush1.bf16.msra.mxu0 %v1343
    %4412 = vmatprep.subr.bf16.mxu0 %v1336
    %4413 = vmatpush1.bf16.msra.mxu0 %v1335
    %4414 = vmatprep.subr.bf16.mxu0 %v1456
    %4415 = vmatpush2.bf16.msra.mxu0 %v1455
    %4416 = vmatprep.subr.bf16.mxu0 %v1448
    %4417 = vmatpush2.bf16.msra.mxu0 %v1447
    %4418 = vmatprep.subr.bf16.mxu0 %v1440
    %4419 = vmatpush2.bf16.msra.mxu0 %v1439
    %4420 = vmatprep.subr.bf16.mxu0 %v1432
    %4421 = vmatpush2.bf16.msra.mxu0 %v1431
    %4422 = vmatprep.subr.bf16.mxu0 %v1424
    %4423 = vmatpush2.bf16.msra.mxu0 %v1423
    %4424 = vmatprep.subr.bf16.mxu0 %v1416
    %4425 = vmatpush2.bf16.msra.mxu0 %v1415
    %4426 = vmatprep.subr.bf16.mxu0 %v1408
    %4427 = vmatpush2.bf16.msra.mxu0 %v1407
    %4428 = vmatprep.subr.bf16.mxu0 %v1400
    %4429 = vmatpush2.bf16.msra.mxu0 %v1399
    %4430 = vmatprep.mubr.bf16.mxu0 %v3962
    %4431 = vmatmul.mubr.bf16.gmra.mxu0 %v3961
    %v4432 = vpop.f32.mrf.mxu0
    %v4433 = vadd.f32 0.0, %v4432
    %v4434 = vpop.f32.mrf.mxu0
    %v4435 = vadd.f32 0.0, %v4434
    %v4436 = vpop.f32.mrf.mxu0
    %v4437 = vpop.f32.mrf.mxu0
    %4438 = vdwg.mxu0
    %4439 = vmatprep.subr.bf16.mxu0 %v1394
    %4440 = vmatpush1.bf16.msra.mxu0 %v1393
    %4441 = vmatprep.subr.bf16.mxu0 %v1386
    %4442 = vmatpush1.bf16.msra.mxu0 %v1385
    %4443 = vmatprep.subr.bf16.mxu0 %v1378
    %4444 = vmatpush1.bf16.msra.mxu0 %v1377
    %4445 = vmatprep.subr.bf16.mxu0 %v1370
    %4446 = vmatpush1.bf16.msra.mxu0 %v1369
    %4447 = vmatprep.subr.bf16.mxu0 %v1362
    %4448 = vmatpush1.bf16.msra.mxu0 %v1361
    %4449 = vmatprep.subr.bf16.mxu0 %v1354
    %4450 = vmatpush1.bf16.msra.mxu0 %v1353
    %4451 = vmatprep.subr.bf16.mxu0 %v1346
    %4452 = vmatpush1.bf16.msra.mxu0 %v1345
    %4453 = vmatprep.subr.bf16.mxu0 %v1338
    %4454 = vmatpush1.bf16.msra.mxu0 %v1337
    %4455 = vmatprep.subr.bf16.mxu0 %v1458
    %4456 = vmatpush2.bf16.msra.mxu0 %v1457
    %4457 = vmatprep.subr.bf16.mxu0 %v1450
    %4458 = vmatpush2.bf16.msra.mxu0 %v1449
    %4459 = vmatprep.subr.bf16.mxu0 %v1442
    %4460 = vmatpush2.bf16.msra.mxu0 %v1441
    %4461 = vmatprep.subr.bf16.mxu0 %v1434
    %4462 = vmatpush2.bf16.msra.mxu0 %v1433
    %4463 = vmatprep.subr.bf16.mxu0 %v1426
    %4464 = vmatpush2.bf16.msra.mxu0 %v1425
    %4465 = vmatprep.subr.bf16.mxu0 %v1418
    %4466 = vmatpush2.bf16.msra.mxu0 %v1417
    %4467 = vmatprep.subr.bf16.mxu0 %v1410
    %4468 = vmatpush2.bf16.msra.mxu0 %v1409
    %4469 = vmatprep.subr.bf16.mxu0 %v1402
    %4470 = vmatpush2.bf16.msra.mxu0 %v1401
    %4471 = vmatprep.mubr.bf16.mxu0 %v3962
    %4472 = vmatmul.mubr.bf16.gmra.mxu0 %v3961
    %v4473 = vpop.f32.mrf.mxu0
    %v4474 = vadd.f32 0.0, %v4473
    %v4475 = vpop.f32.mrf.mxu0
    %v4476 = vadd.f32 0.0, %v4475
    %v4477 = vpop.f32.mrf.mxu0
    %v4478 = vpop.f32.mrf.mxu0
    %4479 = vdwg.mxu0
    %4480 = vmatprep.subr.bf16.mxu0 %v1396
    %4481 = vmatpush1.bf16.msra.mxu0 %v1395
    %4482 = vmatprep.subr.bf16.mxu0 %v1388
    %4483 = vmatpush1.bf16.msra.mxu0 %v1387
    %4484 = vmatprep.subr.bf16.mxu0 %v1380
    %4485 = vmatpush1.bf16.msra.mxu0 %v1379
    %4486 = vmatprep.subr.bf16.mxu0 %v1372
    %4487 = vmatpush1.bf16.msra.mxu0 %v1371
    %4488 = vmatprep.subr.bf16.mxu0 %v1364
    %4489 = vmatpush1.bf16.msra.mxu0 %v1363
    %4490 = vmatprep.subr.bf16.mxu0 %v1356
    %4491 = vmatpush1.bf16.msra.mxu0 %v1355
    %4492 = vmatprep.subr.bf16.mxu0 %v1348
    %4493 = vmatpush1.bf16.msra.mxu0 %v1347
    %4494 = vmatprep.subr.bf16.mxu0 %v1340
    %4495 = vmatpush1.bf16.msra.mxu0 %v1339
    %4496 = vmatprep.subr.bf16.mxu0 %v1460
    %4497 = vmatpush2.bf16.msra.mxu0 %v1459
    %4498 = vmatprep.subr.bf16.mxu0 %v1452
    %4499 = vmatpush2.bf16.msra.mxu0 %v1451
    %4500 = vmatprep.subr.bf16.mxu0 %v1444
    %4501 = vmatpush2.bf16.msra.mxu0 %v1443
    %4502 = vmatprep.subr.bf16.mxu0 %v1436
    %4503 = vmatpush2.bf16.msra.mxu0 %v1435
    %4504 = vmatprep.subr.bf16.mxu0 %v1428
    %4505 = vmatpush2.bf16.msra.mxu0 %v1427
    %4506 = vmatprep.subr.bf16.mxu0 %v1420
    %4507 = vmatpush2.bf16.msra.mxu0 %v1419
    %4508 = vmatprep.subr.bf16.mxu0 %v1412
    %4509 = vmatpush2.bf16.msra.mxu0 %v1411
    %4510 = vmatprep.subr.bf16.mxu0 %v1404
    %4511 = vmatpush2.bf16.msra.mxu0 %v1403
    %4512 = vmatprep.mubr.bf16.mxu0 %v3962
    %4513 = vmatmul.mubr.bf16.gmra.mxu0 %v3961
    %v4514 = vpop.f32.mrf.mxu0
    %v4515 = vadd.f32 0.0, %v4514
    %v4516 = vpop.f32.mrf.mxu0
    %v4517 = vadd.f32 0.0, %v4516
    %v4518 = vpop.f32.mrf.mxu0
    %v4519 = vpop.f32.mrf.mxu0
    %4520 = vdwg.mxu0
    %v4521 = vadd.f32 %v4349, %v4392
    %v4522 = vadd.f32 %v4350, %v4394
    %v4523 = vadd.f32 %v4351, %v4433
    %v4524 = vadd.f32 %v4352, %v4435
    %v4525 = vadd.f32 %v4353, %v4474
    %v4526 = vadd.f32 %v4354, %v4476
    %v4527 = vadd.f32 %v4355, %v4515
    %v4528 = vadd.f32 %v4356, %v4517
    %v4529 = vxor.u32 %v4521, 2147483648
    %v4530 = vxor.u32 %v4522, 2147483648
    %v4531 = vmul.f32 %v4529, 1.442695
    %v4532 = vpow.pop %v4531
    %v4533 = vmul.f32 %v4530, 1.442695
    %v4534 = vpow.pop %v4533
    %v4535 = vadd.f32 %v4532, 1.0
    %v4536 = vadd.f32 %v4534, 1.0
    %v4537 = vrcp.pop %v4535
    %v4538 = vmul.f32 1.0, %v4537
    %v4539 = vrcp.pop %v4536
    %v4540 = vmul.f32 1.0, %v4539
    %v4541 = vxor.u32 %v4523, 2147483648
    %v4542 = vxor.u32 %v4524, 2147483648
    %v4543 = vmul.f32 %v4541, 1.442695
    %v4544 = vpow.pop %v4543
    %v4545 = vmul.f32 %v4542, 1.442695
    %v4546 = vpow.pop %v4545
    %v4547 = vadd.f32 %v4544, 1.0
    %v4548 = vadd.f32 %v4546, 1.0
    %v4549 = vrcp.pop %v4547
    %v4550 = vmul.f32 1.0, %v4549
    %v4551 = vrcp.pop %v4548
    %v4552 = vmul.f32 1.0, %v4551
    %v4553 = vtanh.pop %v4525
    %v4554 = vtanh.pop %v4526
    %v4555 = vxor.u32 %v4527, 2147483648
    %v4556 = vxor.u32 %v4528, 2147483648
    %v4557 = vmul.f32 %v4555, 1.442695
    %v4558 = vpow.pop %v4557
    %v4559 = vmul.f32 %v4556, 1.442695
    %v4560 = vpow.pop %v4559
    %v4561 = vadd.f32 %v4558, 1.0
    %v4562 = vadd.f32 %v4560, 1.0
    %v4563 = vrcp.pop %v4561
    %v4564 = vmul.f32 1.0, %v4563
    %v4565 = vrcp.pop %v4562
    %v4566 = vmul.f32 1.0, %v4565
    %v4567 = vmul.f32 %v4550, %v3955
    %v4568 = vmul.f32 %v4552, %v3956
    %v4569 = vmul.f32 %v4538, %v4553
    %v4570 = vmul.f32 %v4540, %v4554
    %v4571 = vadd.f32 %v4567, %v4569
    %v4572 = vadd.f32 %v4568, %v4570
    %v4573 = vtanh.pop %v4571
    %v4574 = vtanh.pop %v4572
    %v4575 = vmul.f32 %v4564, %v4573
    %v4576 = vmul.f32 %v4566, %v4574
    %v4577 = vpack.c.bf16 %v4575, %v4575
    %v4578 = vpack.c.bf16 %v4576, %v4576
    %v4579 = vpack.c.bf16 %v4347, %v4347
    %v4580 = vpack.c.bf16 %v4348, %v4348
    %4581 = vmatprep.subr.bf16.mxu0 %v2510
    %4582 = vmatpush1.bf16.msra.mxu0 %v2509
    %4583 = vmatprep.subr.bf16.mxu0 %v2502
    %4584 = vmatpush1.bf16.msra.mxu0 %v2501
    %4585 = vmatprep.subr.bf16.mxu0 %v2494
    %4586 = vmatpush1.bf16.msra.mxu0 %v2493
    %4587 = vmatprep.subr.bf16.mxu0 %v2486
    %4588 = vmatpush1.bf16.msra.mxu0 %v2485
    %4589 = vmatprep.subr.bf16.mxu0 %v2478
    %4590 = vmatpush1.bf16.msra.mxu0 %v2477
    %4591 = vmatprep.subr.bf16.mxu0 %v2470
    %4592 = vmatpush1.bf16.msra.mxu0 %v2469
    %4593 = vmatprep.subr.bf16.mxu0 %v2462
    %4594 = vmatpush1.bf16.msra.mxu0 %v2461
    %4595 = vmatprep.subr.bf16.mxu0 %v2454
    %4596 = vmatpush1.bf16.msra.mxu0 %v2453
    %4597 = vmatprep.subr.bf16.mxu0 %v2574
    %4598 = vmatpush2.bf16.msra.mxu0 %v2573
    %4599 = vmatprep.subr.bf16.mxu0 %v2566
    %4600 = vmatpush2.bf16.msra.mxu0 %v2565
    %4601 = vmatprep.subr.bf16.mxu0 %v2558
    %4602 = vmatpush2.bf16.msra.mxu0 %v2557
    %4603 = vmatprep.subr.bf16.mxu0 %v2550
    %4604 = vmatpush2.bf16.msra.mxu0 %v2549
    %4605 = vmatprep.subr.bf16.mxu0 %v2542
    %4606 = vmatpush2.bf16.msra.mxu0 %v2541
    %4607 = vmatprep.subr.bf16.mxu0 %v2534
    %4608 = vmatpush2.bf16.msra.mxu0 %v2533
    %4609 = vmatprep.subr.bf16.mxu0 %v2526
    %4610 = vmatpush2.bf16.msra.mxu0 %v2525
    %4611 = vmatprep.subr.bf16.mxu0 %v2518
    %4612 = vmatpush2.bf16.msra.mxu0 %v2517
    %4613 = vmatprep.mubr.bf16.mxu0 %v4580
    %4614 = vmatmul.mubr.bf16.gmra.mxu0 %v4579
    %v4615 = vpop.f32.mrf.mxu0
    %v4616 = vadd.f32 0.0, %v4615
    %v4617 = vpop.f32.mrf.mxu0
    %v4618 = vadd.f32 0.0, %v4617
    %v4619 = vpop.f32.mrf.mxu0
    %v4620 = vpop.f32.mrf.mxu0
    %4621 = vdwg.mxu0
    %4622 = vmatprep.subr.bf16.mxu0 %v2512
    %4623 = vmatpush1.bf16.msra.mxu0 %v2511
    %4624 = vmatprep.subr.bf16.mxu0 %v2504
    %4625 = vmatpush1.bf16.msra.mxu0 %v2503
    %4626 = vmatprep.subr.bf16.mxu0 %v2496
    %4627 = vmatpush1.bf16.msra.mxu0 %v2495
    %4628 = vmatprep.subr.bf16.mxu0 %v2488
    %4629 = vmatpush1.bf16.msra.mxu0 %v2487
    %4630 = vmatprep.subr.bf16.mxu0 %v2480
    %4631 = vmatpush1.bf16.msra.mxu0 %v2479
    %4632 = vmatprep.subr.bf16.mxu0 %v2472
    %4633 = vmatpush1.bf16.msra.mxu0 %v2471
    %4634 = vmatprep.subr.bf16.mxu0 %v2464
    %4635 = vmatpush1.bf16.msra.mxu0 %v2463
    %4636 = vmatprep.subr.bf16.mxu0 %v2456
    %4637 = vmatpush1.bf16.msra.mxu0 %v2455
    %4638 = vmatprep.subr.bf16.mxu0 %v2576
    %4639 = vmatpush2.bf16.msra.mxu0 %v2575
    %4640 = vmatprep.subr.bf16.mxu0 %v2568
    %4641 = vmatpush2.bf16.msra.mxu0 %v2567
    %4642 = vmatprep.subr.bf16.mxu0 %v2560
    %4643 = vmatpush2.bf16.msra.mxu0 %v2559
    %4644 = vmatprep.subr.bf16.mxu0 %v2552
    %4645 = vmatpush2.bf16.msra.mxu0 %v2551
    %4646 = vmatprep.subr.bf16.mxu0 %v2544
    %4647 = vmatpush2.bf16.msra.mxu0 %v2543
    %4648 = vmatprep.subr.bf16.mxu0 %v2536
    %4649 = vmatpush2.bf16.msra.mxu0 %v2535
    %4650 = vmatprep.subr.bf16.mxu0 %v2528
    %4651 = vmatpush2.bf16.msra.mxu0 %v2527
    %4652 = vmatprep.subr.bf16.mxu0 %v2520
    %4653 = vmatpush2.bf16.msra.mxu0 %v2519
    %4654 = vmatprep.mubr.bf16.mxu0 %v4580
    %4655 = vmatmul.mubr.bf16.gmra.mxu0 %v4579
    %v4656 = vpop.f32.mrf.mxu0
    %v4657 = vadd.f32 0.0, %v4656
    %v4658 = vpop.f32.mrf.mxu0
    %v4659 = vadd.f32 0.0, %v4658
    %v4660 = vpop.f32.mrf.mxu0
    %v4661 = vpop.f32.mrf.mxu0
    %4662 = vdwg.mxu0
    %4663 = vmatprep.subr.bf16.mxu0 %v2514
    %4664 = vmatpush1.bf16.msra.mxu0 %v2513
    %4665 = vmatprep.subr.bf16.mxu0 %v2506
    %4666 = vmatpush1.bf16.msra.mxu0 %v2505
    %4667 = vmatprep.subr.bf16.mxu0 %v2498
    %4668 = vmatpush1.bf16.msra.mxu0 %v2497
    %4669 = vmatprep.subr.bf16.mxu0 %v2490
    %4670 = vmatpush1.bf16.msra.mxu0 %v2489
    %4671 = vmatprep.subr.bf16.mxu0 %v2482
    %4672 = vmatpush1.bf16.msra.mxu0 %v2481
    %4673 = vmatprep.subr.bf16.mxu0 %v2474
    %4674 = vmatpush1.bf16.msra.mxu0 %v2473
    %4675 = vmatprep.subr.bf16.mxu0 %v2466
    %4676 = vmatpush1.bf16.msra.mxu0 %v2465
    %4677 = vmatprep.subr.bf16.mxu0 %v2458
    %4678 = vmatpush1.bf16.msra.mxu0 %v2457
    %4679 = vmatprep.subr.bf16.mxu0 %v2578
    %4680 = vmatpush2.bf16.msra.mxu0 %v2577
    %4681 = vmatprep.subr.bf16.mxu0 %v2570
    %4682 = vmatpush2.bf16.msra.mxu0 %v2569
    %4683 = vmatprep.subr.bf16.mxu0 %v2562
    %4684 = vmatpush2.bf16.msra.mxu0 %v2561
    %4685 = vmatprep.subr.bf16.mxu0 %v2554
    %4686 = vmatpush2.bf16.msra.mxu0 %v2553
    %4687 = vmatprep.subr.bf16.mxu0 %v2546
    %4688 = vmatpush2.bf16.msra.mxu0 %v2545
    %4689 = vmatprep.subr.bf16.mxu0 %v2538
    %4690 = vmatpush2.bf16.msra.mxu0 %v2537
    %4691 = vmatprep.subr.bf16.mxu0 %v2530
    %4692 = vmatpush2.bf16.msra.mxu0 %v2529
    %4693 = vmatprep.subr.bf16.mxu0 %v2522
    %4694 = vmatpush2.bf16.msra.mxu0 %v2521
    %4695 = vmatprep.mubr.bf16.mxu0 %v4580
    %4696 = vmatmul.mubr.bf16.gmra.mxu0 %v4579
    %v4697 = vpop.f32.mrf.mxu0
    %v4698 = vadd.f32 0.0, %v4697
    %v4699 = vpop.f32.mrf.mxu0
    %v4700 = vadd.f32 0.0, %v4699
    %v4701 = vpop.f32.mrf.mxu0
    %v4702 = vpop.f32.mrf.mxu0
    %4703 = vdwg.mxu0
    %4704 = vmatprep.subr.bf16.mxu0 %v2516
    %4705 = vmatpush1.bf16.msra.mxu0 %v2515
    %4706 = vmatprep.subr.bf16.mxu0 %v2508
    %4707 = vmatpush1.bf16.msra.mxu0 %v2507
    %4708 = vmatprep.subr.bf16.mxu0 %v2500
    %4709 = vmatpush1.bf16.msra.mxu0 %v2499
    %4710 = vmatprep.subr.bf16.mxu0 %v2492
    %4711 = vmatpush1.bf16.msra.mxu0 %v2491
    %4712 = vmatprep.subr.bf16.mxu0 %v2484
    %4713 = vmatpush1.bf16.msra.mxu0 %v2483
    %4714 = vmatprep.subr.bf16.mxu0 %v2476
    %4715 = vmatpush1.bf16.msra.mxu0 %v2475
    %4716 = vmatprep.subr.bf16.mxu0 %v2468
    %4717 = vmatpush1.bf16.msra.mxu0 %v2467
    %4718 = vmatprep.subr.bf16.mxu0 %v2460
    %4719 = vmatpush1.bf16.msra.mxu0 %v2459
    %4720 = vmatprep.subr.bf16.mxu0 %v2580
    %4721 = vmatpush2.bf16.msra.mxu0 %v2579
    %4722 = vmatprep.subr.bf16.mxu0 %v2572
    %4723 = vmatpush2.bf16.msra.mxu0 %v2571
    %4724 = vmatprep.subr.bf16.mxu0 %v2564
    %4725 = vmatpush2.bf16.msra.mxu0 %v2563
    %4726 = vmatprep.subr.bf16.mxu0 %v2556
    %4727 = vmatpush2.bf16.msra.mxu0 %v2555
    %4728 = vmatprep.subr.bf16.mxu0 %v2548
    %4729 = vmatpush2.bf16.msra.mxu0 %v2547
    %4730 = vmatprep.subr.bf16.mxu0 %v2540
    %4731 = vmatpush2.bf16.msra.mxu0 %v2539
    %4732 = vmatprep.subr.bf16.mxu0 %v2532
    %4733 = vmatpush2.bf16.msra.mxu0 %v2531
    %4734 = vmatprep.subr.bf16.mxu0 %v2524
    %4735 = vmatpush2.bf16.msra.mxu0 %v2523
    %4736 = vmatprep.mubr.bf16.mxu0 %v4580
    %4737 = vmatmul.mubr.bf16.gmra.mxu0 %v4579
    %v4738 = vpop.f32.mrf.mxu0
    %v4739 = vadd.f32 0.0, %v4738
    %v4740 = vpop.f32.mrf.mxu0
    %v4741 = vadd.f32 0.0, %v4740
    %v4742 = vpop.f32.mrf.mxu0
    %v4743 = vpop.f32.mrf.mxu0
    %4744 = vdwg.mxu0
    %4745 = vmatprep.subr.bf16.mxu0 %v3314
    %4746 = vmatpush1.bf16.msra.mxu0 %v3313
    %4747 = vmatprep.subr.bf16.mxu0 %v3306
    %4748 = vmatpush1.bf16.msra.mxu0 %v3305
    %4749 = vmatprep.subr.bf16.mxu0 %v3298
    %4750 = vmatpush1.bf16.msra.mxu0 %v3297
    %4751 = vmatprep.subr.bf16.mxu0 %v3290
    %4752 = vmatpush1.bf16.msra.mxu0 %v3289
    %4753 = vmatprep.subr.bf16.mxu0 %v3282
    %4754 = vmatpush1.bf16.msra.mxu0 %v3281
    %4755 = vmatprep.subr.bf16.mxu0 %v3274
    %4756 = vmatpush1.bf16.msra.mxu0 %v3273
    %4757 = vmatprep.subr.bf16.mxu0 %v3266
    %4758 = vmatpush1.bf16.msra.mxu0 %v3265
    %4759 = vmatprep.subr.bf16.mxu0 %v3258
    %4760 = vmatpush1.bf16.msra.mxu0 %v3257
    %4761 = vmatprep.subr.bf16.mxu0 %v3378
    %4762 = vmatpush2.bf16.msra.mxu0 %v3377
    %4763 = vmatprep.subr.bf16.mxu0 %v3370
    %4764 = vmatpush2.bf16.msra.mxu0 %v3369
    %4765 = vmatprep.subr.bf16.mxu0 %v3362
    %4766 = vmatpush2.bf16.msra.mxu0 %v3361
    %4767 = vmatprep.subr.bf16.mxu0 %v3354
    %4768 = vmatpush2.bf16.msra.mxu0 %v3353
    %4769 = vmatprep.subr.bf16.mxu0 %v3346
    %4770 = vmatpush2.bf16.msra.mxu0 %v3345
    %4771 = vmatprep.subr.bf16.mxu0 %v3338
    %4772 = vmatpush2.bf16.msra.mxu0 %v3337
    %4773 = vmatprep.subr.bf16.mxu0 %v3330
    %4774 = vmatpush2.bf16.msra.mxu0 %v3329
    %4775 = vmatprep.subr.bf16.mxu0 %v3322
    %4776 = vmatpush2.bf16.msra.mxu0 %v3321
    %4777 = vmatprep.mubr.bf16.mxu0 %v4578
    %4778 = vmatmul.mubr.bf16.gmra.mxu0 %v4577
    %v4779 = vpop.f32.mrf.mxu0
    %v4780 = vadd.f32 %v4616, %v4779
    %v4781 = vpop.f32.mrf.mxu0
    %v4782 = vadd.f32 %v4618, %v4781
    %v4783 = vpop.f32.mrf.mxu0
    %v4784 = vpop.f32.mrf.mxu0
    %4785 = vdwg.mxu0
    %4786 = vmatprep.subr.bf16.mxu0 %v3316
    %4787 = vmatpush1.bf16.msra.mxu0 %v3315
    %4788 = vmatprep.subr.bf16.mxu0 %v3308
    %4789 = vmatpush1.bf16.msra.mxu0 %v3307
    %4790 = vmatprep.subr.bf16.mxu0 %v3300
    %4791 = vmatpush1.bf16.msra.mxu0 %v3299
    %4792 = vmatprep.subr.bf16.mxu0 %v3292
    %4793 = vmatpush1.bf16.msra.mxu0 %v3291
    %4794 = vmatprep.subr.bf16.mxu0 %v3284
    %4795 = vmatpush1.bf16.msra.mxu0 %v3283
    %4796 = vmatprep.subr.bf16.mxu0 %v3276
    %4797 = vmatpush1.bf16.msra.mxu0 %v3275
    %4798 = vmatprep.subr.bf16.mxu0 %v3268
    %4799 = vmatpush1.bf16.msra.mxu0 %v3267
    %4800 = vmatprep.subr.bf16.mxu0 %v3260
    %4801 = vmatpush1.bf16.msra.mxu0 %v3259
    %4802 = vmatprep.subr.bf16.mxu0 %v3380
    %4803 = vmatpush2.bf16.msra.mxu0 %v3379
    %4804 = vmatprep.subr.bf16.mxu0 %v3372
    %4805 = vmatpush2.bf16.msra.mxu0 %v3371
    %4806 = vmatprep.subr.bf16.mxu0 %v3364
    %4807 = vmatpush2.bf16.msra.mxu0 %v3363
    %4808 = vmatprep.subr.bf16.mxu0 %v3356
    %4809 = vmatpush2.bf16.msra.mxu0 %v3355
    %4810 = vmatprep.subr.bf16.mxu0 %v3348
    %4811 = vmatpush2.bf16.msra.mxu0 %v3347
    %4812 = vmatprep.subr.bf16.mxu0 %v3340
    %4813 = vmatpush2.bf16.msra.mxu0 %v3339
    %4814 = vmatprep.subr.bf16.mxu0 %v3332
    %4815 = vmatpush2.bf16.msra.mxu0 %v3331
    %4816 = vmatprep.subr.bf16.mxu0 %v3324
    %4817 = vmatpush2.bf16.msra.mxu0 %v3323
    %4818 = vmatprep.mubr.bf16.mxu0 %v4578
    %4819 = vmatmul.mubr.bf16.gmra.mxu0 %v4577
    %v4820 = vpop.f32.mrf.mxu0
    %v4821 = vadd.f32 %v4657, %v4820
    %v4822 = vpop.f32.mrf.mxu0
    %v4823 = vadd.f32 %v4659, %v4822
    %v4824 = vpop.f32.mrf.mxu0
    %v4825 = vpop.f32.mrf.mxu0
    %4826 = vdwg.mxu0
    %4827 = vmatprep.subr.bf16.mxu0 %v3318
    %4828 = vmatpush1.bf16.msra.mxu0 %v3317
    %4829 = vmatprep.subr.bf16.mxu0 %v3310
    %4830 = vmatpush1.bf16.msra.mxu0 %v3309
    %4831 = vmatprep.subr.bf16.mxu0 %v3302
    %4832 = vmatpush1.bf16.msra.mxu0 %v3301
    %4833 = vmatprep.subr.bf16.mxu0 %v3294
    %4834 = vmatpush1.bf16.msra.mxu0 %v3293
    %4835 = vmatprep.subr.bf16.mxu0 %v3286
    %4836 = vmatpush1.bf16.msra.mxu0 %v3285
    %4837 = vmatprep.subr.bf16.mxu0 %v3278
    %4838 = vmatpush1.bf16.msra.mxu0 %v3277
    %4839 = vmatprep.subr.bf16.mxu0 %v3270
    %4840 = vmatpush1.bf16.msra.mxu0 %v3269
    %4841 = vmatprep.subr.bf16.mxu0 %v3262
    %4842 = vmatpush1.bf16.msra.mxu0 %v3261
    %4843 = vmatprep.subr.bf16.mxu0 %v3382
    %4844 = vmatpush2.bf16.msra.mxu0 %v3381
    %4845 = vmatprep.subr.bf16.mxu0 %v3374
    %4846 = vmatpush2.bf16.msra.mxu0 %v3373
    %4847 = vmatprep.subr.bf16.mxu0 %v3366
    %4848 = vmatpush2.bf16.msra.mxu0 %v3365
    %4849 = vmatprep.subr.bf16.mxu0 %v3358
    %4850 = vmatpush2.bf16.msra.mxu0 %v3357
    %4851 = vmatprep.subr.bf16.mxu0 %v3350
    %4852 = vmatpush2.bf16.msra.mxu0 %v3349
    %4853 = vmatprep.subr.bf16.mxu0 %v3342
    %4854 = vmatpush2.bf16.msra.mxu0 %v3341
    %4855 = vmatprep.subr.bf16.mxu0 %v3334
    %4856 = vmatpush2.bf16.msra.mxu0 %v3333
    %4857 = vmatprep.subr.bf16.mxu0 %v3326
    %4858 = vmatpush2.bf16.msra.mxu0 %v3325
    %4859 = vmatprep.mubr.bf16.mxu0 %v4578
    %4860 = vmatmul.mubr.bf16.gmra.mxu0 %v4577
    %v4861 = vpop.f32.mrf.mxu0
    %v4862 = vadd.f32 %v4698, %v4861
    %v4863 = vpop.f32.mrf.mxu0
    %v4864 = vadd.f32 %v4700, %v4863
    %v4865 = vpop.f32.mrf.mxu0
    %v4866 = vpop.f32.mrf.mxu0
    %4867 = vdwg.mxu0
    %4868 = vmatprep.subr.bf16.mxu0 %v3320
    %4869 = vmatpush1.bf16.msra.mxu0 %v3319
    %4870 = vmatprep.subr.bf16.mxu0 %v3312
    %4871 = vmatpush1.bf16.msra.mxu0 %v3311
    %4872 = vmatprep.subr.bf16.mxu0 %v3304
    %4873 = vmatpush1.bf16.msra.mxu0 %v3303
    %4874 = vmatprep.subr.bf16.mxu0 %v3296
    %4875 = vmatpush1.bf16.msra.mxu0 %v3295
    %4876 = vmatprep.subr.bf16.mxu0 %v3288
    %4877 = vmatpush1.bf16.msra.mxu0 %v3287
    %4878 = vmatprep.subr.bf16.mxu0 %v3280
    %4879 = vmatpush1.bf16.msra.mxu0 %v3279
    %4880 = vmatprep.subr.bf16.mxu0 %v3272
    %4881 = vmatpush1.bf16.msra.mxu0 %v3271
    %4882 = vmatprep.subr.bf16.mxu0 %v3264
    %4883 = vmatpush1.bf16.msra.mxu0 %v3263
    %4884 = vmatprep.subr.bf16.mxu0 %v3384
    %4885 = vmatpush2.bf16.msra.mxu0 %v3383
    %4886 = vmatprep.subr.bf16.mxu0 %v3376
    %4887 = vmatpush2.bf16.msra.mxu0 %v3375
    %4888 = vmatprep.subr.bf16.mxu0 %v3368
    %4889 = vmatpush2.bf16.msra.mxu0 %v3367
    %4890 = vmatprep.subr.bf16.mxu0 %v3360
    %4891 = vmatpush2.bf16.msra.mxu0 %v3359
    %4892 = vmatprep.subr.bf16.mxu0 %v3352
    %4893 = vmatpush2.bf16.msra.mxu0 %v3351
    %4894 = vmatprep.subr.bf16.mxu0 %v3344
    %4895 = vmatpush2.bf16.msra.mxu0 %v3343
    %4896 = vmatprep.subr.bf16.mxu0 %v3336
    %4897 = vmatpush2.bf16.msra.mxu0 %v3335
    %4898 = vmatprep.subr.bf16.mxu0 %v3328
    %4899 = vmatpush2.bf16.msra.mxu0 %v3327
    %4900 = vmatprep.mubr.bf16.mxu0 %v4578
    %4901 = vmatmul.mubr.bf16.gmra.mxu0 %v4577
    %v4902 = vpop.f32.mrf.mxu0
    %v4903 = vadd.f32 %v4739, %v4902
    %v4904 = vpop.f32.mrf.mxu0
    %v4905 = vadd.f32 %v4741, %v4904
    %v4906 = vpop.f32.mrf.mxu0
    %v4907 = vpop.f32.mrf.mxu0
    %4908 = vdwg.mxu0
    %v4909 = vadd.f32 %v4780, %v764
    %v4910 = vadd.f32 %v4782, %v768
    %v4911 = vadd.f32 %v4821, %v772
    %v4912 = vadd.f32 %v4823, %v776
    %v4913 = vadd.f32 %v4862, %v780
    %v4914 = vadd.f32 %v4864, %v784
    %v4915 = vadd.f32 %v4903, %v788
    %v4916 = vadd.f32 %v4905, %v792
    %v4917 = vxor.u32 %v4909, 2147483648
    %v4918 = vxor.u32 %v4910, 2147483648
    %v4919 = vmul.f32 %v4917, 1.442695
    %v4920 = vpow.pop %v4919
    %v4921 = vmul.f32 %v4918, 1.442695
    %v4922 = vpow.pop %v4921
    %v4923 = vadd.f32 %v4920, 1.0
    %v4924 = vadd.f32 %v4922, 1.0
    %v4925 = vrcp.pop %v4923
    %v4926 = vmul.f32 1.0, %v4925
    %v4927 = vrcp.pop %v4924
    %v4928 = vmul.f32 1.0, %v4927
    %v4929 = vxor.u32 %v4911, 2147483648
    %v4930 = vxor.u32 %v4912, 2147483648
    %v4931 = vmul.f32 %v4929, 1.442695
    %v4932 = vpow.pop %v4931
    %v4933 = vmul.f32 %v4930, 1.442695
    %v4934 = vpow.pop %v4933
    %v4935 = vadd.f32 %v4932, 1.0
    %v4936 = vadd.f32 %v4934, 1.0
    %v4937 = vrcp.pop %v4935
    %v4938 = vmul.f32 1.0, %v4937
    %v4939 = vrcp.pop %v4936
    %v4940 = vmul.f32 1.0, %v4939
    %v4941 = vtanh.pop %v4913
    %v4942 = vtanh.pop %v4914
    %v4943 = vxor.u32 %v4915, 2147483648
    %v4944 = vxor.u32 %v4916, 2147483648
    %v4945 = vmul.f32 %v4943, 1.442695
    %v4946 = vpow.pop %v4945
    %v4947 = vmul.f32 %v4944, 1.442695
    %v4948 = vpow.pop %v4947
    %v4949 = vadd.f32 %v4946, 1.0
    %v4950 = vadd.f32 %v4948, 1.0
    %v4951 = vrcp.pop %v4949
    %v4952 = vmul.f32 1.0, %v4951
    %v4953 = vrcp.pop %v4950
    %v4954 = vmul.f32 1.0, %v4953
    %v4955 = vmul.f32 %v4938, %v4343
    %v4956 = vmul.f32 %v4940, %v4344
    %v4957 = vmul.f32 %v4926, %v4941
    %v4958 = vmul.f32 %v4928, %v4942
    %v4959 = vadd.f32 %v4955, %v4957
    %v4960 = vadd.f32 %v4956, %v4958
    %v4961 = vtanh.pop %v4959
    %v4962 = vtanh.pop %v4960
    %v4963 = vmul.f32 %v4952, %v4961
    %v4964 = vmul.f32 %v4954, %v4962
    %v4965 = vld [vmem:[#allocation2 + $0xc0] sm:$0xff]
    %v4966 = vld [vmem:[#allocation2 + $0xc8] sm:$0xff]
    %v4967 = vld [vmem:[#allocation2 + $0xd0] sm:$0xff]
    %v4968 = vld [vmem:[#allocation2 + $0xd8] sm:$0xff]
    %v4969 = vld [vmem:[#allocation2 + $0xe0] sm:$0xff]
    %v4970 = vld [vmem:[#allocation2 + $0xe8] sm:$0xff]
    %v4971 = vld [vmem:[#allocation2 + $0xf0] sm:$0xff]
    %v4972 = vld [vmem:[#allocation2 + $0xf8] sm:$0xff]
    %4973 = vmatprep.subr.bf16.mxu0 %v1390
    %4974 = vmatpush1.bf16.msra.mxu0 %v1389
    %4975 = vmatprep.subr.bf16.mxu0 %v1382
    %4976 = vmatpush1.bf16.msra.mxu0 %v1381
    %4977 = vmatprep.subr.bf16.mxu0 %v1374
    %4978 = vmatpush1.bf16.msra.mxu0 %v1373
    %4979 = vmatprep.subr.bf16.mxu0 %v1366
    %4980 = vmatpush1.bf16.msra.mxu0 %v1365
    %4981 = vmatprep.subr.bf16.mxu0 %v1358
    %4982 = vmatpush1.bf16.msra.mxu0 %v1357
    %4983 = vmatprep.subr.bf16.mxu0 %v1350
    %4984 = vmatpush1.bf16.msra.mxu0 %v1349
    %4985 = vmatprep.subr.bf16.mxu0 %v1342
    %4986 = vmatpush1.bf16.msra.mxu0 %v1341
    %4987 = vmatprep.subr.bf16.mxu0 %v1334
    %4988 = vmatpush1.bf16.msra.mxu0 %v1333
    %4989 = vmatprep.subr.bf16.mxu0 %v1454
    %4990 = vmatpush2.bf16.msra.mxu0 %v1453
    %4991 = vmatprep.subr.bf16.mxu0 %v1446
    %4992 = vmatpush2.bf16.msra.mxu0 %v1445
    %4993 = vmatprep.subr.bf16.mxu0 %v1438
    %4994 = vmatpush2.bf16.msra.mxu0 %v1437
    %4995 = vmatprep.subr.bf16.mxu0 %v1430
    %4996 = vmatpush2.bf16.msra.mxu0 %v1429
    %4997 = vmatprep.subr.bf16.mxu0 %v1422
    %4998 = vmatpush2.bf16.msra.mxu0 %v1421
    %4999 = vmatprep.subr.bf16.mxu0 %v1414
    %5000 = vmatpush2.bf16.msra.mxu0 %v1413
    %5001 = vmatprep.subr.bf16.mxu0 %v1406
    %5002 = vmatpush2.bf16.msra.mxu0 %v1405
    %5003 = vmatprep.subr.bf16.mxu0 %v1398
    %5004 = vmatpush2.bf16.msra.mxu0 %v1397
    %5005 = vmatprep.mubr.bf16.mxu0 %v4578
    %5006 = vmatmul.mubr.bf16.gmra.mxu0 %v4577
    %v5007 = vpop.f32.mrf.mxu0
    %v5008 = vadd.f32 0.0, %v5007
    %v5009 = vpop.f32.mrf.mxu0
    %v5010 = vadd.f32 0.0, %v5009
    %v5011 = vpop.f32.mrf.mxu0
    %v5012 = vpop.f32.mrf.mxu0
    %5013 = vdwg.mxu0
    %5014 = vmatprep.subr.bf16.mxu0 %v1392
    %5015 = vmatpush1.bf16.msra.mxu0 %v1391
    %5016 = vmatprep.subr.bf16.mxu0 %v1384
    %5017 = vmatpush1.bf16.msra.mxu0 %v1383
    %5018 = vmatprep.subr.bf16.mxu0 %v1376
    %5019 = vmatpush1.bf16.msra.mxu0 %v1375
    %5020 = vmatprep.subr.bf16.mxu0 %v1368
    %5021 = vmatpush1.bf16.msra.mxu0 %v1367
    %5022 = vmatprep.subr.bf16.mxu0 %v1360
    %5023 = vmatpush1.bf16.msra.mxu0 %v1359
    %5024 = vmatprep.subr.bf16.mxu0 %v1352
    %5025 = vmatpush1.bf16.msra.mxu0 %v1351
    %5026 = vmatprep.subr.bf16.mxu0 %v1344
    %5027 = vmatpush1.bf16.msra.mxu0 %v1343
    %5028 = vmatprep.subr.bf16.mxu0 %v1336
    %5029 = vmatpush1.bf16.msra.mxu0 %v1335
    %5030 = vmatprep.subr.bf16.mxu0 %v1456
    %5031 = vmatpush2.bf16.msra.mxu0 %v1455
    %5032 = vmatprep.subr.bf16.mxu0 %v1448
    %5033 = vmatpush2.bf16.msra.mxu0 %v1447
    %5034 = vmatprep.subr.bf16.mxu0 %v1440
    %5035 = vmatpush2.bf16.msra.mxu0 %v1439
    %5036 = vmatprep.subr.bf16.mxu0 %v1432
    %5037 = vmatpush2.bf16.msra.mxu0 %v1431
    %5038 = vmatprep.subr.bf16.mxu0 %v1424
    %5039 = vmatpush2.bf16.msra.mxu0 %v1423
    %5040 = vmatprep.subr.bf16.mxu0 %v1416
    %5041 = vmatpush2.bf16.msra.mxu0 %v1415
    %5042 = vmatprep.subr.bf16.mxu0 %v1408
    %5043 = vmatpush2.bf16.msra.mxu0 %v1407
    %5044 = vmatprep.subr.bf16.mxu0 %v1400
    %5045 = vmatpush2.bf16.msra.mxu0 %v1399
    %5046 = vmatprep.mubr.bf16.mxu0 %v4578
    %5047 = vmatmul.mubr.bf16.gmra.mxu0 %v4577
    %v5048 = vpop.f32.mrf.mxu0
    %v5049 = vadd.f32 0.0, %v5048
    %v5050 = vpop.f32.mrf.mxu0
    %v5051 = vadd.f32 0.0, %v5050
    %v5052 = vpop.f32.mrf.mxu0
    %v5053 = vpop.f32.mrf.mxu0
    %5054 = vdwg.mxu0
    %5055 = vmatprep.subr.bf16.mxu0 %v1394
    %5056 = vmatpush1.bf16.msra.mxu0 %v1393
    %5057 = vmatprep.subr.bf16.mxu0 %v1386
    %5058 = vmatpush1.bf16.msra.mxu0 %v1385
    %5059 = vmatprep.subr.bf16.mxu0 %v1378
    %5060 = vmatpush1.bf16.msra.mxu0 %v1377
    %5061 = vmatprep.subr.bf16.mxu0 %v1370
    %5062 = vmatpush1.bf16.msra.mxu0 %v1369
    %5063 = vmatprep.subr.bf16.mxu0 %v1362
    %5064 = vmatpush1.bf16.msra.mxu0 %v1361
    %5065 = vmatprep.subr.bf16.mxu0 %v1354
    %5066 = vmatpush1.bf16.msra.mxu0 %v1353
    %5067 = vmatprep.subr.bf16.mxu0 %v1346
    %5068 = vmatpush1.bf16.msra.mxu0 %v1345
    %5069 = vmatprep.subr.bf16.mxu0 %v1338
    %5070 = vmatpush1.bf16.msra.mxu0 %v1337
    %5071 = vmatprep.subr.bf16.mxu0 %v1458
    %5072 = vmatpush2.bf16.msra.mxu0 %v1457
    %5073 = vmatprep.subr.bf16.mxu0 %v1450
    %5074 = vmatpush2.bf16.msra.mxu0 %v1449
    %5075 = vmatprep.subr.bf16.mxu0 %v1442
    %5076 = vmatpush2.bf16.msra.mxu0 %v1441
    %5077 = vmatprep.subr.bf16.mxu0 %v1434
    %5078 = vmatpush2.bf16.msra.mxu0 %v1433
    %5079 = vmatprep.subr.bf16.mxu0 %v1426
    %5080 = vmatpush2.bf16.msra.mxu0 %v1425
    %5081 = vmatprep.subr.bf16.mxu0 %v1418
    %5082 = vmatpush2.bf16.msra.mxu0 %v1417
    %5083 = vmatprep.subr.bf16.mxu0 %v1410
    %5084 = vmatpush2.bf16.msra.mxu0 %v1409
    %5085 = vmatprep.subr.bf16.mxu0 %v1402
    %5086 = vmatpush2.bf16.msra.mxu0 %v1401
    %5087 = vmatprep.mubr.bf16.mxu0 %v4578
    %5088 = vmatmul.mubr.bf16.gmra.mxu0 %v4577
    %v5089 = vpop.f32.mrf.mxu0
    %v5090 = vadd.f32 0.0, %v5089
    %v5091 = vpop.f32.mrf.mxu0
    %v5092 = vadd.f32 0.0, %v5091
    %v5093 = vpop.f32.mrf.mxu0
    %v5094 = vpop.f32.mrf.mxu0
    %5095 = vdwg.mxu0
    %5096 = vmatprep.subr.bf16.mxu0 %v1396
    %5097 = vmatpush1.bf16.msra.mxu0 %v1395
    %5098 = vmatprep.subr.bf16.mxu0 %v1388
    %5099 = vmatpush1.bf16.msra.mxu0 %v1387
    %5100 = vmatprep.subr.bf16.mxu0 %v1380
    %5101 = vmatpush1.bf16.msra.mxu0 %v1379
    %5102 = vmatprep.subr.bf16.mxu0 %v1372
    %5103 = vmatpush1.bf16.msra.mxu0 %v1371
    %5104 = vmatprep.subr.bf16.mxu0 %v1364
    %5105 = vmatpush1.bf16.msra.mxu0 %v1363
    %5106 = vmatprep.subr.bf16.mxu0 %v1356
    %5107 = vmatpush1.bf16.msra.mxu0 %v1355
    %5108 = vmatprep.subr.bf16.mxu0 %v1348
    %5109 = vmatpush1.bf16.msra.mxu0 %v1347
    %5110 = vmatprep.subr.bf16.mxu0 %v1340
    %5111 = vmatpush1.bf16.msra.mxu0 %v1339
    %5112 = vmatprep.subr.bf16.mxu0 %v1460
    %5113 = vmatpush2.bf16.msra.mxu0 %v1459
    %5114 = vmatprep.subr.bf16.mxu0 %v1452
    %5115 = vmatpush2.bf16.msra.mxu0 %v1451
    %5116 = vmatprep.subr.bf16.mxu0 %v1444
    %5117 = vmatpush2.bf16.msra.mxu0 %v1443
    %5118 = vmatprep.subr.bf16.mxu0 %v1436
    %5119 = vmatpush2.bf16.msra.mxu0 %v1435
    %5120 = vmatprep.subr.bf16.mxu0 %v1428
    %5121 = vmatpush2.bf16.msra.mxu0 %v1427
    %5122 = vmatprep.subr.bf16.mxu0 %v1420
    %5123 = vmatpush2.bf16.msra.mxu0 %v1419
    %5124 = vmatprep.subr.bf16.mxu0 %v1412
    %5125 = vmatpush2.bf16.msra.mxu0 %v1411
    %5126 = vmatprep.subr.bf16.mxu0 %v1404
    %5127 = vmatpush2.bf16.msra.mxu0 %v1403
    %5128 = vmatprep.mubr.bf16.mxu0 %v4578
    %5129 = vmatmul.mubr.bf16.gmra.mxu0 %v4577
    %v5130 = vpop.f32.mrf.mxu0
    %v5131 = vadd.f32 0.0, %v5130
    %v5132 = vpop.f32.mrf.mxu0
    %v5133 = vadd.f32 0.0, %v5132
    %v5134 = vpop.f32.mrf.mxu0
    %v5135 = vpop.f32.mrf.mxu0
    %5136 = vdwg.mxu0
    %v5137 = vadd.f32 %v4965, %v5008
    %v5138 = vadd.f32 %v4966, %v5010
    %v5139 = vadd.f32 %v4967, %v5049
    %v5140 = vadd.f32 %v4968, %v5051
    %v5141 = vadd.f32 %v4969, %v5090
    %v5142 = vadd.f32 %v4970, %v5092
    %v5143 = vadd.f32 %v4971, %v5131
    %v5144 = vadd.f32 %v4972, %v5133
    %v5145 = vxor.u32 %v5137, 2147483648
    %v5146 = vxor.u32 %v5138, 2147483648
    %v5147 = vmul.f32 %v5145, 1.442695
    %v5148 = vpow.pop %v5147
    %v5149 = vmul.f32 %v5146, 1.442695
    %v5150 = vpow.pop %v5149
    %v5151 = vadd.f32 %v5148, 1.0
    %v5152 = vadd.f32 %v5150, 1.0
    %v5153 = vrcp.pop %v5151
    %v5154 = vmul.f32 1.0, %v5153
    %v5155 = vrcp.pop %v5152
    %v5156 = vmul.f32 1.0, %v5155
    %v5157 = vxor.u32 %v5139, 2147483648
    %v5158 = vxor.u32 %v5140, 2147483648
    %v5159 = vmul.f32 %v5157, 1.442695
    %v5160 = vpow.pop %v5159
    %v5161 = vmul.f32 %v5158, 1.442695
    %v5162 = vpow.pop %v5161
    %v5163 = vadd.f32 %v5160, 1.0
    %v5164 = vadd.f32 %v5162, 1.0
    %v5165 = vrcp.pop %v5163
    %v5166 = vmul.f32 1.0, %v5165
    %v5167 = vrcp.pop %v5164
    %v5168 = vmul.f32 1.0, %v5167
    %v5169 = vtanh.pop %v5141
    %v5170 = vtanh.pop %v5142
    %v5171 = vxor.u32 %v5143, 2147483648
    %v5172 = vxor.u32 %v5144, 2147483648
    %v5173 = vmul.f32 %v5171, 1.442695
    %v5174 = vpow.pop %v5173
    %v5175 = vmul.f32 %v5172, 1.442695
    %v5176 = vpow.pop %v5175
    %v5177 = vadd.f32 %v5174, 1.0
    %v5178 = vadd.f32 %v5176, 1.0
    %v5179 = vrcp.pop %v5177
    %v5180 = vmul.f32 1.0, %v5179
    %v5181 = vrcp.pop %v5178
    %v5182 = vmul.f32 1.0, %v5181
    %v5183 = vmul.f32 %v5166, %v4571
    %v5184 = vmul.f32 %v5168, %v4572
    %v5185 = vmul.f32 %v5154, %v5169
    %v5186 = vmul.f32 %v5156, %v5170
    %v5187 = vadd.f32 %v5183, %v5185
    %v5188 = vadd.f32 %v5184, %v5186
    %v5189 = vtanh.pop %v5187
    %v5190 = vtanh.pop %v5188
    %v5191 = vmul.f32 %v5180, %v5189
    %v5192 = vmul.f32 %v5182, %v5190
    %v5193 = vpack.c.bf16 %v5191, %v5191
    %v5194 = vpack.c.bf16 %v5192, %v5192
    %v5195 = vpack.c.bf16 %v4963, %v4963
    %v5196 = vpack.c.bf16 %v4964, %v4964
    %5197 = vmatprep.subr.bf16.mxu0 %v2510
    %5198 = vmatpush1.bf16.msra.mxu0 %v2509
    %5199 = vmatprep.subr.bf16.mxu0 %v2502
    %5200 = vmatpush1.bf16.msra.mxu0 %v2501
    %5201 = vmatprep.subr.bf16.mxu0 %v2494
    %5202 = vmatpush1.bf16.msra.mxu0 %v2493
    %5203 = vmatprep.subr.bf16.mxu0 %v2486
    %5204 = vmatpush1.bf16.msra.mxu0 %v2485
    %5205 = vmatprep.subr.bf16.mxu0 %v2478
    %5206 = vmatpush1.bf16.msra.mxu0 %v2477
    %5207 = vmatprep.subr.bf16.mxu0 %v2470
    %5208 = vmatpush1.bf16.msra.mxu0 %v2469
    %5209 = vmatprep.subr.bf16.mxu0 %v2462
    %5210 = vmatpush1.bf16.msra.mxu0 %v2461
    %5211 = vmatprep.subr.bf16.mxu0 %v2454
    %5212 = vmatpush1.bf16.msra.mxu0 %v2453
    %5213 = vmatprep.subr.bf16.mxu0 %v2574
    %5214 = vmatpush2.bf16.msra.mxu0 %v2573
    %5215 = vmatprep.subr.bf16.mxu0 %v2566
    %5216 = vmatpush2.bf16.msra.mxu0 %v2565
    %5217 = vmatprep.subr.bf16.mxu0 %v2558
    %5218 = vmatpush2.bf16.msra.mxu0 %v2557
    %5219 = vmatprep.subr.bf16.mxu0 %v2550
    %5220 = vmatpush2.bf16.msra.mxu0 %v2549
    %5221 = vmatprep.subr.bf16.mxu0 %v2542
    %5222 = vmatpush2.bf16.msra.mxu0 %v2541
    %5223 = vmatprep.subr.bf16.mxu0 %v2534
    %5224 = vmatpush2.bf16.msra.mxu0 %v2533
    %5225 = vmatprep.subr.bf16.mxu0 %v2526
    %5226 = vmatpush2.bf16.msra.mxu0 %v2525
    %5227 = vmatprep.subr.bf16.mxu0 %v2518
    %5228 = vmatpush2.bf16.msra.mxu0 %v2517
    %5229 = vmatprep.mubr.bf16.mxu0 %v5196
    %5230 = vmatmul.mubr.bf16.gmra.mxu0 %v5195
    %v5231 = vpop.f32.mrf.mxu0
    %v5232 = vadd.f32 0.0, %v5231
    %v5233 = vpop.f32.mrf.mxu0
    %v5234 = vadd.f32 0.0, %v5233
    %v5235 = vpop.f32.mrf.mxu0
    %v5236 = vpop.f32.mrf.mxu0
    %5237 = vdwg.mxu0
    %5238 = vmatprep.subr.bf16.mxu0 %v2512
    %5239 = vmatpush1.bf16.msra.mxu0 %v2511
    %5240 = vmatprep.subr.bf16.mxu0 %v2504
    %5241 = vmatpush1.bf16.msra.mxu0 %v2503
    %5242 = vmatprep.subr.bf16.mxu0 %v2496
    %5243 = vmatpush1.bf16.msra.mxu0 %v2495
    %5244 = vmatprep.subr.bf16.mxu0 %v2488
    %5245 = vmatpush1.bf16.msra.mxu0 %v2487
    %5246 = vmatprep.subr.bf16.mxu0 %v2480
    %5247 = vmatpush1.bf16.msra.mxu0 %v2479
    %5248 = vmatprep.subr.bf16.mxu0 %v2472
    %5249 = vmatpush1.bf16.msra.mxu0 %v2471
    %5250 = vmatprep.subr.bf16.mxu0 %v2464
    %5251 = vmatpush1.bf16.msra.mxu0 %v2463
    %5252 = vmatprep.subr.bf16.mxu0 %v2456
    %5253 = vmatpush1.bf16.msra.mxu0 %v2455
    %5254 = vmatprep.subr.bf16.mxu0 %v2576
    %5255 = vmatpush2.bf16.msra.mxu0 %v2575
    %5256 = vmatprep.subr.bf16.mxu0 %v2568
    %5257 = vmatpush2.bf16.msra.mxu0 %v2567
    %5258 = vmatprep.subr.bf16.mxu0 %v2560
    %5259 = vmatpush2.bf16.msra.mxu0 %v2559
    %5260 = vmatprep.subr.bf16.mxu0 %v2552
    %5261 = vmatpush2.bf16.msra.mxu0 %v2551
    %5262 = vmatprep.subr.bf16.mxu0 %v2544
    %5263 = vmatpush2.bf16.msra.mxu0 %v2543
    %5264 = vmatprep.subr.bf16.mxu0 %v2536
    %5265 = vmatpush2.bf16.msra.mxu0 %v2535
    %5266 = vmatprep.subr.bf16.mxu0 %v2528
    %5267 = vmatpush2.bf16.msra.mxu0 %v2527
    %5268 = vmatprep.subr.bf16.mxu0 %v2520
    %5269 = vmatpush2.bf16.msra.mxu0 %v2519
    %5270 = vmatprep.mubr.bf16.mxu0 %v5196
    %5271 = vmatmul.mubr.bf16.gmra.mxu0 %v5195
    %v5272 = vpop.f32.mrf.mxu0
    %v5273 = vadd.f32 0.0, %v5272
    %v5274 = vpop.f32.mrf.mxu0
    %v5275 = vadd.f32 0.0, %v5274
    %v5276 = vpop.f32.mrf.mxu0
    %v5277 = vpop.f32.mrf.mxu0
    %5278 = vdwg.mxu0
    %5279 = vmatprep.subr.bf16.mxu0 %v2514
    %5280 = vmatpush1.bf16.msra.mxu0 %v2513
    %5281 = vmatprep.subr.bf16.mxu0 %v2506
    %5282 = vmatpush1.bf16.msra.mxu0 %v2505
    %5283 = vmatprep.subr.bf16.mxu0 %v2498
    %5284 = vmatpush1.bf16.msra.mxu0 %v2497
    %5285 = vmatprep.subr.bf16.mxu0 %v2490
    %5286 = vmatpush1.bf16.msra.mxu0 %v2489
    %5287 = vmatprep.subr.bf16.mxu0 %v2482
    %5288 = vmatpush1.bf16.msra.mxu0 %v2481
    %5289 = vmatprep.subr.bf16.mxu0 %v2474
    %5290 = vmatpush1.bf16.msra.mxu0 %v2473
    %5291 = vmatprep.subr.bf16.mxu0 %v2466
    %5292 = vmatpush1.bf16.msra.mxu0 %v2465
    %5293 = vmatprep.subr.bf16.mxu0 %v2458
    %5294 = vmatpush1.bf16.msra.mxu0 %v2457
    %5295 = vmatprep.subr.bf16.mxu0 %v2578
    %5296 = vmatpush2.bf16.msra.mxu0 %v2577
    %5297 = vmatprep.subr.bf16.mxu0 %v2570
    %5298 = vmatpush2.bf16.msra.mxu0 %v2569
    %5299 = vmatprep.subr.bf16.mxu0 %v2562
    %5300 = vmatpush2.bf16.msra.mxu0 %v2561
    %5301 = vmatprep.subr.bf16.mxu0 %v2554
    %5302 = vmatpush2.bf16.msra.mxu0 %v2553
    %5303 = vmatprep.subr.bf16.mxu0 %v2546
    %5304 = vmatpush2.bf16.msra.mxu0 %v2545
    %5305 = vmatprep.subr.bf16.mxu0 %v2538
    %5306 = vmatpush2.bf16.msra.mxu0 %v2537
    %5307 = vmatprep.subr.bf16.mxu0 %v2530
    %5308 = vmatpush2.bf16.msra.mxu0 %v2529
    %5309 = vmatprep.subr.bf16.mxu0 %v2522
    %5310 = vmatpush2.bf16.msra.mxu0 %v2521
    %5311 = vmatprep.mubr.bf16.mxu0 %v5196
    %5312 = vmatmul.mubr.bf16.gmra.mxu0 %v5195
    %v5313 = vpop.f32.mrf.mxu0
    %v5314 = vadd.f32 0.0, %v5313
    %v5315 = vpop.f32.mrf.mxu0
    %v5316 = vadd.f32 0.0, %v5315
    %v5317 = vpop.f32.mrf.mxu0
    %v5318 = vpop.f32.mrf.mxu0
    %5319 = vdwg.mxu0
    %5320 = vmatprep.subr.bf16.mxu0 %v2516
    %5321 = vmatpush1.bf16.msra.mxu0 %v2515
    %5322 = vmatprep.subr.bf16.mxu0 %v2508
    %5323 = vmatpush1.bf16.msra.mxu0 %v2507
    %5324 = vmatprep.subr.bf16.mxu0 %v2500
    %5325 = vmatpush1.bf16.msra.mxu0 %v2499
    %5326 = vmatprep.subr.bf16.mxu0 %v2492
    %5327 = vmatpush1.bf16.msra.mxu0 %v2491
    %5328 = vmatprep.subr.bf16.mxu0 %v2484
    %5329 = vmatpush1.bf16.msra.mxu0 %v2483
    %5330 = vmatprep.subr.bf16.mxu0 %v2476
    %5331 = vmatpush1.bf16.msra.mxu0 %v2475
    %5332 = vmatprep.subr.bf16.mxu0 %v2468
    %5333 = vmatpush1.bf16.msra.mxu0 %v2467
    %5334 = vmatprep.subr.bf16.mxu0 %v2460
    %5335 = vmatpush1.bf16.msra.mxu0 %v2459
    %5336 = vmatprep.subr.bf16.mxu0 %v2580
    %5337 = vmatpush2.bf16.msra.mxu0 %v2579
    %5338 = vmatprep.subr.bf16.mxu0 %v2572
    %5339 = vmatpush2.bf16.msra.mxu0 %v2571
    %5340 = vmatprep.subr.bf16.mxu0 %v2564
    %5341 = vmatpush2.bf16.msra.mxu0 %v2563
    %5342 = vmatprep.subr.bf16.mxu0 %v2556
    %5343 = vmatpush2.bf16.msra.mxu0 %v2555
    %5344 = vmatprep.subr.bf16.mxu0 %v2548
    %5345 = vmatpush2.bf16.msra.mxu0 %v2547
    %5346 = vmatprep.subr.bf16.mxu0 %v2540
    %5347 = vmatpush2.bf16.msra.mxu0 %v2539
    %5348 = vmatprep.subr.bf16.mxu0 %v2532
    %5349 = vmatpush2.bf16.msra.mxu0 %v2531
    %5350 = vmatprep.subr.bf16.mxu0 %v2524
    %5351 = vmatpush2.bf16.msra.mxu0 %v2523
    %5352 = vmatprep.mubr.bf16.mxu0 %v5196
    %5353 = vmatmul.mubr.bf16.gmra.mxu0 %v5195
    %v5354 = vpop.f32.mrf.mxu0
    %v5355 = vadd.f32 0.0, %v5354
    %v5356 = vpop.f32.mrf.mxu0
    %v5357 = vadd.f32 0.0, %v5356
    %v5358 = vpop.f32.mrf.mxu0
    %v5359 = vpop.f32.mrf.mxu0
    %5360 = vdwg.mxu0
    %5361 = vmatprep.subr.bf16.mxu0 %v3314
    %5362 = vmatpush1.bf16.msra.mxu0 %v3313
    %5363 = vmatprep.subr.bf16.mxu0 %v3306
    %5364 = vmatpush1.bf16.msra.mxu0 %v3305
    %5365 = vmatprep.subr.bf16.mxu0 %v3298
    %5366 = vmatpush1.bf16.msra.mxu0 %v3297
    %5367 = vmatprep.subr.bf16.mxu0 %v3290
    %5368 = vmatpush1.bf16.msra.mxu0 %v3289
    %5369 = vmatprep.subr.bf16.mxu0 %v3282
    %5370 = vmatpush1.bf16.msra.mxu0 %v3281
    %5371 = vmatprep.subr.bf16.mxu0 %v3274
    %5372 = vmatpush1.bf16.msra.mxu0 %v3273
    %5373 = vmatprep.subr.bf16.mxu0 %v3266
    %5374 = vmatpush1.bf16.msra.mxu0 %v3265
    %5375 = vmatprep.subr.bf16.mxu0 %v3258
    %5376 = vmatpush1.bf16.msra.mxu0 %v3257
    %5377 = vmatprep.subr.bf16.mxu0 %v3378
    %5378 = vmatpush2.bf16.msra.mxu0 %v3377
    %5379 = vmatprep.subr.bf16.mxu0 %v3370
    %5380 = vmatpush2.bf16.msra.mxu0 %v3369
    %5381 = vmatprep.subr.bf16.mxu0 %v3362
    %5382 = vmatpush2.bf16.msra.mxu0 %v3361
    %5383 = vmatprep.subr.bf16.mxu0 %v3354
    %5384 = vmatpush2.bf16.msra.mxu0 %v3353
    %5385 = vmatprep.subr.bf16.mxu0 %v3346
    %5386 = vmatpush2.bf16.msra.mxu0 %v3345
    %5387 = vmatprep.subr.bf16.mxu0 %v3338
    %5388 = vmatpush2.bf16.msra.mxu0 %v3337
    %5389 = vmatprep.subr.bf16.mxu0 %v3330
    %5390 = vmatpush2.bf16.msra.mxu0 %v3329
    %5391 = vmatprep.subr.bf16.mxu0 %v3322
    %5392 = vmatpush2.bf16.msra.mxu0 %v3321
    %5393 = vmatprep.mubr.bf16.mxu0 %v5194
    %5394 = vmatmul.mubr.bf16.gmra.mxu0 %v5193
    %v5395 = vpop.f32.mrf.mxu0
    %v5396 = vadd.f32 %v5232, %v5395
    %v5397 = vpop.f32.mrf.mxu0
    %v5398 = vadd.f32 %v5234, %v5397
    %v5399 = vpop.f32.mrf.mxu0
    %v5400 = vpop.f32.mrf.mxu0
    %5401 = vdwg.mxu0
    %5402 = vmatprep.subr.bf16.mxu0 %v3316
    %5403 = vmatpush1.bf16.msra.mxu0 %v3315
    %5404 = vmatprep.subr.bf16.mxu0 %v3308
    %5405 = vmatpush1.bf16.msra.mxu0 %v3307
    %5406 = vmatprep.subr.bf16.mxu0 %v3300
    %5407 = vmatpush1.bf16.msra.mxu0 %v3299
    %5408 = vmatprep.subr.bf16.mxu0 %v3292
    %5409 = vmatpush1.bf16.msra.mxu0 %v3291
    %5410 = vmatprep.subr.bf16.mxu0 %v3284
    %5411 = vmatpush1.bf16.msra.mxu0 %v3283
    %5412 = vmatprep.subr.bf16.mxu0 %v3276
    %5413 = vmatpush1.bf16.msra.mxu0 %v3275
    %5414 = vmatprep.subr.bf16.mxu0 %v3268
    %5415 = vmatpush1.bf16.msra.mxu0 %v3267
    %5416 = vmatprep.subr.bf16.mxu0 %v3260
    %5417 = vmatpush1.bf16.msra.mxu0 %v3259
    %5418 = vmatprep.subr.bf16.mxu0 %v3380
    %5419 = vmatpush2.bf16.msra.mxu0 %v3379
    %5420 = vmatprep.subr.bf16.mxu0 %v3372
    %5421 = vmatpush2.bf16.msra.mxu0 %v3371
    %5422 = vmatprep.subr.bf16.mxu0 %v3364
    %5423 = vmatpush2.bf16.msra.mxu0 %v3363
    %5424 = vmatprep.subr.bf16.mxu0 %v3356
    %5425 = vmatpush2.bf16.msra.mxu0 %v3355
    %5426 = vmatprep.subr.bf16.mxu0 %v3348
    %5427 = vmatpush2.bf16.msra.mxu0 %v3347
    %5428 = vmatprep.subr.bf16.mxu0 %v3340
    %5429 = vmatpush2.bf16.msra.mxu0 %v3339
    %5430 = vmatprep.subr.bf16.mxu0 %v3332
    %5431 = vmatpush2.bf16.msra.mxu0 %v3331
    %5432 = vmatprep.subr.bf16.mxu0 %v3324
    %5433 = vmatpush2.bf16.msra.mxu0 %v3323
    %5434 = vmatprep.mubr.bf16.mxu0 %v5194
    %5435 = vmatmul.mubr.bf16.gmra.mxu0 %v5193
    %v5436 = vpop.f32.mrf.mxu0
    %v5437 = vadd.f32 %v5273, %v5436
    %v5438 = vpop.f32.mrf.mxu0
    %v5439 = vadd.f32 %v5275, %v5438
    %v5440 = vpop.f32.mrf.mxu0
    %v5441 = vpop.f32.mrf.mxu0
    %5442 = vdwg.mxu0
    %5443 = vmatprep.subr.bf16.mxu0 %v3318
    %5444 = vmatpush1.bf16.msra.mxu0 %v3317
    %5445 = vmatprep.subr.bf16.mxu0 %v3310
    %5446 = vmatpush1.bf16.msra.mxu0 %v3309
    %5447 = vmatprep.subr.bf16.mxu0 %v3302
    %5448 = vmatpush1.bf16.msra.mxu0 %v3301
    %5449 = vmatprep.subr.bf16.mxu0 %v3294
    %5450 = vmatpush1.bf16.msra.mxu0 %v3293
    %5451 = vmatprep.subr.bf16.mxu0 %v3286
    %5452 = vmatpush1.bf16.msra.mxu0 %v3285
    %5453 = vmatprep.subr.bf16.mxu0 %v3278
    %5454 = vmatpush1.bf16.msra.mxu0 %v3277
    %5455 = vmatprep.subr.bf16.mxu0 %v3270
    %5456 = vmatpush1.bf16.msra.mxu0 %v3269
    %5457 = vmatprep.subr.bf16.mxu0 %v3262
    %5458 = vmatpush1.bf16.msra.mxu0 %v3261
    %5459 = vmatprep.subr.bf16.mxu0 %v3382
    %5460 = vmatpush2.bf16.msra.mxu0 %v3381
    %5461 = vmatprep.subr.bf16.mxu0 %v3374
    %5462 = vmatpush2.bf16.msra.mxu0 %v3373
    %5463 = vmatprep.subr.bf16.mxu0 %v3366
    %5464 = vmatpush2.bf16.msra.mxu0 %v3365
    %5465 = vmatprep.subr.bf16.mxu0 %v3358
    %5466 = vmatpush2.bf16.msra.mxu0 %v3357
    %5467 = vmatprep.subr.bf16.mxu0 %v3350
    %5468 = vmatpush2.bf16.msra.mxu0 %v3349
    %5469 = vmatprep.subr.bf16.mxu0 %v3342
    %5470 = vmatpush2.bf16.msra.mxu0 %v3341
    %5471 = vmatprep.subr.bf16.mxu0 %v3334
    %5472 = vmatpush2.bf16.msra.mxu0 %v3333
    %5473 = vmatprep.subr.bf16.mxu0 %v3326
    %5474 = vmatpush2.bf16.msra.mxu0 %v3325
    %5475 = vmatprep.mubr.bf16.mxu0 %v5194
    %5476 = vmatmul.mubr.bf16.gmra.mxu0 %v5193
    %v5477 = vpop.f32.mrf.mxu0
    %v5478 = vadd.f32 %v5314, %v5477
    %v5479 = vpop.f32.mrf.mxu0
    %v5480 = vadd.f32 %v5316, %v5479
    %v5481 = vpop.f32.mrf.mxu0
    %v5482 = vpop.f32.mrf.mxu0
    %5483 = vdwg.mxu0
    %5484 = vmatprep.subr.bf16.mxu0 %v3320
    %5485 = vmatpush1.bf16.msra.mxu0 %v3319
    %5486 = vmatprep.subr.bf16.mxu0 %v3312
    %5487 = vmatpush1.bf16.msra.mxu0 %v3311
    %5488 = vmatprep.subr.bf16.mxu0 %v3304
    %5489 = vmatpush1.bf16.msra.mxu0 %v3303
    %5490 = vmatprep.subr.bf16.mxu0 %v3296
    %5491 = vmatpush1.bf16.msra.mxu0 %v3295
    %5492 = vmatprep.subr.bf16.mxu0 %v3288
    %5493 = vmatpush1.bf16.msra.mxu0 %v3287
    %5494 = vmatprep.subr.bf16.mxu0 %v3280
    %5495 = vmatpush1.bf16.msra.mxu0 %v3279
    %5496 = vmatprep.subr.bf16.mxu0 %v3272
    %5497 = vmatpush1.bf16.msra.mxu0 %v3271
    %5498 = vmatprep.subr.bf16.mxu0 %v3264
    %5499 = vmatpush1.bf16.msra.mxu0 %v3263
    %5500 = vmatprep.subr.bf16.mxu0 %v3384
    %5501 = vmatpush2.bf16.msra.mxu0 %v3383
    %5502 = vmatprep.subr.bf16.mxu0 %v3376
    %5503 = vmatpush2.bf16.msra.mxu0 %v3375
    %5504 = vmatprep.subr.bf16.mxu0 %v3368
    %5505 = vmatpush2.bf16.msra.mxu0 %v3367
    %5506 = vmatprep.subr.bf16.mxu0 %v3360
    %5507 = vmatpush2.bf16.msra.mxu0 %v3359
    %5508 = vmatprep.subr.bf16.mxu0 %v3352
    %5509 = vmatpush2.bf16.msra.mxu0 %v3351
    %5510 = vmatprep.subr.bf16.mxu0 %v3344
    %5511 = vmatpush2.bf16.msra.mxu0 %v3343
    %5512 = vmatprep.subr.bf16.mxu0 %v3336
    %5513 = vmatpush2.bf16.msra.mxu0 %v3335
    %5514 = vmatprep.subr.bf16.mxu0 %v3328
    %5515 = vmatpush2.bf16.msra.mxu0 %v3327
    %5516 = vmatprep.mubr.bf16.mxu0 %v5194
    %5517 = vmatmul.mubr.bf16.gmra.mxu0 %v5193
    %v5518 = vpop.f32.mrf.mxu0
    %v5519 = vadd.f32 %v5355, %v5518
    %v5520 = vpop.f32.mrf.mxu0
    %v5521 = vadd.f32 %v5357, %v5520
    %v5522 = vpop.f32.mrf.mxu0
    %v5523 = vpop.f32.mrf.mxu0
    %5524 = vdwg.mxu0
    %v5525 = vadd.f32 %v5396, %v764
    %v5526 = vadd.f32 %v5398, %v768
    %v5527 = vadd.f32 %v5437, %v772
    %v5528 = vadd.f32 %v5439, %v776
    %v5529 = vadd.f32 %v5478, %v780
    %v5530 = vadd.f32 %v5480, %v784
    %v5531 = vadd.f32 %v5519, %v788
    %v5532 = vadd.f32 %v5521, %v792
    %v5533 = vxor.u32 %v5525, 2147483648
    %v5534 = vxor.u32 %v5526, 2147483648
    %v5535 = vmul.f32 %v5533, 1.442695
    %v5536 = vpow.pop %v5535
    %v5537 = vmul.f32 %v5534, 1.442695
    %v5538 = vpow.pop %v5537
    %v5539 = vadd.f32 %v5536, 1.0
    %v5540 = vadd.f32 %v5538, 1.0
    %v5541 = vrcp.pop %v5539
    %v5542 = vmul.f32 1.0, %v5541
    %v5543 = vrcp.pop %v5540
    %v5544 = vmul.f32 1.0, %v5543
    %v5545 = vxor.u32 %v5527, 2147483648
    %v5546 = vxor.u32 %v5528, 2147483648
    %v5547 = vmul.f32 %v5545, 1.442695
    %v5548 = vpow.pop %v5547
    %v5549 = vmul.f32 %v5546, 1.442695
    %v5550 = vpow.pop %v5549
    %v5551 = vadd.f32 %v5548, 1.0
    %v5552 = vadd.f32 %v5550, 1.0
    %v5553 = vrcp.pop %v5551
    %v5554 = vmul.f32 1.0, %v5553
    %v5555 = vrcp.pop %v5552
    %v5556 = vmul.f32 1.0, %v5555
    %v5557 = vtanh.pop %v5529
    %v5558 = vtanh.pop %v5530
    %v5559 = vxor.u32 %v5531, 2147483648
    %v5560 = vxor.u32 %v5532, 2147483648
    %v5561 = vmul.f32 %v5559, 1.442695
    %v5562 = vpow.pop %v5561
    %v5563 = vmul.f32 %v5560, 1.442695
    %v5564 = vpow.pop %v5563
    %v5565 = vadd.f32 %v5562, 1.0
    %v5566 = vadd.f32 %v5564, 1.0
    %v5567 = vrcp.pop %v5565
    %v5568 = vmul.f32 1.0, %v5567
    %v5569 = vrcp.pop %v5566
    %v5570 = vmul.f32 1.0, %v5569
    %v5571 = vmul.f32 %v5554, %v4959
    %v5572 = vmul.f32 %v5556, %v4960
    %v5573 = vmul.f32 %v5542, %v5557
    %v5574 = vmul.f32 %v5544, %v5558
    %v5575 = vadd.f32 %v5571, %v5573
    %v5576 = vadd.f32 %v5572, %v5574
    %v5577 = vtanh.pop %v5575
    %v5578 = vtanh.pop %v5576
    %v5579 = vmul.f32 %v5568, %v5577
    %v5580 = vmul.f32 %v5570, %v5578
    %v5581 = vld [vmem:[#allocation2 + $0x100] sm:$0xff]
    %v5582 = vld [vmem:[#allocation2 + $0x108] sm:$0xff]
    %v5583 = vld [vmem:[#allocation2 + $0x110] sm:$0xff]
    %v5584 = vld [vmem:[#allocation2 + $0x118] sm:$0xff]
    %v5585 = vld [vmem:[#allocation2 + $0x120] sm:$0xff]
    %v5586 = vld [vmem:[#allocation2 + $0x128] sm:$0xff]
    %v5587 = vld [vmem:[#allocation2 + $0x130] sm:$0xff]
    %v5588 = vld [vmem:[#allocation2 + $0x138] sm:$0xff]
    %5589 = vmatprep.subr.bf16.mxu0 %v1390
    %5590 = vmatpush1.bf16.msra.mxu0 %v1389
    %5591 = vmatprep.subr.bf16.mxu0 %v1382
    %5592 = vmatpush1.bf16.msra.mxu0 %v1381
    %5593 = vmatprep.subr.bf16.mxu0 %v1374
    %5594 = vmatpush1.bf16.msra.mxu0 %v1373
    %5595 = vmatprep.subr.bf16.mxu0 %v1366
    %5596 = vmatpush1.bf16.msra.mxu0 %v1365
    %5597 = vmatprep.subr.bf16.mxu0 %v1358
    %5598 = vmatpush1.bf16.msra.mxu0 %v1357
    %5599 = vmatprep.subr.bf16.mxu0 %v1350
    %5600 = vmatpush1.bf16.msra.mxu0 %v1349
    %5601 = vmatprep.subr.bf16.mxu0 %v1342
    %5602 = vmatpush1.bf16.msra.mxu0 %v1341
    %5603 = vmatprep.subr.bf16.mxu0 %v1334
    %5604 = vmatpush1.bf16.msra.mxu0 %v1333
    %5605 = vmatprep.subr.bf16.mxu0 %v1454
    %5606 = vmatpush2.bf16.msra.mxu0 %v1453
    %5607 = vmatprep.subr.bf16.mxu0 %v1446
    %5608 = vmatpush2.bf16.msra.mxu0 %v1445
    %5609 = vmatprep.subr.bf16.mxu0 %v1438
    %5610 = vmatpush2.bf16.msra.mxu0 %v1437
    %5611 = vmatprep.subr.bf16.mxu0 %v1430
    %5612 = vmatpush2.bf16.msra.mxu0 %v1429
    %5613 = vmatprep.subr.bf16.mxu0 %v1422
    %5614 = vmatpush2.bf16.msra.mxu0 %v1421
    %5615 = vmatprep.subr.bf16.mxu0 %v1414
    %5616 = vmatpush2.bf16.msra.mxu0 %v1413
    %5617 = vmatprep.subr.bf16.mxu0 %v1406
    %5618 = vmatpush2.bf16.msra.mxu0 %v1405
    %5619 = vmatprep.subr.bf16.mxu0 %v1398
    %5620 = vmatpush2.bf16.msra.mxu0 %v1397
    %5621 = vmatprep.mubr.bf16.mxu0 %v5194
    %5622 = vmatmul.mubr.bf16.gmra.mxu0 %v5193
    %v5623 = vpop.f32.mrf.mxu0
    %v5624 = vadd.f32 0.0, %v5623
    %v5625 = vpop.f32.mrf.mxu0
    %v5626 = vadd.f32 0.0, %v5625
    %v5627 = vpop.f32.mrf.mxu0
    %v5628 = vpop.f32.mrf.mxu0
    %5629 = vdwg.mxu0
    %5630 = vmatprep.subr.bf16.mxu0 %v1392
    %5631 = vmatpush1.bf16.msra.mxu0 %v1391
    %5632 = vmatprep.subr.bf16.mxu0 %v1384
    %5633 = vmatpush1.bf16.msra.mxu0 %v1383
    %5634 = vmatprep.subr.bf16.mxu0 %v1376
    %5635 = vmatpush1.bf16.msra.mxu0 %v1375
    %5636 = vmatprep.subr.bf16.mxu0 %v1368
    %5637 = vmatpush1.bf16.msra.mxu0 %v1367
    %5638 = vmatprep.subr.bf16.mxu0 %v1360
    %5639 = vmatpush1.bf16.msra.mxu0 %v1359
    %5640 = vmatprep.subr.bf16.mxu0 %v1352
    %5641 = vmatpush1.bf16.msra.mxu0 %v1351
    %5642 = vmatprep.subr.bf16.mxu0 %v1344
    %5643 = vmatpush1.bf16.msra.mxu0 %v1343
    %5644 = vmatprep.subr.bf16.mxu0 %v1336
    %5645 = vmatpush1.bf16.msra.mxu0 %v1335
    %5646 = vmatprep.subr.bf16.mxu0 %v1456
    %5647 = vmatpush2.bf16.msra.mxu0 %v1455
    %5648 = vmatprep.subr.bf16.mxu0 %v1448
    %5649 = vmatpush2.bf16.msra.mxu0 %v1447
    %5650 = vmatprep.subr.bf16.mxu0 %v1440
    %5651 = vmatpush2.bf16.msra.mxu0 %v1439
    %5652 = vmatprep.subr.bf16.mxu0 %v1432
    %5653 = vmatpush2.bf16.msra.mxu0 %v1431
    %5654 = vmatprep.subr.bf16.mxu0 %v1424
    %5655 = vmatpush2.bf16.msra.mxu0 %v1423
    %5656 = vmatprep.subr.bf16.mxu0 %v1416
    %5657 = vmatpush2.bf16.msra.mxu0 %v1415
    %5658 = vmatprep.subr.bf16.mxu0 %v1408
    %5659 = vmatpush2.bf16.msra.mxu0 %v1407
    %5660 = vmatprep.subr.bf16.mxu0 %v1400
    %5661 = vmatpush2.bf16.msra.mxu0 %v1399
    %5662 = vmatprep.mubr.bf16.mxu0 %v5194
    %5663 = vmatmul.mubr.bf16.gmra.mxu0 %v5193
    %v5664 = vpop.f32.mrf.mxu0
    %v5665 = vadd.f32 0.0, %v5664
    %v5666 = vpop.f32.mrf.mxu0
    %v5667 = vadd.f32 0.0, %v5666
    %v5668 = vpop.f32.mrf.mxu0
    %v5669 = vpop.f32.mrf.mxu0
    %5670 = vdwg.mxu0
    %5671 = vmatprep.subr.bf16.mxu0 %v1394
    %5672 = vmatpush1.bf16.msra.mxu0 %v1393
    %5673 = vmatprep.subr.bf16.mxu0 %v1386
    %5674 = vmatpush1.bf16.msra.mxu0 %v1385
    %5675 = vmatprep.subr.bf16.mxu0 %v1378
    %5676 = vmatpush1.bf16.msra.mxu0 %v1377
    %5677 = vmatprep.subr.bf16.mxu0 %v1370
    %5678 = vmatpush1.bf16.msra.mxu0 %v1369
    %5679 = vmatprep.subr.bf16.mxu0 %v1362
    %5680 = vmatpush1.bf16.msra.mxu0 %v1361
    %5681 = vmatprep.subr.bf16.mxu0 %v1354
    %5682 = vmatpush1.bf16.msra.mxu0 %v1353
    %5683 = vmatprep.subr.bf16.mxu0 %v1346
    %5684 = vmatpush1.bf16.msra.mxu0 %v1345
    %5685 = vmatprep.subr.bf16.mxu0 %v1338
    %5686 = vmatpush1.bf16.msra.mxu0 %v1337
    %5687 = vmatprep.subr.bf16.mxu0 %v1458
    %5688 = vmatpush2.bf16.msra.mxu0 %v1457
    %5689 = vmatprep.subr.bf16.mxu0 %v1450
    %5690 = vmatpush2.bf16.msra.mxu0 %v1449
    %5691 = vmatprep.subr.bf16.mxu0 %v1442
    %5692 = vmatpush2.bf16.msra.mxu0 %v1441
    %5693 = vmatprep.subr.bf16.mxu0 %v1434
    %5694 = vmatpush2.bf16.msra.mxu0 %v1433
    %5695 = vmatprep.subr.bf16.mxu0 %v1426
    %5696 = vmatpush2.bf16.msra.mxu0 %v1425
    %5697 = vmatprep.subr.bf16.mxu0 %v1418
    %5698 = vmatpush2.bf16.msra.mxu0 %v1417
    %5699 = vmatprep.subr.bf16.mxu0 %v1410
    %5700 = vmatpush2.bf16.msra.mxu0 %v1409
    %5701 = vmatprep.subr.bf16.mxu0 %v1402
    %5702 = vmatpush2.bf16.msra.mxu0 %v1401
    %5703 = vmatprep.mubr.bf16.mxu0 %v5194
    %5704 = vmatmul.mubr.bf16.gmra.mxu0 %v5193
    %v5705 = vpop.f32.mrf.mxu0
    %v5706 = vadd.f32 0.0, %v5705
    %v5707 = vpop.f32.mrf.mxu0
    %v5708 = vadd.f32 0.0, %v5707
    %v5709 = vpop.f32.mrf.mxu0
    %v5710 = vpop.f32.mrf.mxu0
    %5711 = vdwg.mxu0
    %5712 = vmatprep.subr.bf16.mxu0 %v1396
    %5713 = vmatpush1.bf16.msra.mxu0 %v1395
    %5714 = vmatprep.subr.bf16.mxu0 %v1388
    %5715 = vmatpush1.bf16.msra.mxu0 %v1387
    %5716 = vmatprep.subr.bf16.mxu0 %v1380
    %5717 = vmatpush1.bf16.msra.mxu0 %v1379
    %5718 = vmatprep.subr.bf16.mxu0 %v1372
    %5719 = vmatpush1.bf16.msra.mxu0 %v1371
    %5720 = vmatprep.subr.bf16.mxu0 %v1364
    %5721 = vmatpush1.bf16.msra.mxu0 %v1363
    %5722 = vmatprep.subr.bf16.mxu0 %v1356
    %5723 = vmatpush1.bf16.msra.mxu0 %v1355
    %5724 = vmatprep.subr.bf16.mxu0 %v1348
    %5725 = vmatpush1.bf16.msra.mxu0 %v1347
    %5726 = vmatprep.subr.bf16.mxu0 %v1340
    %5727 = vmatpush1.bf16.msra.mxu0 %v1339
    %5728 = vmatprep.subr.bf16.mxu0 %v1460
    %5729 = vmatpush2.bf16.msra.mxu0 %v1459
    %5730 = vmatprep.subr.bf16.mxu0 %v1452
    %5731 = vmatpush2.bf16.msra.mxu0 %v1451
    %5732 = vmatprep.subr.bf16.mxu0 %v1444
    %5733 = vmatpush2.bf16.msra.mxu0 %v1443
    %5734 = vmatprep.subr.bf16.mxu0 %v1436
    %5735 = vmatpush2.bf16.msra.mxu0 %v1435
    %5736 = vmatprep.subr.bf16.mxu0 %v1428
    %5737 = vmatpush2.bf16.msra.mxu0 %v1427
    %5738 = vmatprep.subr.bf16.mxu0 %v1420
    %5739 = vmatpush2.bf16.msra.mxu0 %v1419
    %5740 = vmatprep.subr.bf16.mxu0 %v1412
    %5741 = vmatpush2.bf16.msra.mxu0 %v1411
    %5742 = vmatprep.subr.bf16.mxu0 %v1404
    %5743 = vmatpush2.bf16.msra.mxu0 %v1403
    %5744 = vmatprep.mubr.bf16.mxu0 %v5194
    %5745 = vmatmul.mubr.bf16.gmra.mxu0 %v5193
    %v5746 = vpop.f32.mrf.mxu0
    %v5747 = vadd.f32 0.0, %v5746
    %v5748 = vpop.f32.mrf.mxu0
    %v5749 = vadd.f32 0.0, %v5748
    %v5750 = vpop.f32.mrf.mxu0
    %v5751 = vpop.f32.mrf.mxu0
    %5752 = vdwg.mxu0
    %v5753 = vadd.f32 %v5581, %v5624
    %v5754 = vadd.f32 %v5582, %v5626
    %v5755 = vadd.f32 %v5583, %v5665
    %v5756 = vadd.f32 %v5584, %v5667
    %v5757 = vadd.f32 %v5585, %v5706
    %v5758 = vadd.f32 %v5586, %v5708
    %v5759 = vadd.f32 %v5587, %v5747
    %v5760 = vadd.f32 %v5588, %v5749
    %v5761 = vxor.u32 %v5753, 2147483648
    %v5762 = vxor.u32 %v5754, 2147483648
    %v5763 = vmul.f32 %v5761, 1.442695
    %v5764 = vpow.pop %v5763
    %v5765 = vmul.f32 %v5762, 1.442695
    %v5766 = vpow.pop %v5765
    %v5767 = vadd.f32 %v5764, 1.0
    %v5768 = vadd.f32 %v5766, 1.0
    %v5769 = vrcp.pop %v5767
    %v5770 = vmul.f32 1.0, %v5769
    %v5771 = vrcp.pop %v5768
    %v5772 = vmul.f32 1.0, %v5771
    %v5773 = vxor.u32 %v5755, 2147483648
    %v5774 = vxor.u32 %v5756, 2147483648
    %v5775 = vmul.f32 %v5773, 1.442695
    %v5776 = vpow.pop %v5775
    %v5777 = vmul.f32 %v5774, 1.442695
    %v5778 = vpow.pop %v5777
    %v5779 = vadd.f32 %v5776, 1.0
    %v5780 = vadd.f32 %v5778, 1.0
    %v5781 = vrcp.pop %v5779
    %v5782 = vmul.f32 1.0, %v5781
    %v5783 = vrcp.pop %v5780
    %v5784 = vmul.f32 1.0, %v5783
    %v5785 = vtanh.pop %v5757
    %v5786 = vtanh.pop %v5758
    %v5787 = vxor.u32 %v5759, 2147483648
    %v5788 = vxor.u32 %v5760, 2147483648
    %v5789 = vmul.f32 %v5787, 1.442695
    %v5790 = vpow.pop %v5789
    %v5791 = vmul.f32 %v5788, 1.442695
    %v5792 = vpow.pop %v5791
    %v5793 = vadd.f32 %v5790, 1.0
    %v5794 = vadd.f32 %v5792, 1.0
    %v5795 = vrcp.pop %v5793
    %v5796 = vmul.f32 1.0, %v5795
    %v5797 = vrcp.pop %v5794
    %v5798 = vmul.f32 1.0, %v5797
    %v5799 = vmul.f32 %v5782, %v5187
    %v5800 = vmul.f32 %v5784, %v5188
    %v5801 = vmul.f32 %v5770, %v5785
    %v5802 = vmul.f32 %v5772, %v5786
    %v5803 = vadd.f32 %v5799, %v5801
    %v5804 = vadd.f32 %v5800, %v5802
    %v5805 = vtanh.pop %v5803
    %v5806 = vtanh.pop %v5804
    %v5807 = vmul.f32 %v5796, %v5805
    %v5808 = vmul.f32 %v5798, %v5806
    %v5809 = vpack.c.bf16 %v5807, %v5807
    %v5810 = vpack.c.bf16 %v5808, %v5808
    %v5811 = vpack.c.bf16 %v5579, %v5579
    %v5812 = vpack.c.bf16 %v5580, %v5580
    %5813 = vmatprep.subr.bf16.mxu0 %v2510
    %5814 = vmatpush1.bf16.msra.mxu0 %v2509
    %5815 = vmatprep.subr.bf16.mxu0 %v2502
    %5816 = vmatpush1.bf16.msra.mxu0 %v2501
    %5817 = vmatprep.subr.bf16.mxu0 %v2494
    %5818 = vmatpush1.bf16.msra.mxu0 %v2493
    %5819 = vmatprep.subr.bf16.mxu0 %v2486
    %5820 = vmatpush1.bf16.msra.mxu0 %v2485
    %5821 = vmatprep.subr.bf16.mxu0 %v2478
    %5822 = vmatpush1.bf16.msra.mxu0 %v2477
    %5823 = vmatprep.subr.bf16.mxu0 %v2470
    %5824 = vmatpush1.bf16.msra.mxu0 %v2469
    %5825 = vmatprep.subr.bf16.mxu0 %v2462
    %5826 = vmatpush1.bf16.msra.mxu0 %v2461
    %5827 = vmatprep.subr.bf16.mxu0 %v2454
    %5828 = vmatpush1.bf16.msra.mxu0 %v2453
    %5829 = vmatprep.subr.bf16.mxu0 %v2574
    %5830 = vmatpush2.bf16.msra.mxu0 %v2573
    %5831 = vmatprep.subr.bf16.mxu0 %v2566
    %5832 = vmatpush2.bf16.msra.mxu0 %v2565
    %5833 = vmatprep.subr.bf16.mxu0 %v2558
    %5834 = vmatpush2.bf16.msra.mxu0 %v2557
    %5835 = vmatprep.subr.bf16.mxu0 %v2550
    %5836 = vmatpush2.bf16.msra.mxu0 %v2549
    %5837 = vmatprep.subr.bf16.mxu0 %v2542
    %5838 = vmatpush2.bf16.msra.mxu0 %v2541
    %5839 = vmatprep.subr.bf16.mxu0 %v2534
    %5840 = vmatpush2.bf16.msra.mxu0 %v2533
    %5841 = vmatprep.subr.bf16.mxu0 %v2526
    %5842 = vmatpush2.bf16.msra.mxu0 %v2525
    %5843 = vmatprep.subr.bf16.mxu0 %v2518
    %5844 = vmatpush2.bf16.msra.mxu0 %v2517
    %5845 = vmatprep.mubr.bf16.mxu0 %v5812
    %5846 = vmatmul.mubr.bf16.gmra.mxu0 %v5811
    %v5847 = vpop.f32.mrf.mxu0
    %v5848 = vadd.f32 0.0, %v5847
    %v5849 = vpop.f32.mrf.mxu0
    %v5850 = vadd.f32 0.0, %v5849
    %v5851 = vpop.f32.mrf.mxu0
    %v5852 = vpop.f32.mrf.mxu0
    %5853 = vdwg.mxu0
    %5854 = vmatprep.subr.bf16.mxu0 %v2512
    %5855 = vmatpush1.bf16.msra.mxu0 %v2511
    %5856 = vmatprep.subr.bf16.mxu0 %v2504
    %5857 = vmatpush1.bf16.msra.mxu0 %v2503
    %5858 = vmatprep.subr.bf16.mxu0 %v2496
    %5859 = vmatpush1.bf16.msra.mxu0 %v2495
    %5860 = vmatprep.subr.bf16.mxu0 %v2488
    %5861 = vmatpush1.bf16.msra.mxu0 %v2487
    %5862 = vmatprep.subr.bf16.mxu0 %v2480
    %5863 = vmatpush1.bf16.msra.mxu0 %v2479
    %5864 = vmatprep.subr.bf16.mxu0 %v2472
    %5865 = vmatpush1.bf16.msra.mxu0 %v2471
    %5866 = vmatprep.subr.bf16.mxu0 %v2464
    %5867 = vmatpush1.bf16.msra.mxu0 %v2463
    %5868 = vmatprep.subr.bf16.mxu0 %v2456
    %5869 = vmatpush1.bf16.msra.mxu0 %v2455
    %5870 = vmatprep.subr.bf16.mxu0 %v2576
    %5871 = vmatpush2.bf16.msra.mxu0 %v2575
    %5872 = vmatprep.subr.bf16.mxu0 %v2568
    %5873 = vmatpush2.bf16.msra.mxu0 %v2567
    %5874 = vmatprep.subr.bf16.mxu0 %v2560
    %5875 = vmatpush2.bf16.msra.mxu0 %v2559
    %5876 = vmatprep.subr.bf16.mxu0 %v2552
    %5877 = vmatpush2.bf16.msra.mxu0 %v2551
    %5878 = vmatprep.subr.bf16.mxu0 %v2544
    %5879 = vmatpush2.bf16.msra.mxu0 %v2543
    %5880 = vmatprep.subr.bf16.mxu0 %v2536
    %5881 = vmatpush2.bf16.msra.mxu0 %v2535
    %5882 = vmatprep.subr.bf16.mxu0 %v2528
    %5883 = vmatpush2.bf16.msra.mxu0 %v2527
    %5884 = vmatprep.subr.bf16.mxu0 %v2520
    %5885 = vmatpush2.bf16.msra.mxu0 %v2519
    %5886 = vmatprep.mubr.bf16.mxu0 %v5812
    %5887 = vmatmul.mubr.bf16.gmra.mxu0 %v5811
    %v5888 = vpop.f32.mrf.mxu0
    %v5889 = vadd.f32 0.0, %v5888
    %v5890 = vpop.f32.mrf.mxu0
    %v5891 = vadd.f32 0.0, %v5890
    %v5892 = vpop.f32.mrf.mxu0
    %v5893 = vpop.f32.mrf.mxu0
    %5894 = vdwg.mxu0
    %5895 = vmatprep.subr.bf16.mxu0 %v2514
    %5896 = vmatpush1.bf16.msra.mxu0 %v2513
    %5897 = vmatprep.subr.bf16.mxu0 %v2506
    %5898 = vmatpush1.bf16.msra.mxu0 %v2505
    %5899 = vmatprep.subr.bf16.mxu0 %v2498
    %5900 = vmatpush1.bf16.msra.mxu0 %v2497
    %5901 = vmatprep.subr.bf16.mxu0 %v2490
    %5902 = vmatpush1.bf16.msra.mxu0 %v2489
    %5903 = vmatprep.subr.bf16.mxu0 %v2482
    %5904 = vmatpush1.bf16.msra.mxu0 %v2481
    %5905 = vmatprep.subr.bf16.mxu0 %v2474
    %5906 = vmatpush1.bf16.msra.mxu0 %v2473
    %5907 = vmatprep.subr.bf16.mxu0 %v2466
    %5908 = vmatpush1.bf16.msra.mxu0 %v2465
    %5909 = vmatprep.subr.bf16.mxu0 %v2458
    %5910 = vmatpush1.bf16.msra.mxu0 %v2457
    %5911 = vmatprep.subr.bf16.mxu0 %v2578
    %5912 = vmatpush2.bf16.msra.mxu0 %v2577
    %5913 = vmatprep.subr.bf16.mxu0 %v2570
    %5914 = vmatpush2.bf16.msra.mxu0 %v2569
    %5915 = vmatprep.subr.bf16.mxu0 %v2562
    %5916 = vmatpush2.bf16.msra.mxu0 %v2561
    %5917 = vmatprep.subr.bf16.mxu0 %v2554
    %5918 = vmatpush2.bf16.msra.mxu0 %v2553
    %5919 = vmatprep.subr.bf16.mxu0 %v2546
    %5920 = vmatpush2.bf16.msra.mxu0 %v2545
    %5921 = vmatprep.subr.bf16.mxu0 %v2538
    %5922 = vmatpush2.bf16.msra.mxu0 %v2537
    %5923 = vmatprep.subr.bf16.mxu0 %v2530
    %5924 = vmatpush2.bf16.msra.mxu0 %v2529
    %5925 = vmatprep.subr.bf16.mxu0 %v2522
    %5926 = vmatpush2.bf16.msra.mxu0 %v2521
    %5927 = vmatprep.mubr.bf16.mxu0 %v5812
    %5928 = vmatmul.mubr.bf16.gmra.mxu0 %v5811
    %v5929 = vpop.f32.mrf.mxu0
    %v5930 = vadd.f32 0.0, %v5929
    %v5931 = vpop.f32.mrf.mxu0
    %v5932 = vadd.f32 0.0, %v5931
    %v5933 = vpop.f32.mrf.mxu0
    %v5934 = vpop.f32.mrf.mxu0
    %5935 = vdwg.mxu0
    %5936 = vmatprep.subr.bf16.mxu0 %v2516
    %5937 = vmatpush1.bf16.msra.mxu0 %v2515
    %5938 = vmatprep.subr.bf16.mxu0 %v2508
    %5939 = vmatpush1.bf16.msra.mxu0 %v2507
    %5940 = vmatprep.subr.bf16.mxu0 %v2500
    %5941 = vmatpush1.bf16.msra.mxu0 %v2499
    %5942 = vmatprep.subr.bf16.mxu0 %v2492
    %5943 = vmatpush1.bf16.msra.mxu0 %v2491
    %5944 = vmatprep.subr.bf16.mxu0 %v2484
    %5945 = vmatpush1.bf16.msra.mxu0 %v2483
    %5946 = vmatprep.subr.bf16.mxu0 %v2476
    %5947 = vmatpush1.bf16.msra.mxu0 %v2475
    %5948 = vmatprep.subr.bf16.mxu0 %v2468
    %5949 = vmatpush1.bf16.msra.mxu0 %v2467
    %5950 = vmatprep.subr.bf16.mxu0 %v2460
    %5951 = vmatpush1.bf16.msra.mxu0 %v2459
    %5952 = vmatprep.subr.bf16.mxu0 %v2580
    %5953 = vmatpush2.bf16.msra.mxu0 %v2579
    %5954 = vmatprep.subr.bf16.mxu0 %v2572
    %5955 = vmatpush2.bf16.msra.mxu0 %v2571
    %5956 = vmatprep.subr.bf16.mxu0 %v2564
    %5957 = vmatpush2.bf16.msra.mxu0 %v2563
    %5958 = vmatprep.subr.bf16.mxu0 %v2556
    %5959 = vmatpush2.bf16.msra.mxu0 %v2555
    %5960 = vmatprep.subr.bf16.mxu0 %v2548
    %5961 = vmatpush2.bf16.msra.mxu0 %v2547
    %5962 = vmatprep.subr.bf16.mxu0 %v2540
    %5963 = vmatpush2.bf16.msra.mxu0 %v2539
    %5964 = vmatprep.subr.bf16.mxu0 %v2532
    %5965 = vmatpush2.bf16.msra.mxu0 %v2531
    %5966 = vmatprep.subr.bf16.mxu0 %v2524
    %5967 = vmatpush2.bf16.msra.mxu0 %v2523
    %5968 = vmatprep.mubr.bf16.mxu0 %v5812
    %5969 = vmatmul.mubr.bf16.gmra.mxu0 %v5811
    %v5970 = vpop.f32.mrf.mxu0
    %v5971 = vadd.f32 0.0, %v5970
    %v5972 = vpop.f32.mrf.mxu0
    %v5973 = vadd.f32 0.0, %v5972
    %v5974 = vpop.f32.mrf.mxu0
    %v5975 = vpop.f32.mrf.mxu0
    %5976 = vdwg.mxu0
    %5977 = vmatprep.subr.bf16.mxu0 %v3314
    %5978 = vmatpush1.bf16.msra.mxu0 %v3313
    %5979 = vmatprep.subr.bf16.mxu0 %v3306
    %5980 = vmatpush1.bf16.msra.mxu0 %v3305
    %5981 = vmatprep.subr.bf16.mxu0 %v3298
    %5982 = vmatpush1.bf16.msra.mxu0 %v3297
    %5983 = vmatprep.subr.bf16.mxu0 %v3290
    %5984 = vmatpush1.bf16.msra.mxu0 %v3289
    %5985 = vmatprep.subr.bf16.mxu0 %v3282
    %5986 = vmatpush1.bf16.msra.mxu0 %v3281
    %5987 = vmatprep.subr.bf16.mxu0 %v3274
    %5988 = vmatpush1.bf16.msra.mxu0 %v3273
    %5989 = vmatprep.subr.bf16.mxu0 %v3266
    %5990 = vmatpush1.bf16.msra.mxu0 %v3265
    %5991 = vmatprep.subr.bf16.mxu0 %v3258
    %5992 = vmatpush1.bf16.msra.mxu0 %v3257
    %5993 = vmatprep.subr.bf16.mxu0 %v3378
    %5994 = vmatpush2.bf16.msra.mxu0 %v3377
    %5995 = vmatprep.subr.bf16.mxu0 %v3370
    %5996 = vmatpush2.bf16.msra.mxu0 %v3369
    %5997 = vmatprep.subr.bf16.mxu0 %v3362
    %5998 = vmatpush2.bf16.msra.mxu0 %v3361
    %5999 = vmatprep.subr.bf16.mxu0 %v3354
    %6000 = vmatpush2.bf16.msra.mxu0 %v3353
    %6001 = vmatprep.subr.bf16.mxu0 %v3346
    %6002 = vmatpush2.bf16.msra.mxu0 %v3345
    %6003 = vmatprep.subr.bf16.mxu0 %v3338
    %6004 = vmatpush2.bf16.msra.mxu0 %v3337
    %6005 = vmatprep.subr.bf16.mxu0 %v3330
    %6006 = vmatpush2.bf16.msra.mxu0 %v3329
    %6007 = vmatprep.subr.bf16.mxu0 %v3322
    %6008 = vmatpush2.bf16.msra.mxu0 %v3321
    %6009 = vmatprep.mubr.bf16.mxu0 %v5810
    %6010 = vmatmul.mubr.bf16.gmra.mxu0 %v5809
    %v6011 = vpop.f32.mrf.mxu0
    %v6012 = vadd.f32 %v5848, %v6011
    %v6013 = vpop.f32.mrf.mxu0
    %v6014 = vadd.f32 %v5850, %v6013
    %v6015 = vpop.f32.mrf.mxu0
    %v6016 = vpop.f32.mrf.mxu0
    %6017 = vdwg.mxu0
    %6018 = vmatprep.subr.bf16.mxu0 %v3316
    %6019 = vmatpush1.bf16.msra.mxu0 %v3315
    %6020 = vmatprep.subr.bf16.mxu0 %v3308
    %6021 = vmatpush1.bf16.msra.mxu0 %v3307
    %6022 = vmatprep.subr.bf16.mxu0 %v3300
    %6023 = vmatpush1.bf16.msra.mxu0 %v3299
    %6024 = vmatprep.subr.bf16.mxu0 %v3292
    %6025 = vmatpush1.bf16.msra.mxu0 %v3291
    %6026 = vmatprep.subr.bf16.mxu0 %v3284
    %6027 = vmatpush1.bf16.msra.mxu0 %v3283
    %6028 = vmatprep.subr.bf16.mxu0 %v3276
    %6029 = vmatpush1.bf16.msra.mxu0 %v3275
    %6030 = vmatprep.subr.bf16.mxu0 %v3268
    %6031 = vmatpush1.bf16.msra.mxu0 %v3267
    %6032 = vmatprep.subr.bf16.mxu0 %v3260
    %6033 = vmatpush1.bf16.msra.mxu0 %v3259
    %6034 = vmatprep.subr.bf16.mxu0 %v3380
    %6035 = vmatpush2.bf16.msra.mxu0 %v3379
    %6036 = vmatprep.subr.bf16.mxu0 %v3372
    %6037 = vmatpush2.bf16.msra.mxu0 %v3371
    %6038 = vmatprep.subr.bf16.mxu0 %v3364
    %6039 = vmatpush2.bf16.msra.mxu0 %v3363
    %6040 = vmatprep.subr.bf16.mxu0 %v3356
    %6041 = vmatpush2.bf16.msra.mxu0 %v3355
    %6042 = vmatprep.subr.bf16.mxu0 %v3348
    %6043 = vmatpush2.bf16.msra.mxu0 %v3347
    %6044 = vmatprep.subr.bf16.mxu0 %v3340
    %6045 = vmatpush2.bf16.msra.mxu0 %v3339
    %6046 = vmatprep.subr.bf16.mxu0 %v3332
    %6047 = vmatpush2.bf16.msra.mxu0 %v3331
    %6048 = vmatprep.subr.bf16.mxu0 %v3324
    %6049 = vmatpush2.bf16.msra.mxu0 %v3323
    %6050 = vmatprep.mubr.bf16.mxu0 %v5810
    %6051 = vmatmul.mubr.bf16.gmra.mxu0 %v5809
    %v6052 = vpop.f32.mrf.mxu0
    %v6053 = vadd.f32 %v5889, %v6052
    %v6054 = vpop.f32.mrf.mxu0
    %v6055 = vadd.f32 %v5891, %v6054
    %v6056 = vpop.f32.mrf.mxu0
    %v6057 = vpop.f32.mrf.mxu0
    %6058 = vdwg.mxu0
    %6059 = vmatprep.subr.bf16.mxu0 %v3318
    %6060 = vmatpush1.bf16.msra.mxu0 %v3317
    %6061 = vmatprep.subr.bf16.mxu0 %v3310
    %6062 = vmatpush1.bf16.msra.mxu0 %v3309
    %6063 = vmatprep.subr.bf16.mxu0 %v3302
    %6064 = vmatpush1.bf16.msra.mxu0 %v3301
    %6065 = vmatprep.subr.bf16.mxu0 %v3294
    %6066 = vmatpush1.bf16.msra.mxu0 %v3293
    %6067 = vmatprep.subr.bf16.mxu0 %v3286
    %6068 = vmatpush1.bf16.msra.mxu0 %v3285
    %6069 = vmatprep.subr.bf16.mxu0 %v3278
    %6070 = vmatpush1.bf16.msra.mxu0 %v3277
    %6071 = vmatprep.subr.bf16.mxu0 %v3270
    %6072 = vmatpush1.bf16.msra.mxu0 %v3269
    %6073 = vmatprep.subr.bf16.mxu0 %v3262
    %6074 = vmatpush1.bf16.msra.mxu0 %v3261
    %6075 = vmatprep.subr.bf16.mxu0 %v3382
    %6076 = vmatpush2.bf16.msra.mxu0 %v3381
    %6077 = vmatprep.subr.bf16.mxu0 %v3374
    %6078 = vmatpush2.bf16.msra.mxu0 %v3373
    %6079 = vmatprep.subr.bf16.mxu0 %v3366
    %6080 = vmatpush2.bf16.msra.mxu0 %v3365
    %6081 = vmatprep.subr.bf16.mxu0 %v3358
    %6082 = vmatpush2.bf16.msra.mxu0 %v3357
    %6083 = vmatprep.subr.bf16.mxu0 %v3350
    %6084 = vmatpush2.bf16.msra.mxu0 %v3349
    %6085 = vmatprep.subr.bf16.mxu0 %v3342
    %6086 = vmatpush2.bf16.msra.mxu0 %v3341
    %6087 = vmatprep.subr.bf16.mxu0 %v3334
    %6088 = vmatpush2.bf16.msra.mxu0 %v3333
    %6089 = vmatprep.subr.bf16.mxu0 %v3326
    %6090 = vmatpush2.bf16.msra.mxu0 %v3325
    %6091 = vmatprep.mubr.bf16.mxu0 %v5810
    %6092 = vmatmul.mubr.bf16.gmra.mxu0 %v5809
    %v6093 = vpop.f32.mrf.mxu0
    %v6094 = vadd.f32 %v5930, %v6093
    %v6095 = vpop.f32.mrf.mxu0
    %v6096 = vadd.f32 %v5932, %v6095
    %v6097 = vpop.f32.mrf.mxu0
    %v6098 = vpop.f32.mrf.mxu0
    %6099 = vdwg.mxu0
    %6100 = vmatprep.subr.bf16.mxu0 %v3320
    %6101 = vmatpush1.bf16.msra.mxu0 %v3319
    %6102 = vmatprep.subr.bf16.mxu0 %v3312
    %6103 = vmatpush1.bf16.msra.mxu0 %v3311
    %6104 = vmatprep.subr.bf16.mxu0 %v3304
    %6105 = vmatpush1.bf16.msra.mxu0 %v3303
    %6106 = vmatprep.subr.bf16.mxu0 %v3296
    %6107 = vmatpush1.bf16.msra.mxu0 %v3295
    %6108 = vmatprep.subr.bf16.mxu0 %v3288
    %6109 = vmatpush1.bf16.msra.mxu0 %v3287
    %6110 = vmatprep.subr.bf16.mxu0 %v3280
    %6111 = vmatpush1.bf16.msra.mxu0 %v3279
    %6112 = vmatprep.subr.bf16.mxu0 %v3272
    %6113 = vmatpush1.bf16.msra.mxu0 %v3271
    %6114 = vmatprep.subr.bf16.mxu0 %v3264
    %6115 = vmatpush1.bf16.msra.mxu0 %v3263
    %6116 = vmatprep.subr.bf16.mxu0 %v3384
    %6117 = vmatpush2.bf16.msra.mxu0 %v3383
    %6118 = vmatprep.subr.bf16.mxu0 %v3376
    %6119 = vmatpush2.bf16.msra.mxu0 %v3375
    %6120 = vmatprep.subr.bf16.mxu0 %v3368
    %6121 = vmatpush2.bf16.msra.mxu0 %v3367
    %6122 = vmatprep.subr.bf16.mxu0 %v3360
    %6123 = vmatpush2.bf16.msra.mxu0 %v3359
    %6124 = vmatprep.subr.bf16.mxu0 %v3352
    %6125 = vmatpush2.bf16.msra.mxu0 %v3351
    %6126 = vmatprep.subr.bf16.mxu0 %v3344
    %6127 = vmatpush2.bf16.msra.mxu0 %v3343
    %6128 = vmatprep.subr.bf16.mxu0 %v3336
    %6129 = vmatpush2.bf16.msra.mxu0 %v3335
    %6130 = vmatprep.subr.bf16.mxu0 %v3328
    %6131 = vmatpush2.bf16.msra.mxu0 %v3327
    %6132 = vmatprep.mubr.bf16.mxu0 %v5810
    %6133 = vmatmul.mubr.bf16.gmra.mxu0 %v5809
    %v6134 = vpop.f32.mrf.mxu0
    %v6135 = vadd.f32 %v5971, %v6134
    %v6136 = vpop.f32.mrf.mxu0
    %v6137 = vadd.f32 %v5973, %v6136
    %v6138 = vpop.f32.mrf.mxu0
    %v6139 = vpop.f32.mrf.mxu0
    %6140 = vdwg.mxu0
    %v6141 = vadd.f32 %v6012, %v764
    %v6142 = vadd.f32 %v6014, %v768
    %v6143 = vadd.f32 %v6053, %v772
    %v6144 = vadd.f32 %v6055, %v776
    %v6145 = vadd.f32 %v6094, %v780
    %v6146 = vadd.f32 %v6096, %v784
    %v6147 = vadd.f32 %v6135, %v788
    %v6148 = vadd.f32 %v6137, %v792
    %v6149 = vxor.u32 %v6141, 2147483648
    %v6150 = vxor.u32 %v6142, 2147483648
    %v6151 = vmul.f32 %v6149, 1.442695
    %v6152 = vpow.pop %v6151
    %v6153 = vmul.f32 %v6150, 1.442695
    %v6154 = vpow.pop %v6153
    %v6155 = vadd.f32 %v6152, 1.0
    %v6156 = vadd.f32 %v6154, 1.0
    %v6157 = vrcp.pop %v6155
    %v6158 = vmul.f32 1.0, %v6157
    %v6159 = vrcp.pop %v6156
    %v6160 = vmul.f32 1.0, %v6159
    %v6161 = vxor.u32 %v6143, 2147483648
    %v6162 = vxor.u32 %v6144, 2147483648
    %v6163 = vmul.f32 %v6161, 1.442695
    %v6164 = vpow.pop %v6163
    %v6165 = vmul.f32 %v6162, 1.442695
    %v6166 = vpow.pop %v6165
    %v6167 = vadd.f32 %v6164, 1.0
    %v6168 = vadd.f32 %v6166, 1.0
    %v6169 = vrcp.pop %v6167
    %v6170 = vmul.f32 1.0, %v6169
    %v6171 = vrcp.pop %v6168
    %v6172 = vmul.f32 1.0, %v6171
    %v6173 = vtanh.pop %v6145
    %v6174 = vtanh.pop %v6146
    %v6175 = vxor.u32 %v6147, 2147483648
    %v6176 = vxor.u32 %v6148, 2147483648
    %v6177 = vmul.f32 %v6175, 1.442695
    %v6178 = vpow.pop %v6177
    %v6179 = vmul.f32 %v6176, 1.442695
    %v6180 = vpow.pop %v6179
    %v6181 = vadd.f32 %v6178, 1.0
    %v6182 = vadd.f32 %v6180, 1.0
    %v6183 = vrcp.pop %v6181
    %v6184 = vmul.f32 1.0, %v6183
    %v6185 = vrcp.pop %v6182
    %v6186 = vmul.f32 1.0, %v6185
    %v6187 = vmul.f32 %v6170, %v5575
    %v6188 = vmul.f32 %v6172, %v5576
    %v6189 = vmul.f32 %v6158, %v6173
    %v6190 = vmul.f32 %v6160, %v6174
    %v6191 = vadd.f32 %v6187, %v6189
    %v6192 = vadd.f32 %v6188, %v6190
    %v6193 = vtanh.pop %v6191
    %v6194 = vtanh.pop %v6192
    %v6195 = vmul.f32 %v6184, %v6193
    %v6196 = vmul.f32 %v6186, %v6194
    %v6197 = vld [vmem:[#allocation2 + $0x140] sm:$0xff]
    %v6198 = vld [vmem:[#allocation2 + $0x148] sm:$0xff]
    %v6199 = vld [vmem:[#allocation2 + $0x150] sm:$0xff]
    %v6200 = vld [vmem:[#allocation2 + $0x158] sm:$0xff]
    %v6201 = vld [vmem:[#allocation2 + $0x160] sm:$0xff]
    %v6202 = vld [vmem:[#allocation2 + $0x168] sm:$0xff]
    %v6203 = vld [vmem:[#allocation2 + $0x170] sm:$0xff]
    %v6204 = vld [vmem:[#allocation2 + $0x178] sm:$0xff]
    %6205 = vmatprep.subr.bf16.mxu0 %v1390
    %6206 = vmatpush1.bf16.msra.mxu0 %v1389
    %6207 = vmatprep.subr.bf16.mxu0 %v1382
    %6208 = vmatpush1.bf16.msra.mxu0 %v1381
    %6209 = vmatprep.subr.bf16.mxu0 %v1374
    %6210 = vmatpush1.bf16.msra.mxu0 %v1373
    %6211 = vmatprep.subr.bf16.mxu0 %v1366
    %6212 = vmatpush1.bf16.msra.mxu0 %v1365
    %6213 = vmatprep.subr.bf16.mxu0 %v1358
    %6214 = vmatpush1.bf16.msra.mxu0 %v1357
    %6215 = vmatprep.subr.bf16.mxu0 %v1350
    %6216 = vmatpush1.bf16.msra.mxu0 %v1349
    %6217 = vmatprep.subr.bf16.mxu0 %v1342
    %6218 = vmatpush1.bf16.msra.mxu0 %v1341
    %6219 = vmatprep.subr.bf16.mxu0 %v1334
    %6220 = vmatpush1.bf16.msra.mxu0 %v1333
    %6221 = vmatprep.subr.bf16.mxu0 %v1454
    %6222 = vmatpush2.bf16.msra.mxu0 %v1453
    %6223 = vmatprep.subr.bf16.mxu0 %v1446
    %6224 = vmatpush2.bf16.msra.mxu0 %v1445
    %6225 = vmatprep.subr.bf16.mxu0 %v1438
    %6226 = vmatpush2.bf16.msra.mxu0 %v1437
    %6227 = vmatprep.subr.bf16.mxu0 %v1430
    %6228 = vmatpush2.bf16.msra.mxu0 %v1429
    %6229 = vmatprep.subr.bf16.mxu0 %v1422
    %6230 = vmatpush2.bf16.msra.mxu0 %v1421
    %6231 = vmatprep.subr.bf16.mxu0 %v1414
    %6232 = vmatpush2.bf16.msra.mxu0 %v1413
    %6233 = vmatprep.subr.bf16.mxu0 %v1406
    %6234 = vmatpush2.bf16.msra.mxu0 %v1405
    %6235 = vmatprep.subr.bf16.mxu0 %v1398
    %6236 = vmatpush2.bf16.msra.mxu0 %v1397
    %6237 = vmatprep.mubr.bf16.mxu0 %v5810
    %6238 = vmatmul.mubr.bf16.gmra.mxu0 %v5809
    %v6239 = vpop.f32.mrf.mxu0
    %v6240 = vadd.f32 0.0, %v6239
    %v6241 = vpop.f32.mrf.mxu0
    %v6242 = vadd.f32 0.0, %v6241
    %v6243 = vpop.f32.mrf.mxu0
    %v6244 = vpop.f32.mrf.mxu0
    %6245 = vdwg.mxu0
    %6246 = vmatprep.subr.bf16.mxu0 %v1392
    %6247 = vmatpush1.bf16.msra.mxu0 %v1391
    %6248 = vmatprep.subr.bf16.mxu0 %v1384
    %6249 = vmatpush1.bf16.msra.mxu0 %v1383
    %6250 = vmatprep.subr.bf16.mxu0 %v1376
    %6251 = vmatpush1.bf16.msra.mxu0 %v1375
    %6252 = vmatprep.subr.bf16.mxu0 %v1368
    %6253 = vmatpush1.bf16.msra.mxu0 %v1367
    %6254 = vmatprep.subr.bf16.mxu0 %v1360
    %6255 = vmatpush1.bf16.msra.mxu0 %v1359
    %6256 = vmatprep.subr.bf16.mxu0 %v1352
    %6257 = vmatpush1.bf16.msra.mxu0 %v1351
    %6258 = vmatprep.subr.bf16.mxu0 %v1344
    %6259 = vmatpush1.bf16.msra.mxu0 %v1343
    %6260 = vmatprep.subr.bf16.mxu0 %v1336
    %6261 = vmatpush1.bf16.msra.mxu0 %v1335
    %6262 = vmatprep.subr.bf16.mxu0 %v1456
    %6263 = vmatpush2.bf16.msra.mxu0 %v1455
    %6264 = vmatprep.subr.bf16.mxu0 %v1448
    %6265 = vmatpush2.bf16.msra.mxu0 %v1447
    %6266 = vmatprep.subr.bf16.mxu0 %v1440
    %6267 = vmatpush2.bf16.msra.mxu0 %v1439
    %6268 = vmatprep.subr.bf16.mxu0 %v1432
    %6269 = vmatpush2.bf16.msra.mxu0 %v1431
    %6270 = vmatprep.subr.bf16.mxu0 %v1424
    %6271 = vmatpush2.bf16.msra.mxu0 %v1423
    %6272 = vmatprep.subr.bf16.mxu0 %v1416
    %6273 = vmatpush2.bf16.msra.mxu0 %v1415
    %6274 = vmatprep.subr.bf16.mxu0 %v1408
    %6275 = vmatpush2.bf16.msra.mxu0 %v1407
    %6276 = vmatprep.subr.bf16.mxu0 %v1400
    %6277 = vmatpush2.bf16.msra.mxu0 %v1399
    %6278 = vmatprep.mubr.bf16.mxu0 %v5810
    %6279 = vmatmul.mubr.bf16.gmra.mxu0 %v5809
    %v6280 = vpop.f32.mrf.mxu0
    %v6281 = vadd.f32 0.0, %v6280
    %v6282 = vpop.f32.mrf.mxu0
    %v6283 = vadd.f32 0.0, %v6282
    %v6284 = vpop.f32.mrf.mxu0
    %v6285 = vpop.f32.mrf.mxu0
    %6286 = vdwg.mxu0
    %6287 = vmatprep.subr.bf16.mxu0 %v1394
    %6288 = vmatpush1.bf16.msra.mxu0 %v1393
    %6289 = vmatprep.subr.bf16.mxu0 %v1386
    %6290 = vmatpush1.bf16.msra.mxu0 %v1385
    %6291 = vmatprep.subr.bf16.mxu0 %v1378
    %6292 = vmatpush1.bf16.msra.mxu0 %v1377
    %6293 = vmatprep.subr.bf16.mxu0 %v1370
    %6294 = vmatpush1.bf16.msra.mxu0 %v1369
    %6295 = vmatprep.subr.bf16.mxu0 %v1362
    %6296 = vmatpush1.bf16.msra.mxu0 %v1361
    %6297 = vmatprep.subr.bf16.mxu0 %v1354
    %6298 = vmatpush1.bf16.msra.mxu0 %v1353
    %6299 = vmatprep.subr.bf16.mxu0 %v1346
    %6300 = vmatpush1.bf16.msra.mxu0 %v1345
    %6301 = vmatprep.subr.bf16.mxu0 %v1338
    %6302 = vmatpush1.bf16.msra.mxu0 %v1337
    %6303 = vmatprep.subr.bf16.mxu0 %v1458
    %6304 = vmatpush2.bf16.msra.mxu0 %v1457
    %6305 = vmatprep.subr.bf16.mxu0 %v1450
    %6306 = vmatpush2.bf16.msra.mxu0 %v1449
    %6307 = vmatprep.subr.bf16.mxu0 %v1442
    %6308 = vmatpush2.bf16.msra.mxu0 %v1441
    %6309 = vmatprep.subr.bf16.mxu0 %v1434
    %6310 = vmatpush2.bf16.msra.mxu0 %v1433
    %6311 = vmatprep.subr.bf16.mxu0 %v1426
    %6312 = vmatpush2.bf16.msra.mxu0 %v1425
    %6313 = vmatprep.subr.bf16.mxu0 %v1418
    %6314 = vmatpush2.bf16.msra.mxu0 %v1417
    %6315 = vmatprep.subr.bf16.mxu0 %v1410
    %6316 = vmatpush2.bf16.msra.mxu0 %v1409
    %6317 = vmatprep.subr.bf16.mxu0 %v1402
    %6318 = vmatpush2.bf16.msra.mxu0 %v1401
    %6319 = vmatprep.mubr.bf16.mxu0 %v5810
    %6320 = vmatmul.mubr.bf16.gmra.mxu0 %v5809
    %v6321 = vpop.f32.mrf.mxu0
    %v6322 = vadd.f32 0.0, %v6321
    %v6323 = vpop.f32.mrf.mxu0
    %v6324 = vadd.f32 0.0, %v6323
    %v6325 = vpop.f32.mrf.mxu0
    %v6326 = vpop.f32.mrf.mxu0
    %6327 = vdwg.mxu0
    %6328 = vmatprep.subr.bf16.mxu0 %v1396
    %6329 = vmatpush1.bf16.msra.mxu0 %v1395
    %6330 = vmatprep.subr.bf16.mxu0 %v1388
    %6331 = vmatpush1.bf16.msra.mxu0 %v1387
    %6332 = vmatprep.subr.bf16.mxu0 %v1380
    %6333 = vmatpush1.bf16.msra.mxu0 %v1379
    %6334 = vmatprep.subr.bf16.mxu0 %v1372
    %6335 = vmatpush1.bf16.msra.mxu0 %v1371
    %6336 = vmatprep.subr.bf16.mxu0 %v1364
    %6337 = vmatpush1.bf16.msra.mxu0 %v1363
    %6338 = vmatprep.subr.bf16.mxu0 %v1356
    %6339 = vmatpush1.bf16.msra.mxu0 %v1355
    %6340 = vmatprep.subr.bf16.mxu0 %v1348
    %6341 = vmatpush1.bf16.msra.mxu0 %v1347
    %6342 = vmatprep.subr.bf16.mxu0 %v1340
    %6343 = vmatpush1.bf16.msra.mxu0 %v1339
    %6344 = vmatprep.subr.bf16.mxu0 %v1460
    %6345 = vmatpush2.bf16.msra.mxu0 %v1459
    %6346 = vmatprep.subr.bf16.mxu0 %v1452
    %6347 = vmatpush2.bf16.msra.mxu0 %v1451
    %6348 = vmatprep.subr.bf16.mxu0 %v1444
    %6349 = vmatpush2.bf16.msra.mxu0 %v1443
    %6350 = vmatprep.subr.bf16.mxu0 %v1436
    %6351 = vmatpush2.bf16.msra.mxu0 %v1435
    %6352 = vmatprep.subr.bf16.mxu0 %v1428
    %6353 = vmatpush2.bf16.msra.mxu0 %v1427
    %6354 = vmatprep.subr.bf16.mxu0 %v1420
    %6355 = vmatpush2.bf16.msra.mxu0 %v1419
    %6356 = vmatprep.subr.bf16.mxu0 %v1412
    %6357 = vmatpush2.bf16.msra.mxu0 %v1411
    %6358 = vmatprep.subr.bf16.mxu0 %v1404
    %6359 = vmatpush2.bf16.msra.mxu0 %v1403
    %6360 = vmatprep.mubr.bf16.mxu0 %v5810
    %6361 = vmatmul.mubr.bf16.gmra.mxu0 %v5809
    %v6362 = vpop.f32.mrf.mxu0
    %v6363 = vadd.f32 0.0, %v6362
    %v6364 = vpop.f32.mrf.mxu0
    %v6365 = vadd.f32 0.0, %v6364
    %v6366 = vpop.f32.mrf.mxu0
    %v6367 = vpop.f32.mrf.mxu0
    %6368 = vdwg.mxu0
    %v6369 = vadd.f32 %v6197, %v6240
    %v6370 = vadd.f32 %v6198, %v6242
    %v6371 = vadd.f32 %v6199, %v6281
    %v6372 = vadd.f32 %v6200, %v6283
    %v6373 = vadd.f32 %v6201, %v6322
    %v6374 = vadd.f32 %v6202, %v6324
    %v6375 = vadd.f32 %v6203, %v6363
    %v6376 = vadd.f32 %v6204, %v6365
    %v6377 = vxor.u32 %v6369, 2147483648
    %v6378 = vxor.u32 %v6370, 2147483648
    %v6379 = vmul.f32 %v6377, 1.442695
    %v6380 = vpow.pop %v6379
    %v6381 = vmul.f32 %v6378, 1.442695
    %v6382 = vpow.pop %v6381
    %v6383 = vadd.f32 %v6380, 1.0
    %v6384 = vadd.f32 %v6382, 1.0
    %v6385 = vrcp.pop %v6383
    %v6386 = vmul.f32 1.0, %v6385
    %v6387 = vrcp.pop %v6384
    %v6388 = vmul.f32 1.0, %v6387
    %v6389 = vxor.u32 %v6371, 2147483648
    %v6390 = vxor.u32 %v6372, 2147483648
    %v6391 = vmul.f32 %v6389, 1.442695
    %v6392 = vpow.pop %v6391
    %v6393 = vmul.f32 %v6390, 1.442695
    %v6394 = vpow.pop %v6393
    %v6395 = vadd.f32 %v6392, 1.0
    %v6396 = vadd.f32 %v6394, 1.0
    %v6397 = vrcp.pop %v6395
    %v6398 = vmul.f32 1.0, %v6397
    %v6399 = vrcp.pop %v6396
    %v6400 = vmul.f32 1.0, %v6399
    %v6401 = vtanh.pop %v6373
    %v6402 = vtanh.pop %v6374
    %v6403 = vxor.u32 %v6375, 2147483648
    %v6404 = vxor.u32 %v6376, 2147483648
    %v6405 = vmul.f32 %v6403, 1.442695
    %v6406 = vpow.pop %v6405
    %v6407 = vmul.f32 %v6404, 1.442695
    %v6408 = vpow.pop %v6407
    %v6409 = vadd.f32 %v6406, 1.0
    %v6410 = vadd.f32 %v6408, 1.0
    %v6411 = vrcp.pop %v6409
    %v6412 = vmul.f32 1.0, %v6411
    %v6413 = vrcp.pop %v6410
    %v6414 = vmul.f32 1.0, %v6413
    %v6415 = vmul.f32 %v6398, %v5803
    %v6416 = vmul.f32 %v6400, %v5804
    %v6417 = vmul.f32 %v6386, %v6401
    %v6418 = vmul.f32 %v6388, %v6402
    %v6419 = vadd.f32 %v6415, %v6417
    %v6420 = vadd.f32 %v6416, %v6418
    %v6421 = vtanh.pop %v6419
    %v6422 = vtanh.pop %v6420
    %v6423 = vmul.f32 %v6412, %v6421
    %v6424 = vmul.f32 %v6414, %v6422
    %v6425 = vpack.c.bf16 %v6423, %v6423
    %v6426 = vpack.c.bf16 %v6424, %v6424
    %v6427 = vpack.c.bf16 %v6195, %v6195
    %v6428 = vpack.c.bf16 %v6196, %v6196
    %6429 = vmatprep.subr.bf16.mxu0 %v2510
    %6430 = vmatpush1.bf16.msra.mxu0 %v2509
    %6431 = vmatprep.subr.bf16.mxu0 %v2502
    %6432 = vmatpush1.bf16.msra.mxu0 %v2501
    %6433 = vmatprep.subr.bf16.mxu0 %v2494
    %6434 = vmatpush1.bf16.msra.mxu0 %v2493
    %6435 = vmatprep.subr.bf16.mxu0 %v2486
    %6436 = vmatpush1.bf16.msra.mxu0 %v2485
    %6437 = vmatprep.subr.bf16.mxu0 %v2478
    %6438 = vmatpush1.bf16.msra.mxu0 %v2477
    %6439 = vmatprep.subr.bf16.mxu0 %v2470
    %6440 = vmatpush1.bf16.msra.mxu0 %v2469
    %6441 = vmatprep.subr.bf16.mxu0 %v2462
    %6442 = vmatpush1.bf16.msra.mxu0 %v2461
    %6443 = vmatprep.subr.bf16.mxu0 %v2454
    %6444 = vmatpush1.bf16.msra.mxu0 %v2453
    %6445 = vmatprep.subr.bf16.mxu0 %v2574
    %6446 = vmatpush2.bf16.msra.mxu0 %v2573
    %6447 = vmatprep.subr.bf16.mxu0 %v2566
    %6448 = vmatpush2.bf16.msra.mxu0 %v2565
    %6449 = vmatprep.subr.bf16.mxu0 %v2558
    %6450 = vmatpush2.bf16.msra.mxu0 %v2557
    %6451 = vmatprep.subr.bf16.mxu0 %v2550
    %6452 = vmatpush2.bf16.msra.mxu0 %v2549
    %6453 = vmatprep.subr.bf16.mxu0 %v2542
    %6454 = vmatpush2.bf16.msra.mxu0 %v2541
    %6455 = vmatprep.subr.bf16.mxu0 %v2534
    %6456 = vmatpush2.bf16.msra.mxu0 %v2533
    %6457 = vmatprep.subr.bf16.mxu0 %v2526
    %6458 = vmatpush2.bf16.msra.mxu0 %v2525
    %6459 = vmatprep.subr.bf16.mxu0 %v2518
    %6460 = vmatpush2.bf16.msra.mxu0 %v2517
    %6461 = vmatprep.mubr.bf16.mxu0 %v6428
    %6462 = vmatmul.mubr.bf16.gmra.mxu0 %v6427
    %v6463 = vpop.f32.mrf.mxu0
    %v6464 = vadd.f32 0.0, %v6463
    %v6465 = vpop.f32.mrf.mxu0
    %v6466 = vadd.f32 0.0, %v6465
    %v6467 = vpop.f32.mrf.mxu0
    %v6468 = vpop.f32.mrf.mxu0
    %6469 = vdwg.mxu0
    %6470 = vmatprep.subr.bf16.mxu0 %v2512
    %6471 = vmatpush1.bf16.msra.mxu0 %v2511
    %6472 = vmatprep.subr.bf16.mxu0 %v2504
    %6473 = vmatpush1.bf16.msra.mxu0 %v2503
    %6474 = vmatprep.subr.bf16.mxu0 %v2496
    %6475 = vmatpush1.bf16.msra.mxu0 %v2495
    %6476 = vmatprep.subr.bf16.mxu0 %v2488
    %6477 = vmatpush1.bf16.msra.mxu0 %v2487
    %6478 = vmatprep.subr.bf16.mxu0 %v2480
    %6479 = vmatpush1.bf16.msra.mxu0 %v2479
    %6480 = vmatprep.subr.bf16.mxu0 %v2472
    %6481 = vmatpush1.bf16.msra.mxu0 %v2471
    %6482 = vmatprep.subr.bf16.mxu0 %v2464
    %6483 = vmatpush1.bf16.msra.mxu0 %v2463
    %6484 = vmatprep.subr.bf16.mxu0 %v2456
    %6485 = vmatpush1.bf16.msra.mxu0 %v2455
    %6486 = vmatprep.subr.bf16.mxu0 %v2576
    %6487 = vmatpush2.bf16.msra.mxu0 %v2575
    %6488 = vmatprep.subr.bf16.mxu0 %v2568
    %6489 = vmatpush2.bf16.msra.mxu0 %v2567
    %6490 = vmatprep.subr.bf16.mxu0 %v2560
    %6491 = vmatpush2.bf16.msra.mxu0 %v2559
    %6492 = vmatprep.subr.bf16.mxu0 %v2552
    %6493 = vmatpush2.bf16.msra.mxu0 %v2551
    %6494 = vmatprep.subr.bf16.mxu0 %v2544
    %6495 = vmatpush2.bf16.msra.mxu0 %v2543
    %6496 = vmatprep.subr.bf16.mxu0 %v2536
    %6497 = vmatpush2.bf16.msra.mxu0 %v2535
    %6498 = vmatprep.subr.bf16.mxu0 %v2528
    %6499 = vmatpush2.bf16.msra.mxu0 %v2527
    %6500 = vmatprep.subr.bf16.mxu0 %v2520
    %6501 = vmatpush2.bf16.msra.mxu0 %v2519
    %6502 = vmatprep.mubr.bf16.mxu0 %v6428
    %6503 = vmatmul.mubr.bf16.gmra.mxu0 %v6427
    %v6504 = vpop.f32.mrf.mxu0
    %v6505 = vadd.f32 0.0, %v6504
    %v6506 = vpop.f32.mrf.mxu0
    %v6507 = vadd.f32 0.0, %v6506
    %v6508 = vpop.f32.mrf.mxu0
    %v6509 = vpop.f32.mrf.mxu0
    %6510 = vdwg.mxu0
    %6511 = vmatprep.subr.bf16.mxu0 %v2514
    %6512 = vmatpush1.bf16.msra.mxu0 %v2513
    %6513 = vmatprep.subr.bf16.mxu0 %v2506
    %6514 = vmatpush1.bf16.msra.mxu0 %v2505
    %6515 = vmatprep.subr.bf16.mxu0 %v2498
    %6516 = vmatpush1.bf16.msra.mxu0 %v2497
    %6517 = vmatprep.subr.bf16.mxu0 %v2490
    %6518 = vmatpush1.bf16.msra.mxu0 %v2489
    %6519 = vmatprep.subr.bf16.mxu0 %v2482
    %6520 = vmatpush1.bf16.msra.mxu0 %v2481
    %6521 = vmatprep.subr.bf16.mxu0 %v2474
    %6522 = vmatpush1.bf16.msra.mxu0 %v2473
    %6523 = vmatprep.subr.bf16.mxu0 %v2466
    %6524 = vmatpush1.bf16.msra.mxu0 %v2465
    %6525 = vmatprep.subr.bf16.mxu0 %v2458
    %6526 = vmatpush1.bf16.msra.mxu0 %v2457
    %6527 = vmatprep.subr.bf16.mxu0 %v2578
    %6528 = vmatpush2.bf16.msra.mxu0 %v2577
    %6529 = vmatprep.subr.bf16.mxu0 %v2570
    %6530 = vmatpush2.bf16.msra.mxu0 %v2569
    %6531 = vmatprep.subr.bf16.mxu0 %v2562
    %6532 = vmatpush2.bf16.msra.mxu0 %v2561
    %6533 = vmatprep.subr.bf16.mxu0 %v2554
    %6534 = vmatpush2.bf16.msra.mxu0 %v2553
    %6535 = vmatprep.subr.bf16.mxu0 %v2546
    %6536 = vmatpush2.bf16.msra.mxu0 %v2545
    %6537 = vmatprep.subr.bf16.mxu0 %v2538
    %6538 = vmatpush2.bf16.msra.mxu0 %v2537
    %6539 = vmatprep.subr.bf16.mxu0 %v2530
    %6540 = vmatpush2.bf16.msra.mxu0 %v2529
    %6541 = vmatprep.subr.bf16.mxu0 %v2522
    %6542 = vmatpush2.bf16.msra.mxu0 %v2521
    %6543 = vmatprep.mubr.bf16.mxu0 %v6428
    %6544 = vmatmul.mubr.bf16.gmra.mxu0 %v6427
    %v6545 = vpop.f32.mrf.mxu0
    %v6546 = vadd.f32 0.0, %v6545
    %v6547 = vpop.f32.mrf.mxu0
    %v6548 = vadd.f32 0.0, %v6547
    %v6549 = vpop.f32.mrf.mxu0
    %v6550 = vpop.f32.mrf.mxu0
    %6551 = vdwg.mxu0
    %6552 = vmatprep.subr.bf16.mxu0 %v2516
    %6553 = vmatpush1.bf16.msra.mxu0 %v2515
    %6554 = vmatprep.subr.bf16.mxu0 %v2508
    %6555 = vmatpush1.bf16.msra.mxu0 %v2507
    %6556 = vmatprep.subr.bf16.mxu0 %v2500
    %6557 = vmatpush1.bf16.msra.mxu0 %v2499
    %6558 = vmatprep.subr.bf16.mxu0 %v2492
    %6559 = vmatpush1.bf16.msra.mxu0 %v2491
    %6560 = vmatprep.subr.bf16.mxu0 %v2484
    %6561 = vmatpush1.bf16.msra.mxu0 %v2483
    %6562 = vmatprep.subr.bf16.mxu0 %v2476
    %6563 = vmatpush1.bf16.msra.mxu0 %v2475
    %6564 = vmatprep.subr.bf16.mxu0 %v2468
    %6565 = vmatpush1.bf16.msra.mxu0 %v2467
    %6566 = vmatprep.subr.bf16.mxu0 %v2460
    %6567 = vmatpush1.bf16.msra.mxu0 %v2459
    %6568 = vmatprep.subr.bf16.mxu0 %v2580
    %6569 = vmatpush2.bf16.msra.mxu0 %v2579
    %6570 = vmatprep.subr.bf16.mxu0 %v2572
    %6571 = vmatpush2.bf16.msra.mxu0 %v2571
    %6572 = vmatprep.subr.bf16.mxu0 %v2564
    %6573 = vmatpush2.bf16.msra.mxu0 %v2563
    %6574 = vmatprep.subr.bf16.mxu0 %v2556
    %6575 = vmatpush2.bf16.msra.mxu0 %v2555
    %6576 = vmatprep.subr.bf16.mxu0 %v2548
    %6577 = vmatpush2.bf16.msra.mxu0 %v2547
    %6578 = vmatprep.subr.bf16.mxu0 %v2540
    %6579 = vmatpush2.bf16.msra.mxu0 %v2539
    %6580 = vmatprep.subr.bf16.mxu0 %v2532
    %6581 = vmatpush2.bf16.msra.mxu0 %v2531
    %6582 = vmatprep.subr.bf16.mxu0 %v2524
    %6583 = vmatpush2.bf16.msra.mxu0 %v2523
    %6584 = vmatprep.mubr.bf16.mxu0 %v6428
    %6585 = vmatmul.mubr.bf16.gmra.mxu0 %v6427
    %v6586 = vpop.f32.mrf.mxu0
    %v6587 = vadd.f32 0.0, %v6586
    %v6588 = vpop.f32.mrf.mxu0
    %v6589 = vadd.f32 0.0, %v6588
    %v6590 = vpop.f32.mrf.mxu0
    %v6591 = vpop.f32.mrf.mxu0
    %6592 = vdwg.mxu0
    %6593 = vmatprep.subr.bf16.mxu0 %v3314
    %6594 = vmatpush1.bf16.msra.mxu0 %v3313
    %6595 = vmatprep.subr.bf16.mxu0 %v3306
    %6596 = vmatpush1.bf16.msra.mxu0 %v3305
    %6597 = vmatprep.subr.bf16.mxu0 %v3298
    %6598 = vmatpush1.bf16.msra.mxu0 %v3297
    %6599 = vmatprep.subr.bf16.mxu0 %v3290
    %6600 = vmatpush1.bf16.msra.mxu0 %v3289
    %6601 = vmatprep.subr.bf16.mxu0 %v3282
    %6602 = vmatpush1.bf16.msra.mxu0 %v3281
    %6603 = vmatprep.subr.bf16.mxu0 %v3274
    %6604 = vmatpush1.bf16.msra.mxu0 %v3273
    %6605 = vmatprep.subr.bf16.mxu0 %v3266
    %6606 = vmatpush1.bf16.msra.mxu0 %v3265
    %6607 = vmatprep.subr.bf16.mxu0 %v3258
    %6608 = vmatpush1.bf16.msra.mxu0 %v3257
    %6609 = vmatprep.subr.bf16.mxu0 %v3378
    %6610 = vmatpush2.bf16.msra.mxu0 %v3377
    %6611 = vmatprep.subr.bf16.mxu0 %v3370
    %6612 = vmatpush2.bf16.msra.mxu0 %v3369
    %6613 = vmatprep.subr.bf16.mxu0 %v3362
    %6614 = vmatpush2.bf16.msra.mxu0 %v3361
    %6615 = vmatprep.subr.bf16.mxu0 %v3354
    %6616 = vmatpush2.bf16.msra.mxu0 %v3353
    %6617 = vmatprep.subr.bf16.mxu0 %v3346
    %6618 = vmatpush2.bf16.msra.mxu0 %v3345
    %6619 = vmatprep.subr.bf16.mxu0 %v3338
    %6620 = vmatpush2.bf16.msra.mxu0 %v3337
    %6621 = vmatprep.subr.bf16.mxu0 %v3330
    %6622 = vmatpush2.bf16.msra.mxu0 %v3329
    %6623 = vmatprep.subr.bf16.mxu0 %v3322
    %6624 = vmatpush2.bf16.msra.mxu0 %v3321
    %6625 = vmatprep.mubr.bf16.mxu0 %v6426
    %6626 = vmatmul.mubr.bf16.gmra.mxu0 %v6425
    %v6627 = vpop.f32.mrf.mxu0
    %v6628 = vadd.f32 %v6464, %v6627
    %v6629 = vpop.f32.mrf.mxu0
    %v6630 = vadd.f32 %v6466, %v6629
    %v6631 = vpop.f32.mrf.mxu0
    %v6632 = vpop.f32.mrf.mxu0
    %6633 = vdwg.mxu0
    %6634 = vmatprep.subr.bf16.mxu0 %v3316
    %6635 = vmatpush1.bf16.msra.mxu0 %v3315
    %6636 = vmatprep.subr.bf16.mxu0 %v3308
    %6637 = vmatpush1.bf16.msra.mxu0 %v3307
    %6638 = vmatprep.subr.bf16.mxu0 %v3300
    %6639 = vmatpush1.bf16.msra.mxu0 %v3299
    %6640 = vmatprep.subr.bf16.mxu0 %v3292
    %6641 = vmatpush1.bf16.msra.mxu0 %v3291
    %6642 = vmatprep.subr.bf16.mxu0 %v3284
    %6643 = vmatpush1.bf16.msra.mxu0 %v3283
    %6644 = vmatprep.subr.bf16.mxu0 %v3276
    %6645 = vmatpush1.bf16.msra.mxu0 %v3275
    %6646 = vmatprep.subr.bf16.mxu0 %v3268
    %6647 = vmatpush1.bf16.msra.mxu0 %v3267
    %6648 = vmatprep.subr.bf16.mxu0 %v3260
    %6649 = vmatpush1.bf16.msra.mxu0 %v3259
    %6650 = vmatprep.subr.bf16.mxu0 %v3380
    %6651 = vmatpush2.bf16.msra.mxu0 %v3379
    %6652 = vmatprep.subr.bf16.mxu0 %v3372
    %6653 = vmatpush2.bf16.msra.mxu0 %v3371
    %6654 = vmatprep.subr.bf16.mxu0 %v3364
    %6655 = vmatpush2.bf16.msra.mxu0 %v3363
    %6656 = vmatprep.subr.bf16.mxu0 %v3356
    %6657 = vmatpush2.bf16.msra.mxu0 %v3355
    %6658 = vmatprep.subr.bf16.mxu0 %v3348
    %6659 = vmatpush2.bf16.msra.mxu0 %v3347
    %6660 = vmatprep.subr.bf16.mxu0 %v3340
    %6661 = vmatpush2.bf16.msra.mxu0 %v3339
    %6662 = vmatprep.subr.bf16.mxu0 %v3332
    %6663 = vmatpush2.bf16.msra.mxu0 %v3331
    %6664 = vmatprep.subr.bf16.mxu0 %v3324
    %6665 = vmatpush2.bf16.msra.mxu0 %v3323
    %6666 = vmatprep.mubr.bf16.mxu0 %v6426
    %6667 = vmatmul.mubr.bf16.gmra.mxu0 %v6425
    %v6668 = vpop.f32.mrf.mxu0
    %v6669 = vadd.f32 %v6505, %v6668
    %v6670 = vpop.f32.mrf.mxu0
    %v6671 = vadd.f32 %v6507, %v6670
    %v6672 = vpop.f32.mrf.mxu0
    %v6673 = vpop.f32.mrf.mxu0
    %6674 = vdwg.mxu0
    %6675 = vmatprep.subr.bf16.mxu0 %v3318
    %6676 = vmatpush1.bf16.msra.mxu0 %v3317
    %6677 = vmatprep.subr.bf16.mxu0 %v3310
    %6678 = vmatpush1.bf16.msra.mxu0 %v3309
    %6679 = vmatprep.subr.bf16.mxu0 %v3302
    %6680 = vmatpush1.bf16.msra.mxu0 %v3301
    %6681 = vmatprep.subr.bf16.mxu0 %v3294
    %6682 = vmatpush1.bf16.msra.mxu0 %v3293
    %6683 = vmatprep.subr.bf16.mxu0 %v3286
    %6684 = vmatpush1.bf16.msra.mxu0 %v3285
    %6685 = vmatprep.subr.bf16.mxu0 %v3278
    %6686 = vmatpush1.bf16.msra.mxu0 %v3277
    %6687 = vmatprep.subr.bf16.mxu0 %v3270
    %6688 = vmatpush1.bf16.msra.mxu0 %v3269
    %6689 = vmatprep.subr.bf16.mxu0 %v3262
    %6690 = vmatpush1.bf16.msra.mxu0 %v3261
    %6691 = vmatprep.subr.bf16.mxu0 %v3382
    %6692 = vmatpush2.bf16.msra.mxu0 %v3381
    %6693 = vmatprep.subr.bf16.mxu0 %v3374
    %6694 = vmatpush2.bf16.msra.mxu0 %v3373
    %6695 = vmatprep.subr.bf16.mxu0 %v3366
    %6696 = vmatpush2.bf16.msra.mxu0 %v3365
    %6697 = vmatprep.subr.bf16.mxu0 %v3358
    %6698 = vmatpush2.bf16.msra.mxu0 %v3357
    %6699 = vmatprep.subr.bf16.mxu0 %v3350
    %6700 = vmatpush2.bf16.msra.mxu0 %v3349
    %6701 = vmatprep.subr.bf16.mxu0 %v3342
    %6702 = vmatpush2.bf16.msra.mxu0 %v3341
    %6703 = vmatprep.subr.bf16.mxu0 %v3334
    %6704 = vmatpush2.bf16.msra.mxu0 %v3333
    %6705 = vmatprep.subr.bf16.mxu0 %v3326
    %6706 = vmatpush2.bf16.msra.mxu0 %v3325
    %6707 = vmatprep.mubr.bf16.mxu0 %v6426
    %6708 = vmatmul.mubr.bf16.gmra.mxu0 %v6425
    %v6709 = vpop.f32.mrf.mxu0
    %v6710 = vadd.f32 %v6546, %v6709
    %v6711 = vpop.f32.mrf.mxu0
    %v6712 = vadd.f32 %v6548, %v6711
    %v6713 = vpop.f32.mrf.mxu0
    %v6714 = vpop.f32.mrf.mxu0
    %6715 = vdwg.mxu0
    %6716 = vmatprep.subr.bf16.mxu0 %v3320
    %6717 = vmatpush1.bf16.msra.mxu0 %v3319
    %6718 = vmatprep.subr.bf16.mxu0 %v3312
    %6719 = vmatpush1.bf16.msra.mxu0 %v3311
    %6720 = vmatprep.subr.bf16.mxu0 %v3304
    %6721 = vmatpush1.bf16.msra.mxu0 %v3303
    %6722 = vmatprep.subr.bf16.mxu0 %v3296
    %6723 = vmatpush1.bf16.msra.mxu0 %v3295
    %6724 = vmatprep.subr.bf16.mxu0 %v3288
    %6725 = vmatpush1.bf16.msra.mxu0 %v3287
    %6726 = vmatprep.subr.bf16.mxu0 %v3280
    %6727 = vmatpush1.bf16.msra.mxu0 %v3279
    %6728 = vmatprep.subr.bf16.mxu0 %v3272
    %6729 = vmatpush1.bf16.msra.mxu0 %v3271
    %6730 = vmatprep.subr.bf16.mxu0 %v3264
    %6731 = vmatpush1.bf16.msra.mxu0 %v3263
    %6732 = vmatprep.subr.bf16.mxu0 %v3384
    %6733 = vmatpush2.bf16.msra.mxu0 %v3383
    %6734 = vmatprep.subr.bf16.mxu0 %v3376
    %6735 = vmatpush2.bf16.msra.mxu0 %v3375
    %6736 = vmatprep.subr.bf16.mxu0 %v3368
    %6737 = vmatpush2.bf16.msra.mxu0 %v3367
    %6738 = vmatprep.subr.bf16.mxu0 %v3360
    %6739 = vmatpush2.bf16.msra.mxu0 %v3359
    %6740 = vmatprep.subr.bf16.mxu0 %v3352
    %6741 = vmatpush2.bf16.msra.mxu0 %v3351
    %6742 = vmatprep.subr.bf16.mxu0 %v3344
    %6743 = vmatpush2.bf16.msra.mxu0 %v3343
    %6744 = vmatprep.subr.bf16.mxu0 %v3336
    %6745 = vmatpush2.bf16.msra.mxu0 %v3335
    %6746 = vmatprep.subr.bf16.mxu0 %v3328
    %6747 = vmatpush2.bf16.msra.mxu0 %v3327
    %6748 = vmatprep.mubr.bf16.mxu0 %v6426
    %6749 = vmatmul.mubr.bf16.gmra.mxu0 %v6425
    %v6750 = vpop.f32.mrf.mxu0
    %v6751 = vadd.f32 %v6587, %v6750
    %v6752 = vpop.f32.mrf.mxu0
    %v6753 = vadd.f32 %v6589, %v6752
    %v6754 = vpop.f32.mrf.mxu0
    %v6755 = vpop.f32.mrf.mxu0
    %6756 = vdwg.mxu0
    %v6757 = vadd.f32 %v6628, %v764
    %v6758 = vadd.f32 %v6630, %v768
    %v6759 = vadd.f32 %v6669, %v772
    %v6760 = vadd.f32 %v6671, %v776
    %v6761 = vadd.f32 %v6710, %v780
    %v6762 = vadd.f32 %v6712, %v784
    %v6763 = vadd.f32 %v6751, %v788
    %v6764 = vadd.f32 %v6753, %v792
    %v6765 = vxor.u32 %v6757, 2147483648
    %v6766 = vxor.u32 %v6758, 2147483648
    %v6767 = vmul.f32 %v6765, 1.442695
    %v6768 = vpow.pop %v6767
    %v6769 = vmul.f32 %v6766, 1.442695
    %v6770 = vpow.pop %v6769
    %v6771 = vadd.f32 %v6768, 1.0
    %v6772 = vadd.f32 %v6770, 1.0
    %v6773 = vrcp.pop %v6771
    %v6774 = vmul.f32 1.0, %v6773
    %v6775 = vrcp.pop %v6772
    %v6776 = vmul.f32 1.0, %v6775
    %v6777 = vxor.u32 %v6759, 2147483648
    %v6778 = vxor.u32 %v6760, 2147483648
    %v6779 = vmul.f32 %v6777, 1.442695
    %v6780 = vpow.pop %v6779
    %v6781 = vmul.f32 %v6778, 1.442695
    %v6782 = vpow.pop %v6781
    %v6783 = vadd.f32 %v6780, 1.0
    %v6784 = vadd.f32 %v6782, 1.0
    %v6785 = vrcp.pop %v6783
    %v6786 = vmul.f32 1.0, %v6785
    %v6787 = vrcp.pop %v6784
    %v6788 = vmul.f32 1.0, %v6787
    %v6789 = vtanh.pop %v6761
    %v6790 = vtanh.pop %v6762
    %v6791 = vxor.u32 %v6763, 2147483648
    %v6792 = vxor.u32 %v6764, 2147483648
    %v6793 = vmul.f32 %v6791, 1.442695
    %v6794 = vpow.pop %v6793
    %v6795 = vmul.f32 %v6792, 1.442695
    %v6796 = vpow.pop %v6795
    %v6797 = vadd.f32 %v6794, 1.0
    %v6798 = vadd.f32 %v6796, 1.0
    %v6799 = vrcp.pop %v6797
    %v6800 = vmul.f32 1.0, %v6799
    %v6801 = vrcp.pop %v6798
    %v6802 = vmul.f32 1.0, %v6801
    %v6803 = vmul.f32 %v6786, %v6191
    %v6804 = vmul.f32 %v6788, %v6192
    %v6805 = vmul.f32 %v6774, %v6789
    %v6806 = vmul.f32 %v6776, %v6790
    %v6807 = vadd.f32 %v6803, %v6805
    %v6808 = vadd.f32 %v6804, %v6806
    %v6809 = vtanh.pop %v6807
    %v6810 = vtanh.pop %v6808
    %v6811 = vmul.f32 %v6800, %v6809
    %v6812 = vmul.f32 %v6802, %v6810
    %v6813 = vld [vmem:[#allocation2 + $0x180] sm:$0xff]
    %v6814 = vld [vmem:[#allocation2 + $0x188] sm:$0xff]
    %v6815 = vld [vmem:[#allocation2 + $0x190] sm:$0xff]
    %v6816 = vld [vmem:[#allocation2 + $0x198] sm:$0xff]
    %v6817 = vld [vmem:[#allocation2 + $0x1a0] sm:$0xff]
    %v6818 = vld [vmem:[#allocation2 + $0x1a8] sm:$0xff]
    %v6819 = vld [vmem:[#allocation2 + $0x1b0] sm:$0xff]
    %v6820 = vld [vmem:[#allocation2 + $0x1b8] sm:$0xff]
    %6821 = vmatprep.subr.bf16.mxu0 %v1390
    %6822 = vmatpush1.bf16.msra.mxu0 %v1389
    %6823 = vmatprep.subr.bf16.mxu0 %v1382
    %6824 = vmatpush1.bf16.msra.mxu0 %v1381
    %6825 = vmatprep.subr.bf16.mxu0 %v1374
    %6826 = vmatpush1.bf16.msra.mxu0 %v1373
    %6827 = vmatprep.subr.bf16.mxu0 %v1366
    %6828 = vmatpush1.bf16.msra.mxu0 %v1365
    %6829 = vmatprep.subr.bf16.mxu0 %v1358
    %6830 = vmatpush1.bf16.msra.mxu0 %v1357
    %6831 = vmatprep.subr.bf16.mxu0 %v1350
    %6832 = vmatpush1.bf16.msra.mxu0 %v1349
    %6833 = vmatprep.subr.bf16.mxu0 %v1342
    %6834 = vmatpush1.bf16.msra.mxu0 %v1341
    %6835 = vmatprep.subr.bf16.mxu0 %v1334
    %6836 = vmatpush1.bf16.msra.mxu0 %v1333
    %6837 = vmatprep.subr.bf16.mxu0 %v1454
    %6838 = vmatpush2.bf16.msra.mxu0 %v1453
    %6839 = vmatprep.subr.bf16.mxu0 %v1446
    %6840 = vmatpush2.bf16.msra.mxu0 %v1445
    %6841 = vmatprep.subr.bf16.mxu0 %v1438
    %6842 = vmatpush2.bf16.msra.mxu0 %v1437
    %6843 = vmatprep.subr.bf16.mxu0 %v1430
    %6844 = vmatpush2.bf16.msra.mxu0 %v1429
    %6845 = vmatprep.subr.bf16.mxu0 %v1422
    %6846 = vmatpush2.bf16.msra.mxu0 %v1421
    %6847 = vmatprep.subr.bf16.mxu0 %v1414
    %6848 = vmatpush2.bf16.msra.mxu0 %v1413
    %6849 = vmatprep.subr.bf16.mxu0 %v1406
    %6850 = vmatpush2.bf16.msra.mxu0 %v1405
    %6851 = vmatprep.subr.bf16.mxu0 %v1398
    %6852 = vmatpush2.bf16.msra.mxu0 %v1397
    %6853 = vmatprep.mubr.bf16.mxu0 %v6426
    %6854 = vmatmul.mubr.bf16.gmra.mxu0 %v6425
    %v6855 = vpop.f32.mrf.mxu0
    %v6856 = vadd.f32 0.0, %v6855
    %v6857 = vpop.f32.mrf.mxu0
    %v6858 = vadd.f32 0.0, %v6857
    %v6859 = vpop.f32.mrf.mxu0
    %v6860 = vpop.f32.mrf.mxu0
    %6861 = vdwg.mxu0
    %6862 = vmatprep.subr.bf16.mxu0 %v1392
    %6863 = vmatpush1.bf16.msra.mxu0 %v1391
    %6864 = vmatprep.subr.bf16.mxu0 %v1384
    %6865 = vmatpush1.bf16.msra.mxu0 %v1383
    %6866 = vmatprep.subr.bf16.mxu0 %v1376
    %6867 = vmatpush1.bf16.msra.mxu0 %v1375
    %6868 = vmatprep.subr.bf16.mxu0 %v1368
    %6869 = vmatpush1.bf16.msra.mxu0 %v1367
    %6870 = vmatprep.subr.bf16.mxu0 %v1360
    %6871 = vmatpush1.bf16.msra.mxu0 %v1359
    %6872 = vmatprep.subr.bf16.mxu0 %v1352
    %6873 = vmatpush1.bf16.msra.mxu0 %v1351
    %6874 = vmatprep.subr.bf16.mxu0 %v1344
    %6875 = vmatpush1.bf16.msra.mxu0 %v1343
    %6876 = vmatprep.subr.bf16.mxu0 %v1336
    %6877 = vmatpush1.bf16.msra.mxu0 %v1335
    %6878 = vmatprep.subr.bf16.mxu0 %v1456
    %6879 = vmatpush2.bf16.msra.mxu0 %v1455
    %6880 = vmatprep.subr.bf16.mxu0 %v1448
    %6881 = vmatpush2.bf16.msra.mxu0 %v1447
    %6882 = vmatprep.subr.bf16.mxu0 %v1440
    %6883 = vmatpush2.bf16.msra.mxu0 %v1439
    %6884 = vmatprep.subr.bf16.mxu0 %v1432
    %6885 = vmatpush2.bf16.msra.mxu0 %v1431
    %6886 = vmatprep.subr.bf16.mxu0 %v1424
    %6887 = vmatpush2.bf16.msra.mxu0 %v1423
    %6888 = vmatprep.subr.bf16.mxu0 %v1416
    %6889 = vmatpush2.bf16.msra.mxu0 %v1415
    %6890 = vmatprep.subr.bf16.mxu0 %v1408
    %6891 = vmatpush2.bf16.msra.mxu0 %v1407
    %6892 = vmatprep.subr.bf16.mxu0 %v1400
    %6893 = vmatpush2.bf16.msra.mxu0 %v1399
    %6894 = vmatprep.mubr.bf16.mxu0 %v6426
    %6895 = vmatmul.mubr.bf16.gmra.mxu0 %v6425
    %v6896 = vpop.f32.mrf.mxu0
    %v6897 = vadd.f32 0.0, %v6896
    %v6898 = vpop.f32.mrf.mxu0
    %v6899 = vadd.f32 0.0, %v6898
    %v6900 = vpop.f32.mrf.mxu0
    %v6901 = vpop.f32.mrf.mxu0
    %6902 = vdwg.mxu0
    %6903 = vmatprep.subr.bf16.mxu0 %v1394
    %6904 = vmatpush1.bf16.msra.mxu0 %v1393
    %6905 = vmatprep.subr.bf16.mxu0 %v1386
    %6906 = vmatpush1.bf16.msra.mxu0 %v1385
    %6907 = vmatprep.subr.bf16.mxu0 %v1378
    %6908 = vmatpush1.bf16.msra.mxu0 %v1377
    %6909 = vmatprep.subr.bf16.mxu0 %v1370
    %6910 = vmatpush1.bf16.msra.mxu0 %v1369
    %6911 = vmatprep.subr.bf16.mxu0 %v1362
    %6912 = vmatpush1.bf16.msra.mxu0 %v1361
    %6913 = vmatprep.subr.bf16.mxu0 %v1354
    %6914 = vmatpush1.bf16.msra.mxu0 %v1353
    %6915 = vmatprep.subr.bf16.mxu0 %v1346
    %6916 = vmatpush1.bf16.msra.mxu0 %v1345
    %6917 = vmatprep.subr.bf16.mxu0 %v1338
    %6918 = vmatpush1.bf16.msra.mxu0 %v1337
    %6919 = vmatprep.subr.bf16.mxu0 %v1458
    %6920 = vmatpush2.bf16.msra.mxu0 %v1457
    %6921 = vmatprep.subr.bf16.mxu0 %v1450
    %6922 = vmatpush2.bf16.msra.mxu0 %v1449
    %6923 = vmatprep.subr.bf16.mxu0 %v1442
    %6924 = vmatpush2.bf16.msra.mxu0 %v1441
    %6925 = vmatprep.subr.bf16.mxu0 %v1434
    %6926 = vmatpush2.bf16.msra.mxu0 %v1433
    %6927 = vmatprep.subr.bf16.mxu0 %v1426
    %6928 = vmatpush2.bf16.msra.mxu0 %v1425
    %6929 = vmatprep.subr.bf16.mxu0 %v1418
    %6930 = vmatpush2.bf16.msra.mxu0 %v1417
    %6931 = vmatprep.subr.bf16.mxu0 %v1410
    %6932 = vmatpush2.bf16.msra.mxu0 %v1409
    %6933 = vmatprep.subr.bf16.mxu0 %v1402
    %6934 = vmatpush2.bf16.msra.mxu0 %v1401
    %6935 = vmatprep.mubr.bf16.mxu0 %v6426
    %6936 = vmatmul.mubr.bf16.gmra.mxu0 %v6425
    %v6937 = vpop.f32.mrf.mxu0
    %v6938 = vadd.f32 0.0, %v6937
    %v6939 = vpop.f32.mrf.mxu0
    %v6940 = vadd.f32 0.0, %v6939
    %v6941 = vpop.f32.mrf.mxu0
    %v6942 = vpop.f32.mrf.mxu0
    %6943 = vdwg.mxu0
    %6944 = vmatprep.subr.bf16.mxu0 %v1396
    %6945 = vmatpush1.bf16.msra.mxu0 %v1395
    %6946 = vmatprep.subr.bf16.mxu0 %v1388
    %6947 = vmatpush1.bf16.msra.mxu0 %v1387
    %6948 = vmatprep.subr.bf16.mxu0 %v1380
    %6949 = vmatpush1.bf16.msra.mxu0 %v1379
    %6950 = vmatprep.subr.bf16.mxu0 %v1372
    %6951 = vmatpush1.bf16.msra.mxu0 %v1371
    %6952 = vmatprep.subr.bf16.mxu0 %v1364
    %6953 = vmatpush1.bf16.msra.mxu0 %v1363
    %6954 = vmatprep.subr.bf16.mxu0 %v1356
    %6955 = vmatpush1.bf16.msra.mxu0 %v1355
    %6956 = vmatprep.subr.bf16.mxu0 %v1348
    %6957 = vmatpush1.bf16.msra.mxu0 %v1347
    %6958 = vmatprep.subr.bf16.mxu0 %v1340
    %6959 = vmatpush1.bf16.msra.mxu0 %v1339
    %6960 = vmatprep.subr.bf16.mxu0 %v1460
    %6961 = vmatpush2.bf16.msra.mxu0 %v1459
    %6962 = vmatprep.subr.bf16.mxu0 %v1452
    %6963 = vmatpush2.bf16.msra.mxu0 %v1451
    %6964 = vmatprep.subr.bf16.mxu0 %v1444
    %6965 = vmatpush2.bf16.msra.mxu0 %v1443
    %6966 = vmatprep.subr.bf16.mxu0 %v1436
    %6967 = vmatpush2.bf16.msra.mxu0 %v1435
    %6968 = vmatprep.subr.bf16.mxu0 %v1428
    %6969 = vmatpush2.bf16.msra.mxu0 %v1427
    %6970 = vmatprep.subr.bf16.mxu0 %v1420
    %6971 = vmatpush2.bf16.msra.mxu0 %v1419
    %6972 = vmatprep.subr.bf16.mxu0 %v1412
    %6973 = vmatpush2.bf16.msra.mxu0 %v1411
    %6974 = vmatprep.subr.bf16.mxu0 %v1404
    %6975 = vmatpush2.bf16.msra.mxu0 %v1403
    %6976 = vmatprep.mubr.bf16.mxu0 %v6426
    %6977 = vmatmul.mubr.bf16.gmra.mxu0 %v6425
    %v6978 = vpop.f32.mrf.mxu0
    %v6979 = vadd.f32 0.0, %v6978
    %v6980 = vpop.f32.mrf.mxu0
    %v6981 = vadd.f32 0.0, %v6980
    %v6982 = vpop.f32.mrf.mxu0
    %v6983 = vpop.f32.mrf.mxu0
    %6984 = vdwg.mxu0
    %v6985 = vadd.f32 %v6813, %v6856
    %v6986 = vadd.f32 %v6814, %v6858
    %v6987 = vadd.f32 %v6815, %v6897
    %v6988 = vadd.f32 %v6816, %v6899
    %v6989 = vadd.f32 %v6817, %v6938
    %v6990 = vadd.f32 %v6818, %v6940
    %v6991 = vadd.f32 %v6819, %v6979
    %v6992 = vadd.f32 %v6820, %v6981
    %v6993 = vxor.u32 %v6985, 2147483648
    %v6994 = vxor.u32 %v6986, 2147483648
    %v6995 = vmul.f32 %v6993, 1.442695
    %v6996 = vpow.pop %v6995
    %v6997 = vmul.f32 %v6994, 1.442695
    %v6998 = vpow.pop %v6997
    %v6999 = vadd.f32 %v6996, 1.0
    %v7000 = vadd.f32 %v6998, 1.0
    %v7001 = vrcp.pop %v6999
    %v7002 = vmul.f32 1.0, %v7001
    %v7003 = vrcp.pop %v7000
    %v7004 = vmul.f32 1.0, %v7003
    %v7005 = vxor.u32 %v6987, 2147483648
    %v7006 = vxor.u32 %v6988, 2147483648
    %v7007 = vmul.f32 %v7005, 1.442695
    %v7008 = vpow.pop %v7007
    %v7009 = vmul.f32 %v7006, 1.442695
    %v7010 = vpow.pop %v7009
    %v7011 = vadd.f32 %v7008, 1.0
    %v7012 = vadd.f32 %v7010, 1.0
    %v7013 = vrcp.pop %v7011
    %v7014 = vmul.f32 1.0, %v7013
    %v7015 = vrcp.pop %v7012
    %v7016 = vmul.f32 1.0, %v7015
    %v7017 = vtanh.pop %v6989
    %v7018 = vtanh.pop %v6990
    %v7019 = vxor.u32 %v6991, 2147483648
    %v7020 = vxor.u32 %v6992, 2147483648
    %v7021 = vmul.f32 %v7019, 1.442695
    %v7022 = vpow.pop %v7021
    %v7023 = vmul.f32 %v7020, 1.442695
    %v7024 = vpow.pop %v7023
    %v7025 = vadd.f32 %v7022, 1.0
    %v7026 = vadd.f32 %v7024, 1.0
    %v7027 = vrcp.pop %v7025
    %v7028 = vmul.f32 1.0, %v7027
    %v7029 = vrcp.pop %v7026
    %v7030 = vmul.f32 1.0, %v7029
    %v7031 = vmul.f32 %v7014, %v6419
    %v7032 = vmul.f32 %v7016, %v6420
    %v7033 = vmul.f32 %v7002, %v7017
    %v7034 = vmul.f32 %v7004, %v7018
    %v7035 = vadd.f32 %v7031, %v7033
    %v7036 = vadd.f32 %v7032, %v7034
    %v7037 = vtanh.pop %v7035
    %v7038 = vtanh.pop %v7036
    %v7039 = vmul.f32 %v7028, %v7037
    %v7040 = vmul.f32 %v7030, %v7038
    %v7041 = vpack.c.bf16 %v7039, %v7039
    %v7042 = vpack.c.bf16 %v7040, %v7040
    %v7043 = vpack.c.bf16 %v6811, %v6811
    %v7044 = vpack.c.bf16 %v6812, %v6812
    %7045 = vmatprep.subr.bf16.mxu0 %v2510
    %7046 = vmatpush1.bf16.msra.mxu0 %v2509
    %7047 = vmatprep.subr.bf16.mxu0 %v2502
    %7048 = vmatpush1.bf16.msra.mxu0 %v2501
    %7049 = vmatprep.subr.bf16.mxu0 %v2494
    %7050 = vmatpush1.bf16.msra.mxu0 %v2493
    %7051 = vmatprep.subr.bf16.mxu0 %v2486
    %7052 = vmatpush1.bf16.msra.mxu0 %v2485
    %7053 = vmatprep.subr.bf16.mxu0 %v2478
    %7054 = vmatpush1.bf16.msra.mxu0 %v2477
    %7055 = vmatprep.subr.bf16.mxu0 %v2470
    %7056 = vmatpush1.bf16.msra.mxu0 %v2469
    %7057 = vmatprep.subr.bf16.mxu0 %v2462
    %7058 = vmatpush1.bf16.msra.mxu0 %v2461
    %7059 = vmatprep.subr.bf16.mxu0 %v2454
    %7060 = vmatpush1.bf16.msra.mxu0 %v2453
    %7061 = vmatprep.subr.bf16.mxu0 %v2574
    %7062 = vmatpush2.bf16.msra.mxu0 %v2573
    %7063 = vmatprep.subr.bf16.mxu0 %v2566
    %7064 = vmatpush2.bf16.msra.mxu0 %v2565
    %7065 = vmatprep.subr.bf16.mxu0 %v2558
    %7066 = vmatpush2.bf16.msra.mxu0 %v2557
    %7067 = vmatprep.subr.bf16.mxu0 %v2550
    %7068 = vmatpush2.bf16.msra.mxu0 %v2549
    %7069 = vmatprep.subr.bf16.mxu0 %v2542
    %7070 = vmatpush2.bf16.msra.mxu0 %v2541
    %7071 = vmatprep.subr.bf16.mxu0 %v2534
    %7072 = vmatpush2.bf16.msra.mxu0 %v2533
    %7073 = vmatprep.subr.bf16.mxu0 %v2526
    %7074 = vmatpush2.bf16.msra.mxu0 %v2525
    %7075 = vmatprep.subr.bf16.mxu0 %v2518
    %7076 = vmatpush2.bf16.msra.mxu0 %v2517
    %7077 = vmatprep.mubr.bf16.mxu0 %v7044
    %7078 = vmatmul.mubr.bf16.gmra.mxu0 %v7043
    %v7079 = vpop.f32.mrf.mxu0
    %v7080 = vadd.f32 0.0, %v7079
    %v7081 = vpop.f32.mrf.mxu0
    %v7082 = vadd.f32 0.0, %v7081
    %v7083 = vpop.f32.mrf.mxu0
    %v7084 = vpop.f32.mrf.mxu0
    %7085 = vdwg.mxu0
    %7086 = vmatprep.subr.bf16.mxu0 %v2512
    %7087 = vmatpush1.bf16.msra.mxu0 %v2511
    %7088 = vmatprep.subr.bf16.mxu0 %v2504
    %7089 = vmatpush1.bf16.msra.mxu0 %v2503
    %7090 = vmatprep.subr.bf16.mxu0 %v2496
    %7091 = vmatpush1.bf16.msra.mxu0 %v2495
    %7092 = vmatprep.subr.bf16.mxu0 %v2488
    %7093 = vmatpush1.bf16.msra.mxu0 %v2487
    %7094 = vmatprep.subr.bf16.mxu0 %v2480
    %7095 = vmatpush1.bf16.msra.mxu0 %v2479
    %7096 = vmatprep.subr.bf16.mxu0 %v2472
    %7097 = vmatpush1.bf16.msra.mxu0 %v2471
    %7098 = vmatprep.subr.bf16.mxu0 %v2464
    %7099 = vmatpush1.bf16.msra.mxu0 %v2463
    %7100 = vmatprep.subr.bf16.mxu0 %v2456
    %7101 = vmatpush1.bf16.msra.mxu0 %v2455
    %7102 = vmatprep.subr.bf16.mxu0 %v2576
    %7103 = vmatpush2.bf16.msra.mxu0 %v2575
    %7104 = vmatprep.subr.bf16.mxu0 %v2568
    %7105 = vmatpush2.bf16.msra.mxu0 %v2567
    %7106 = vmatprep.subr.bf16.mxu0 %v2560
    %7107 = vmatpush2.bf16.msra.mxu0 %v2559
    %7108 = vmatprep.subr.bf16.mxu0 %v2552
    %7109 = vmatpush2.bf16.msra.mxu0 %v2551
    %7110 = vmatprep.subr.bf16.mxu0 %v2544
    %7111 = vmatpush2.bf16.msra.mxu0 %v2543
    %7112 = vmatprep.subr.bf16.mxu0 %v2536
    %7113 = vmatpush2.bf16.msra.mxu0 %v2535
    %7114 = vmatprep.subr.bf16.mxu0 %v2528
    %7115 = vmatpush2.bf16.msra.mxu0 %v2527
    %7116 = vmatprep.subr.bf16.mxu0 %v2520
    %7117 = vmatpush2.bf16.msra.mxu0 %v2519
    %7118 = vmatprep.mubr.bf16.mxu0 %v7044
    %7119 = vmatmul.mubr.bf16.gmra.mxu0 %v7043
    %v7120 = vpop.f32.mrf.mxu0
    %v7121 = vadd.f32 0.0, %v7120
    %v7122 = vpop.f32.mrf.mxu0
    %v7123 = vadd.f32 0.0, %v7122
    %v7124 = vpop.f32.mrf.mxu0
    %v7125 = vpop.f32.mrf.mxu0
    %7126 = vdwg.mxu0
    %7127 = vmatprep.subr.bf16.mxu0 %v2514
    %7128 = vmatpush1.bf16.msra.mxu0 %v2513
    %7129 = vmatprep.subr.bf16.mxu0 %v2506
    %7130 = vmatpush1.bf16.msra.mxu0 %v2505
    %7131 = vmatprep.subr.bf16.mxu0 %v2498
    %7132 = vmatpush1.bf16.msra.mxu0 %v2497
    %7133 = vmatprep.subr.bf16.mxu0 %v2490
    %7134 = vmatpush1.bf16.msra.mxu0 %v2489
    %7135 = vmatprep.subr.bf16.mxu0 %v2482
    %7136 = vmatpush1.bf16.msra.mxu0 %v2481
    %7137 = vmatprep.subr.bf16.mxu0 %v2474
    %7138 = vmatpush1.bf16.msra.mxu0 %v2473
    %7139 = vmatprep.subr.bf16.mxu0 %v2466
    %7140 = vmatpush1.bf16.msra.mxu0 %v2465
    %7141 = vmatprep.subr.bf16.mxu0 %v2458
    %7142 = vmatpush1.bf16.msra.mxu0 %v2457
    %7143 = vmatprep.subr.bf16.mxu0 %v2578
    %7144 = vmatpush2.bf16.msra.mxu0 %v2577
    %7145 = vmatprep.subr.bf16.mxu0 %v2570
    %7146 = vmatpush2.bf16.msra.mxu0 %v2569
    %7147 = vmatprep.subr.bf16.mxu0 %v2562
    %7148 = vmatpush2.bf16.msra.mxu0 %v2561
    %7149 = vmatprep.subr.bf16.mxu0 %v2554
    %7150 = vmatpush2.bf16.msra.mxu0 %v2553
    %7151 = vmatprep.subr.bf16.mxu0 %v2546
    %7152 = vmatpush2.bf16.msra.mxu0 %v2545
    %7153 = vmatprep.subr.bf16.mxu0 %v2538
    %7154 = vmatpush2.bf16.msra.mxu0 %v2537
    %7155 = vmatprep.subr.bf16.mxu0 %v2530
    %7156 = vmatpush2.bf16.msra.mxu0 %v2529
    %7157 = vmatprep.subr.bf16.mxu0 %v2522
    %7158 = vmatpush2.bf16.msra.mxu0 %v2521
    %7159 = vmatprep.mubr.bf16.mxu0 %v7044
    %7160 = vmatmul.mubr.bf16.gmra.mxu0 %v7043
    %v7161 = vpop.f32.mrf.mxu0
    %v7162 = vadd.f32 0.0, %v7161
    %v7163 = vpop.f32.mrf.mxu0
    %v7164 = vadd.f32 0.0, %v7163
    %v7165 = vpop.f32.mrf.mxu0
    %v7166 = vpop.f32.mrf.mxu0
    %7167 = vdwg.mxu0
    %7168 = vmatprep.subr.bf16.mxu0 %v2516
    %7169 = vmatpush1.bf16.msra.mxu0 %v2515
    %7170 = vmatprep.subr.bf16.mxu0 %v2508
    %7171 = vmatpush1.bf16.msra.mxu0 %v2507
    %7172 = vmatprep.subr.bf16.mxu0 %v2500
    %7173 = vmatpush1.bf16.msra.mxu0 %v2499
    %7174 = vmatprep.subr.bf16.mxu0 %v2492
    %7175 = vmatpush1.bf16.msra.mxu0 %v2491
    %7176 = vmatprep.subr.bf16.mxu0 %v2484
    %7177 = vmatpush1.bf16.msra.mxu0 %v2483
    %7178 = vmatprep.subr.bf16.mxu0 %v2476
    %7179 = vmatpush1.bf16.msra.mxu0 %v2475
    %7180 = vmatprep.subr.bf16.mxu0 %v2468
    %7181 = vmatpush1.bf16.msra.mxu0 %v2467
    %7182 = vmatprep.subr.bf16.mxu0 %v2460
    %7183 = vmatpush1.bf16.msra.mxu0 %v2459
    %7184 = vmatprep.subr.bf16.mxu0 %v2580
    %7185 = vmatpush2.bf16.msra.mxu0 %v2579
    %7186 = vmatprep.subr.bf16.mxu0 %v2572
    %7187 = vmatpush2.bf16.msra.mxu0 %v2571
    %7188 = vmatprep.subr.bf16.mxu0 %v2564
    %7189 = vmatpush2.bf16.msra.mxu0 %v2563
    %7190 = vmatprep.subr.bf16.mxu0 %v2556
    %7191 = vmatpush2.bf16.msra.mxu0 %v2555
    %7192 = vmatprep.subr.bf16.mxu0 %v2548
    %7193 = vmatpush2.bf16.msra.mxu0 %v2547
    %7194 = vmatprep.subr.bf16.mxu0 %v2540
    %7195 = vmatpush2.bf16.msra.mxu0 %v2539
    %7196 = vmatprep.subr.bf16.mxu0 %v2532
    %7197 = vmatpush2.bf16.msra.mxu0 %v2531
    %7198 = vmatprep.subr.bf16.mxu0 %v2524
    %7199 = vmatpush2.bf16.msra.mxu0 %v2523
    %7200 = vmatprep.mubr.bf16.mxu0 %v7044
    %7201 = vmatmul.mubr.bf16.gmra.mxu0 %v7043
    %v7202 = vpop.f32.mrf.mxu0
    %v7203 = vadd.f32 0.0, %v7202
    %v7204 = vpop.f32.mrf.mxu0
    %v7205 = vadd.f32 0.0, %v7204
    %v7206 = vpop.f32.mrf.mxu0
    %v7207 = vpop.f32.mrf.mxu0
    %7208 = vdwg.mxu0
    %7209 = vmatprep.subr.bf16.mxu0 %v3314
    %7210 = vmatpush1.bf16.msra.mxu0 %v3313
    %7211 = vmatprep.subr.bf16.mxu0 %v3306
    %7212 = vmatpush1.bf16.msra.mxu0 %v3305
    %7213 = vmatprep.subr.bf16.mxu0 %v3298
    %7214 = vmatpush1.bf16.msra.mxu0 %v3297
    %7215 = vmatprep.subr.bf16.mxu0 %v3290
    %7216 = vmatpush1.bf16.msra.mxu0 %v3289
    %7217 = vmatprep.subr.bf16.mxu0 %v3282
    %7218 = vmatpush1.bf16.msra.mxu0 %v3281
    %7219 = vmatprep.subr.bf16.mxu0 %v3274
    %7220 = vmatpush1.bf16.msra.mxu0 %v3273
    %7221 = vmatprep.subr.bf16.mxu0 %v3266
    %7222 = vmatpush1.bf16.msra.mxu0 %v3265
    %7223 = vmatprep.subr.bf16.mxu0 %v3258
    %7224 = vmatpush1.bf16.msra.mxu0 %v3257
    %7225 = vmatprep.subr.bf16.mxu0 %v3378
    %7226 = vmatpush2.bf16.msra.mxu0 %v3377
    %7227 = vmatprep.subr.bf16.mxu0 %v3370
    %7228 = vmatpush2.bf16.msra.mxu0 %v3369
    %7229 = vmatprep.subr.bf16.mxu0 %v3362
    %7230 = vmatpush2.bf16.msra.mxu0 %v3361
    %7231 = vmatprep.subr.bf16.mxu0 %v3354
    %7232 = vmatpush2.bf16.msra.mxu0 %v3353
    %7233 = vmatprep.subr.bf16.mxu0 %v3346
    %7234 = vmatpush2.bf16.msra.mxu0 %v3345
    %7235 = vmatprep.subr.bf16.mxu0 %v3338
    %7236 = vmatpush2.bf16.msra.mxu0 %v3337
    %7237 = vmatprep.subr.bf16.mxu0 %v3330
    %7238 = vmatpush2.bf16.msra.mxu0 %v3329
    %7239 = vmatprep.subr.bf16.mxu0 %v3322
    %7240 = vmatpush2.bf16.msra.mxu0 %v3321
    %7241 = vmatprep.mubr.bf16.mxu0 %v7042
    %7242 = vmatmul.mubr.bf16.gmra.mxu0 %v7041
    %v7243 = vpop.f32.mrf.mxu0
    %v7244 = vadd.f32 %v7080, %v7243
    %v7245 = vpop.f32.mrf.mxu0
    %v7246 = vadd.f32 %v7082, %v7245
    %v7247 = vpop.f32.mrf.mxu0
    %v7248 = vpop.f32.mrf.mxu0
    %7249 = vdwg.mxu0
    %7250 = vmatprep.subr.bf16.mxu0 %v3316
    %7251 = vmatpush1.bf16.msra.mxu0 %v3315
    %7252 = vmatprep.subr.bf16.mxu0 %v3308
    %7253 = vmatpush1.bf16.msra.mxu0 %v3307
    %7254 = vmatprep.subr.bf16.mxu0 %v3300
    %7255 = vmatpush1.bf16.msra.mxu0 %v3299
    %7256 = vmatprep.subr.bf16.mxu0 %v3292
    %7257 = vmatpush1.bf16.msra.mxu0 %v3291
    %7258 = vmatprep.subr.bf16.mxu0 %v3284
    %7259 = vmatpush1.bf16.msra.mxu0 %v3283
    %7260 = vmatprep.subr.bf16.mxu0 %v3276
    %7261 = vmatpush1.bf16.msra.mxu0 %v3275
    %7262 = vmatprep.subr.bf16.mxu0 %v3268
    %7263 = vmatpush1.bf16.msra.mxu0 %v3267
    %7264 = vmatprep.subr.bf16.mxu0 %v3260
    %7265 = vmatpush1.bf16.msra.mxu0 %v3259
    %7266 = vmatprep.subr.bf16.mxu0 %v3380
    %7267 = vmatpush2.bf16.msra.mxu0 %v3379
    %7268 = vmatprep.subr.bf16.mxu0 %v3372
    %7269 = vmatpush2.bf16.msra.mxu0 %v3371
    %7270 = vmatprep.subr.bf16.mxu0 %v3364
    %7271 = vmatpush2.bf16.msra.mxu0 %v3363
    %7272 = vmatprep.subr.bf16.mxu0 %v3356
    %7273 = vmatpush2.bf16.msra.mxu0 %v3355
    %7274 = vmatprep.subr.bf16.mxu0 %v3348
    %7275 = vmatpush2.bf16.msra.mxu0 %v3347
    %7276 = vmatprep.subr.bf16.mxu0 %v3340
    %7277 = vmatpush2.bf16.msra.mxu0 %v3339
    %7278 = vmatprep.subr.bf16.mxu0 %v3332
    %7279 = vmatpush2.bf16.msra.mxu0 %v3331
    %7280 = vmatprep.subr.bf16.mxu0 %v3324
    %7281 = vmatpush2.bf16.msra.mxu0 %v3323
    %7282 = vmatprep.mubr.bf16.mxu0 %v7042
    %7283 = vmatmul.mubr.bf16.gmra.mxu0 %v7041
    %v7284 = vpop.f32.mrf.mxu0
    %v7285 = vadd.f32 %v7121, %v7284
    %v7286 = vpop.f32.mrf.mxu0
    %v7287 = vadd.f32 %v7123, %v7286
    %v7288 = vpop.f32.mrf.mxu0
    %v7289 = vpop.f32.mrf.mxu0
    %7290 = vdwg.mxu0
    %7291 = vmatprep.subr.bf16.mxu0 %v3318
    %7292 = vmatpush1.bf16.msra.mxu0 %v3317
    %7293 = vmatprep.subr.bf16.mxu0 %v3310
    %7294 = vmatpush1.bf16.msra.mxu0 %v3309
    %7295 = vmatprep.subr.bf16.mxu0 %v3302
    %7296 = vmatpush1.bf16.msra.mxu0 %v3301
    %7297 = vmatprep.subr.bf16.mxu0 %v3294
    %7298 = vmatpush1.bf16.msra.mxu0 %v3293
    %7299 = vmatprep.subr.bf16.mxu0 %v3286
    %7300 = vmatpush1.bf16.msra.mxu0 %v3285
    %7301 = vmatprep.subr.bf16.mxu0 %v3278
    %7302 = vmatpush1.bf16.msra.mxu0 %v3277
    %7303 = vmatprep.subr.bf16.mxu0 %v3270
    %7304 = vmatpush1.bf16.msra.mxu0 %v3269
    %7305 = vmatprep.subr.bf16.mxu0 %v3262
    %7306 = vmatpush1.bf16.msra.mxu0 %v3261
    %7307 = vmatprep.subr.bf16.mxu0 %v3382
    %7308 = vmatpush2.bf16.msra.mxu0 %v3381
    %7309 = vmatprep.subr.bf16.mxu0 %v3374
    %7310 = vmatpush2.bf16.msra.mxu0 %v3373
    %7311 = vmatprep.subr.bf16.mxu0 %v3366
    %7312 = vmatpush2.bf16.msra.mxu0 %v3365
    %7313 = vmatprep.subr.bf16.mxu0 %v3358
    %7314 = vmatpush2.bf16.msra.mxu0 %v3357
    %7315 = vmatprep.subr.bf16.mxu0 %v3350
    %7316 = vmatpush2.bf16.msra.mxu0 %v3349
    %7317 = vmatprep.subr.bf16.mxu0 %v3342
    %7318 = vmatpush2.bf16.msra.mxu0 %v3341
    %7319 = vmatprep.subr.bf16.mxu0 %v3334
    %7320 = vmatpush2.bf16.msra.mxu0 %v3333
    %7321 = vmatprep.subr.bf16.mxu0 %v3326
    %7322 = vmatpush2.bf16.msra.mxu0 %v3325
    %7323 = vmatprep.mubr.bf16.mxu0 %v7042
    %7324 = vmatmul.mubr.bf16.gmra.mxu0 %v7041
    %v7325 = vpop.f32.mrf.mxu0
    %v7326 = vadd.f32 %v7162, %v7325
    %v7327 = vpop.f32.mrf.mxu0
    %v7328 = vadd.f32 %v7164, %v7327
    %v7329 = vpop.f32.mrf.mxu0
    %v7330 = vpop.f32.mrf.mxu0
    %7331 = vdwg.mxu0
    %7332 = vmatprep.subr.bf16.mxu0 %v3320
    %7333 = vmatpush1.bf16.msra.mxu0 %v3319
    %7334 = vmatprep.subr.bf16.mxu0 %v3312
    %7335 = vmatpush1.bf16.msra.mxu0 %v3311
    %7336 = vmatprep.subr.bf16.mxu0 %v3304
    %7337 = vmatpush1.bf16.msra.mxu0 %v3303
    %7338 = vmatprep.subr.bf16.mxu0 %v3296
    %7339 = vmatpush1.bf16.msra.mxu0 %v3295
    %7340 = vmatprep.subr.bf16.mxu0 %v3288
    %7341 = vmatpush1.bf16.msra.mxu0 %v3287
    %7342 = vmatprep.subr.bf16.mxu0 %v3280
    %7343 = vmatpush1.bf16.msra.mxu0 %v3279
    %7344 = vmatprep.subr.bf16.mxu0 %v3272
    %7345 = vmatpush1.bf16.msra.mxu0 %v3271
    %7346 = vmatprep.subr.bf16.mxu0 %v3264
    %7347 = vmatpush1.bf16.msra.mxu0 %v3263
    %7348 = vmatprep.subr.bf16.mxu0 %v3384
    %7349 = vmatpush2.bf16.msra.mxu0 %v3383
    %7350 = vmatprep.subr.bf16.mxu0 %v3376
    %7351 = vmatpush2.bf16.msra.mxu0 %v3375
    %7352 = vmatprep.subr.bf16.mxu0 %v3368
    %7353 = vmatpush2.bf16.msra.mxu0 %v3367
    %7354 = vmatprep.subr.bf16.mxu0 %v3360
    %7355 = vmatpush2.bf16.msra.mxu0 %v3359
    %7356 = vmatprep.subr.bf16.mxu0 %v3352
    %7357 = vmatpush2.bf16.msra.mxu0 %v3351
    %7358 = vmatprep.subr.bf16.mxu0 %v3344
    %7359 = vmatpush2.bf16.msra.mxu0 %v3343
    %7360 = vmatprep.subr.bf16.mxu0 %v3336
    %7361 = vmatpush2.bf16.msra.mxu0 %v3335
    %7362 = vmatprep.subr.bf16.mxu0 %v3328
    %7363 = vmatpush2.bf16.msra.mxu0 %v3327
    %7364 = vmatprep.mubr.bf16.mxu0 %v7042
    %7365 = vmatmul.mubr.bf16.gmra.mxu0 %v7041
    %v7366 = vpop.f32.mrf.mxu0
    %v7367 = vadd.f32 %v7203, %v7366
    %v7368 = vpop.f32.mrf.mxu0
    %v7369 = vadd.f32 %v7205, %v7368
    %v7370 = vpop.f32.mrf.mxu0
    %v7371 = vpop.f32.mrf.mxu0
    %7372 = vdwg.mxu0
    %v7373 = vadd.f32 %v7244, %v764
    %v7374 = vadd.f32 %v7246, %v768
    %v7375 = vadd.f32 %v7285, %v772
    %v7376 = vadd.f32 %v7287, %v776
    %v7377 = vadd.f32 %v7326, %v780
    %v7378 = vadd.f32 %v7328, %v784
    %v7379 = vadd.f32 %v7367, %v788
    %v7380 = vadd.f32 %v7369, %v792
    %v7381 = vxor.u32 %v7373, 2147483648
    %v7382 = vxor.u32 %v7374, 2147483648
    %v7383 = vmul.f32 %v7381, 1.442695
    %v7384 = vpow.pop %v7383
    %v7385 = vmul.f32 %v7382, 1.442695
    %v7386 = vpow.pop %v7385
    %v7387 = vadd.f32 %v7384, 1.0
    %v7388 = vadd.f32 %v7386, 1.0
    %v7389 = vrcp.pop %v7387
    %v7390 = vmul.f32 1.0, %v7389
    %v7391 = vrcp.pop %v7388
    %v7392 = vmul.f32 1.0, %v7391
    %v7393 = vxor.u32 %v7375, 2147483648
    %v7394 = vxor.u32 %v7376, 2147483648
    %v7395 = vmul.f32 %v7393, 1.442695
    %v7396 = vpow.pop %v7395
    %v7397 = vmul.f32 %v7394, 1.442695
    %v7398 = vpow.pop %v7397
    %v7399 = vadd.f32 %v7396, 1.0
    %v7400 = vadd.f32 %v7398, 1.0
    %v7401 = vrcp.pop %v7399
    %v7402 = vmul.f32 1.0, %v7401
    %v7403 = vrcp.pop %v7400
    %v7404 = vmul.f32 1.0, %v7403
    %v7405 = vtanh.pop %v7377
    %v7406 = vtanh.pop %v7378
    %v7407 = vxor.u32 %v7379, 2147483648
    %v7408 = vxor.u32 %v7380, 2147483648
    %v7409 = vmul.f32 %v7407, 1.442695
    %v7410 = vpow.pop %v7409
    %v7411 = vmul.f32 %v7408, 1.442695
    %v7412 = vpow.pop %v7411
    %v7413 = vadd.f32 %v7410, 1.0
    %v7414 = vadd.f32 %v7412, 1.0
    %v7415 = vrcp.pop %v7413
    %v7416 = vmul.f32 1.0, %v7415
    %v7417 = vrcp.pop %v7414
    %v7418 = vmul.f32 1.0, %v7417
    %v7419 = vmul.f32 %v7402, %v6807
    %v7420 = vmul.f32 %v7404, %v6808
    %v7421 = vmul.f32 %v7390, %v7405
    %v7422 = vmul.f32 %v7392, %v7406
    %v7423 = vadd.f32 %v7419, %v7421
    %v7424 = vadd.f32 %v7420, %v7422
    %v7425 = vtanh.pop %v7423
    %v7426 = vtanh.pop %v7424
    %v7427 = vmul.f32 %v7416, %v7425
    %v7428 = vmul.f32 %v7418, %v7426
    %v7429 = vld [vmem:[#allocation2 + $0x1c0] sm:$0xff]
    %v7430 = vld [vmem:[#allocation2 + $0x1c8] sm:$0xff]
    %v7431 = vld [vmem:[#allocation2 + $0x1d0] sm:$0xff]
    %v7432 = vld [vmem:[#allocation2 + $0x1d8] sm:$0xff]
    %v7433 = vld [vmem:[#allocation2 + $0x1e0] sm:$0xff]
    %v7434 = vld [vmem:[#allocation2 + $0x1e8] sm:$0xff]
    %v7435 = vld [vmem:[#allocation2 + $0x1f0] sm:$0xff]
    %v7436 = vld [vmem:[#allocation2 + $0x1f8] sm:$0xff]
    %7437 = vmatprep.subr.bf16.mxu0 %v1390
    %7438 = vmatpush1.bf16.msra.mxu0 %v1389
    %7439 = vmatprep.subr.bf16.mxu0 %v1382
    %7440 = vmatpush1.bf16.msra.mxu0 %v1381
    %7441 = vmatprep.subr.bf16.mxu0 %v1374
    %7442 = vmatpush1.bf16.msra.mxu0 %v1373
    %7443 = vmatprep.subr.bf16.mxu0 %v1366
    %7444 = vmatpush1.bf16.msra.mxu0 %v1365
    %7445 = vmatprep.subr.bf16.mxu0 %v1358
    %7446 = vmatpush1.bf16.msra.mxu0 %v1357
    %7447 = vmatprep.subr.bf16.mxu0 %v1350
    %7448 = vmatpush1.bf16.msra.mxu0 %v1349
    %7449 = vmatprep.subr.bf16.mxu0 %v1342
    %7450 = vmatpush1.bf16.msra.mxu0 %v1341
    %7451 = vmatprep.subr.bf16.mxu0 %v1334
    %7452 = vmatpush1.bf16.msra.mxu0 %v1333
    %7453 = vmatprep.subr.bf16.mxu0 %v1454
    %7454 = vmatpush2.bf16.msra.mxu0 %v1453
    %7455 = vmatprep.subr.bf16.mxu0 %v1446
    %7456 = vmatpush2.bf16.msra.mxu0 %v1445
    %7457 = vmatprep.subr.bf16.mxu0 %v1438
    %7458 = vmatpush2.bf16.msra.mxu0 %v1437
    %7459 = vmatprep.subr.bf16.mxu0 %v1430
    %7460 = vmatpush2.bf16.msra.mxu0 %v1429
    %7461 = vmatprep.subr.bf16.mxu0 %v1422
    %7462 = vmatpush2.bf16.msra.mxu0 %v1421
    %7463 = vmatprep.subr.bf16.mxu0 %v1414
    %7464 = vmatpush2.bf16.msra.mxu0 %v1413
    %7465 = vmatprep.subr.bf16.mxu0 %v1406
    %7466 = vmatpush2.bf16.msra.mxu0 %v1405
    %7467 = vmatprep.subr.bf16.mxu0 %v1398
    %7468 = vmatpush2.bf16.msra.mxu0 %v1397
    %7469 = vmatprep.mubr.bf16.mxu0 %v7042
    %7470 = vmatmul.mubr.bf16.gmra.mxu0 %v7041
    %v7471 = vpop.f32.mrf.mxu0
    %v7472 = vadd.f32 0.0, %v7471
    %v7473 = vpop.f32.mrf.mxu0
    %v7474 = vadd.f32 0.0, %v7473
    %v7475 = vpop.f32.mrf.mxu0
    %v7476 = vpop.f32.mrf.mxu0
    %7477 = vdwg.mxu0
    %7478 = vmatprep.subr.bf16.mxu0 %v1392
    %7479 = vmatpush1.bf16.msra.mxu0 %v1391
    %7480 = vmatprep.subr.bf16.mxu0 %v1384
    %7481 = vmatpush1.bf16.msra.mxu0 %v1383
    %7482 = vmatprep.subr.bf16.mxu0 %v1376
    %7483 = vmatpush1.bf16.msra.mxu0 %v1375
    %7484 = vmatprep.subr.bf16.mxu0 %v1368
    %7485 = vmatpush1.bf16.msra.mxu0 %v1367
    %7486 = vmatprep.subr.bf16.mxu0 %v1360
    %7487 = vmatpush1.bf16.msra.mxu0 %v1359
    %7488 = vmatprep.subr.bf16.mxu0 %v1352
    %7489 = vmatpush1.bf16.msra.mxu0 %v1351
    %7490 = vmatprep.subr.bf16.mxu0 %v1344
    %7491 = vmatpush1.bf16.msra.mxu0 %v1343
    %7492 = vmatprep.subr.bf16.mxu0 %v1336
    %7493 = vmatpush1.bf16.msra.mxu0 %v1335
    %7494 = vmatprep.subr.bf16.mxu0 %v1456
    %7495 = vmatpush2.bf16.msra.mxu0 %v1455
    %7496 = vmatprep.subr.bf16.mxu0 %v1448
    %7497 = vmatpush2.bf16.msra.mxu0 %v1447
    %7498 = vmatprep.subr.bf16.mxu0 %v1440
    %7499 = vmatpush2.bf16.msra.mxu0 %v1439
    %7500 = vmatprep.subr.bf16.mxu0 %v1432
    %7501 = vmatpush2.bf16.msra.mxu0 %v1431
    %7502 = vmatprep.subr.bf16.mxu0 %v1424
    %7503 = vmatpush2.bf16.msra.mxu0 %v1423
    %7504 = vmatprep.subr.bf16.mxu0 %v1416
    %7505 = vmatpush2.bf16.msra.mxu0 %v1415
    %7506 = vmatprep.subr.bf16.mxu0 %v1408
    %7507 = vmatpush2.bf16.msra.mxu0 %v1407
    %7508 = vmatprep.subr.bf16.mxu0 %v1400
    %7509 = vmatpush2.bf16.msra.mxu0 %v1399
    %7510 = vmatprep.mubr.bf16.mxu0 %v7042
    %7511 = vmatmul.mubr.bf16.gmra.mxu0 %v7041
    %v7512 = vpop.f32.mrf.mxu0
    %v7513 = vadd.f32 0.0, %v7512
    %v7514 = vpop.f32.mrf.mxu0
    %v7515 = vadd.f32 0.0, %v7514
    %v7516 = vpop.f32.mrf.mxu0
    %v7517 = vpop.f32.mrf.mxu0
    %7518 = vdwg.mxu0
    %7519 = vmatprep.subr.bf16.mxu0 %v1394
    %7520 = vmatpush1.bf16.msra.mxu0 %v1393
    %7521 = vmatprep.subr.bf16.mxu0 %v1386
    %7522 = vmatpush1.bf16.msra.mxu0 %v1385
    %7523 = vmatprep.subr.bf16.mxu0 %v1378
    %7524 = vmatpush1.bf16.msra.mxu0 %v1377
    %7525 = vmatprep.subr.bf16.mxu0 %v1370
    %7526 = vmatpush1.bf16.msra.mxu0 %v1369
    %7527 = vmatprep.subr.bf16.mxu0 %v1362
    %7528 = vmatpush1.bf16.msra.mxu0 %v1361
    %7529 = vmatprep.subr.bf16.mxu0 %v1354
    %7530 = vmatpush1.bf16.msra.mxu0 %v1353
    %7531 = vmatprep.subr.bf16.mxu0 %v1346
    %7532 = vmatpush1.bf16.msra.mxu0 %v1345
    %7533 = vmatprep.subr.bf16.mxu0 %v1338
    %7534 = vmatpush1.bf16.msra.mxu0 %v1337
    %7535 = vmatprep.subr.bf16.mxu0 %v1458
    %7536 = vmatpush2.bf16.msra.mxu0 %v1457
    %7537 = vmatprep.subr.bf16.mxu0 %v1450
    %7538 = vmatpush2.bf16.msra.mxu0 %v1449
    %7539 = vmatprep.subr.bf16.mxu0 %v1442
    %7540 = vmatpush2.bf16.msra.mxu0 %v1441
    %7541 = vmatprep.subr.bf16.mxu0 %v1434
    %7542 = vmatpush2.bf16.msra.mxu0 %v1433
    %7543 = vmatprep.subr.bf16.mxu0 %v1426
    %7544 = vmatpush2.bf16.msra.mxu0 %v1425
    %7545 = vmatprep.subr.bf16.mxu0 %v1418
    %7546 = vmatpush2.bf16.msra.mxu0 %v1417
    %7547 = vmatprep.subr.bf16.mxu0 %v1410
    %7548 = vmatpush2.bf16.msra.mxu0 %v1409
    %7549 = vmatprep.subr.bf16.mxu0 %v1402
    %7550 = vmatpush2.bf16.msra.mxu0 %v1401
    %7551 = vmatprep.mubr.bf16.mxu0 %v7042
    %7552 = vmatmul.mubr.bf16.gmra.mxu0 %v7041
    %v7553 = vpop.f32.mrf.mxu0
    %v7554 = vadd.f32 0.0, %v7553
    %v7555 = vpop.f32.mrf.mxu0
    %v7556 = vadd.f32 0.0, %v7555
    %v7557 = vpop.f32.mrf.mxu0
    %v7558 = vpop.f32.mrf.mxu0
    %7559 = vdwg.mxu0
    %7560 = vmatprep.subr.bf16.mxu0 %v1396
    %7561 = vmatpush1.bf16.msra.mxu0 %v1395
    %7562 = vmatprep.subr.bf16.mxu0 %v1388
    %7563 = vmatpush1.bf16.msra.mxu0 %v1387
    %7564 = vmatprep.subr.bf16.mxu0 %v1380
    %7565 = vmatpush1.bf16.msra.mxu0 %v1379
    %7566 = vmatprep.subr.bf16.mxu0 %v1372
    %7567 = vmatpush1.bf16.msra.mxu0 %v1371
    %7568 = vmatprep.subr.bf16.mxu0 %v1364
    %7569 = vmatpush1.bf16.msra.mxu0 %v1363
    %7570 = vmatprep.subr.bf16.mxu0 %v1356
    %7571 = vmatpush1.bf16.msra.mxu0 %v1355
    %7572 = vmatprep.subr.bf16.mxu0 %v1348
    %7573 = vmatpush1.bf16.msra.mxu0 %v1347
    %7574 = vmatprep.subr.bf16.mxu0 %v1340
    %7575 = vmatpush1.bf16.msra.mxu0 %v1339
    %7576 = vmatprep.subr.bf16.mxu0 %v1460
    %7577 = vmatpush2.bf16.msra.mxu0 %v1459
    %7578 = vmatprep.subr.bf16.mxu0 %v1452
    %7579 = vmatpush2.bf16.msra.mxu0 %v1451
    %7580 = vmatprep.subr.bf16.mxu0 %v1444
    %7581 = vmatpush2.bf16.msra.mxu0 %v1443
    %7582 = vmatprep.subr.bf16.mxu0 %v1436
    %7583 = vmatpush2.bf16.msra.mxu0 %v1435
    %7584 = vmatprep.subr.bf16.mxu0 %v1428
    %7585 = vmatpush2.bf16.msra.mxu0 %v1427
    %7586 = vmatprep.subr.bf16.mxu0 %v1420
    %7587 = vmatpush2.bf16.msra.mxu0 %v1419
    %7588 = vmatprep.subr.bf16.mxu0 %v1412
    %7589 = vmatpush2.bf16.msra.mxu0 %v1411
    %7590 = vmatprep.subr.bf16.mxu0 %v1404
    %7591 = vmatpush2.bf16.msra.mxu0 %v1403
    %7592 = vmatprep.mubr.bf16.mxu0 %v7042
    %7593 = vmatmul.mubr.bf16.gmra.mxu0 %v7041
    %v7594 = vpop.f32.mrf.mxu0
    %v7595 = vadd.f32 0.0, %v7594
    %v7596 = vpop.f32.mrf.mxu0
    %v7597 = vadd.f32 0.0, %v7596
    %v7598 = vpop.f32.mrf.mxu0
    %v7599 = vpop.f32.mrf.mxu0
    %7600 = vdwg.mxu0
    %v7601 = vadd.f32 %v7429, %v7472
    %v7602 = vadd.f32 %v7430, %v7474
    %v7603 = vadd.f32 %v7431, %v7513
    %v7604 = vadd.f32 %v7432, %v7515
    %v7605 = vadd.f32 %v7433, %v7554
    %v7606 = vadd.f32 %v7434, %v7556
    %v7607 = vadd.f32 %v7435, %v7595
    %v7608 = vadd.f32 %v7436, %v7597
    %v7609 = vxor.u32 %v7601, 2147483648
    %v7610 = vxor.u32 %v7602, 2147483648
    %v7611 = vmul.f32 %v7609, 1.442695
    %v7612 = vpow.pop %v7611
    %v7613 = vmul.f32 %v7610, 1.442695
    %v7614 = vpow.pop %v7613
    %v7615 = vadd.f32 %v7612, 1.0
    %v7616 = vadd.f32 %v7614, 1.0
    %v7617 = vrcp.pop %v7615
    %v7618 = vmul.f32 1.0, %v7617
    %v7619 = vrcp.pop %v7616
    %v7620 = vmul.f32 1.0, %v7619
    %v7621 = vxor.u32 %v7603, 2147483648
    %v7622 = vxor.u32 %v7604, 2147483648
    %v7623 = vmul.f32 %v7621, 1.442695
    %v7624 = vpow.pop %v7623
    %v7625 = vmul.f32 %v7622, 1.442695
    %v7626 = vpow.pop %v7625
    %v7627 = vadd.f32 %v7624, 1.0
    %v7628 = vadd.f32 %v7626, 1.0
    %v7629 = vrcp.pop %v7627
    %v7630 = vmul.f32 1.0, %v7629
    %v7631 = vrcp.pop %v7628
    %v7632 = vmul.f32 1.0, %v7631
    %v7633 = vtanh.pop %v7605
    %v7634 = vtanh.pop %v7606
    %v7635 = vxor.u32 %v7607, 2147483648
    %v7636 = vxor.u32 %v7608, 2147483648
    %v7637 = vmul.f32 %v7635, 1.442695
    %v7638 = vpow.pop %v7637
    %v7639 = vmul.f32 %v7636, 1.442695
    %v7640 = vpow.pop %v7639
    %v7641 = vadd.f32 %v7638, 1.0
    %v7642 = vadd.f32 %v7640, 1.0
    %v7643 = vrcp.pop %v7641
    %v7644 = vmul.f32 1.0, %v7643
    %v7645 = vrcp.pop %v7642
    %v7646 = vmul.f32 1.0, %v7645
    %v7647 = vmul.f32 %v7630, %v7035
    %v7648 = vmul.f32 %v7632, %v7036
    %v7649 = vmul.f32 %v7618, %v7633
    %v7650 = vmul.f32 %v7620, %v7634
    %v7651 = vadd.f32 %v7647, %v7649
    %v7652 = vadd.f32 %v7648, %v7650
    %v7653 = vtanh.pop %v7651
    %v7654 = vtanh.pop %v7652
    %v7655 = vmul.f32 %v7644, %v7653
    %v7656 = vmul.f32 %v7646, %v7654
    %v7657 = vpack.c.bf16 %v7655, %v7655
    %v7658 = vpack.c.bf16 %v7656, %v7656
    %v7659 = vpack.c.bf16 %v7427, %v7427
    %v7660 = vpack.c.bf16 %v7428, %v7428
    %7661 = vmatprep.subr.bf16.mxu0 %v2510
    %7662 = vmatpush1.bf16.msra.mxu0 %v2509
    %7663 = vmatprep.subr.bf16.mxu0 %v2502
    %7664 = vmatpush1.bf16.msra.mxu0 %v2501
    %7665 = vmatprep.subr.bf16.mxu0 %v2494
    %7666 = vmatpush1.bf16.msra.mxu0 %v2493
    %7667 = vmatprep.subr.bf16.mxu0 %v2486
    %7668 = vmatpush1.bf16.msra.mxu0 %v2485
    %7669 = vmatprep.subr.bf16.mxu0 %v2478
    %7670 = vmatpush1.bf16.msra.mxu0 %v2477
    %7671 = vmatprep.subr.bf16.mxu0 %v2470
    %7672 = vmatpush1.bf16.msra.mxu0 %v2469
    %7673 = vmatprep.subr.bf16.mxu0 %v2462
    %7674 = vmatpush1.bf16.msra.mxu0 %v2461
    %7675 = vmatprep.subr.bf16.mxu0 %v2454
    %7676 = vmatpush1.bf16.msra.mxu0 %v2453
    %7677 = vmatprep.subr.bf16.mxu0 %v2574
    %7678 = vmatpush2.bf16.msra.mxu0 %v2573
    %7679 = vmatprep.subr.bf16.mxu0 %v2566
    %7680 = vmatpush2.bf16.msra.mxu0 %v2565
    %7681 = vmatprep.subr.bf16.mxu0 %v2558
    %7682 = vmatpush2.bf16.msra.mxu0 %v2557
    %7683 = vmatprep.subr.bf16.mxu0 %v2550
    %7684 = vmatpush2.bf16.msra.mxu0 %v2549
    %7685 = vmatprep.subr.bf16.mxu0 %v2542
    %7686 = vmatpush2.bf16.msra.mxu0 %v2541
    %7687 = vmatprep.subr.bf16.mxu0 %v2534
    %7688 = vmatpush2.bf16.msra.mxu0 %v2533
    %7689 = vmatprep.subr.bf16.mxu0 %v2526
    %7690 = vmatpush2.bf16.msra.mxu0 %v2525
    %7691 = vmatprep.subr.bf16.mxu0 %v2518
    %7692 = vmatpush2.bf16.msra.mxu0 %v2517
    %7693 = vmatprep.mubr.bf16.mxu0 %v7660
    %7694 = vmatmul.mubr.bf16.gmra.mxu0 %v7659
    %v7695 = vpop.f32.mrf.mxu0
    %v7696 = vadd.f32 0.0, %v7695
    %v7697 = vpop.f32.mrf.mxu0
    %v7698 = vadd.f32 0.0, %v7697
    %v7699 = vpop.f32.mrf.mxu0
    %v7700 = vpop.f32.mrf.mxu0
    %7701 = vdwg.mxu0
    %7702 = vmatprep.subr.bf16.mxu0 %v2512
    %7703 = vmatpush1.bf16.msra.mxu0 %v2511
    %7704 = vmatprep.subr.bf16.mxu0 %v2504
    %7705 = vmatpush1.bf16.msra.mxu0 %v2503
    %7706 = vmatprep.subr.bf16.mxu0 %v2496
    %7707 = vmatpush1.bf16.msra.mxu0 %v2495
    %7708 = vmatprep.subr.bf16.mxu0 %v2488
    %7709 = vmatpush1.bf16.msra.mxu0 %v2487
    %7710 = vmatprep.subr.bf16.mxu0 %v2480
    %7711 = vmatpush1.bf16.msra.mxu0 %v2479
    %7712 = vmatprep.subr.bf16.mxu0 %v2472
    %7713 = vmatpush1.bf16.msra.mxu0 %v2471
    %7714 = vmatprep.subr.bf16.mxu0 %v2464
    %7715 = vmatpush1.bf16.msra.mxu0 %v2463
    %7716 = vmatprep.subr.bf16.mxu0 %v2456
    %7717 = vmatpush1.bf16.msra.mxu0 %v2455
    %7718 = vmatprep.subr.bf16.mxu0 %v2576
    %7719 = vmatpush2.bf16.msra.mxu0 %v2575
    %7720 = vmatprep.subr.bf16.mxu0 %v2568
    %7721 = vmatpush2.bf16.msra.mxu0 %v2567
    %7722 = vmatprep.subr.bf16.mxu0 %v2560
    %7723 = vmatpush2.bf16.msra.mxu0 %v2559
    %7724 = vmatprep.subr.bf16.mxu0 %v2552
    %7725 = vmatpush2.bf16.msra.mxu0 %v2551
    %7726 = vmatprep.subr.bf16.mxu0 %v2544
    %7727 = vmatpush2.bf16.msra.mxu0 %v2543
    %7728 = vmatprep.subr.bf16.mxu0 %v2536
    %7729 = vmatpush2.bf16.msra.mxu0 %v2535
    %7730 = vmatprep.subr.bf16.mxu0 %v2528
    %7731 = vmatpush2.bf16.msra.mxu0 %v2527
    %7732 = vmatprep.subr.bf16.mxu0 %v2520
    %7733 = vmatpush2.bf16.msra.mxu0 %v2519
    %7734 = vmatprep.mubr.bf16.mxu0 %v7660
    %7735 = vmatmul.mubr.bf16.gmra.mxu0 %v7659
    %v7736 = vpop.f32.mrf.mxu0
    %v7737 = vadd.f32 0.0, %v7736
    %v7738 = vpop.f32.mrf.mxu0
    %v7739 = vadd.f32 0.0, %v7738
    %v7740 = vpop.f32.mrf.mxu0
    %v7741 = vpop.f32.mrf.mxu0
    %7742 = vdwg.mxu0
    %7743 = vmatprep.subr.bf16.mxu0 %v2514
    %7744 = vmatpush1.bf16.msra.mxu0 %v2513
    %7745 = vmatprep.subr.bf16.mxu0 %v2506
    %7746 = vmatpush1.bf16.msra.mxu0 %v2505
    %7747 = vmatprep.subr.bf16.mxu0 %v2498
    %7748 = vmatpush1.bf16.msra.mxu0 %v2497
    %7749 = vmatprep.subr.bf16.mxu0 %v2490
    %7750 = vmatpush1.bf16.msra.mxu0 %v2489
    %7751 = vmatprep.subr.bf16.mxu0 %v2482
    %7752 = vmatpush1.bf16.msra.mxu0 %v2481
    %7753 = vmatprep.subr.bf16.mxu0 %v2474
    %7754 = vmatpush1.bf16.msra.mxu0 %v2473
    %7755 = vmatprep.subr.bf16.mxu0 %v2466
    %7756 = vmatpush1.bf16.msra.mxu0 %v2465
    %7757 = vmatprep.subr.bf16.mxu0 %v2458
    %7758 = vmatpush1.bf16.msra.mxu0 %v2457
    %7759 = vmatprep.subr.bf16.mxu0 %v2578
    %7760 = vmatpush2.bf16.msra.mxu0 %v2577
    %7761 = vmatprep.subr.bf16.mxu0 %v2570
    %7762 = vmatpush2.bf16.msra.mxu0 %v2569
    %7763 = vmatprep.subr.bf16.mxu0 %v2562
    %7764 = vmatpush2.bf16.msra.mxu0 %v2561
    %7765 = vmatprep.subr.bf16.mxu0 %v2554
    %7766 = vmatpush2.bf16.msra.mxu0 %v2553
    %7767 = vmatprep.subr.bf16.mxu0 %v2546
    %7768 = vmatpush2.bf16.msra.mxu0 %v2545
    %7769 = vmatprep.subr.bf16.mxu0 %v2538
    %7770 = vmatpush2.bf16.msra.mxu0 %v2537
    %7771 = vmatprep.subr.bf16.mxu0 %v2530
    %7772 = vmatpush2.bf16.msra.mxu0 %v2529
    %7773 = vmatprep.subr.bf16.mxu0 %v2522
    %7774 = vmatpush2.bf16.msra.mxu0 %v2521
    %7775 = vmatprep.mubr.bf16.mxu0 %v7660
    %7776 = vmatmul.mubr.bf16.gmra.mxu0 %v7659
    %v7777 = vpop.f32.mrf.mxu0
    %v7778 = vadd.f32 0.0, %v7777
    %v7779 = vpop.f32.mrf.mxu0
    %v7780 = vadd.f32 0.0, %v7779
    %v7781 = vpop.f32.mrf.mxu0
    %v7782 = vpop.f32.mrf.mxu0
    %7783 = vdwg.mxu0
    %7784 = vmatprep.subr.bf16.mxu0 %v2516
    %7785 = vmatpush1.bf16.msra.mxu0 %v2515
    %7786 = vmatprep.subr.bf16.mxu0 %v2508
    %7787 = vmatpush1.bf16.msra.mxu0 %v2507
    %7788 = vmatprep.subr.bf16.mxu0 %v2500
    %7789 = vmatpush1.bf16.msra.mxu0 %v2499
    %7790 = vmatprep.subr.bf16.mxu0 %v2492
    %7791 = vmatpush1.bf16.msra.mxu0 %v2491
    %7792 = vmatprep.subr.bf16.mxu0 %v2484
    %7793 = vmatpush1.bf16.msra.mxu0 %v2483
    %7794 = vmatprep.subr.bf16.mxu0 %v2476
    %7795 = vmatpush1.bf16.msra.mxu0 %v2475
    %7796 = vmatprep.subr.bf16.mxu0 %v2468
    %7797 = vmatpush1.bf16.msra.mxu0 %v2467
    %7798 = vmatprep.subr.bf16.mxu0 %v2460
    %7799 = vmatpush1.bf16.msra.mxu0 %v2459
    %7800 = vmatprep.subr.bf16.mxu0 %v2580
    %7801 = vmatpush2.bf16.msra.mxu0 %v2579
    %7802 = vmatprep.subr.bf16.mxu0 %v2572
    %7803 = vmatpush2.bf16.msra.mxu0 %v2571
    %7804 = vmatprep.subr.bf16.mxu0 %v2564
    %7805 = vmatpush2.bf16.msra.mxu0 %v2563
    %7806 = vmatprep.subr.bf16.mxu0 %v2556
    %7807 = vmatpush2.bf16.msra.mxu0 %v2555
    %7808 = vmatprep.subr.bf16.mxu0 %v2548
    %7809 = vmatpush2.bf16.msra.mxu0 %v2547
    %7810 = vmatprep.subr.bf16.mxu0 %v2540
    %7811 = vmatpush2.bf16.msra.mxu0 %v2539
    %7812 = vmatprep.subr.bf16.mxu0 %v2532
    %7813 = vmatpush2.bf16.msra.mxu0 %v2531
    %7814 = vmatprep.subr.bf16.mxu0 %v2524
    %7815 = vmatpush2.bf16.msra.mxu0 %v2523
    %7816 = vmatprep.mubr.bf16.mxu0 %v7660
    %7817 = vmatmul.mubr.bf16.gmra.mxu0 %v7659
    %v7818 = vpop.f32.mrf.mxu0
    %v7819 = vadd.f32 0.0, %v7818
    %v7820 = vpop.f32.mrf.mxu0
    %v7821 = vadd.f32 0.0, %v7820
    %v7822 = vpop.f32.mrf.mxu0
    %v7823 = vpop.f32.mrf.mxu0
    %7824 = vdwg.mxu0
    %7825 = vmatprep.subr.bf16.mxu0 %v3314
    %7826 = vmatpush1.bf16.msra.mxu0 %v3313
    %7827 = vmatprep.subr.bf16.mxu0 %v3306
    %7828 = vmatpush1.bf16.msra.mxu0 %v3305
    %7829 = vmatprep.subr.bf16.mxu0 %v3298
    %7830 = vmatpush1.bf16.msra.mxu0 %v3297
    %7831 = vmatprep.subr.bf16.mxu0 %v3290
    %7832 = vmatpush1.bf16.msra.mxu0 %v3289
    %7833 = vmatprep.subr.bf16.mxu0 %v3282
    %7834 = vmatpush1.bf16.msra.mxu0 %v3281
    %7835 = vmatprep.subr.bf16.mxu0 %v3274
    %7836 = vmatpush1.bf16.msra.mxu0 %v3273
    %7837 = vmatprep.subr.bf16.mxu0 %v3266
    %7838 = vmatpush1.bf16.msra.mxu0 %v3265
    %7839 = vmatprep.subr.bf16.mxu0 %v3258
    %7840 = vmatpush1.bf16.msra.mxu0 %v3257
    %7841 = vmatprep.subr.bf16.mxu0 %v3378
    %7842 = vmatpush2.bf16.msra.mxu0 %v3377
    %7843 = vmatprep.subr.bf16.mxu0 %v3370
    %7844 = vmatpush2.bf16.msra.mxu0 %v3369
    %7845 = vmatprep.subr.bf16.mxu0 %v3362
    %7846 = vmatpush2.bf16.msra.mxu0 %v3361
    %7847 = vmatprep.subr.bf16.mxu0 %v3354
    %7848 = vmatpush2.bf16.msra.mxu0 %v3353
    %7849 = vmatprep.subr.bf16.mxu0 %v3346
    %7850 = vmatpush2.bf16.msra.mxu0 %v3345
    %7851 = vmatprep.subr.bf16.mxu0 %v3338
    %7852 = vmatpush2.bf16.msra.mxu0 %v3337
    %7853 = vmatprep.subr.bf16.mxu0 %v3330
    %7854 = vmatpush2.bf16.msra.mxu0 %v3329
    %7855 = vmatprep.subr.bf16.mxu0 %v3322
    %7856 = vmatpush2.bf16.msra.mxu0 %v3321
    %7857 = vmatprep.mubr.bf16.mxu0 %v7658
    %7858 = vmatmul.mubr.bf16.gmra.mxu0 %v7657
    %v7859 = vpop.f32.mrf.mxu0
    %v7860 = vadd.f32 %v7696, %v7859
    %v7861 = vpop.f32.mrf.mxu0
    %v7862 = vadd.f32 %v7698, %v7861
    %v7863 = vpop.f32.mrf.mxu0
    %v7864 = vpop.f32.mrf.mxu0
    %7865 = vdwg.mxu0
    %7866 = vmatprep.subr.bf16.mxu0 %v3316
    %7867 = vmatpush1.bf16.msra.mxu0 %v3315
    %7868 = vmatprep.subr.bf16.mxu0 %v3308
    %7869 = vmatpush1.bf16.msra.mxu0 %v3307
    %7870 = vmatprep.subr.bf16.mxu0 %v3300
    %7871 = vmatpush1.bf16.msra.mxu0 %v3299
    %7872 = vmatprep.subr.bf16.mxu0 %v3292
    %7873 = vmatpush1.bf16.msra.mxu0 %v3291
    %7874 = vmatprep.subr.bf16.mxu0 %v3284
    %7875 = vmatpush1.bf16.msra.mxu0 %v3283
    %7876 = vmatprep.subr.bf16.mxu0 %v3276
    %7877 = vmatpush1.bf16.msra.mxu0 %v3275
    %7878 = vmatprep.subr.bf16.mxu0 %v3268
    %7879 = vmatpush1.bf16.msra.mxu0 %v3267
    %7880 = vmatprep.subr.bf16.mxu0 %v3260
    %7881 = vmatpush1.bf16.msra.mxu0 %v3259
    %7882 = vmatprep.subr.bf16.mxu0 %v3380
    %7883 = vmatpush2.bf16.msra.mxu0 %v3379
    %7884 = vmatprep.subr.bf16.mxu0 %v3372
    %7885 = vmatpush2.bf16.msra.mxu0 %v3371
    %7886 = vmatprep.subr.bf16.mxu0 %v3364
    %7887 = vmatpush2.bf16.msra.mxu0 %v3363
    %7888 = vmatprep.subr.bf16.mxu0 %v3356
    %7889 = vmatpush2.bf16.msra.mxu0 %v3355
    %7890 = vmatprep.subr.bf16.mxu0 %v3348
    %7891 = vmatpush2.bf16.msra.mxu0 %v3347
    %7892 = vmatprep.subr.bf16.mxu0 %v3340
    %7893 = vmatpush2.bf16.msra.mxu0 %v3339
    %7894 = vmatprep.subr.bf16.mxu0 %v3332
    %7895 = vmatpush2.bf16.msra.mxu0 %v3331
    %7896 = vmatprep.subr.bf16.mxu0 %v3324
    %7897 = vmatpush2.bf16.msra.mxu0 %v3323
    %7898 = vmatprep.mubr.bf16.mxu0 %v7658
    %7899 = vmatmul.mubr.bf16.gmra.mxu0 %v7657
    %v7900 = vpop.f32.mrf.mxu0
    %v7901 = vadd.f32 %v7737, %v7900
    %v7902 = vpop.f32.mrf.mxu0
    %v7903 = vadd.f32 %v7739, %v7902
    %v7904 = vpop.f32.mrf.mxu0
    %v7905 = vpop.f32.mrf.mxu0
    %7906 = vdwg.mxu0
    %7907 = vmatprep.subr.bf16.mxu0 %v3318
    %7908 = vmatpush1.bf16.msra.mxu0 %v3317
    %7909 = vmatprep.subr.bf16.mxu0 %v3310
    %7910 = vmatpush1.bf16.msra.mxu0 %v3309
    %7911 = vmatprep.subr.bf16.mxu0 %v3302
    %7912 = vmatpush1.bf16.msra.mxu0 %v3301
    %7913 = vmatprep.subr.bf16.mxu0 %v3294
    %7914 = vmatpush1.bf16.msra.mxu0 %v3293
    %7915 = vmatprep.subr.bf16.mxu0 %v3286
    %7916 = vmatpush1.bf16.msra.mxu0 %v3285
    %7917 = vmatprep.subr.bf16.mxu0 %v3278
    %7918 = vmatpush1.bf16.msra.mxu0 %v3277
    %7919 = vmatprep.subr.bf16.mxu0 %v3270
    %7920 = vmatpush1.bf16.msra.mxu0 %v3269
    %7921 = vmatprep.subr.bf16.mxu0 %v3262
    %7922 = vmatpush1.bf16.msra.mxu0 %v3261
    %7923 = vmatprep.subr.bf16.mxu0 %v3382
    %7924 = vmatpush2.bf16.msra.mxu0 %v3381
    %7925 = vmatprep.subr.bf16.mxu0 %v3374
    %7926 = vmatpush2.bf16.msra.mxu0 %v3373
    %7927 = vmatprep.subr.bf16.mxu0 %v3366
    %7928 = vmatpush2.bf16.msra.mxu0 %v3365
    %7929 = vmatprep.subr.bf16.mxu0 %v3358
    %7930 = vmatpush2.bf16.msra.mxu0 %v3357
    %7931 = vmatprep.subr.bf16.mxu0 %v3350
    %7932 = vmatpush2.bf16.msra.mxu0 %v3349
    %7933 = vmatprep.subr.bf16.mxu0 %v3342
    %7934 = vmatpush2.bf16.msra.mxu0 %v3341
    %7935 = vmatprep.subr.bf16.mxu0 %v3334
    %7936 = vmatpush2.bf16.msra.mxu0 %v3333
    %7937 = vmatprep.subr.bf16.mxu0 %v3326
    %7938 = vmatpush2.bf16.msra.mxu0 %v3325
    %7939 = vmatprep.mubr.bf16.mxu0 %v7658
    %7940 = vmatmul.mubr.bf16.gmra.mxu0 %v7657
    %v7941 = vpop.f32.mrf.mxu0
    %v7942 = vadd.f32 %v7778, %v7941
    %v7943 = vpop.f32.mrf.mxu0
    %v7944 = vadd.f32 %v7780, %v7943
    %v7945 = vpop.f32.mrf.mxu0
    %v7946 = vpop.f32.mrf.mxu0
    %7947 = vdwg.mxu0
    %7948 = vmatprep.subr.bf16.mxu0 %v3320
    %7949 = vmatpush1.bf16.msra.mxu0 %v3319
    %7950 = vmatprep.subr.bf16.mxu0 %v3312
    %7951 = vmatpush1.bf16.msra.mxu0 %v3311
    %7952 = vmatprep.subr.bf16.mxu0 %v3304
    %7953 = vmatpush1.bf16.msra.mxu0 %v3303
    %7954 = vmatprep.subr.bf16.mxu0 %v3296
    %7955 = vmatpush1.bf16.msra.mxu0 %v3295
    %7956 = vmatprep.subr.bf16.mxu0 %v3288
    %7957 = vmatpush1.bf16.msra.mxu0 %v3287
    %7958 = vmatprep.subr.bf16.mxu0 %v3280
    %7959 = vmatpush1.bf16.msra.mxu0 %v3279
    %7960 = vmatprep.subr.bf16.mxu0 %v3272
    %7961 = vmatpush1.bf16.msra.mxu0 %v3271
    %7962 = vmatprep.subr.bf16.mxu0 %v3264
    %7963 = vmatpush1.bf16.msra.mxu0 %v3263
    %7964 = vmatprep.subr.bf16.mxu0 %v3384
    %7965 = vmatpush2.bf16.msra.mxu0 %v3383
    %7966 = vmatprep.subr.bf16.mxu0 %v3376
    %7967 = vmatpush2.bf16.msra.mxu0 %v3375
    %7968 = vmatprep.subr.bf16.mxu0 %v3368
    %7969 = vmatpush2.bf16.msra.mxu0 %v3367
    %7970 = vmatprep.subr.bf16.mxu0 %v3360
    %7971 = vmatpush2.bf16.msra.mxu0 %v3359
    %7972 = vmatprep.subr.bf16.mxu0 %v3352
    %7973 = vmatpush2.bf16.msra.mxu0 %v3351
    %7974 = vmatprep.subr.bf16.mxu0 %v3344
    %7975 = vmatpush2.bf16.msra.mxu0 %v3343
    %7976 = vmatprep.subr.bf16.mxu0 %v3336
    %7977 = vmatpush2.bf16.msra.mxu0 %v3335
    %7978 = vmatprep.subr.bf16.mxu0 %v3328
    %7979 = vmatpush2.bf16.msra.mxu0 %v3327
    %7980 = vmatprep.mubr.bf16.mxu0 %v7658
    %7981 = vmatmul.mubr.bf16.gmra.mxu0 %v7657
    %v7982 = vpop.f32.mrf.mxu0
    %v7983 = vadd.f32 %v7819, %v7982
    %v7984 = vpop.f32.mrf.mxu0
    %v7985 = vadd.f32 %v7821, %v7984
    %v7986 = vpop.f32.mrf.mxu0
    %v7987 = vpop.f32.mrf.mxu0
    %7988 = vdwg.mxu0
    %v7989 = vadd.f32 %v7860, %v764
    %v7990 = vadd.f32 %v7862, %v768
    %v7991 = vadd.f32 %v7901, %v772
    %v7992 = vadd.f32 %v7903, %v776
    %v7993 = vadd.f32 %v7942, %v780
    %v7994 = vadd.f32 %v7944, %v784
    %v7995 = vadd.f32 %v7983, %v788
    %v7996 = vadd.f32 %v7985, %v792
    %v7997 = vxor.u32 %v7989, 2147483648
    %v7998 = vxor.u32 %v7990, 2147483648
    %v7999 = vmul.f32 %v7997, 1.442695
    %v8000 = vpow.pop %v7999
    %v8001 = vmul.f32 %v7998, 1.442695
    %v8002 = vpow.pop %v8001
    %v8003 = vadd.f32 %v8000, 1.0
    %v8004 = vadd.f32 %v8002, 1.0
    %v8005 = vrcp.pop %v8003
    %v8006 = vmul.f32 1.0, %v8005
    %v8007 = vrcp.pop %v8004
    %v8008 = vmul.f32 1.0, %v8007
    %v8009 = vxor.u32 %v7991, 2147483648
    %v8010 = vxor.u32 %v7992, 2147483648
    %v8011 = vmul.f32 %v8009, 1.442695
    %v8012 = vpow.pop %v8011
    %v8013 = vmul.f32 %v8010, 1.442695
    %v8014 = vpow.pop %v8013
    %v8015 = vadd.f32 %v8012, 1.0
    %v8016 = vadd.f32 %v8014, 1.0
    %v8017 = vrcp.pop %v8015
    %v8018 = vmul.f32 1.0, %v8017
    %v8019 = vrcp.pop %v8016
    %v8020 = vmul.f32 1.0, %v8019
    %v8021 = vtanh.pop %v7993
    %v8022 = vtanh.pop %v7994
    %v8023 = vxor.u32 %v7995, 2147483648
    %v8024 = vxor.u32 %v7996, 2147483648
    %v8025 = vmul.f32 %v8023, 1.442695
    %v8026 = vpow.pop %v8025
    %v8027 = vmul.f32 %v8024, 1.442695
    %v8028 = vpow.pop %v8027
    %v8029 = vadd.f32 %v8026, 1.0
    %v8030 = vadd.f32 %v8028, 1.0
    %v8031 = vrcp.pop %v8029
    %v8032 = vmul.f32 1.0, %v8031
    %v8033 = vrcp.pop %v8030
    %v8034 = vmul.f32 1.0, %v8033
    %v8035 = vmul.f32 %v8018, %v7423
    %v8036 = vmul.f32 %v8020, %v7424
    %v8037 = vmul.f32 %v8006, %v8021
    %v8038 = vmul.f32 %v8008, %v8022
    %v8039 = vadd.f32 %v8035, %v8037
    %v8040 = vadd.f32 %v8036, %v8038
    %v8041 = vtanh.pop %v8039
    %v8042 = vtanh.pop %v8040
    %v8043 = vmul.f32 %v8032, %v8041
    %v8044 = vmul.f32 %v8034, %v8042
    %8045 = vst [vmem:[#allocation16] sm:$0xff] %v7655
    %8046 = vst [vmem:[#allocation16 + $0x8] sm:$0xff] %v7656
    %s8047 = scalar_lea.vmem [#allocation16], 16
    %8048 = vst [vmem:[%s8047] sm:$0xff] %v8043
    %8049 = vst [vmem:[%s8047 + $0x8] sm:$0xff] %v8044
    %8050 = vst [vmem:[#allocation18] sm:$0xff] %v7651
    %8051 = vst [vmem:[#allocation18 + $0x8] sm:$0xff] %v7652
    %s8052 = scalar_lea.vmem [#allocation18], 16
    %8053 = vst [vmem:[%s8052] sm:$0xff] %v8039
    %8054 = vst [vmem:[%s8052 + $0x8] sm:$0xff] %v8040
    %v8055 = vld [vmem:[%s7] sm:$0x3]
    %v8057 = vlaneseq
    %v8058 = vshrl.u32 %v8057, 7
    %v8059 = vsub.s32 0, %v8058
    %v8060 = vrot.slane %v8055, %v8059
    %v8061 = vlaneseq
    %v8062 = vshrl.u32 %v8061, 7
    %v8063 = vsub.s32 1, %v8062
    %v8064 = vrot.slane %v8055, %v8063
    %v8067 = vmul.f32 %v8043, %v8060
    %v8068 = vmul.f32 %v8044, %v8064
    %v8069 = vadd.f32 %v8067, %v8068
    %8070 = vadd.xlane.f32.xlu0 %v8069
    %v8071 = vpop.xlane.xlu0 %8070
    %v8072 = vld [vmem:[#allocation3] sm:$0x1]
    %v8074 = vlaneseq
    %v8075 = vshrl.u32 %v8074, 7
    %v8076 = vsub.s32 0, %v8075
    %v8077 = vrot.slane %v8072, %v8076
    %v8079 = vadd.f32 %v8071, %v8077
    %v8080 = vxor.u32 %v8079, 2147483648
    %v8081 = vmul.f32 %v8080, 1.442695
    %v8082 = vpow.pop %v8081
    %v8083 = vadd.f32 %v8082, 1.0
    %v8084 = vrcp.pop %v8083
    %v8085 = vmul.f32 1.0, %v8084
    %8087 = vset.pattern.permute.xlu0 0
    %8088 = vperm.xlu0 %8087, %v8085
    %v8089 = vpop.permute.xlu0 %8088
    %8091 = vst [vmem:[#allocation15] sm:$0xff] %v8089
    // Predicated region
    $region70: #{tpu_custom_call.1} parent=1 // pred_check
      _
    $region71: #{tpu_custom_call.1} parent=1 // pred_check_branch
      %8093 = sbr.rel (0) target = $region73
    $region72: #{tpu_custom_call.1} parent=1 // pred_region
      %s8095 = ssub.s32 128, 128
      %8096 = vsyncadd [#allocation6], %s8095
      %s8098 = sshll.u32 [#allocation15], 4
      %s8099 = int_to_ptr.vmem [resolvable:$true] %s8098
      %8101 = dma.vmem_to_hbm [thread:$0]  %s8099, 128, %s11, [#allocation6]
    $region73: #{tpu_custom_call.1} parent=1 // pred_fallthru
      _
    // Predicated region
    $region74: #{tpu_custom_call.1} parent=1 // pred_check
      _
    $region75: #{tpu_custom_call.1} parent=1 // pred_check_branch
      %8103 = sbr.rel (0) target = $region77
    $region76: #{tpu_custom_call.1} parent=1 // pred_region
      %s8105 = ssub.s32 512, 512
      %8106 = vsyncadd [#allocation17], %s8105
      %s8107 = sshll.u32 [#allocation16], 4
      %s8108 = int_to_ptr.vmem [resolvable:$true] %s8107
      %8113 = dma.vmem_to_hbm [thread:$0]  %s8108, 512, %s12, [#allocation17], 256, 256, 16
    $region77: #{tpu_custom_call.1} parent=1 // pred_fallthru
      _
    // Predicated region
    $region78: #{tpu_custom_call.1} parent=1 // pred_check
      _
    $region79: #{tpu_custom_call.1} parent=1 // pred_check_branch
      %8115 = sbr.rel (0) target = $region81
    $region80: #{tpu_custom_call.1} parent=1 // pred_region
      %s8117 = ssub.s32 512, 512
      %8118 = vsyncadd [#allocation17], %s8117
      %s8119 = sshll.u32 [#allocation18], 4
      %s8120 = int_to_ptr.vmem [resolvable:$true] %s8119
      %8125 = dma.vmem_to_hbm [thread:$0]  %s8120, 512, %s13, [#allocation17], 256, 256, 16
    $region81: #{tpu_custom_call.1} parent=1 // pred_fallthru
      _
    // Predicated region
    $region82: #{tpu_custom_call.1} parent=1 // pred_check
      _
    $region83: #{tpu_custom_call.1} parent=1 // pred_check_branch
      %8127 = sbr.rel (0) target = $region85
    $region84: #{tpu_custom_call.1} parent=1 // pred_region
      %8128 = dma.done [#allocation6], 128
    $region85: #{tpu_custom_call.1} parent=1 // pred_fallthru
      _
    // Predicated region
    $region86: #{tpu_custom_call.1} parent=1 // pred_check
      _
    $region87: #{tpu_custom_call.1} parent=1 // pred_check_branch
      %8130 = sbr.rel (0) target = $region89
    $region88: #{tpu_custom_call.1} parent=1 // pred_region
      %8131 = dma.done [#allocation17], 512
    $region89: #{tpu_custom_call.1} parent=1 // pred_fallthru
      _
    // Predicated region
    $region90: #{tpu_custom_call.1} parent=1 // pred_check
      _
    $region91: #{tpu_custom_call.1} parent=1 // pred_check_branch
      %8133 = sbr.rel (0) target = $region93
    $region92: #{tpu_custom_call.1} parent=1 // pred_region
      %8134 = dma.done [#allocation17], 512
    $region93: #{tpu_custom_call.1} parent=1 // pred_fallthru
      _
    %8135 = vsyncpa [#allocation5], 1
    %8136 = vsyncpa [#allocation8], 1
    %8137 = vsyncpa [#allocation11], 1
    %8138 = vsyncpa [#allocation14], 1
    %8139 = vsyncpa [#allocation6], 1
    %8140 = vsyncpa [#allocation17], 1

</llo_original>
